<compile_context>
chip_gen: v7x
topology: tpu7x:2x2x1
jax: 0.10.0
libtpu: 0.0.40
codegen_flags: <defaults>
</compile_context>

<pallas_src>
import functools

import jax
import jax.numpy as jnp
import numpy as np
from jax import lax
from jax.experimental import pallas as pl
from jax.experimental.pallas import tpu as pltpu

LANE = 128
SUBLANE = 8
TM_MAX = 512


def _round_up(x, m):
    return (x + m - 1) // m * m


def _cdiv(a, b):
    return (a + b - 1) // b


def _vmem_capacity_bytes():
    try:
        return int(pltpu.get_tpu_info().vmem_capacity_bytes)
    except Exception:
        return 64 * 1024 * 1024            # conservative (v7x per-core VMEM)


_VMEM_CAP = _vmem_capacity_bytes()
_VMEM_BUDGET = min(_VMEM_CAP // 2, 48 * 1024 * 1024)
_VMEM_LIMIT = min((_VMEM_CAP * 3) // 4, 96 * 1024 * 1024)


def _compiler_params(**kw):
    cls = getattr(pltpu, "CompilerParams", None) or getattr(pltpu, "TPUCompilerParams", None)
    if cls is None:
        return None
    try:
        return cls(**kw)
    except TypeError:                       # very old API: drop optional kwargs
        kw.pop("vmem_limit_bytes", None)
        return cls(**kw)


def _pad_axis(x, axis, new_size):
    pad = new_size - x.shape[axis]
    if pad <= 0:
        return x
    widths = [(0, 0)] * x.ndim
    widths[axis] = (0, pad)
    return jnp.pad(x, widths)


def _pick_tm(m, row_bytes):
    """Largest M tile under the VMEM budget, but >=2 grid steps (v7x megacore)."""
    tm = TM_MAX
    while tm > 64 and 2 * tm * row_bytes > _VMEM_BUDGET:
        tm //= 2
    if m > 2 * SUBLANE:
        tm = min(tm, _round_up(_cdiv(m, 2), SUBLANE))
    else:
        tm = min(tm, _round_up(max(m, 1), SUBLANE))
    return max(SUBLANE, tm)


# ----------------------------------------------------------------------------
# Stem (4x4 stride-2) convs: im2col + fused matmul / bias / ReLU kernel.
# ----------------------------------------------------------------------------
def _matmul_bias_kernel(x_ref, w_ref, b_ref, o_ref, *, out_relu):
    acc = jnp.dot(x_ref[...], w_ref[...], preferred_element_type=jnp.float32)
    acc = acc + b_ref[...]
    if out_relu:
        acc = jnp.maximum(acc, 0.0)
    o_ref[...] = acc.astype(o_ref.dtype)


def _pallas_conv_matmul(patches_bf16, w2d, bias, *, out_relu):
    m, k = patches_bf16.shape
    n = w2d.shape[1]
    n_pad = _round_up(n, LANE)              # lane-dense output stores
    tm = _pick_tm(m, 2 * k + 6 * n_pad)
    m_pad = _round_up(m, tm)

    p = _pad_axis(patches_bf16, 0, m_pad)
    w = _pad_axis(w2d.astype(jnp.bfloat16), 1, n_pad)
    b = _pad_axis(bias.reshape(1, n).astype(jnp.float32), 1, n_pad)

    out = pl.pallas_call(
        functools.partial(_matmul_bias_kernel, out_relu=out_relu),
        out_shape=jax.ShapeDtypeStruct((m_pad, n_pad), jnp.bfloat16),
        grid=(m_pad // tm,),
        in_specs=[
            pl.BlockSpec((tm, k), lambda i: (i, 0)),       # streamed patch tile
            pl.BlockSpec((k, n_pad), lambda i: (0, 0)),    # resident weight
            pl.BlockSpec((1, n_pad), lambda i: (0, 0)),    # resident bias
        ],
        out_specs=pl.BlockSpec((tm, n_pad), lambda i: (i, 0)),
        compiler_params=_compiler_params(
            dimension_semantics=("parallel",),
            vmem_limit_bytes=_VMEM_LIMIT),
    )(p, w, b)
    return out, m_pad, n_pad


def _im2col(x_nhwc, k, stride, pad):
    """Pure-indexing patch extraction (stem convs only)."""
    n, h, w, c = x_nhwc.shape
    xp = jnp.pad(x_nhwc, ((0, 0), (pad, pad), (pad, pad), (0, 0)))
    oh = (h + 2 * pad - k) // stride + 1
    ow = (w + 2 * pad - k) // stride + 1
    taps = []
    for kh in range(k):
        for kw in range(k):
            taps.append(xp[:, kh: kh + stride * (oh - 1) + 1: stride,
                              kw: kw + stride * (ow - 1) + 1: stride, :])
    patches = jnp.stack(taps, axis=3)       # (N, OH, OW, k*k, C) -> rows (kh,kw,cin)
    return patches.reshape(n * oh * ow, k * k * c), (n, oh, ow)


def _stem_conv(x_nhwc_bf16, w_hwio, b, k, stride, pad, *, out_relu, keep_cpad):
    patches, (n, oh, ow) = _im2col(x_nhwc_bf16, k, stride, pad)
    cout = w_hwio.shape[-1]
    out, _, n_pad = _pallas_conv_matmul(
        patches, w_hwio.reshape(-1, cout), b, out_relu=out_relu)
    m = n * oh * ow
    if keep_cpad:                            # padded channels are exactly zero
        return out[:m].reshape(n, oh, ow, n_pad)
    return out[:m, :cout].reshape(n, oh, ow, cout)


# ----------------------------------------------------------------------------
# 3x3 stride-1 convs on the persistent padded-flat layout (in-VMEM im2col).
# Layout per image: [hf zero rows | (H+2)*(W+2) rows (halo ring) | back zeros],
# channels padded to a multiple of 128 (padded channels stay zero).
# ----------------------------------------------------------------------------
def _flat_geometry(h, w):
    r0 = (h + 2) * (w + 2)                   # real padded-grid rows per image
    rout = _round_up(r0, SUBLANE)            # rows computed per image
    hf = _round_up(w + 3, SUBLANE)           # front zero rows (>= max |tap offset|)
    rp = _round_up(hf + rout + (w + 3), SUBLANE)
    taps = tuple((kh - 1) * (w + 2) + (kw - 1)
                 for kh in range(3) for kw in range(3))
    return r0, rout, hf, rp, taps


def _to_flat(x_nhwc_cp_bf16, hf, rp):
    n, h, w, cp = x_nhwc_cp_bf16.shape
    xp = jnp.pad(x_nhwc_cp_bf16, ((0, 0), (1, 1), (1, 1), (0, 0)))
    a = xp.reshape(n, (h + 2) * (w + 2), cp)
    back = rp - hf - (h + 2) * (w + 2)
    return jnp.pad(a, ((0, 0), (hf, back), (0, 0)))


def _interior_mask(h, w, rout):
    m = np.zeros((rout, 1), np.float32)
    grid = np.pad(np.ones((h, w), np.float32), ((1, 1), (1, 1))).reshape(-1)
    m[: grid.shape[0], 0] = grid
    return jnp.asarray(m)


def _conv3x3_flat_kernel(x_ref, w_ref, b_ref, mask_ref, o_ref, *,
                         taps, hf, rout, out_relu):
    rp, cp = o_ref.shape
    acc = None
    for k, d in enumerate(taps):             # unrolled 9-tap in-VMEM im2col
        xs = x_ref[hf + d: hf + d + rout, :]
        part = jnp.dot(xs, w_ref[k], preferred_element_type=jnp.float32)
        acc = part if acc is None else acc + part
    acc = acc + b_ref[...]
    if out_relu:
        acc = jnp.maximum(acc, 0.0)
    acc = acc * mask_ref[...]                # keep halo ring / junk rows at zero
    o_ref[0:hf, :] = jnp.zeros((hf, cp), o_ref.dtype)
    o_ref[hf:hf + rout, :] = acc.astype(o_ref.dtype)
    o_ref[hf + rout:rp, :] = jnp.zeros((rp - hf - rout, cp), o_ref.dtype)


def _residual3x3_flat_kernel(x_ref, w3_ref, w1_ref, mask_ref, o_ref, *,
                             taps, hf, rout, out_relu):
    rp, cp = o_ref.shape
    h = None
    for k, d in enumerate(taps):             # relu(x) -> 3x3 conv (9 taps)
        xs = jnp.maximum(x_ref[hf + d: hf + d + rout, :], 0)
        part = jnp.dot(xs, w3_ref[k], preferred_element_type=jnp.float32)
        h = part if h is None else h + part
    h = jnp.maximum(h, 0.0).astype(jnp.bfloat16)      # relu, `h` never leaves VMEM
    xres = x_ref[hf:hf + rout, :].astype(jnp.float32)
    out = xres + jnp.dot(h, w1_ref[...], preferred_element_type=jnp.float32)
    if out_relu:                                      # fused stack-final F.relu
        out = jnp.maximum(out, 0.0)
    out = out * mask_ref[...]
    o_ref[0:hf, :] = jnp.zeros((hf, cp), o_ref.dtype)
    o_ref[hf:hf + rout, :] = out.astype(o_ref.dtype)
    o_ref[hf + rout:rp, :] = jnp.zeros((rp - hf - rout, cp), o_ref.dtype)


def _pallas_conv3_flat(a, w_hwio, bias, mask, geo, *, out_relu):
    _, rout, hf, rp, taps = geo
    n, _, cp = a.shape
    c_in, c_out = w_hwio.shape[2], w_hwio.shape[3]
    w = jnp.pad(w_hwio.astype(jnp.bfloat16),
                ((0, 0), (0, 0), (0, cp - c_in), (0, cp - c_out))).reshape(9, cp, cp)
    b = _pad_axis(bias.reshape(1, c_out).astype(jnp.float32), 1, cp)
    return pl.pallas_call(
        functools.partial(_conv3x3_flat_kernel, taps=taps, hf=hf, rout=rout,
                          out_relu=out_relu),
        out_shape=jax.ShapeDtypeStruct((n, rp, cp), jnp.bfloat16),
        grid=(n,),
        in_specs=[
            pl.BlockSpec((None, rp, cp), lambda i: (i, 0, 0)),   # one image / step
            pl.BlockSpec((9, cp, cp), lambda i: (0, 0, 0)),      # resident weights
            pl.BlockSpec((1, cp), lambda i: (0, 0)),             # resident bias
            pl.BlockSpec((rout, 1), lambda i: (0, 0)),           # resident mask
        ],
        out_specs=pl.BlockSpec((None, rp, cp), lambda i: (i, 0, 0)),
        compiler_params=_compiler_params(dimension_semantics=("parallel",),
                                         vmem_limit_bytes=_VMEM_LIMIT),
    )(a, w, b, mask)


def _pallas_residual_flat(a, w3_hwio, w1_2d, mask, geo, *, out_relu):
    _, rout, hf, rp, taps = geo
    n, _, cp = a.shape
    c_in, rh = w3_hwio.shape[2], w3_hwio.shape[3]
    rh_pad = _round_up(rh, 16)               # bf16 packing granularity only
    w3 = jnp.pad(w3_hwio.astype(jnp.bfloat16),
                 ((0, 0), (0, 0), (0, cp - c_in), (0, rh_pad - rh))).reshape(9, cp, rh_pad)
    w1 = jnp.pad(w1_2d.astype(jnp.bfloat16),
                 ((0, rh_pad - rh), (0, cp - w1_2d.shape[1])))
    return pl.pallas_call(
        functools.partial(_residual3x3_flat_kernel, taps=taps, hf=hf, rout=rout,
                          out_relu=out_relu),
        out_shape=jax.ShapeDtypeStruct((n, rp, cp), jnp.bfloat16),
        grid=(n,),
        in_specs=[
            pl.BlockSpec((None, rp, cp), lambda i: (i, 0, 0)),
            pl.BlockSpec((9, cp, rh_pad), lambda i: (0, 0, 0)),
            pl.BlockSpec((rh_pad, cp), lambda i: (0, 0)),
            pl.BlockSpec((rout, 1), lambda i: (0, 0)),
        ],
        out_specs=pl.BlockSpec((None, rp, cp), lambda i: (i, 0, 0)),
        compiler_params=_compiler_params(dimension_semantics=("parallel",),
                                         vmem_limit_bytes=_VMEM_LIMIT),
    )(a, w3, w1, mask)


# ----------------------------------------------------------------------------
# Encoder forward
# ----------------------------------------------------------------------------
def encoder_forward(x_nchw, params, num_residual_layers):
    x = jnp.transpose(x_nchw, (0, 2, 3, 1)).astype(jnp.bfloat16)   # NCHW -> NHWC

    # Stem: conv 4x4/2 + relu, conv 4x4/2 + relu.
    x = _stem_conv(x, params["w1"], params["b1"], 4, 2, 1,
                   out_relu=True, keep_cpad=False)
    x = _stem_conv(x, params["w2"], params["b2"], 4, 2, 1,
                   out_relu=True, keep_cpad=True)     # keep 128-lane channel pad

    n, h, w, _ = x.shape
    c = params["w3"].shape[-1]                        # num_hiddens
    geo = _flat_geometry(h, w)
    r0, _, hf, _, _ = geo
    mask = _interior_mask(h, w, geo[1])
    a = _to_flat(x, hf, geo[3])                       # persistent layout, built once

    # conv_3 (3x3 stride 1); fuses the stack-final relu if there are no
    # residual layers.
    a = _pallas_conv3_flat(a, params["w3"], params["b3"], mask, geo,
                           out_relu=(num_residual_layers == 0))

    # Residual stack: one fused pallas_call per layer; activation stays in the
    # padded flat bf16 layout for the whole loop.
    for i in range(num_residual_layers):
        rh = params[f"res{i}_w3"].shape[-1]
        a = _pallas_residual_flat(
            a, params[f"res{i}_w3"], params[f"res{i}_w1"].reshape(rh, c),
            mask, geo, out_relu=(i == num_residual_layers - 1))

    # Slice the interior once at the end: flat -> NHWC -> NCHW (f32).
    core = a[:, hf: hf + r0, :c].reshape(n, h + 2, w + 2, c)[:, 1:h + 1, 1:w + 1, :]
    return jnp.transpose(core, (0, 3, 1, 2)).astype(jnp.float32)


# ----------------------------------------------------------------------------
# Pure-JAX references (f32 = exact PyTorch semantics; bf16 = matmul-matched)
# ----------------------------------------------------------------------------
def _ref_conv(x, w_hwio, b, stride, pad, *, bf16):
    if bf16:
        x = x.astype(jnp.bfloat16)
        w_hwio = w_hwio.astype(jnp.bfloat16)
    out = lax.conv_general_dilated(
        x, w_hwio, (stride, stride), ((pad, pad), (pad, pad)),
        dimension_numbers=("NHWC", "HWIO", "NHWC"),
        preferred_element_type=jnp.float32)
    return out + b.reshape(1, 1, 1, -1)


def encoder_reference(x_nchw, params, num_residual_layers, *, bf16):
    x = jnp.transpose(x_nchw, (0, 2, 3, 1)).astype(jnp.float32)
    x = jax.nn.relu(_ref_conv(x, params["w1"], params["b1"], 2, 1, bf16=bf16))
    x = jax.nn.relu(_ref_conv(x, params["w2"], params["b2"], 2, 1, bf16=bf16))
    x = _ref_conv(x, params["w3"], params["b3"], 1, 1, bf16=bf16)
    zero_c = jnp.zeros((x.shape[-1],), jnp.float32)
    for i in range(num_residual_layers):
        zero_rh = jnp.zeros((params[f"res{i}_w3"].shape[-1],), jnp.float32)
        h = jax.nn.relu(_ref_conv(jax.nn.relu(x), params[f"res{i}_w3"],
                                  zero_rh, 1, 1, bf16=bf16))
        x = x + _ref_conv(h, params[f"res{i}_w1"], zero_c, 1, 0, bf16=bf16)
    x = jax.nn.relu(x)
    return jnp.transpose(x, (0, 3, 1, 2))


# ----------------------------------------------------------------------------
# Deterministic parameter init (PyTorch default-init-style uniform bounds)
# ----------------------------------------------------------------------------
def init_params(key, in_channels, num_hiddens, num_residual_layers, num_residual_hiddens):
    params = {}

    def conv_init(k_, ksz, cin, cout, bias):
        kw_, kb_ = jax.random.split(k_)
        bound = 1.0 / np.sqrt(cin * ksz * ksz)
        w = jax.random.uniform(kw_, (ksz, ksz, cin, cout), jnp.float32, -bound, bound)
        b = (jax.random.uniform(kb_, (cout,), jnp.float32, -bound, bound)
             if bias else jnp.zeros((cout,), jnp.float32))
        return w, b

    keys = jax.random.split(key, 3 + 2 * num_residual_layers)
    params["w1"], params["b1"] = conv_init(keys[0], 4, in_channels, num_hiddens // 2, True)
    params["w2"], params["b2"] = conv_init(keys[1], 4, num_hiddens // 2, num_hiddens, True)
    params["w3"], params["b3"] = conv_init(keys[2], 3, num_hiddens, num_hiddens, True)
    for i in range(num_residual_layers):
        params[f"res{i}_w3"], _ = conv_init(keys[3 + 2 * i], 3, num_hiddens,
                                            num_residual_hiddens, False)
        params[f"res{i}_w1"], _ = conv_init(keys[4 + 2 * i], 1, num_residual_hiddens,
                                            num_hiddens, False)
    return params


if __name__ == "__main__":
    # Small but non-degenerate: multi-step stem grids, lane/channel padding,
    # 4-image parallel batch grid for the 3x3 kernels (spatial 30 -> 15 -> 7).
    batch, in_channels, spatial = 4, 3, 30
    num_hiddens, num_residual_layers, num_residual_hiddens = 64, 2, 32

    key = jax.random.PRNGKey(0)
    k_x, k_p = jax.random.split(key)
    x = jax.random.normal(k_x, (batch, in_channels, spatial, spatial), jnp.float32)
    params = init_params(k_p, in_channels, num_hiddens,
                         num_residual_layers, num_residual_hiddens)

    fwd = jax.jit(encoder_forward, static_argnums=2)
    out = jax.block_until_ready(fwd(x, params, num_residual_layers))

    ref_bf16 = jax.block_until_ready(
        encoder_reference(x, params, num_residual_layers, bf16=True))
    ref_f32 = jax.block_until_ready(
        encoder_reference(x, params, num_residual_layers, bf16=False))

    assert out.shape == ref_f32.shape, (out.shape, ref_f32.shape)
    # Check vs a reference using the same bf16-input / f32-accum matmuls.
    np.testing.assert_allclose(np.asarray(out), np.asarray(ref_bf16),
                               rtol=2e-2, atol=2e-2)
    # Loose check vs the exact f32 (PyTorch-semantics) reference; the gap is the
    # expected bf16 quantization of MXU inputs and the bf16 activation carry.
    np.testing.assert_allclose(np.asarray(out), np.asarray(ref_f32),
                               rtol=6e-2, atol=6e-2)

    print("KERNEL_OK")
</pallas_src>

<mosaic_0001>
module attributes {stable_mosaic.version = 11 : i64} {
  func.func @_matmul_bias_kernel(%arg0: i32, %arg1: memref<456x48xbf16, #tpu.memory_space<vmem>>, %arg2: memref<48x128xbf16, #tpu.memory_space<vmem>>, %arg3: memref<1x128xf32, #tpu.memory_space<vmem>>, %arg4: memref<456x128xbf16, #tpu.memory_space<vmem>>) attributes {dimension_semantics = [#tpu.dimension_semantics<parallel>], iteration_bounds = array<i64: 2>, scalar_prefetch = 0 : i64, scratch_operands = 0 : i64, tpu.core_type = #tpu.core_type<tc>, window_params = [{transform_indices = @transform_0, window_bounds = array<i64: 456, 48>}, {pipeline_mode = #tpu.pipeline_mode<synchronous>, transform_indices = @transform_1, window_bounds = array<i64: 48, 128>}, {pipeline_mode = #tpu.pipeline_mode<synchronous>, transform_indices = @transform_2, window_bounds = array<i64: 1, 128>}, {transform_indices = @transform_3, window_bounds = array<i64: 456, 128>}]} {
    %c0 = arith.constant 0 : index
    %c0_0 = arith.constant 0 : index
    %0 = vector.load %arg1[%c0, %c0_0] : memref<456x48xbf16, #tpu.memory_space<vmem>>, vector<456x48xbf16>
    %c0_1 = arith.constant 0 : index
    %c0_2 = arith.constant 0 : index
    %1 = vector.load %arg2[%c0_1, %c0_2] : memref<48x128xbf16, #tpu.memory_space<vmem>>, vector<48x128xbf16>
    %cst = arith.constant dense<0.000000e+00> : vector<456x128xf32>
    %2 = tpu.matmul %0, %1, %cst {dimension_numbers = #tpu.dot_dimension_numbers<[1], [0], [0], [1], [0, 0, 1, 1], [], []>} : vector<456x48xbf16>, vector<48x128xbf16>, vector<456x128xf32> -> vector<456x128xf32>
    %c0_3 = arith.constant 0 : index
    %c0_4 = arith.constant 0 : index
    %3 = vector.load %arg3[%c0_3, %c0_4] : memref<1x128xf32, #tpu.memory_space<vmem>>, vector<1x128xf32>
    %4 = vector.broadcast %3 : vector<1x128xf32> to vector<456x128xf32>
    %5 = arith.addf %2, %4 : vector<456x128xf32>
    %cst_5 = arith.constant 0.000000e+00 : f32
    %6 = vector.broadcast %cst_5 : f32 to vector<456x128xf32>
    %7 = arith.maximumf %5, %6 : vector<456x128xf32>
    %8 = arith.truncf %7 : vector<456x128xf32> to vector<456x128xbf16>
    %c0_6 = arith.constant 0 : index
    %c0_7 = arith.constant 0 : index
    %9 = vector.load %arg4[%c0_6, %c0_7] : memref<456x128xbf16, #tpu.memory_space<vmem>>, vector<456x128xbf16>
    tpu.vector_store %arg4[%c0_6, %c0_7], %8 {strides = array<i32>} : memref<456x128xbf16, #tpu.memory_space<vmem>>, vector<456x128xbf16>,
    return
  }
  func.func @transform_0(%arg0: i32) -> (i32, i32) {
    %c0_i32 = arith.constant 0 : i32
    %c0_i32_0 = arith.constant 0 : i32
    return %arg0, %c0_i32 : i32, i32
  }
  func.func @transform_1(%arg0: i32) -> (i32, i32) {
    %c0_i32 = arith.constant 0 : i32
    %c0_i32_0 = arith.constant 0 : i32
    %c0_i32_1 = arith.constant 0 : i32
    return %c0_i32, %c0_i32_0 : i32, i32
  }
  func.func @transform_2(%arg0: i32) -> (i32, i32) {
    %c0_i32 = arith.constant 0 : i32
    %c0_i32_0 = arith.constant 0 : i32
    %c0_i32_1 = arith.constant 0 : i32
    return %c0_i32, %c0_i32_0 : i32, i32
  }
  func.func @transform_3(%arg0: i32) -> (i32, i32) {
    %c0_i32 = arith.constant 0 : i32
    %c0_i32_0 = arith.constant 0 : i32
    return %arg0, %c0_i32 : i32, i32
  }
}

module attributes {stable_mosaic.version = 11 : i64} {
  func.func @_matmul_bias_kernel(%arg0: i32, %arg1: memref<104x512xbf16, #tpu.memory_space<vmem>>, %arg2: memref<512x128xbf16, #tpu.memory_space<vmem>>, %arg3: memref<1x128xf32, #tpu.memory_space<vmem>>, %arg4: memref<104x128xbf16, #tpu.memory_space<vmem>>) attributes {dimension_semantics = [#tpu.dimension_semantics<parallel>], iteration_bounds = array<i64: 2>, scalar_prefetch = 0 : i64, scratch_operands = 0 : i64, tpu.core_type = #tpu.core_type<tc>, window_params = [{transform_indices = @transform_0, window_bounds = array<i64: 104, 512>}, {pipeline_mode = #tpu.pipeline_mode<synchronous>, transform_indices = @transform_1, window_bounds = array<i64: 512, 128>}, {pipeline_mode = #tpu.pipeline_mode<synchronous>, transform_indices = @transform_2, window_bounds = array<i64: 1, 128>}, {transform_indices = @transform_3, window_bounds = array<i64: 104, 128>}]} {
    %c0 = arith.constant 0 : index
    %c0_0 = arith.constant 0 : index
    %0 = vector.load %arg1[%c0, %c0_0] : memref<104x512xbf16, #tpu.memory_space<vmem>>, vector<104x512xbf16>
    %c0_1 = arith.constant 0 : index
    %c0_2 = arith.constant 0 : index
    %1 = vector.load %arg2[%c0_1, %c0_2] : memref<512x128xbf16, #tpu.memory_space<vmem>>, vector<512x128xbf16>
    %cst = arith.constant dense<0.000000e+00> : vector<104x128xf32>
    %2 = tpu.matmul %0, %1, %cst {dimension_numbers = #tpu.dot_dimension_numbers<[1], [0], [0], [1], [0, 0, 1, 1], [], []>} : vector<104x512xbf16>, vector<512x128xbf16>, vector<104x128xf32> -> vector<104x128xf32>
    %c0_3 = arith.constant 0 : index
    %c0_4 = arith.constant 0 : index
    %3 = vector.load %arg3[%c0_3, %c0_4] : memref<1x128xf32, #tpu.memory_space<vmem>>, vector<1x128xf32>
    %4 = vector.broadcast %3 : vector<1x128xf32> to vector<104x128xf32>
    %5 = arith.addf %2, %4 : vector<104x128xf32>
    %cst_5 = arith.constant 0.000000e+00 : f32
    %6 = vector.broadcast %cst_5 : f32 to vector<104x128xf32>
    %7 = arith.maximumf %5, %6 : vector<104x128xf32>
    %8 = arith.truncf %7 : vector<104x128xf32> to vector<104x128xbf16>
    %c0_6 = arith.constant 0 : index
    %c0_7 = arith.constant 0 : index
    %9 = vector.load %arg4[%c0_6, %c0_7] : memref<104x128xbf16, #tpu.memory_space<vmem>>, vector<104x128xbf16>
    tpu.vector_store %arg4[%c0_6, %c0_7], %8 {strides = array<i32>} : memref<104x128xbf16, #tpu.memory_space<vmem>>, vector<104x128xbf16>,
    return
  }
  func.func @transform_0(%arg0: i32) -> (i32, i32) {
    %c0_i32 = arith.constant 0 : i32
    %c0_i32_0 = arith.constant 0 : i32
    return %arg0, %c0_i32 : i32, i32
  }
  func.func @transform_1(%arg0: i32) -> (i32, i32) {
    %c0_i32 = arith.constant 0 : i32
    %c0_i32_0 = arith.constant 0 : i32
    %c0_i32_1 = arith.constant 0 : i32
    return %c0_i32, %c0_i32_0 : i32, i32
  }
  func.func @transform_2(%arg0: i32) -> (i32, i32) {
    %c0_i32 = arith.constant 0 : i32
    %c0_i32_0 = arith.constant 0 : i32
    %c0_i32_1 = arith.constant 0 : i32
    return %c0_i32, %c0_i32_0 : i32, i32
  }
  func.func @transform_3(%arg0: i32) -> (i32, i32) {
    %c0_i32 = arith.constant 0 : i32
    %c0_i32_0 = arith.constant 0 : i32
    return %arg0, %c0_i32 : i32, i32
  }
}

module attributes {stable_mosaic.version = 11 : i64} {
  func.func @_conv3x3_flat_kernel(%arg0: i32, %arg1: memref<1x120x128xbf16, #tpu.memory_space<vmem>>, %arg2: memref<9x128x128xbf16, #tpu.memory_space<vmem>>, %arg3: memref<1x128xf32, #tpu.memory_space<vmem>>, %arg4: memref<88x1xf32, #tpu.memory_space<vmem>>, %arg5: memref<1x120x128xbf16, #tpu.memory_space<vmem>>) attributes {dimension_semantics = [#tpu.dimension_semantics<parallel>], iteration_bounds = array<i64: 4>, scalar_prefetch = 0 : i64, scratch_operands = 0 : i64, tpu.core_type = #tpu.core_type<tc>, window_params = [{transform_indices = @transform_0, window_bounds = array<i64: 1, 120, 128>}, {pipeline_mode = #tpu.pipeline_mode<synchronous>, transform_indices = @transform_1, window_bounds = array<i64: 9, 128, 128>}, {pipeline_mode = #tpu.pipeline_mode<synchronous>, transform_indices = @transform_2, window_bounds = array<i64: 1, 128>}, {pipeline_mode = #tpu.pipeline_mode<synchronous>, transform_indices = @transform_3, window_bounds = array<i64: 88, 1>}, {transform_indices = @transform_4, window_bounds = array<i64: 1, 120, 128>}]} {
    %c0 = arith.constant 0 : index
    %c6 = arith.constant 6 : index
    %c0_0 = arith.constant 0 : index
    %0 = vector.load %arg1[%c0, %c6, %c0_0] : memref<1x120x128xbf16, #tpu.memory_space<vmem>>, vector<1x88x128xbf16>
    %1 = vector.shape_cast %0 : vector<1x88x128xbf16> to vector<88x128xbf16>
    %c0_1 = arith.constant 0 : index
    %c0_2 = arith.constant 0 : index
    %c0_3 = arith.constant 0 : index
    %2 = vector.load %arg2[%c0_1, %c0_2, %c0_3] : memref<9x128x128xbf16, #tpu.memory_space<vmem>>, vector<1x128x128xbf16>
    %3 = vector.shape_cast %2 : vector<1x128x128xbf16> to vector<128x128xbf16>
    %cst = arith.constant dense<0.000000e+00> : vector<88x128xf32>
    %4 = tpu.matmul %1, %3, %cst {dimension_numbers = #tpu.dot_dimension_numbers<[1], [0], [0], [1], [0, 0, 1, 1], [], []>} : vector<88x128xbf16>, vector<128x128xbf16>, vector<88x128xf32> -> vector<88x128xf32>
    %c0_4 = arith.constant 0 : index
    %c7 = arith.constant 7 : index
    %c0_5 = arith.constant 0 : index
    %5 = vector.load %arg1[%c0_4, %c7, %c0_5] : memref<1x120x128xbf16, #tpu.memory_space<vmem>>, vector<1x88x128xbf16>
    %6 = vector.shape_cast %5 : vector<1x88x128xbf16> to vector<88x128xbf16>
    %c1 = arith.constant 1 : index
    %c0_6 = arith.constant 0 : index
    %c0_7 = arith.constant 0 : index
    %7 = vector.load %arg2[%c1, %c0_6, %c0_7] : memref<9x128x128xbf16, #tpu.memory_space<vmem>>, vector<1x128x128xbf16>
    %8 = vector.shape_cast %7 : vector<1x128x128xbf16> to vector<128x128xbf16>
    %cst_8 = arith.constant dense<0.000000e+00> : vector<88x128xf32>
    %9 = tpu.matmul %6, %8, %cst_8 {dimension_numbers = #tpu.dot_dimension_numbers<[1], [0], [0], [1], [0, 0, 1, 1], [], []>} : vector<88x128xbf16>, vector<128x128xbf16>, vector<88x128xf32> -> vector<88x128xf32>
    %10 = arith.addf %4, %9 : vector<88x128xf32>
    %c0_9 = arith.constant 0 : index
    %c8 = arith.constant 8 : index
    %c0_10 = arith.constant 0 : index
    %11 = vector.load %arg1[%c0_9, %c8, %c0_10] : memref<1x120x128xbf16, #tpu.memory_space<vmem>>, vector<1x88x128xbf16>
    %12 = vector.shape_cast %11 : vector<1x88x128xbf16> to vector<88x128xbf16>
    %c2 = arith.constant 2 : index
    %c0_11 = arith.constant 0 : index
    %c0_12 = arith.constant 0 : index
    %13 = vector.load %arg2[%c2, %c0_11, %c0_12] : memref<9x128x128xbf16, #tpu.memory_space<vmem>>, vector<1x128x128xbf16>
    %14 = vector.shape_cast %13 : vector<1x128x128xbf16> to vector<128x128xbf16>
    %cst_13 = arith.constant dense<0.000000e+00> : vector<88x128xf32>
    %15 = tpu.matmul %12, %14, %cst_13 {dimension_numbers = #tpu.dot_dimension_numbers<[1], [0], [0], [1], [0, 0, 1, 1], [], []>} : vector<88x128xbf16>, vector<128x128xbf16>, vector<88x128xf32> -> vector<88x128xf32>
    %16 = arith.addf %10, %15 : vector<88x128xf32>
    %c0_14 = arith.constant 0 : index
    %c15 = arith.constant 15 : index
    %c0_15 = arith.constant 0 : index
    %17 = vector.load %arg1[%c0_14, %c15, %c0_15] : memref<1x120x128xbf16, #tpu.memory_space<vmem>>, vector<1x88x128xbf16>
    %18 = vector.shape_cast %17 : vector<1x88x128xbf16> to vector<88x128xbf16>
    %c3 = arith.constant 3 : index
    %c0_16 = arith.constant 0 : index
    %c0_17 = arith.constant 0 : index
    %19 = vector.load %arg2[%c3, %c0_16, %c0_17] : memref<9x128x128xbf16, #tpu.memory_space<vmem>>, vector<1x128x128xbf16>
    %20 = vector.shape_cast %19 : vector<1x128x128xbf16> to vector<128x128xbf16>
    %cst_18 = arith.constant dense<0.000000e+00> : vector<88x128xf32>
    %21 = tpu.matmul %18, %20, %cst_18 {dimension_numbers = #tpu.dot_dimension_numbers<[1], [0], [0], [1], [0, 0, 1, 1], [], []>} : vector<88x128xbf16>, vector<128x128xbf16>, vector<88x128xf32> -> vector<88x128xf32>
    %22 = arith.addf %16, %21 : vector<88x128xf32>
    %c0_19 = arith.constant 0 : index
    %c16 = arith.constant 16 : index
    %c0_20 = arith.constant 0 : index
    %23 = vector.load %arg1[%c0_19, %c16, %c0_20] : memref<1x120x128xbf16, #tpu.memory_space<vmem>>, vector<1x88x128xbf16>
    %24 = vector.shape_cast %23 : vector<1x88x128xbf16> to vector<88x128xbf16>
    %c4 = arith.constant 4 : index
    %c0_21 = arith.constant 0 : index
    %c0_22 = arith.constant 0 : index
    %25 = vector.load %arg2[%c4, %c0_21, %c0_22] : memref<9x128x128xbf16, #tpu.memory_space<vmem>>, vector<1x128x128xbf16>
    %26 = vector.shape_cast %25 : vector<1x128x128xbf16> to vector<128x128xbf16>
    %cst_23 = arith.constant dense<0.000000e+00> : vector<88x128xf32>
    %27 = tpu.matmul %24, %26, %cst_23 {dimension_numbers = #tpu.dot_dimension_numbers<[1], [0], [0], [1], [0, 0, 1, 1], [], []>} : vector<88x128xbf16>, vector<128x128xbf16>, vector<88x128xf32> -> vector<88x128xf32>
    %28 = arith.addf %22, %27 : vector<88x128xf32>
    %c0_24 = arith.constant 0 : index
    %c17 = arith.constant 17 : index
    %c0_25 = arith.constant 0 : index
    %29 = vector.load %arg1[%c0_24, %c17, %c0_25] : memref<1x120x128xbf16, #tpu.memory_space<vmem>>, vector<1x88x128xbf16>
    %30 = vector.shape_cast %29 : vector<1x88x128xbf16> to vector<88x128xbf16>
    %c5 = arith.constant 5 : index
    %c0_26 = arith.constant 0 : index
    %c0_27 = arith.constant 0 : index
    %31 = vector.load %arg2[%c5, %c0_26, %c0_27] : memref<9x128x128xbf16, #tpu.memory_space<vmem>>, vector<1x128x128xbf16>
    %32 = vector.shape_cast %31 : vector<1x128x128xbf16> to vector<128x128xbf16>
    %cst_28 = arith.constant dense<0.000000e+00> : vector<88x128xf32>
    %33 = tpu.matmul %30, %32, %cst_28 {dimension_numbers = #tpu.dot_dimension_numbers<[1], [0], [0], [1], [0, 0, 1, 1], [], []>} : vector<88x128xbf16>, vector<128x128xbf16>, vector<88x128xf32> -> vector<88x128xf32>
    %34 = arith.addf %28, %33 : vector<88x128xf32>
    %c0_29 = arith.constant 0 : index
    %c24 = arith.constant 24 : index
    %c0_30 = arith.constant 0 : index
    %35 = vector.load %arg1[%c0_29, %c24, %c0_30] : memref<1x120x128xbf16, #tpu.memory_space<vmem>>, vector<1x88x128xbf16>
    %36 = vector.shape_cast %35 : vector<1x88x128xbf16> to vector<88x128xbf16>
    %c6_31 = arith.constant 6 : index
    %c0_32 = arith.constant 0 : index
    %c0_33 = arith.constant 0 : index
    %37 = vector.load %arg2[%c6_31, %c0_32, %c0_33] : memref<9x128x128xbf16, #tpu.memory_space<vmem>>, vector<1x128x128xbf16>
    %38 = vector.shape_cast %37 : vector<1x128x128xbf16> to vector<128x128xbf16>
    %cst_34 = arith.constant dense<0.000000e+00> : vector<88x128xf32>
    %39 = tpu.matmul %36, %38, %cst_34 {dimension_numbers = #tpu.dot_dimension_numbers<[1], [0], [0], [1], [0, 0, 1, 1], [], []>} : vector<88x128xbf16>, vector<128x128xbf16>, vector<88x128xf32> -> vector<88x128xf32>
    %40 = arith.addf %34, %39 : vector<88x128xf32>
    %c0_35 = arith.constant 0 : index
    %c25 = arith.constant 25 : index
    %c0_36 = arith.constant 0 : index
    %41 = vector.load %arg1[%c0_35, %c25, %c0_36] : memref<1x120x128xbf16, #tpu.memory_space<vmem>>, vector<1x88x128xbf16>
    %42 = vector.shape_cast %41 : vector<1x88x128xbf16> to vector<88x128xbf16>
    %c7_37 = arith.constant 7 : index
    %c0_38 = arith.constant 0 : index
    %c0_39 = arith.constant 0 : index
    %43 = vector.load %arg2[%c7_37, %c0_38, %c0_39] : memref<9x128x128xbf16, #tpu.memory_space<vmem>>, vector<1x128x128xbf16>
    %44 = vector.shape_cast %43 : vector<1x128x128xbf16> to vector<128x128xbf16>
    %cst_40 = arith.constant dense<0.000000e+00> : vector<88x128xf32>
    %45 = tpu.matmul %42, %44, %cst_40 {dimension_numbers = #tpu.dot_dimension_numbers<[1], [0], [0], [1], [0, 0, 1, 1], [], []>} : vector<88x128xbf16>, vector<128x128xbf16>, vector<88x128xf32> -> vector<88x128xf32>
    %46 = arith.addf %40, %45 : vector<88x128xf32>
    %c0_41 = arith.constant 0 : index
    %c26 = arith.constant 26 : index
    %c0_42 = arith.constant 0 : index
    %47 = vector.load %arg1[%c0_41, %c26, %c0_42] : memref<1x120x128xbf16, #tpu.memory_space<vmem>>, vector<1x88x128xbf16>
    %48 = vector.shape_cast %47 : vector<1x88x128xbf16> to vector<88x128xbf16>
    %c8_43 = arith.constant 8 : index
    %c0_44 = arith.constant 0 : index
    %c0_45 = arith.constant 0 : index
    %49 = vector.load %arg2[%c8_43, %c0_44, %c0_45] : memref<9x128x128xbf16, #tpu.memory_space<vmem>>, vector<1x128x128xbf16>
    %50 = vector.shape_cast %49 : vector<1x128x128xbf16> to vector<128x128xbf16>
    %cst_46 = arith.constant dense<0.000000e+00> : vector<88x128xf32>
    %51 = tpu.matmul %48, %50, %cst_46 {dimension_numbers = #tpu.dot_dimension_numbers<[1], [0], [0], [1], [0, 0, 1, 1], [], []>} : vector<88x128xbf16>, vector<128x128xbf16>, vector<88x128xf32> -> vector<88x128xf32>
    %52 = arith.addf %46, %51 : vector<88x128xf32>
    %c0_47 = arith.constant 0 : index
    %c0_48 = arith.constant 0 : index
    %53 = vector.load %arg3[%c0_47, %c0_48] : memref<1x128xf32, #tpu.memory_space<vmem>>, vector<1x128xf32>
    %54 = vector.broadcast %53 : vector<1x128xf32> to vector<88x128xf32>
    %55 = arith.addf %52, %54 : vector<88x128xf32>
    %c0_49 = arith.constant 0 : index
    %c0_50 = arith.constant 0 : index
    %56 = vector.load %arg4[%c0_49, %c0_50] : memref<88x1xf32, #tpu.memory_space<vmem>>, vector<88x1xf32>
    %57 = vector.broadcast %56 : vector<88x1xf32> to vector<88x128xf32>
    %58 = arith.mulf %55, %57 : vector<88x128xf32>
    %cst_51 = arith.constant 0.000000e+00 : bf16
    %59 = vector.broadcast %cst_51 : bf16 to vector<16x128xbf16>
    %c0_52 = arith.constant 0 : index
    %c0_53 = arith.constant 0 : index
    %c0_54 = arith.constant 0 : index
    %60 = vector.load %arg5[%c0_52, %c0_53, %c0_54] : memref<1x120x128xbf16, #tpu.memory_space<vmem>>, vector<1x16x128xbf16>
    %61 = vector.shape_cast %60 : vector<1x16x128xbf16> to vector<16x128xbf16>
    %62 = vector.shape_cast %59 : vector<16x128xbf16> to vector<1x16x128xbf16>
    tpu.vector_store %arg5[%c0_52, %c0_53, %c0_54], %62 {strides = array<i32>} : memref<1x120x128xbf16, #tpu.memory_space<vmem>>, vector<1x16x128xbf16>,
    %63 = arith.truncf %58 : vector<88x128xf32> to vector<88x128xbf16>
    %c0_55 = arith.constant 0 : index
    %c16_56 = arith.constant 16 : index
    %c0_57 = arith.constant 0 : index
    %64 = vector.load %arg5[%c0_55, %c16_56, %c0_57] : memref<1x120x128xbf16, #tpu.memory_space<vmem>>, vector<1x88x128xbf16>
    %65 = vector.shape_cast %64 : vector<1x88x128xbf16> to vector<88x128xbf16>
    %66 = vector.shape_cast %63 : vector<88x128xbf16> to vector<1x88x128xbf16>
    tpu.vector_store %arg5[%c0_55, %c16_56, %c0_57], %66 {strides = array<i32>} : memref<1x120x128xbf16, #tpu.memory_space<vmem>>, vector<1x88x128xbf16>,
    %cst_58 = arith.constant 0.000000e+00 : bf16
    %67 = vector.broadcast %cst_58 : bf16 to vector<16x128xbf16>
    %c0_59 = arith.constant 0 : index
    %c104 = arith.constant 104 : index
    %c0_60 = arith.constant 0 : index
    %68 = vector.load %arg5[%c0_59, %c104, %c0_60] : memref<1x120x128xbf16, #tpu.memory_space<vmem>>, vector<1x16x128xbf16>
    %69 = vector.shape_cast %68 : vector<1x16x128xbf16> to vector<16x128xbf16>
    %70 = vector.shape_cast %67 : vector<16x128xbf16> to vector<1x16x128xbf16>
    tpu.vector_store %arg5[%c0_59, %c104, %c0_60], %70 {strides = array<i32>} : memref<1x120x128xbf16, #tpu.memory_space<vmem>>, vector<1x16x128xbf16>,
    return
  }
  func.func @transform_0(%arg0: i32) -> (i32, i32, i32) {
    %c0_i32 = arith.constant 0 : i32
    %c0_i32_0 = arith.constant 0 : i32
    %c0_i32_1 = arith.constant 0 : i32
    return %arg0, %c0_i32, %c0_i32_0 : i32, i32, i32
  }
  func.func @transform_1(%arg0: i32) -> (i32, i32, i32) {
    %c0_i32 = arith.constant 0 : i32
    %c0_i32_0 = arith.constant 0 : i32
    %c0_i32_1 = arith.constant 0 : i32
    %c0_i32_2 = arith.constant 0 : i32
    return %c0_i32, %c0_i32_0, %c0_i32_1 : i32, i32, i32
  }
  func.func @transform_2(%arg0: i32) -> (i32, i32) {
    %c0_i32 = arith.constant 0 : i32
    %c0_i32_0 = arith.constant 0 : i32
    %c0_i32_1 = arith.constant 0 : i32
    return %c0_i32, %c0_i32_0 : i32, i32
  }
  func.func @transform_3(%arg0: i32) -> (i32, i32) {
    %c0_i32 = arith.constant 0 : i32
    %c0_i32_0 = arith.constant 0 : i32
    %c0_i32_1 = arith.constant 0 : i32
    return %c0_i32, %c0_i32_0 : i32, i32
  }
  func.func @transform_4(%arg0: i32) -> (i32, i32, i32) {
    %c0_i32 = arith.constant 0 : i32
    %c0_i32_0 = arith.constant 0 : i32
    %c0_i32_1 = arith.constant 0 : i32
    return %arg0, %c0_i32, %c0_i32_0 : i32, i32, i32
  }
}

module attributes {stable_mosaic.version = 11 : i64} {
  func.func @_residual3x3_flat_kernel(%arg0: i32, %arg1: memref<1x120x128xbf16, #tpu.memory_space<vmem>>, %arg2: memref<9x128x32xbf16, #tpu.memory_space<vmem>>, %arg3: memref<32x128xbf16, #tpu.memory_space<vmem>>, %arg4: memref<88x1xf32, #tpu.memory_space<vmem>>, %arg5: memref<1x120x128xbf16, #tpu.memory_space<vmem>>) attributes {dimension_semantics = [#tpu.dimension_semantics<parallel>], iteration_bounds = array<i64: 4>, scalar_prefetch = 0 : i64, scratch_operands = 0 : i64, tpu.core_type = #tpu.core_type<tc>, window_params = [{transform_indices = @transform_0, window_bounds = array<i64: 1, 120, 128>}, {pipeline_mode = #tpu.pipeline_mode<synchronous>, transform_indices = @transform_1, window_bounds = array<i64: 9, 128, 32>}, {pipeline_mode = #tpu.pipeline_mode<synchronous>, transform_indices = @transform_2, window_bounds = array<i64: 32, 128>}, {pipeline_mode = #tpu.pipeline_mode<synchronous>, transform_indices = @transform_3, window_bounds = array<i64: 88, 1>}, {transform_indices = @transform_4, window_bounds = array<i64: 1, 120, 128>}]} {
    %c0 = arith.constant 0 : index
    %c6 = arith.constant 6 : index
    %c0_0 = arith.constant 0 : index
    %0 = vector.load %arg1[%c0, %c6, %c0_0] : memref<1x120x128xbf16, #tpu.memory_space<vmem>>, vector<1x88x128xbf16>
    %1 = vector.shape_cast %0 : vector<1x88x128xbf16> to vector<88x128xbf16>
    %cst = arith.constant 0.000000e+00 : bf16
    %2 = vector.broadcast %cst : bf16 to vector<88x128xbf16>
    %3 = arith.maximumf %1, %2 : vector<88x128xbf16>
    %c0_1 = arith.constant 0 : index
    %c0_2 = arith.constant 0 : index
    %c0_3 = arith.constant 0 : index
    %4 = vector.load %arg2[%c0_1, %c0_2, %c0_3] : memref<9x128x32xbf16, #tpu.memory_space<vmem>>, vector<1x128x32xbf16>
    %5 = vector.shape_cast %4 : vector<1x128x32xbf16> to vector<128x32xbf16>
    %cst_4 = arith.constant dense<0.000000e+00> : vector<88x32xf32>
    %6 = tpu.matmul %3, %5, %cst_4 {dimension_numbers = #tpu.dot_dimension_numbers<[1], [0], [0], [1], [0, 0, 1, 1], [], []>} : vector<88x128xbf16>, vector<128x32xbf16>, vector<88x32xf32> -> vector<88x32xf32>
    %c0_5 = arith.constant 0 : index
    %c7 = arith.constant 7 : index
    %c0_6 = arith.constant 0 : index
    %7 = vector.load %arg1[%c0_5, %c7, %c0_6] : memref<1x120x128xbf16, #tpu.memory_space<vmem>>, vector<1x88x128xbf16>
    %8 = vector.shape_cast %7 : vector<1x88x128xbf16> to vector<88x128xbf16>
    %cst_7 = arith.constant 0.000000e+00 : bf16
    %9 = vector.broadcast %cst_7 : bf16 to vector<88x128xbf16>
    %10 = arith.maximumf %8, %9 : vector<88x128xbf16>
    %c1 = arith.constant 1 : index
    %c0_8 = arith.constant 0 : index
    %c0_9 = arith.constant 0 : index
    %11 = vector.load %arg2[%c1, %c0_8, %c0_9] : memref<9x128x32xbf16, #tpu.memory_space<vmem>>, vector<1x128x32xbf16>
    %12 = vector.shape_cast %11 : vector<1x128x32xbf16> to vector<128x32xbf16>
    %cst_10 = arith.constant dense<0.000000e+00> : vector<88x32xf32>
    %13 = tpu.matmul %10, %12, %cst_10 {dimension_numbers = #tpu.dot_dimension_numbers<[1], [0], [0], [1], [0, 0, 1, 1], [], []>} : vector<88x128xbf16>, vector<128x32xbf16>, vector<88x32xf32> -> vector<88x32xf32>
    %14 = arith.addf %6, %13 : vector<88x32xf32>
    %c0_11 = arith.constant 0 : index
    %c8 = arith.constant 8 : index
    %c0_12 = arith.constant 0 : index
    %15 = vector.load %arg1[%c0_11, %c8, %c0_12] : memref<1x120x128xbf16, #tpu.memory_space<vmem>>, vector<1x88x128xbf16>
    %16 = vector.shape_cast %15 : vector<1x88x128xbf16> to vector<88x128xbf16>
    %cst_13 = arith.constant 0.000000e+00 : bf16
    %17 = vector.broadcast %cst_13 : bf16 to vector<88x128xbf16>
    %18 = arith.maximumf %16, %17 : vector<88x128xbf16>
    %c2 = arith.constant 2 : index
    %c0_14 = arith.constant 0 : index
    %c0_15 = arith.constant 0 : index
    %19 = vector.load %arg2[%c2, %c0_14, %c0_15] : memref<9x128x32xbf16, #tpu.memory_space<vmem>>, vector<1x128x32xbf16>
    %20 = vector.shape_cast %19 : vector<1x128x32xbf16> to vector<128x32xbf16>
    %cst_16 = arith.constant dense<0.000000e+00> : vector<88x32xf32>
    %21 = tpu.matmul %18, %20, %cst_16 {dimension_numbers = #tpu.dot_dimension_numbers<[1], [0], [0], [1], [0, 0, 1, 1], [], []>} : vector<88x128xbf16>, vector<128x32xbf16>, vector<88x32xf32> -> vector<88x32xf32>
    %22 = arith.addf %14, %21 : vector<88x32xf32>
    %c0_17 = arith.constant 0 : index
    %c15 = arith.constant 15 : index
    %c0_18 = arith.constant 0 : index
    %23 = vector.load %arg1[%c0_17, %c15, %c0_18] : memref<1x120x128xbf16, #tpu.memory_space<vmem>>, vector<1x88x128xbf16>
    %24 = vector.shape_cast %23 : vector<1x88x128xbf16> to vector<88x128xbf16>
    %cst_19 = arith.constant 0.000000e+00 : bf16
    %25 = vector.broadcast %cst_19 : bf16 to vector<88x128xbf16>
    %26 = arith.maximumf %24, %25 : vector<88x128xbf16>
    %c3 = arith.constant 3 : index
    %c0_20 = arith.constant 0 : index
    %c0_21 = arith.constant 0 : index
    %27 = vector.load %arg2[%c3, %c0_20, %c0_21] : memref<9x128x32xbf16, #tpu.memory_space<vmem>>, vector<1x128x32xbf16>
    %28 = vector.shape_cast %27 : vector<1x128x32xbf16> to vector<128x32xbf16>
    %cst_22 = arith.constant dense<0.000000e+00> : vector<88x32xf32>
    %29 = tpu.matmul %26, %28, %cst_22 {dimension_numbers = #tpu.dot_dimension_numbers<[1], [0], [0], [1], [0, 0, 1, 1], [], []>} : vector<88x128xbf16>, vector<128x32xbf16>, vector<88x32xf32> -> vector<88x32xf32>
    %30 = arith.addf %22, %29 : vector<88x32xf32>
    %c0_23 = arith.constant 0 : index
    %c16 = arith.constant 16 : index
    %c0_24 = arith.constant 0 : index
    %31 = vector.load %arg1[%c0_23, %c16, %c0_24] : memref<1x120x128xbf16, #tpu.memory_space<vmem>>, vector<1x88x128xbf16>
    %32 = vector.shape_cast %31 : vector<1x88x128xbf16> to vector<88x128xbf16>
    %cst_25 = arith.constant 0.000000e+00 : bf16
    %33 = vector.broadcast %cst_25 : bf16 to vector<88x128xbf16>
    %34 = arith.maximumf %32, %33 : vector<88x128xbf16>
    %c4 = arith.constant 4 : index
    %c0_26 = arith.constant 0 : index
    %c0_27 = arith.constant 0 : index
    %35 = vector.load %arg2[%c4, %c0_26, %c0_27] : memref<9x128x32xbf16, #tpu.memory_space<vmem>>, vector<1x128x32xbf16>
    %36 = vector.shape_cast %35 : vector<1x128x32xbf16> to vector<128x32xbf16>
    %cst_28 = arith.constant dense<0.000000e+00> : vector<88x32xf32>
    %37 = tpu.matmul %34, %36, %cst_28 {dimension_numbers = #tpu.dot_dimension_numbers<[1], [0], [0], [1], [0, 0, 1, 1], [], []>} : vector<88x128xbf16>, vector<128x32xbf16>, vector<88x32xf32> -> vector<88x32xf32>
    %38 = arith.addf %30, %37 : vector<88x32xf32>
    %c0_29 = arith.constant 0 : index
    %c17 = arith.constant 17 : index
    %c0_30 = arith.constant 0 : index
    %39 = vector.load %arg1[%c0_29, %c17, %c0_30] : memref<1x120x128xbf16, #tpu.memory_space<vmem>>, vector<1x88x128xbf16>
    %40 = vector.shape_cast %39 : vector<1x88x128xbf16> to vector<88x128xbf16>
    %cst_31 = arith.constant 0.000000e+00 : bf16
    %41 = vector.broadcast %cst_31 : bf16 to vector<88x128xbf16>
    %42 = arith.maximumf %40, %41 : vector<88x128xbf16>
    %c5 = arith.constant 5 : index
    %c0_32 = arith.constant 0 : index
    %c0_33 = arith.constant 0 : index
    %43 = vector.load %arg2[%c5, %c0_32, %c0_33] : memref<9x128x32xbf16, #tpu.memory_space<vmem>>, vector<1x128x32xbf16>
    %44 = vector.shape_cast %43 : vector<1x128x32xbf16> to vector<128x32xbf16>
    %cst_34 = arith.constant dense<0.000000e+00> : vector<88x32xf32>
    %45 = tpu.matmul %42, %44, %cst_34 {dimension_numbers = #tpu.dot_dimension_numbers<[1], [0], [0], [1], [0, 0, 1, 1], [], []>} : vector<88x128xbf16>, vector<128x32xbf16>, vector<88x32xf32> -> vector<88x32xf32>
    %46 = arith.addf %38, %45 : vector<88x32xf32>
    %c0_35 = arith.constant 0 : index
    %c24 = arith.constant 24 : index
    %c0_36 = arith.constant 0 : index
    %47 = vector.load %arg1[%c0_35, %c24, %c0_36] : memref<1x120x128xbf16, #tpu.memory_space<vmem>>, vector<1x88x128xbf16>
    %48 = vector.shape_cast %47 : vector<1x88x128xbf16> to vector<88x128xbf16>
    %cst_37 = arith.constant 0.000000e+00 : bf16
    %49 = vector.broadcast %cst_37 : bf16 to vector<88x128xbf16>
    %50 = arith.maximumf %48, %49 : vector<88x128xbf16>
    %c6_38 = arith.constant 6 : index
    %c0_39 = arith.constant 0 : index
    %c0_40 = arith.constant 0 : index
    %51 = vector.load %arg2[%c6_38, %c0_39, %c0_40] : memref<9x128x32xbf16, #tpu.memory_space<vmem>>, vector<1x128x32xbf16>
    %52 = vector.shape_cast %51 : vector<1x128x32xbf16> to vector<128x32xbf16>
    %cst_41 = arith.constant dense<0.000000e+00> : vector<88x32xf32>
    %53 = tpu.matmul %50, %52, %cst_41 {dimension_numbers = #tpu.dot_dimension_numbers<[1], [0], [0], [1], [0, 0, 1, 1], [], []>} : vector<88x128xbf16>, vector<128x32xbf16>, vector<88x32xf32> -> vector<88x32xf32>
    %54 = arith.addf %46, %53 : vector<88x32xf32>
    %c0_42 = arith.constant 0 : index
    %c25 = arith.constant 25 : index
    %c0_43 = arith.constant 0 : index
    %55 = vector.load %arg1[%c0_42, %c25, %c0_43] : memref<1x120x128xbf16, #tpu.memory_space<vmem>>, vector<1x88x128xbf16>
    %56 = vector.shape_cast %55 : vector<1x88x128xbf16> to vector<88x128xbf16>
    %cst_44 = arith.constant 0.000000e+00 : bf16
    %57 = vector.broadcast %cst_44 : bf16 to vector<88x128xbf16>
    %58 = arith.maximumf %56, %57 : vector<88x128xbf16>
    %c7_45 = arith.constant 7 : index
    %c0_46 = arith.constant 0 : index
    %c0_47 = arith.constant 0 : index
    %59 = vector.load %arg2[%c7_45, %c0_46, %c0_47] : memref<9x128x32xbf16, #tpu.memory_space<vmem>>, vector<1x128x32xbf16>
    %60 = vector.shape_cast %59 : vector<1x128x32xbf16> to vector<128x32xbf16>
    %cst_48 = arith.constant dense<0.000000e+00> : vector<88x32xf32>
    %61 = tpu.matmul %58, %60, %cst_48 {dimension_numbers = #tpu.dot_dimension_numbers<[1], [0], [0], [1], [0, 0, 1, 1], [], []>} : vector<88x128xbf16>, vector<128x32xbf16>, vector<88x32xf32> -> vector<88x32xf32>
    %62 = arith.addf %54, %61 : vector<88x32xf32>
    %c0_49 = arith.constant 0 : index
    %c26 = arith.constant 26 : index
    %c0_50 = arith.constant 0 : index
    %63 = vector.load %arg1[%c0_49, %c26, %c0_50] : memref<1x120x128xbf16, #tpu.memory_space<vmem>>, vector<1x88x128xbf16>
    %64 = vector.shape_cast %63 : vector<1x88x128xbf16> to vector<88x128xbf16>
    %cst_51 = arith.constant 0.000000e+00 : bf16
    %65 = vector.broadcast %cst_51 : bf16 to vector<88x128xbf16>
    %66 = arith.maximumf %64, %65 : vector<88x128xbf16>
    %c8_52 = arith.constant 8 : index
    %c0_53 = arith.constant 0 : index
    %c0_54 = arith.constant 0 : index
    %67 = vector.load %arg2[%c8_52, %c0_53, %c0_54] : memref<9x128x32xbf16, #tpu.memory_space<vmem>>, vector<1x128x32xbf16>
    %68 = vector.shape_cast %67 : vector<1x128x32xbf16> to vector<128x32xbf16>
    %cst_55 = arith.constant dense<0.000000e+00> : vector<88x32xf32>
    %69 = tpu.matmul %66, %68, %cst_55 {dimension_numbers = #tpu.dot_dimension_numbers<[1], [0], [0], [1], [0, 0, 1, 1], [], []>} : vector<88x128xbf16>, vector<128x32xbf16>, vector<88x32xf32> -> vector<88x32xf32>
    %70 = arith.addf %62, %69 : vector<88x32xf32>
    %cst_56 = arith.constant 0.000000e+00 : f32
    %71 = vector.broadcast %cst_56 : f32 to vector<88x32xf32>
    %72 = arith.maximumf %70, %71 : vector<88x32xf32>
    %73 = arith.truncf %72 : vector<88x32xf32> to vector<88x32xbf16>
    %c0_57 = arith.constant 0 : index
    %c16_58 = arith.constant 16 : index
    %c0_59 = arith.constant 0 : index
    %74 = vector.load %arg1[%c0_57, %c16_58, %c0_59] : memref<1x120x128xbf16, #tpu.memory_space<vmem>>, vector<1x88x128xbf16>
    %75 = vector.shape_cast %74 : vector<1x88x128xbf16> to vector<88x128xbf16>
    %76 = arith.extf %75 : vector<88x128xbf16> to vector<88x128xf32>
    %c0_60 = arith.constant 0 : index
    %c0_61 = arith.constant 0 : index
    %77 = vector.load %arg3[%c0_60, %c0_61] : memref<32x128xbf16, #tpu.memory_space<vmem>>, vector<32x128xbf16>
    %cst_62 = arith.constant dense<0.000000e+00> : vector<88x128xf32>
    %78 = tpu.matmul %73, %77, %cst_62 {dimension_numbers = #tpu.dot_dimension_numbers<[1], [0], [0], [1], [0, 0, 1, 1], [], []>} : vector<88x32xbf16>, vector<32x128xbf16>, vector<88x128xf32> -> vector<88x128xf32>
    %79 = arith.addf %76, %78 : vector<88x128xf32>
    %c0_63 = arith.constant 0 : index
    %c0_64 = arith.constant 0 : index
    %80 = vector.load %arg4[%c0_63, %c0_64] : memref<88x1xf32, #tpu.memory_space<vmem>>, vector<88x1xf32>
    %81 = vector.broadcast %80 : vector<88x1xf32> to vector<88x128xf32>
    %82 = arith.mulf %79, %81 : vector<88x128xf32>
    %cst_65 = arith.constant 0.000000e+00 : bf16
    %83 = vector.broadcast %cst_65 : bf16 to vector<16x128xbf16>
    %c0_66 = arith.constant 0 : index
    %c0_67 = arith.constant 0 : index
    %c0_68 = arith.constant 0 : index
    %84 = vector.load %arg5[%c0_66, %c0_67, %c0_68] : memref<1x120x128xbf16, #tpu.memory_space<vmem>>, vector<1x16x128xbf16>
    %85 = vector.shape_cast %84 : vector<1x16x128xbf16> to vector<16x128xbf16>
    %86 = vector.shape_cast %83 : vector<16x128xbf16> to vector<1x16x128xbf16>
    tpu.vector_store %arg5[%c0_66, %c0_67, %c0_68], %86 {strides = array<i32>} : memref<1x120x128xbf16, #tpu.memory_space<vmem>>, vector<1x16x128xbf16>,
    %87 = arith.truncf %82 : vector<88x128xf32> to vector<88x128xbf16>
    %c0_69 = arith.constant 0 : index
    %c16_70 = arith.constant 16 : index
    %c0_71 = arith.constant 0 : index
    %88 = vector.load %arg5[%c0_69, %c16_70, %c0_71] : memref<1x120x128xbf16, #tpu.memory_space<vmem>>, vector<1x88x128xbf16>
    %89 = vector.shape_cast %88 : vector<1x88x128xbf16> to vector<88x128xbf16>
    %90 = vector.shape_cast %87 : vector<88x128xbf16> to vector<1x88x128xbf16>
    tpu.vector_store %arg5[%c0_69, %c16_70, %c0_71], %90 {strides = array<i32>} : memref<1x120x128xbf16, #tpu.memory_space<vmem>>, vector<1x88x128xbf16>,
    %cst_72 = arith.constant 0.000000e+00 : bf16
    %91 = vector.broadcast %cst_72 : bf16 to vector<16x128xbf16>
    %c0_73 = arith.constant 0 : index
    %c104 = arith.constant 104 : index
    %c0_74 = arith.constant 0 : index
    %92 = vector.load %arg5[%c0_73, %c104, %c0_74] : memref<1x120x128xbf16, #tpu.memory_space<vmem>>, vector<1x16x128xbf16>
    %93 = vector.shape_cast %92 : vector<1x16x128xbf16> to vector<16x128xbf16>
    %94 = vector.shape_cast %91 : vector<16x128xbf16> to vector<1x16x128xbf16>
    tpu.vector_store %arg5[%c0_73, %c104, %c0_74], %94 {strides = array<i32>} : memref<1x120x128xbf16, #tpu.memory_space<vmem>>, vector<1x16x128xbf16>,
    return
  }
  func.func @transform_0(%arg0: i32) -> (i32, i32, i32) {
    %c0_i32 = arith.constant 0 : i32
    %c0_i32_0 = arith.constant 0 : i32
    %c0_i32_1 = arith.constant 0 : i32
    return %arg0, %c0_i32, %c0_i32_0 : i32, i32, i32
  }
  func.func @transform_1(%arg0: i32) -> (i32, i32, i32) {
    %c0_i32 = arith.constant 0 : i32
    %c0_i32_0 = arith.constant 0 : i32
    %c0_i32_1 = arith.constant 0 : i32
    %c0_i32_2 = arith.constant 0 : i32
    return %c0_i32, %c0_i32_0, %c0_i32_1 : i32, i32, i32
  }
  func.func @transform_2(%arg0: i32) -> (i32, i32) {
    %c0_i32 = arith.constant 0 : i32
    %c0_i32_0 = arith.constant 0 : i32
    %c0_i32_1 = arith.constant 0 : i32
    return %c0_i32, %c0_i32_0 : i32, i32
  }
  func.func @transform_3(%arg0: i32) -> (i32, i32) {
    %c0_i32 = arith.constant 0 : i32
    %c0_i32_0 = arith.constant 0 : i32
    %c0_i32_1 = arith.constant 0 : i32
    return %c0_i32, %c0_i32_0 : i32, i32
  }
  func.func @transform_4(%arg0: i32) -> (i32, i32, i32) {
    %c0_i32 = arith.constant 0 : i32
    %c0_i32_0 = arith.constant 0 : i32
    %c0_i32_1 = arith.constant 0 : i32
    return %arg0, %c0_i32, %c0_i32_0 : i32, i32, i32
  }
}

module attributes {stable_mosaic.version = 11 : i64} {
  func.func @_residual3x3_flat_kernel(%arg0: i32, %arg1: memref<1x120x128xbf16, #tpu.memory_space<vmem>>, %arg2: memref<9x128x32xbf16, #tpu.memory_space<vmem>>, %arg3: memref<32x128xbf16, #tpu.memory_space<vmem>>, %arg4: memref<88x1xf32, #tpu.memory_space<vmem>>, %arg5: memref<1x120x128xbf16, #tpu.memory_space<vmem>>) attributes {dimension_semantics = [#tpu.dimension_semantics<parallel>], iteration_bounds = array<i64: 4>, scalar_prefetch = 0 : i64, scratch_operands = 0 : i64, tpu.core_type = #tpu.core_type<tc>, window_params = [{transform_indices = @transform_0, window_bounds = array<i64: 1, 120, 128>}, {pipeline_mode = #tpu.pipeline_mode<synchronous>, transform_indices = @transform_1, window_bounds = array<i64: 9, 128, 32>}, {pipeline_mode = #tpu.pipeline_mode<synchronous>, transform_indices = @transform_2, window_bounds = array<i64: 32, 128>}, {pipeline_mode = #tpu.pipeline_mode<synchronous>, transform_indices = @transform_3, window_bounds = array<i64: 88, 1>}, {transform_indices = @transform_4, window_bounds = array<i64: 1, 120, 128>}]} {
    %c0 = arith.constant 0 : index
    %c6 = arith.constant 6 : index
    %c0_0 = arith.constant 0 : index
    %0 = vector.load %arg1[%c0, %c6, %c0_0] : memref<1x120x128xbf16, #tpu.memory_space<vmem>>, vector<1x88x128xbf16>
    %1 = vector.shape_cast %0 : vector<1x88x128xbf16> to vector<88x128xbf16>
    %cst = arith.constant 0.000000e+00 : bf16
    %2 = vector.broadcast %cst : bf16 to vector<88x128xbf16>
    %3 = arith.maximumf %1, %2 : vector<88x128xbf16>
    %c0_1 = arith.constant 0 : index
    %c0_2 = arith.constant 0 : index
    %c0_3 = arith.constant 0 : index
    %4 = vector.load %arg2[%c0_1, %c0_2, %c0_3] : memref<9x128x32xbf16, #tpu.memory_space<vmem>>, vector<1x128x32xbf16>
    %5 = vector.shape_cast %4 : vector<1x128x32xbf16> to vector<128x32xbf16>
    %cst_4 = arith.constant dense<0.000000e+00> : vector<88x32xf32>
    %6 = tpu.matmul %3, %5, %cst_4 {dimension_numbers = #tpu.dot_dimension_numbers<[1], [0], [0], [1], [0, 0, 1, 1], [], []>} : vector<88x128xbf16>, vector<128x32xbf16>, vector<88x32xf32> -> vector<88x32xf32>
    %c0_5 = arith.constant 0 : index
    %c7 = arith.constant 7 : index
    %c0_6 = arith.constant 0 : index
    %7 = vector.load %arg1[%c0_5, %c7, %c0_6] : memref<1x120x128xbf16, #tpu.memory_space<vmem>>, vector<1x88x128xbf16>
    %8 = vector.shape_cast %7 : vector<1x88x128xbf16> to vector<88x128xbf16>
    %cst_7 = arith.constant 0.000000e+00 : bf16
    %9 = vector.broadcast %cst_7 : bf16 to vector<88x128xbf16>
    %10 = arith.maximumf %8, %9 : vector<88x128xbf16>
    %c1 = arith.constant 1 : index
    %c0_8 = arith.constant 0 : index
    %c0_9 = arith.constant 0 : index
    %11 = vector.load %arg2[%c1, %c0_8, %c0_9] : memref<9x128x32xbf16, #tpu.memory_space<vmem>>, vector<1x128x32xbf16>
    %12 = vector.shape_cast %11 : vector<1x128x32xbf16> to vector<128x32xbf16>
    %cst_10 = arith.constant dense<0.000000e+00> : vector<88x32xf32>
    %13 = tpu.matmul %10, %12, %cst_10 {dimension_numbers = #tpu.dot_dimension_numbers<[1], [0], [0], [1], [0, 0, 1, 1], [], []>} : vector<88x128xbf16>, vector<128x32xbf16>, vector<88x32xf32> -> vector<88x32xf32>
    %14 = arith.addf %6, %13 : vector<88x32xf32>
    %c0_11 = arith.constant 0 : index
    %c8 = arith.constant 8 : index
    %c0_12 = arith.constant 0 : index
    %15 = vector.load %arg1[%c0_11, %c8, %c0_12] : memref<1x120x128xbf16, #tpu.memory_space<vmem>>, vector<1x88x128xbf16>
    %16 = vector.shape_cast %15 : vector<1x88x128xbf16> to vector<88x128xbf16>
    %cst_13 = arith.constant 0.000000e+00 : bf16
    %17 = vector.broadcast %cst_13 : bf16 to vector<88x128xbf16>
    %18 = arith.maximumf %16, %17 : vector<88x128xbf16>
    %c2 = arith.constant 2 : index
    %c0_14 = arith.constant 0 : index
    %c0_15 = arith.constant 0 : index
    %19 = vector.load %arg2[%c2, %c0_14, %c0_15] : memref<9x128x32xbf16, #tpu.memory_space<vmem>>, vector<1x128x32xbf16>
    %20 = vector.shape_cast %19 : vector<1x128x32xbf16> to vector<128x32xbf16>
    %cst_16 = arith.constant dense<0.000000e+00> : vector<88x32xf32>
    %21 = tpu.matmul %18, %20, %cst_16 {dimension_numbers = #tpu.dot_dimension_numbers<[1], [0], [0], [1], [0, 0, 1, 1], [], []>} : vector<88x128xbf16>, vector<128x32xbf16>, vector<88x32xf32> -> vector<88x32xf32>
    %22 = arith.addf %14, %21 : vector<88x32xf32>
    %c0_17 = arith.constant 0 : index
    %c15 = arith.constant 15 : index
    %c0_18 = arith.constant 0 : index
    %23 = vector.load %arg1[%c0_17, %c15, %c0_18] : memref<1x120x128xbf16, #tpu.memory_space<vmem>>, vector<1x88x128xbf16>
    %24 = vector.shape_cast %23 : vector<1x88x128xbf16> to vector<88x128xbf16>
    %cst_19 = arith.constant 0.000000e+00 : bf16
    %25 = vector.broadcast %cst_19 : bf16 to vector<88x128xbf16>
    %26 = arith.maximumf %24, %25 : vector<88x128xbf16>
    %c3 = arith.constant 3 : index
    %c0_20 = arith.constant 0 : index
    %c0_21 = arith.constant 0 : index
    %27 = vector.load %arg2[%c3, %c0_20, %c0_21] : memref<9x128x32xbf16, #tpu.memory_space<vmem>>, vector<1x128x32xbf16>
    %28 = vector.shape_cast %27 : vector<1x128x32xbf16> to vector<128x32xbf16>
    %cst_22 = arith.constant dense<0.000000e+00> : vector<88x32xf32>
    %29 = tpu.matmul %26, %28, %cst_22 {dimension_numbers = #tpu.dot_dimension_numbers<[1], [0], [0], [1], [0, 0, 1, 1], [], []>} : vector<88x128xbf16>, vector<128x32xbf16>, vector<88x32xf32> -> vector<88x32xf32>
    %30 = arith.addf %22, %29 : vector<88x32xf32>
    %c0_23 = arith.constant 0 : index
    %c16 = arith.constant 16 : index
    %c0_24 = arith.constant 0 : index
    %31 = vector.load %arg1[%c0_23, %c16, %c0_24] : memref<1x120x128xbf16, #tpu.memory_space<vmem>>, vector<1x88x128xbf16>
    %32 = vector.shape_cast %31 : vector<1x88x128xbf16> to vector<88x128xbf16>
    %cst_25 = arith.constant 0.000000e+00 : bf16
    %33 = vector.broadcast %cst_25 : bf16 to vector<88x128xbf16>
    %34 = arith.maximumf %32, %33 : vector<88x128xbf16>
    %c4 = arith.constant 4 : index
    %c0_26 = arith.constant 0 : index
    %c0_27 = arith.constant 0 : index
    %35 = vector.load %arg2[%c4, %c0_26, %c0_27] : memref<9x128x32xbf16, #tpu.memory_space<vmem>>, vector<1x128x32xbf16>
    %36 = vector.shape_cast %35 : vector<1x128x32xbf16> to vector<128x32xbf16>
    %cst_28 = arith.constant dense<0.000000e+00> : vector<88x32xf32>
    %37 = tpu.matmul %34, %36, %cst_28 {dimension_numbers = #tpu.dot_dimension_numbers<[1], [0], [0], [1], [0, 0, 1, 1], [], []>} : vector<88x128xbf16>, vector<128x32xbf16>, vector<88x32xf32> -> vector<88x32xf32>
    %38 = arith.addf %30, %37 : vector<88x32xf32>
    %c0_29 = arith.constant 0 : index
    %c17 = arith.constant 17 : index
    %c0_30 = arith.constant 0 : index
    %39 = vector.load %arg1[%c0_29, %c17, %c0_30] : memref<1x120x128xbf16, #tpu.memory_space<vmem>>, vector<1x88x128xbf16>
    %40 = vector.shape_cast %39 : vector<1x88x128xbf16> to vector<88x128xbf16>
    %cst_31 = arith.constant 0.000000e+00 : bf16
    %41 = vector.broadcast %cst_31 : bf16 to vector<88x128xbf16>
    %42 = arith.maximumf %40, %41 : vector<88x128xbf16>
    %c5 = arith.constant 5 : index
    %c0_32 = arith.constant 0 : index
    %c0_33 = arith.constant 0 : index
    %43 = vector.load %arg2[%c5, %c0_32, %c0_33] : memref<9x128x32xbf16, #tpu.memory_space<vmem>>, vector<1x128x32xbf16>
    %44 = vector.shape_cast %43 : vector<1x128x32xbf16> to vector<128x32xbf16>
    %cst_34 = arith.constant dense<0.000000e+00> : vector<88x32xf32>
    %45 = tpu.matmul %42, %44, %cst_34 {dimension_numbers = #tpu.dot_dimension_numbers<[1], [0], [0], [1], [0, 0, 1, 1], [], []>} : vector<88x128xbf16>, vector<128x32xbf16>, vector<88x32xf32> -> vector<88x32xf32>
    %46 = arith.addf %38, %45 : vector<88x32xf32>
    %c0_35 = arith.constant 0 : index
    %c24 = arith.constant 24 : index
    %c0_36 = arith.constant 0 : index
    %47 = vector.load %arg1[%c0_35, %c24, %c0_36] : memref<1x120x128xbf16, #tpu.memory_space<vmem>>, vector<1x88x128xbf16>
    %48 = vector.shape_cast %47 : vector<1x88x128xbf16> to vector<88x128xbf16>
    %cst_37 = arith.constant 0.000000e+00 : bf16
    %49 = vector.broadcast %cst_37 : bf16 to vector<88x128xbf16>
    %50 = arith.maximumf %48, %49 : vector<88x128xbf16>
    %c6_38 = arith.constant 6 : index
    %c0_39 = arith.constant 0 : index
    %c0_40 = arith.constant 0 : index
    %51 = vector.load %arg2[%c6_38, %c0_39, %c0_40] : memref<9x128x32xbf16, #tpu.memory_space<vmem>>, vector<1x128x32xbf16>
    %52 = vector.shape_cast %51 : vector<1x128x32xbf16> to vector<128x32xbf16>
    %cst_41 = arith.constant dense<0.000000e+00> : vector<88x32xf32>
    %53 = tpu.matmul %50, %52, %cst_41 {dimension_numbers = #tpu.dot_dimension_numbers<[1], [0], [0], [1], [0, 0, 1, 1], [], []>} : vector<88x128xbf16>, vector<128x32xbf16>, vector<88x32xf32> -> vector<88x32xf32>
    %54 = arith.addf %46, %53 : vector<88x32xf32>
    %c0_42 = arith.constant 0 : index
    %c25 = arith.constant 25 : index
    %c0_43 = arith.constant 0 : index
    %55 = vector.load %arg1[%c0_42, %c25, %c0_43] : memref<1x120x128xbf16, #tpu.memory_space<vmem>>, vector<1x88x128xbf16>
    %56 = vector.shape_cast %55 : vector<1x88x128xbf16> to vector<88x128xbf16>
    %cst_44 = arith.constant 0.000000e+00 : bf16
    %57 = vector.broadcast %cst_44 : bf16 to vector<88x128xbf16>
    %58 = arith.maximumf %56, %57 : vector<88x128xbf16>
    %c7_45 = arith.constant 7 : index
    %c0_46 = arith.constant 0 : index
    %c0_47 = arith.constant 0 : index
    %59 = vector.load %arg2[%c7_45, %c0_46, %c0_47] : memref<9x128x32xbf16, #tpu.memory_space<vmem>>, vector<1x128x32xbf16>
    %60 = vector.shape_cast %59 : vector<1x128x32xbf16> to vector<128x32xbf16>
    %cst_48 = arith.constant dense<0.000000e+00> : vector<88x32xf32>
    %61 = tpu.matmul %58, %60, %cst_48 {dimension_numbers = #tpu.dot_dimension_numbers<[1], [0], [0], [1], [0, 0, 1, 1], [], []>} : vector<88x128xbf16>, vector<128x32xbf16>, vector<88x32xf32> -> vector<88x32xf32>
    %62 = arith.addf %54, %61 : vector<88x32xf32>
    %c0_49 = arith.constant 0 : index
    %c26 = arith.constant 26 : index
    %c0_50 = arith.constant 0 : index
    %63 = vector.load %arg1[%c0_49, %c26, %c0_50] : memref<1x120x128xbf16, #tpu.memory_space<vmem>>, vector<1x88x128xbf16>
    %64 = vector.shape_cast %63 : vector<1x88x128xbf16> to vector<88x128xbf16>
    %cst_51 = arith.constant 0.000000e+00 : bf16
    %65 = vector.broadcast %cst_51 : bf16 to vector<88x128xbf16>
    %66 = arith.maximumf %64, %65 : vector<88x128xbf16>
    %c8_52 = arith.constant 8 : index
    %c0_53 = arith.constant 0 : index
    %c0_54 = arith.constant 0 : index
    %67 = vector.load %arg2[%c8_52, %c0_53, %c0_54] : memref<9x128x32xbf16, #tpu.memory_space<vmem>>, vector<1x128x32xbf16>
    %68 = vector.shape_cast %67 : vector<1x128x32xbf16> to vector<128x32xbf16>
    %cst_55 = arith.constant dense<0.000000e+00> : vector<88x32xf32>
    %69 = tpu.matmul %66, %68, %cst_55 {dimension_numbers = #tpu.dot_dimension_numbers<[1], [0], [0], [1], [0, 0, 1, 1], [], []>} : vector<88x128xbf16>, vector<128x32xbf16>, vector<88x32xf32> -> vector<88x32xf32>
    %70 = arith.addf %62, %69 : vector<88x32xf32>
    %cst_56 = arith.constant 0.000000e+00 : f32
    %71 = vector.broadcast %cst_56 : f32 to vector<88x32xf32>
    %72 = arith.maximumf %70, %71 : vector<88x32xf32>
    %73 = arith.truncf %72 : vector<88x32xf32> to vector<88x32xbf16>
    %c0_57 = arith.constant 0 : index
    %c16_58 = arith.constant 16 : index
    %c0_59 = arith.constant 0 : index
    %74 = vector.load %arg1[%c0_57, %c16_58, %c0_59] : memref<1x120x128xbf16, #tpu.memory_space<vmem>>, vector<1x88x128xbf16>
    %75 = vector.shape_cast %74 : vector<1x88x128xbf16> to vector<88x128xbf16>
    %76 = arith.extf %75 : vector<88x128xbf16> to vector<88x128xf32>
    %c0_60 = arith.constant 0 : index
    %c0_61 = arith.constant 0 : index
    %77 = vector.load %arg3[%c0_60, %c0_61] : memref<32x128xbf16, #tpu.memory_space<vmem>>, vector<32x128xbf16>
    %cst_62 = arith.constant dense<0.000000e+00> : vector<88x128xf32>
    %78 = tpu.matmul %73, %77, %cst_62 {dimension_numbers = #tpu.dot_dimension_numbers<[1], [0], [0], [1], [0, 0, 1, 1], [], []>} : vector<88x32xbf16>, vector<32x128xbf16>, vector<88x128xf32> -> vector<88x128xf32>
    %79 = arith.addf %76, %78 : vector<88x128xf32>
    %cst_63 = arith.constant 0.000000e+00 : f32
    %80 = vector.broadcast %cst_63 : f32 to vector<88x128xf32>
    %81 = arith.maximumf %79, %80 : vector<88x128xf32>
    %c0_64 = arith.constant 0 : index
    %c0_65 = arith.constant 0 : index
    %82 = vector.load %arg4[%c0_64, %c0_65] : memref<88x1xf32, #tpu.memory_space<vmem>>, vector<88x1xf32>
    %83 = vector.broadcast %82 : vector<88x1xf32> to vector<88x128xf32>
    %84 = arith.mulf %81, %83 : vector<88x128xf32>
    %cst_66 = arith.constant 0.000000e+00 : bf16
    %85 = vector.broadcast %cst_66 : bf16 to vector<16x128xbf16>
    %c0_67 = arith.constant 0 : index
    %c0_68 = arith.constant 0 : index
    %c0_69 = arith.constant 0 : index
    %86 = vector.load %arg5[%c0_67, %c0_68, %c0_69] : memref<1x120x128xbf16, #tpu.memory_space<vmem>>, vector<1x16x128xbf16>
    %87 = vector.shape_cast %86 : vector<1x16x128xbf16> to vector<16x128xbf16>
    %88 = vector.shape_cast %85 : vector<16x128xbf16> to vector<1x16x128xbf16>
    tpu.vector_store %arg5[%c0_67, %c0_68, %c0_69], %88 {strides = array<i32>} : memref<1x120x128xbf16, #tpu.memory_space<vmem>>, vector<1x16x128xbf16>,
    %89 = arith.truncf %84 : vector<88x128xf32> to vector<88x128xbf16>
    %c0_70 = arith.constant 0 : index
    %c16_71 = arith.constant 16 : index
    %c0_72 = arith.constant 0 : index
    %90 = vector.load %arg5[%c0_70, %c16_71, %c0_72] : memref<1x120x128xbf16, #tpu.memory_space<vmem>>, vector<1x88x128xbf16>
    %91 = vector.shape_cast %90 : vector<1x88x128xbf16> to vector<88x128xbf16>
    %92 = vector.shape_cast %89 : vector<88x128xbf16> to vector<1x88x128xbf16>
    tpu.vector_store %arg5[%c0_70, %c16_71, %c0_72], %92 {strides = array<i32>} : memref<1x120x128xbf16, #tpu.memory_space<vmem>>, vector<1x88x128xbf16>,
    %cst_73 = arith.constant 0.000000e+00 : bf16
    %93 = vector.broadcast %cst_73 : bf16 to vector<16x128xbf16>
    %c0_74 = arith.constant 0 : index
    %c104 = arith.constant 104 : index
    %c0_75 = arith.constant 0 : index
    %94 = vector.load %arg5[%c0_74, %c104, %c0_75] : memref<1x120x128xbf16, #tpu.memory_space<vmem>>, vector<1x16x128xbf16>
    %95 = vector.shape_cast %94 : vector<1x16x128xbf16> to vector<16x128xbf16>
    %96 = vector.shape_cast %93 : vector<16x128xbf16> to vector<1x16x128xbf16>
    tpu.vector_store %arg5[%c0_74, %c104, %c0_75], %96 {strides = array<i32>} : memref<1x120x128xbf16, #tpu.memory_space<vmem>>, vector<1x16x128xbf16>,
    return
  }
  func.func @transform_0(%arg0: i32) -> (i32, i32, i32) {
    %c0_i32 = arith.constant 0 : i32
    %c0_i32_0 = arith.constant 0 : i32
    %c0_i32_1 = arith.constant 0 : i32
    return %arg0, %c0_i32, %c0_i32_0 : i32, i32, i32
  }
  func.func @transform_1(%arg0: i32) -> (i32, i32, i32) {
    %c0_i32 = arith.constant 0 : i32
    %c0_i32_0 = arith.constant 0 : i32
    %c0_i32_1 = arith.constant 0 : i32
    %c0_i32_2 = arith.constant 0 : i32
    return %c0_i32, %c0_i32_0, %c0_i32_1 : i32, i32, i32
  }
  func.func @transform_2(%arg0: i32) -> (i32, i32) {
    %c0_i32 = arith.constant 0 : i32
    %c0_i32_0 = arith.constant 0 : i32
    %c0_i32_1 = arith.constant 0 : i32
    return %c0_i32, %c0_i32_0 : i32, i32
  }
  func.func @transform_3(%arg0: i32) -> (i32, i32) {
    %c0_i32 = arith.constant 0 : i32
    %c0_i32_0 = arith.constant 0 : i32
    %c0_i32_1 = arith.constant 0 : i32
    return %c0_i32, %c0_i32_0 : i32, i32
  }
  func.func @transform_4(%arg0: i32) -> (i32, i32, i32) {
    %c0_i32 = arith.constant 0 : i32
    %c0_i32_0 = arith.constant 0 : i32
    %c0_i32_1 = arith.constant 0 : i32
    return %arg0, %c0_i32, %c0_i32_0 : i32, i32, i32
  }
}

</mosaic_0001>

<llo_original>
// kernel: encoder_forward.5
$region0: #{encoder_forward.5}
  #allocation0 [shape = 'u32[]', space=smem, size = 0x4, offset = 0x4, fixed_abs, tag = 'smem constant byte address 0x4 - core index']
  #allocation1 [shape = 'u32[144,128]{1,0:T(1,128)}', space=vmem, size = 0x12000, scoped, tag = 'internal scratch']
  %s0 = inlined_call_operand.vmem [shape: bf16[912,48], index: 0, kind: input, shape index: {}]
  %s1 = inlined_call_operand.vmem [shape: bf16[48,128], index: 1, kind: input, shape index: {}]
  %s2 = inlined_call_operand.vmem [shape: f32[1,128], index: 2, kind: input, shape index: {}]
  %s3 = inlined_call_operand.vmem [shape: bf16[912,128], index: 3, kind: output, shape index: {}]
  %s4 = sld [smem:[#allocation0]]
  $region45: #{encoder_forward.5} parent=0
    _
  %s6 = ssub.s32 1, %s4
  %s7 = scalar_select 0, %s6, %s4
  loop: start=0, step=1, limit=4
  $region2: #{encoder_forward.5} parent=0 // loop_pre_header
    _
  $region3: #{encoder_forward.5} parent=0 // loop_header
    %s9 = sphi 0, %s13
    %p10 = scmp.ge.s32.totalorder %s9, 4
    %s19 = sphi 0, %s21
    %s22 = sphi 0, %s19
    %s23 = sphi 0, %s22
    %s39 = sphi 0, %s23
    %s43 = sphi 0, %s43
    %s45 = sphi 0, %s43
    %s46 = sphi 0, %s45
    %s60 = sphi 0, %s46
    %s64 = sphi 0, %s64
    %s66 = sphi 0, %s64
    %s67 = sphi 0, %s66
    %s81 = sphi 0, %s67
    %s87 = sphi 0, %s89
    %s90 = sphi 0, %s87
    %s91 = sphi 0, %s90
    %s107 = sphi 0, %s91
  $region4: #{encoder_forward.5} parent=0 // loop_header_branch
    %12 = sbr.rel (%p10) target = $region8
  $region5: #{encoder_forward.5} parent=0 // loop_body
    %s14 = ssub.s32 %s9, 1
    %s15 = ssub.s32 %s9, 2
    %s16 = sadd.s32 %s9, 1
    %s17 = ssub.s32 %s9, %s16
    %p18 = scmp.eq.s32.totalorder %s17, 0
    %s20 = sadd.s32 %s19, 1
    %s21 = scalar_select %p18, %s19, %s20
    %p24 = pneg %p18
    %p25 = scmp.eq.s32.totalorder %s9, 1
    %p26 = por %p24, %p25
    %p27 = scmp.ne.s32.totalorder %s19, %s22
    %p28 = scmp.eq.s32.totalorder %s9, 0
    %p29 = por %p27, %p28
    %p30 = scmp.ne.s32.totalorder %s19, %s22
    %p31 = scmp.eq.s32.totalorder %s14, 1
    %p32 = por %p30, %p31
    %p33 = scmp.ne.s32.totalorder %s22, %s23
    %p34 = scmp.eq.s32.totalorder %s14, 0
    %p35 = por %p33, %p34
    %p36 = scmp.ne.s32.totalorder %s22, %s23
    %p37 = scmp.eq.s32.totalorder %s15, 1
    %p38 = por %p36, %p37
    %p40 = scmp.ne.s32.totalorder %s23, %s39
    %p41 = scmp.eq.s32.totalorder %s15, 0
    %p42 = por %p40, %p41
    %s44 = sadd.s32 %s43, 1
    %p47 = scmp.eq.s32.totalorder %s9, 1
    %p48 = scmp.ne.s32.totalorder %s43, %s45
    %p49 = scmp.eq.s32.totalorder %s9, 0
    %p50 = por %p48, %p49
    %p51 = scmp.ne.s32.totalorder %s43, %s45
    %p52 = scmp.eq.s32.totalorder %s14, 1
    %p53 = por %p51, %p52
    %p54 = scmp.ne.s32.totalorder %s45, %s46
    %p55 = scmp.eq.s32.totalorder %s14, 0
    %p56 = por %p54, %p55
    %p57 = scmp.ne.s32.totalorder %s45, %s46
    %p58 = scmp.eq.s32.totalorder %s15, 1
    %p59 = por %p57, %p58
    %p61 = scmp.ne.s32.totalorder %s46, %s60
    %p62 = scmp.eq.s32.totalorder %s15, 0
    %p63 = por %p61, %p62
    %s65 = sadd.s32 %s64, 1
    %p68 = scmp.eq.s32.totalorder %s9, 1
    %p69 = scmp.ne.s32.totalorder %s64, %s66
    %p70 = scmp.eq.s32.totalorder %s9, 0
    %p71 = por %p69, %p70
    %p72 = scmp.ne.s32.totalorder %s64, %s66
    %p73 = scmp.eq.s32.totalorder %s14, 1
    %p74 = por %p72, %p73
    %p75 = scmp.ne.s32.totalorder %s66, %s67
    %p76 = scmp.eq.s32.totalorder %s14, 0
    %p77 = por %p75, %p76
    %p78 = scmp.ne.s32.totalorder %s66, %s67
    %p79 = scmp.eq.s32.totalorder %s15, 1
    %p80 = por %p78, %p79
    %p82 = scmp.ne.s32.totalorder %s67, %s81
    %p83 = scmp.eq.s32.totalorder %s15, 0
    %p84 = por %p82, %p83
    %s85 = ssub.s32 %s9, %s16
    %p86 = scmp.eq.s32.totalorder %s85, 0
    %s88 = sadd.s32 %s87, 1
    %s89 = scalar_select %p86, %s87, %s88
    %p92 = pneg %p86
    %p93 = scmp.eq.s32.totalorder %s9, 1
    %p94 = por %p92, %p93
    %p95 = scmp.ne.s32.totalorder %s87, %s90
    %p96 = scmp.eq.s32.totalorder %s9, 0
    %p97 = por %p95, %p96
    %p98 = scmp.ne.s32.totalorder %s87, %s90
    %p99 = scmp.eq.s32.totalorder %s14, 1
    %p100 = por %p98, %p99
    %p101 = scmp.ne.s32.totalorder %s90, %s91
    %p102 = scmp.eq.s32.totalorder %s14, 0
    %p103 = por %p101, %p102
    %p104 = scmp.ne.s32.totalorder %s90, %s91
    %p105 = scmp.eq.s32.totalorder %s15, 1
    %p106 = por %p104, %p105
    %p108 = scmp.ne.s32.totalorder %s91, %s107
    %p109 = scmp.eq.s32.totalorder %s15, 0
    %p110 = por %p108, %p109
    %p111 = scmp.le.s32.totalorder 1, %s9
    %p112 = scmp.lt.s32.totalorder %s9, 3
    %p113 = pnand %p111, %p112
    %p114 = pneg %p113
    // Predicated region
    $region9: #{encoder_forward.5} parent=5 // pred_check
      _
    $region10: #{encoder_forward.5} parent=5 // pred_check_branch
      %116 = sbr.rel (%p113) target = $region12
    $region11: #{encoder_forward.5} parent=5 // pred_region
      %s117 = ssub.s32 %s9, 1
      // Predicated region
      $region13: #{encoder_forward.5} parent=11 // pred_check
        %p118 = pneg %p56
      $region14: #{encoder_forward.5} parent=11 // pred_check_branch
        %120 = sbr.rel (%p118) target = $region16
      $region15: #{encoder_forward.5} parent=11 // pred_region
        _
      $region16: #{encoder_forward.5} parent=11 // pred_fallthru
        _
      // Predicated region
      $region17: #{encoder_forward.5} parent=11 // pred_check
        %p121 = pneg %p77
      $region18: #{encoder_forward.5} parent=11 // pred_check_branch
        %123 = sbr.rel (%p121) target = $region20
      $region19: #{encoder_forward.5} parent=11 // pred_region
        _
      $region20: #{encoder_forward.5} parent=11 // pred_fallthru
        _
    $region12: #{encoder_forward.5} parent=5 // pred_fallthru
      _
    %p124 = scmp.lt.s32.totalorder %s9, 2
    // Predicated region
    $region21: #{encoder_forward.5} parent=5 // pred_check
      %p125 = pneg %p124
    $region22: #{encoder_forward.5} parent=5 // pred_check_branch
      %127 = sbr.rel (%p125) target = $region24
    $region23: #{encoder_forward.5} parent=5 // pred_region
      // Predicated region
      $region25: #{encoder_forward.5} parent=23 // pred_check
        %p128 = pneg %p29
      $region26: #{encoder_forward.5} parent=23 // pred_check_branch
        %130 = sbr.rel (%p128) target = $region28
      $region27: #{encoder_forward.5} parent=23 // pred_region
        %s131 = smul.u32 57, %s9
        %p132 = scmp.lt.s32.totalorder %s131, 113
        %s133 = scalar_select %p132, %s131, 113
        %s134 = smul.addr %s133, 4
        %s135 = scalar_lea.vmem %s0, %s134
        %s136 = smul.u32 57, %s9
      $region28: #{encoder_forward.5} parent=23 // pred_fallthru
        _
    $region24: #{encoder_forward.5} parent=5 // pred_fallthru
      _
    %p137 = scmp.le.s32.totalorder 1, %s9
    %p138 = scmp.lt.s32.totalorder %s9, 3
    %p139 = pnand %p137, %p138
    %p140 = pneg %p139
    // Predicated region
    $region29: #{encoder_forward.5} parent=5 // pred_check
      _
    $region30: #{encoder_forward.5} parent=5 // pred_check_branch
      %142 = sbr.rel (%p139) target = $region32
    $region31: #{encoder_forward.5} parent=5 // pred_region
      %s143 = ssub.s32 %s9, 1
      %s144 = smul.u32 57, %s14
      %p145 = scmp.lt.s32.totalorder %s144, 113
      %s146 = scalar_select %p145, %s144, 113
      %s147 = smul.addr %s146, 4
      %s148 = scalar_lea.vmem %s0, %s147
      %p149 = pneg %p35
      %p150 = pneg %p32
      %p151 = pneg %p56
      %p152 = pneg %p53
      %p153 = pneg %p77
      %p154 = pneg %p74
      %p155 = pneg %p103
      %p156 = pneg %p100
      %s157 = smul.u32 57, %s14
      %p158 = scmp.lt.s32.totalorder %s157, 113
      %s159 = scalar_select %p158, %s157, 113
      %s160 = smul.addr %s159, 4
      %s161 = scalar_lea.vmem %s3, %s160
      %s162 = smul.u32 57, %s14
      %p163 = scmp.lt.s32.totalorder %s162, 113
      %s164 = scalar_select %p163, %s162, 113
      %s165 = smul.addr %s164, 4
      %s166 = scalar_lea.vmem %s0, %s165
      %s167 = smul.u32 57, %s14
      %s168 = smul.u32 57, %s14
      %p169 = scmp.lt.s32.totalorder %s168, 113
      %s170 = scalar_select %p169, %s168, 113
      %s171 = smul.addr %s170, 4
      %s172 = scalar_lea.vmem %s3, %s171
      %s173 = smul.u32 57, %s14
      %v175 = vld [vmem:[%s166] sm:$0xf]
      %v176 = vld [vmem:[%s166 + $0x4] sm:$0xf]
      %v177 = vld [vmem:[%s166 + $0x8] sm:$0xf]
      %v178 = vld [vmem:[%s166 + $0xc] sm:$0xf]
      %v179 = vld [vmem:[%s166 + $0x10] sm:$0xf]
      %v180 = vld [vmem:[%s166 + $0x14] sm:$0xf]
      %v181 = vld [vmem:[%s166 + $0x18] sm:$0xf]
      %v182 = vld [vmem:[%s166 + $0x1c] sm:$0xf]
      %v183 = vld [vmem:[%s166 + $0x20] sm:$0xf]
      %v184 = vld [vmem:[%s166 + $0x24] sm:$0xf]
      %v185 = vld [vmem:[%s166 + $0x28] sm:$0xf]
      %v186 = vld [vmem:[%s166 + $0x2c] sm:$0xf]
      %v187 = vld [vmem:[%s166 + $0x30] sm:$0xf]
      %v188 = vld [vmem:[%s166 + $0x34] sm:$0xf]
      %v189 = vld [vmem:[%s166 + $0x38] sm:$0xf]
      %v190 = vld [vmem:[%s166 + $0x3c] sm:$0xf]
      %v191 = vld [vmem:[%s166 + $0x40] sm:$0xf]
      %v192 = vld [vmem:[%s166 + $0x44] sm:$0xf]
      %v193 = vld [vmem:[%s166 + $0x48] sm:$0xf]
      %v194 = vld [vmem:[%s166 + $0x4c] sm:$0xf]
      %v195 = vld [vmem:[%s166 + $0x50] sm:$0xf]
      %v196 = vld [vmem:[%s166 + $0x54] sm:$0xf]
      %v197 = vld [vmem:[%s166 + $0x58] sm:$0xf]
      %v198 = vld [vmem:[%s166 + $0x5c] sm:$0xf]
      %v199 = vld [vmem:[%s166 + $0x60] sm:$0xf]
      %v200 = vld [vmem:[%s166 + $0x64] sm:$0xf]
      %v201 = vld [vmem:[%s166 + $0x68] sm:$0xf]
      %v202 = vld [vmem:[%s166 + $0x6c] sm:$0xf]
      %v203 = vld [vmem:[%s166 + $0x70] sm:$0xf]
      %v204 = vld [vmem:[%s166 + $0x74] sm:$0xf]
      %v205 = vld [vmem:[%s166 + $0x78] sm:$0xf]
      %v206 = vld [vmem:[%s166 + $0x7c] sm:$0xf]
      %v207 = vld [vmem:[%s166 + $0x80] sm:$0xf]
      %v208 = vld [vmem:[%s166 + $0x84] sm:$0xf]
      %v209 = vld [vmem:[%s166 + $0x88] sm:$0xf]
      %v210 = vld [vmem:[%s166 + $0x8c] sm:$0xf]
      %v211 = vld [vmem:[%s166 + $0x90] sm:$0xf]
      %v212 = vld [vmem:[%s166 + $0x94] sm:$0xf]
      %v213 = vld [vmem:[%s166 + $0x98] sm:$0xf]
      %v214 = vld [vmem:[%s166 + $0x9c] sm:$0xf]
      %v215 = vld [vmem:[%s166 + $0xa0] sm:$0xf]
      %v216 = vld [vmem:[%s166 + $0xa4] sm:$0xf]
      %v217 = vld [vmem:[%s166 + $0xa8] sm:$0xf]
      %v218 = vld [vmem:[%s166 + $0xac] sm:$0xf]
      %v219 = vld [vmem:[%s166 + $0xb0] sm:$0xf]
      %v220 = vld [vmem:[%s166 + $0xb4] sm:$0xf]
      %v221 = vld [vmem:[%s166 + $0xb8] sm:$0xf]
      %v222 = vld [vmem:[%s166 + $0xbc] sm:$0xf]
      %v223 = vld [vmem:[%s166 + $0xc0] sm:$0xf]
      %v224 = vld [vmem:[%s166 + $0xc4] sm:$0xf]
      %v225 = vld [vmem:[%s166 + $0xc8] sm:$0xf]
      %v226 = vld [vmem:[%s166 + $0xcc] sm:$0xf]
      %v227 = vld [vmem:[%s166 + $0xd0] sm:$0xf]
      %v228 = vld [vmem:[%s166 + $0xd4] sm:$0xf]
      %v229 = vld [vmem:[%s166 + $0xd8] sm:$0xf]
      %v230 = vld [vmem:[%s166 + $0xdc] sm:$0xf]
      %v231 = vld [vmem:[%s166 + $0xe0] sm:$0xf]
      %v232 = vld [vmem:[%s1] sm:$0xf]
      %v233 = vld [vmem:[%s1 + $0x4] sm:$0xf]
      %v234 = vld [vmem:[%s1 + $0x8] sm:$0xf]
      %v235 = vld [vmem:[%s1 + $0xc] sm:$0xf]
      %v236 = vld [vmem:[%s1 + $0x10] sm:$0xf]
      %v237 = vld [vmem:[%s1 + $0x14] sm:$0xf]
      %v238 = vld [vmem:[%s2] sm:$0x1]
      %v240 = vlaneseq
      %v241 = vshrl.u32 %v240, 7
      %v242 = vsub.s32 0, %v241
      %v243 = vrot.slane %v238, %v242
      %v302 = vunpack.c.l.b16 %v175
      %v303 = vunpack.c.l.b16 %v176
      %v304 = vunpack.c.l.b16 %v177
      %v305 = vunpack.c.l.b16 %v178
      %v306 = vunpack.c.l.b16 %v179
      %v307 = vunpack.c.l.b16 %v180
      %v308 = vunpack.c.l.b16 %v181
      %v309 = vunpack.c.l.b16 %v182
      %v310 = vunpack.c.l.b16 %v183
      %v311 = vunpack.c.l.b16 %v184
      %v312 = vunpack.c.l.b16 %v185
      %v313 = vunpack.c.l.b16 %v186
      %v314 = vunpack.c.l.b16 %v187
      %v315 = vunpack.c.l.b16 %v188
      %v316 = vunpack.c.l.b16 %v189
      %v317 = vunpack.c.l.b16 %v190
      %v318 = vunpack.c.l.b16 %v191
      %v319 = vunpack.c.l.b16 %v192
      %v320 = vunpack.c.l.b16 %v193
      %v321 = vunpack.c.l.b16 %v194
      %v322 = vunpack.c.l.b16 %v195
      %v323 = vunpack.c.l.b16 %v196
      %v324 = vunpack.c.l.b16 %v197
      %v325 = vunpack.c.l.b16 %v198
      %v326 = vunpack.c.l.b16 %v199
      %v327 = vunpack.c.l.b16 %v200
      %v328 = vunpack.c.l.b16 %v201
      %v329 = vunpack.c.l.b16 %v202
      %v330 = vunpack.c.l.b16 %v203
      %v331 = vunpack.c.l.b16 %v204
      %v332 = vunpack.c.l.b16 %v205
      %v333 = vunpack.c.l.b16 %v206
      %v334 = vunpack.c.l.b16 %v207
      %v335 = vunpack.c.l.b16 %v208
      %v336 = vunpack.c.l.b16 %v209
      %v337 = vunpack.c.l.b16 %v210
      %v338 = vunpack.c.l.b16 %v211
      %v339 = vunpack.c.l.b16 %v212
      %v340 = vunpack.c.l.b16 %v213
      %v341 = vunpack.c.l.b16 %v214
      %v342 = vunpack.c.l.b16 %v215
      %v343 = vunpack.c.l.b16 %v216
      %v344 = vunpack.c.l.b16 %v217
      %v345 = vunpack.c.l.b16 %v218
      %v346 = vunpack.c.l.b16 %v219
      %v347 = vunpack.c.l.b16 %v220
      %v348 = vunpack.c.l.b16 %v221
      %v349 = vunpack.c.l.b16 %v222
      %v350 = vunpack.c.l.b16 %v223
      %v351 = vunpack.c.l.b16 %v224
      %v352 = vunpack.c.l.b16 %v225
      %v353 = vunpack.c.l.b16 %v226
      %v354 = vunpack.c.l.b16 %v227
      %v355 = vunpack.c.l.b16 %v228
      %v356 = vunpack.c.l.b16 %v229
      %v357 = vunpack.c.l.b16 %v230
      %v358 = vunpack.c.l.b16 %v231
      %v359 = vpack.c.b16 %v303, %v302
      %v360 = vpack.c.b16 %v305, %v304
      %v361 = vpack.c.b16 %v307, %v306
      %v362 = vpack.c.b16 %v309, %v308
      %v363 = vpack.c.b16 %v311, %v310
      %v364 = vpack.c.b16 %v313, %v312
      %v365 = vpack.c.b16 %v315, %v314
      %v366 = vpack.c.b16 %v317, %v316
      %v367 = vpack.c.b16 %v319, %v318
      %v368 = vpack.c.b16 %v321, %v320
      %v369 = vpack.c.b16 %v323, %v322
      %v370 = vpack.c.b16 %v325, %v324
      %v371 = vpack.c.b16 %v327, %v326
      %v372 = vpack.c.b16 %v329, %v328
      %v373 = vpack.c.b16 %v331, %v330
      %v374 = vpack.c.b16 %v333, %v332
      %v375 = vpack.c.b16 %v335, %v334
      %v376 = vpack.c.b16 %v337, %v336
      %v377 = vpack.c.b16 %v339, %v338
      %v378 = vpack.c.b16 %v341, %v340
      %v379 = vpack.c.b16 %v343, %v342
      %v380 = vpack.c.b16 %v345, %v344
      %v381 = vpack.c.b16 %v347, %v346
      %v382 = vpack.c.b16 %v349, %v348
      %v383 = vpack.c.b16 %v351, %v350
      %v384 = vpack.c.b16 %v353, %v352
      %v385 = vpack.c.b16 %v355, %v354
      %v386 = vpack.c.b16 %v357, %v356
      %v387 = vpack.c.b16 %v358, %v358
      %v394 = vunpack.c.l.b16 %v232
      %v395 = vunpack.c.l.b16 %v233
      %v396 = vunpack.c.l.b16 %v234
      %v397 = vunpack.c.l.b16 %v235
      %v398 = vunpack.c.l.b16 %v236
      %v399 = vunpack.c.l.b16 %v237
      %v400 = vpack.c.b16 %v395, %v394
      %v401 = vpack.c.b16 %v397, %v396
      %v402 = vpack.c.b16 %v399, %v398
      %vm406 = vcmask 392192
      %v408 = vsel %vm406, %v359, 0
      %v411 = vsel %vm406, %v360, 0
      %v414 = vsel %vm406, %v361, 0
      %v417 = vsel %vm406, %v362, 0
      %v420 = vsel %vm406, %v363, 0
      %v423 = vsel %vm406, %v364, 0
      %v426 = vsel %vm406, %v365, 0
      %v429 = vsel %vm406, %v366, 0
      %v432 = vsel %vm406, %v367, 0
      %v435 = vsel %vm406, %v368, 0
      %v438 = vsel %vm406, %v369, 0
      %v441 = vsel %vm406, %v370, 0
      %v444 = vsel %vm406, %v371, 0
      %v447 = vsel %vm406, %v372, 0
      %v450 = vsel %vm406, %v373, 0
      %v453 = vsel %vm406, %v374, 0
      %v456 = vsel %vm406, %v375, 0
      %v459 = vsel %vm406, %v376, 0
      %v462 = vsel %vm406, %v377, 0
      %v465 = vsel %vm406, %v378, 0
      %v468 = vsel %vm406, %v379, 0
      %v471 = vsel %vm406, %v380, 0
      %v474 = vsel %vm406, %v381, 0
      %v477 = vsel %vm406, %v382, 0
      %v480 = vsel %vm406, %v383, 0
      %v483 = vsel %vm406, %v384, 0
      %v486 = vsel %vm406, %v385, 0
      %v489 = vsel %vm406, %v386, 0
      %v492 = vsel %vm406, %v387, 0
      %494 = vmatprep.subr.bf16.mxu0 0
      %495 = vmatpush1.bf16.msra.mxu0 %v400
      %496 = vmatprep.subr.bf16.mxu0 0
      %497 = vmatpush1.bf16.msra.mxu0 %v401
      %498 = vmatprep.subr.bf16.mxu0 0
      %499 = vmatpush1.bf16.msra.mxu0 %v402
      %500 = vmatprep.subr.bf16.mxu0 0
      %501 = vmatpush1.bf16.msra.mxu0 0
      %502 = vmatprep.subr.bf16.mxu0 0
      %503 = vmatpush1.bf16.msra.mxu0 0
      %504 = vmatprep.subr.bf16.mxu0 0
      %505 = vmatpush1.bf16.msra.mxu0 0
      %506 = vmatprep.subr.bf16.mxu0 0
      %507 = vmatpush1.bf16.msra.mxu0 0
      %508 = vmatprep.subr.bf16.mxu0 0
      %509 = vmatpush1.bf16.msra.mxu0 0
      %510 = vmatprep.subr.bf16.mxu0 0
      %511 = vmatpush1.bf16.msra.mxu0 0
      %512 = vmatprep.subr.bf16.mxu0 0
      %513 = vmatpush1.bf16.msra.mxu0 0
      %514 = vmatprep.subr.bf16.mxu0 0
      %515 = vmatpush1.bf16.msra.mxu0 0
      %516 = vmatprep.subr.bf16.mxu0 0
      %517 = vmatpush1.bf16.msra.mxu0 0
      %518 = vmatprep.subr.bf16.mxu0 0
      %519 = vmatpush1.bf16.msra.mxu0 0
      %520 = vmatprep.subr.bf16.mxu0 0
      %521 = vmatpush1.bf16.msra.mxu0 0
      %522 = vmatprep.subr.bf16.mxu0 0
      %523 = vmatpush1.bf16.msra.mxu0 0
      %524 = vmatprep.subr.bf16.mxu0 0
      %525 = vmatpush1.bf16.msra.mxu0 0
      %526 = vmatprep.mubr.bf16.mxu0 0
      %527 = vmatmul.mubr.bf16.gmra.mrb[0].mxu0 %v408
      %v528 = vpop.f32.mrb[0].mxu0
      %v529 = vadd.f32 %v243, %v528
      %v530 = vpop.f32.mrb[0].mxu0
      %v531 = vpop.f32.mrb[0].mxu0
      %v532 = vadd.f32 %v243, %v531
      %v533 = vpop.f32.mrb[0].mxu0
      %534 = vmatprep.mubr.bf16.mxu0 0
      %535 = vmatmul.mubr.bf16.gmra.mrb[0].mxu0 %v411
      %v536 = vpop.f32.mrb[0].mxu0
      %v537 = vadd.f32 %v243, %v536
      %v538 = vpop.f32.mrb[0].mxu0
      %v539 = vpop.f32.mrb[0].mxu0
      %v540 = vadd.f32 %v243, %v539
      %v541 = vpop.f32.mrb[0].mxu0
      %542 = vmatprep.mubr.bf16.mxu0 0
      %543 = vmatmul.mubr.bf16.gmra.mrb[0].mxu0 %v414
      %v544 = vpop.f32.mrb[0].mxu0
      %v545 = vadd.f32 %v243, %v544
      %v546 = vpop.f32.mrb[0].mxu0
      %v547 = vpop.f32.mrb[0].mxu0
      %v548 = vadd.f32 %v243, %v547
      %v549 = vpop.f32.mrb[0].mxu0
      %550 = vmatprep.mubr.bf16.mxu0 0
      %551 = vmatmul.mubr.bf16.gmra.mrb[0].mxu0 %v417
      %v552 = vpop.f32.mrb[0].mxu0
      %v553 = vadd.f32 %v243, %v552
      %v554 = vpop.f32.mrb[0].mxu0
      %v555 = vpop.f32.mrb[0].mxu0
      %v556 = vadd.f32 %v243, %v555
      %v557 = vpop.f32.mrb[0].mxu0
      %558 = vmatprep.mubr.bf16.mxu0 0
      %559 = vmatmul.mubr.bf16.gmra.mrb[0].mxu0 %v420
      %v560 = vpop.f32.mrb[0].mxu0
      %v561 = vadd.f32 %v243, %v560
      %v562 = vpop.f32.mrb[0].mxu0
      %v563 = vpop.f32.mrb[0].mxu0
      %v564 = vadd.f32 %v243, %v563
      %v565 = vpop.f32.mrb[0].mxu0
      %566 = vmatprep.mubr.bf16.mxu0 0
      %567 = vmatmul.mubr.bf16.gmra.mrb[0].mxu0 %v423
      %v568 = vpop.f32.mrb[0].mxu0
      %v569 = vadd.f32 %v243, %v568
      %v570 = vpop.f32.mrb[0].mxu0
      %v571 = vpop.f32.mrb[0].mxu0
      %v572 = vadd.f32 %v243, %v571
      %v573 = vpop.f32.mrb[0].mxu0
      %574 = vmatprep.mubr.bf16.mxu0 0
      %575 = vmatmul.mubr.bf16.gmra.mrb[0].mxu0 %v426
      %v576 = vpop.f32.mrb[0].mxu0
      %v577 = vadd.f32 %v243, %v576
      %v578 = vpop.f32.mrb[0].mxu0
      %v579 = vpop.f32.mrb[0].mxu0
      %v580 = vadd.f32 %v243, %v579
      %v581 = vpop.f32.mrb[0].mxu0
      %582 = vmatprep.mubr.bf16.mxu0 0
      %583 = vmatmul.mubr.bf16.gmra.mrb[0].mxu0 %v429
      %v584 = vpop.f32.mrb[0].mxu0
      %v585 = vadd.f32 %v243, %v584
      %v586 = vpop.f32.mrb[0].mxu0
      %v587 = vpop.f32.mrb[0].mxu0
      %v588 = vadd.f32 %v243, %v587
      %v589 = vpop.f32.mrb[0].mxu0
      %590 = vmatprep.mubr.bf16.mxu0 0
      %591 = vmatmul.mubr.bf16.gmra.mrb[0].mxu0 %v432
      %v592 = vpop.f32.mrb[0].mxu0
      %v593 = vadd.f32 %v243, %v592
      %v594 = vpop.f32.mrb[0].mxu0
      %v595 = vpop.f32.mrb[0].mxu0
      %v596 = vadd.f32 %v243, %v595
      %v597 = vpop.f32.mrb[0].mxu0
      %598 = vmatprep.mubr.bf16.mxu0 0
      %599 = vmatmul.mubr.bf16.gmra.mrb[0].mxu0 %v435
      %v600 = vpop.f32.mrb[0].mxu0
      %v601 = vadd.f32 %v243, %v600
      %v602 = vpop.f32.mrb[0].mxu0
      %v603 = vpop.f32.mrb[0].mxu0
      %v604 = vadd.f32 %v243, %v603
      %v605 = vpop.f32.mrb[0].mxu0
      %606 = vmatprep.mubr.bf16.mxu0 0
      %607 = vmatmul.mubr.bf16.gmra.mrb[0].mxu0 %v438
      %v608 = vpop.f32.mrb[0].mxu0
      %v609 = vadd.f32 %v243, %v608
      %v610 = vpop.f32.mrb[0].mxu0
      %v611 = vpop.f32.mrb[0].mxu0
      %v612 = vadd.f32 %v243, %v611
      %v613 = vpop.f32.mrb[0].mxu0
      %614 = vmatprep.mubr.bf16.mxu0 0
      %615 = vmatmul.mubr.bf16.gmra.mrb[0].mxu0 %v441
      %v616 = vpop.f32.mrb[0].mxu0
      %v617 = vadd.f32 %v243, %v616
      %v618 = vpop.f32.mrb[0].mxu0
      %v619 = vpop.f32.mrb[0].mxu0
      %v620 = vadd.f32 %v243, %v619
      %v621 = vpop.f32.mrb[0].mxu0
      %622 = vmatprep.mubr.bf16.mxu0 0
      %623 = vmatmul.mubr.bf16.gmra.mrb[0].mxu0 %v444
      %v624 = vpop.f32.mrb[0].mxu0
      %v625 = vadd.f32 %v243, %v624
      %v626 = vpop.f32.mrb[0].mxu0
      %v627 = vpop.f32.mrb[0].mxu0
      %v628 = vadd.f32 %v243, %v627
      %v629 = vpop.f32.mrb[0].mxu0
      %630 = vmatprep.mubr.bf16.mxu0 0
      %631 = vmatmul.mubr.bf16.gmra.mrb[0].mxu0 %v447
      %v632 = vpop.f32.mrb[0].mxu0
      %v633 = vadd.f32 %v243, %v632
      %v634 = vpop.f32.mrb[0].mxu0
      %v635 = vpop.f32.mrb[0].mxu0
      %v636 = vadd.f32 %v243, %v635
      %v637 = vpop.f32.mrb[0].mxu0
      %638 = vmatprep.mubr.bf16.mxu0 0
      %639 = vmatmul.mubr.bf16.gmra.mrb[0].mxu0 %v450
      %v640 = vpop.f32.mrb[0].mxu0
      %v641 = vadd.f32 %v243, %v640
      %v642 = vpop.f32.mrb[0].mxu0
      %v643 = vpop.f32.mrb[0].mxu0
      %v644 = vadd.f32 %v243, %v643
      %v645 = vpop.f32.mrb[0].mxu0
      %646 = vmatprep.mubr.bf16.mxu0 0
      %647 = vmatmul.mubr.bf16.gmra.mrb[0].mxu0 %v453
      %v648 = vpop.f32.mrb[0].mxu0
      %v649 = vadd.f32 %v243, %v648
      %v650 = vpop.f32.mrb[0].mxu0
      %v651 = vpop.f32.mrb[0].mxu0
      %v652 = vadd.f32 %v243, %v651
      %v653 = vpop.f32.mrb[0].mxu0
      %654 = vmatprep.mubr.bf16.mxu0 0
      %655 = vmatmul.mubr.bf16.gmra.mrb[0].mxu0 %v456
      %v656 = vpop.f32.mrb[0].mxu0
      %v657 = vadd.f32 %v243, %v656
      %v658 = vpop.f32.mrb[0].mxu0
      %v659 = vpop.f32.mrb[0].mxu0
      %v660 = vadd.f32 %v243, %v659
      %v661 = vpop.f32.mrb[0].mxu0
      %662 = vmatprep.mubr.bf16.mxu0 0
      %663 = vmatmul.mubr.bf16.gmra.mrb[0].mxu0 %v459
      %v664 = vpop.f32.mrb[0].mxu0
      %v665 = vadd.f32 %v243, %v664
      %v666 = vpop.f32.mrb[0].mxu0
      %v667 = vpop.f32.mrb[0].mxu0
      %v668 = vadd.f32 %v243, %v667
      %v669 = vpop.f32.mrb[0].mxu0
      %670 = vmatprep.mubr.bf16.mxu0 0
      %671 = vmatmul.mubr.bf16.gmra.mrb[0].mxu0 %v462
      %v672 = vpop.f32.mrb[0].mxu0
      %v673 = vadd.f32 %v243, %v672
      %v674 = vpop.f32.mrb[0].mxu0
      %v675 = vpop.f32.mrb[0].mxu0
      %v676 = vadd.f32 %v243, %v675
      %v677 = vpop.f32.mrb[0].mxu0
      %678 = vmatprep.mubr.bf16.mxu0 0
      %679 = vmatmul.mubr.bf16.gmra.mrb[0].mxu0 %v465
      %v680 = vpop.f32.mrb[0].mxu0
      %v681 = vadd.f32 %v243, %v680
      %v682 = vpop.f32.mrb[0].mxu0
      %v683 = vpop.f32.mrb[0].mxu0
      %v684 = vadd.f32 %v243, %v683
      %v685 = vpop.f32.mrb[0].mxu0
      %686 = vmatprep.mubr.bf16.mxu0 0
      %687 = vmatmul.mubr.bf16.gmra.mrb[0].mxu0 %v468
      %v688 = vpop.f32.mrb[0].mxu0
      %v689 = vadd.f32 %v243, %v688
      %v690 = vpop.f32.mrb[0].mxu0
      %v691 = vpop.f32.mrb[0].mxu0
      %v692 = vadd.f32 %v243, %v691
      %v693 = vpop.f32.mrb[0].mxu0
      %694 = vmatprep.mubr.bf16.mxu0 0
      %695 = vmatmul.mubr.bf16.gmra.mrb[0].mxu0 %v471
      %v696 = vpop.f32.mrb[0].mxu0
      %v697 = vadd.f32 %v243, %v696
      %v698 = vpop.f32.mrb[0].mxu0
      %v699 = vpop.f32.mrb[0].mxu0
      %v700 = vadd.f32 %v243, %v699
      %v701 = vpop.f32.mrb[0].mxu0
      %702 = vmatprep.mubr.bf16.mxu0 0
      %703 = vmatmul.mubr.bf16.gmra.mrb[0].mxu0 %v474
      %v704 = vpop.f32.mrb[0].mxu0
      %v705 = vadd.f32 %v243, %v704
      %v706 = vpop.f32.mrb[0].mxu0
      %v707 = vpop.f32.mrb[0].mxu0
      %v708 = vadd.f32 %v243, %v707
      %v709 = vpop.f32.mrb[0].mxu0
      %710 = vmatprep.mubr.bf16.mxu0 0
      %711 = vmatmul.mubr.bf16.gmra.mrb[0].mxu0 %v477
      %v712 = vpop.f32.mrb[0].mxu0
      %v713 = vadd.f32 %v243, %v712
      %v714 = vpop.f32.mrb[0].mxu0
      %v715 = vpop.f32.mrb[0].mxu0
      %v716 = vadd.f32 %v243, %v715
      %v717 = vpop.f32.mrb[0].mxu0
      %718 = vmatprep.mubr.bf16.mxu0 0
      %719 = vmatmul.mubr.bf16.gmra.mrb[0].mxu0 %v480
      %v720 = vpop.f32.mrb[0].mxu0
      %v721 = vadd.f32 %v243, %v720
      %v722 = vpop.f32.mrb[0].mxu0
      %v723 = vpop.f32.mrb[0].mxu0
      %v724 = vadd.f32 %v243, %v723
      %v725 = vpop.f32.mrb[0].mxu0
      %726 = vmatprep.mubr.bf16.mxu0 0
      %727 = vmatmul.mubr.bf16.gmra.mrb[0].mxu0 %v483
      %v728 = vpop.f32.mrb[0].mxu0
      %v729 = vadd.f32 %v243, %v728
      %v730 = vpop.f32.mrb[0].mxu0
      %v731 = vpop.f32.mrb[0].mxu0
      %v732 = vadd.f32 %v243, %v731
      %v733 = vpop.f32.mrb[0].mxu0
      %734 = vmatprep.mubr.bf16.mxu0 0
      %735 = vmatmul.mubr.bf16.gmra.mrb[0].mxu0 %v486
      %v736 = vpop.f32.mrb[0].mxu0
      %v737 = vadd.f32 %v243, %v736
      %v738 = vpop.f32.mrb[0].mxu0
      %v739 = vpop.f32.mrb[0].mxu0
      %v740 = vadd.f32 %v243, %v739
      %v741 = vpop.f32.mrb[0].mxu0
      %742 = vmatprep.mubr.bf16.mxu0 0
      %743 = vmatmul.mubr.bf16.gmra.mrb[0].mxu0 %v489
      %v744 = vpop.f32.mrb[0].mxu0
      %v745 = vadd.f32 %v243, %v744
      %v746 = vpop.f32.mrb[0].mxu0
      %v747 = vpop.f32.mrb[0].mxu0
      %v748 = vadd.f32 %v243, %v747
      %v749 = vpop.f32.mrb[0].mxu0
      %750 = vmatprep.mubr.bf16.mxu0 0
      %751 = vmatmul.mubr.bf16.gmra.mrb[0].mxu0 %v492
      %v752 = vpop.f32.mrb[0].mxu0
      %v753 = vadd.f32 %v243, %v752
      %v754 = vpop.f32.mrb[0].mxu0
      %v755 = vpop.f32.mrb[0].mxu0
      %v756 = vpop.f32.mrb[0].mxu0
      %757 = vdwg.mxu0
      %v758 = vmax.f32 %v529, 0.0
      %v759 = vmax.f32 %v532, 0.0
      %v760 = vmax.f32 %v537, 0.0
      %v761 = vmax.f32 %v540, 0.0
      %v762 = vmax.f32 %v545, 0.0
      %v763 = vmax.f32 %v548, 0.0
      %v764 = vmax.f32 %v553, 0.0
      %v765 = vmax.f32 %v556, 0.0
      %v766 = vmax.f32 %v561, 0.0
      %v767 = vmax.f32 %v564, 0.0
      %v768 = vmax.f32 %v569, 0.0
      %v769 = vmax.f32 %v572, 0.0
      %v770 = vmax.f32 %v577, 0.0
      %v771 = vmax.f32 %v580, 0.0
      %v772 = vmax.f32 %v585, 0.0
      %v773 = vmax.f32 %v588, 0.0
      %v774 = vmax.f32 %v593, 0.0
      %v775 = vmax.f32 %v596, 0.0
      %v776 = vmax.f32 %v601, 0.0
      %v777 = vmax.f32 %v604, 0.0
      %v778 = vmax.f32 %v609, 0.0
      %v779 = vmax.f32 %v612, 0.0
      %v780 = vmax.f32 %v617, 0.0
      %v781 = vmax.f32 %v620, 0.0
      %v782 = vmax.f32 %v625, 0.0
      %v783 = vmax.f32 %v628, 0.0
      %v784 = vmax.f32 %v633, 0.0
      %v785 = vmax.f32 %v636, 0.0
      %v786 = vmax.f32 %v641, 0.0
      %v787 = vmax.f32 %v644, 0.0
      %v788 = vmax.f32 %v649, 0.0
      %v789 = vmax.f32 %v652, 0.0
      %v790 = vmax.f32 %v657, 0.0
      %v791 = vmax.f32 %v660, 0.0
      %v792 = vmax.f32 %v665, 0.0
      %v793 = vmax.f32 %v668, 0.0
      %v794 = vmax.f32 %v673, 0.0
      %v795 = vmax.f32 %v676, 0.0
      %v796 = vmax.f32 %v681, 0.0
      %v797 = vmax.f32 %v684, 0.0
      %v798 = vmax.f32 %v689, 0.0
      %v799 = vmax.f32 %v692, 0.0
      %v800 = vmax.f32 %v697, 0.0
      %v801 = vmax.f32 %v700, 0.0
      %v802 = vmax.f32 %v705, 0.0
      %v803 = vmax.f32 %v708, 0.0
      %v804 = vmax.f32 %v713, 0.0
      %v805 = vmax.f32 %v716, 0.0
      %v806 = vmax.f32 %v721, 0.0
      %v807 = vmax.f32 %v724, 0.0
      %v808 = vmax.f32 %v729, 0.0
      %v809 = vmax.f32 %v732, 0.0
      %v810 = vmax.f32 %v737, 0.0
      %v811 = vmax.f32 %v740, 0.0
      %v812 = vmax.f32 %v745, 0.0
      %v813 = vmax.f32 %v748, 0.0
      %v814 = vmax.f32 %v753, 0.0
      %v815 = vpack.c.bf16 %v759, %v758
      %v816 = vpack.c.bf16 %v761, %v760
      %v817 = vpack.c.bf16 %v763, %v762
      %v818 = vpack.c.bf16 %v765, %v764
      %v819 = vpack.c.bf16 %v767, %v766
      %v820 = vpack.c.bf16 %v769, %v768
      %v821 = vpack.c.bf16 %v771, %v770
      %v822 = vpack.c.bf16 %v773, %v772
      %v823 = vpack.c.bf16 %v775, %v774
      %v824 = vpack.c.bf16 %v777, %v776
      %v825 = vpack.c.bf16 %v779, %v778
      %v826 = vpack.c.bf16 %v781, %v780
      %v827 = vpack.c.bf16 %v783, %v782
      %v828 = vpack.c.bf16 %v785, %v784
      %v829 = vpack.c.bf16 %v787, %v786
      %v830 = vpack.c.bf16 %v789, %v788
      %v831 = vpack.c.bf16 %v791, %v790
      %v832 = vpack.c.bf16 %v793, %v792
      %v833 = vpack.c.bf16 %v795, %v794
      %v834 = vpack.c.bf16 %v797, %v796
      %v835 = vpack.c.bf16 %v799, %v798
      %v836 = vpack.c.bf16 %v801, %v800
      %v837 = vpack.c.bf16 %v803, %v802
      %v838 = vpack.c.bf16 %v805, %v804
      %v839 = vpack.c.bf16 %v807, %v806
      %v840 = vpack.c.bf16 %v809, %v808
      %v841 = vpack.c.bf16 %v811, %v810
      %v842 = vpack.c.bf16 %v813, %v812
      %v843 = vpack.c.bf16 %v814, %v814
      %v873 = vunpack.c.l.b16 %v815
      %v874 = vunpack.c.h.b16 %v815
      %v875 = vunpack.c.l.b16 %v816
      %v876 = vunpack.c.h.b16 %v816
      %v877 = vunpack.c.l.b16 %v817
      %v878 = vunpack.c.h.b16 %v817
      %v879 = vunpack.c.l.b16 %v818
      %v880 = vunpack.c.h.b16 %v818
      %v881 = vunpack.c.l.b16 %v819
      %v882 = vunpack.c.h.b16 %v819
      %v883 = vunpack.c.l.b16 %v820
      %v884 = vunpack.c.h.b16 %v820
      %v885 = vunpack.c.l.b16 %v821
      %v886 = vunpack.c.h.b16 %v821
      %v887 = vunpack.c.l.b16 %v822
      %v888 = vunpack.c.h.b16 %v822
      %v889 = vunpack.c.l.b16 %v823
      %v890 = vunpack.c.h.b16 %v823
      %v891 = vunpack.c.l.b16 %v824
      %v892 = vunpack.c.h.b16 %v824
      %v893 = vunpack.c.l.b16 %v825
      %v894 = vunpack.c.h.b16 %v825
      %v895 = vunpack.c.l.b16 %v826
      %v896 = vunpack.c.h.b16 %v826
      %v897 = vunpack.c.l.b16 %v827
      %v898 = vunpack.c.h.b16 %v827
      %v899 = vunpack.c.l.b16 %v828
      %v900 = vunpack.c.h.b16 %v828
      %v901 = vunpack.c.l.b16 %v829
      %v902 = vunpack.c.h.b16 %v829
      %v903 = vunpack.c.l.b16 %v830
      %v904 = vunpack.c.h.b16 %v830
      %v905 = vunpack.c.l.b16 %v831
      %v906 = vunpack.c.h.b16 %v831
      %v907 = vunpack.c.l.b16 %v832
      %v908 = vunpack.c.h.b16 %v832
      %v909 = vunpack.c.l.b16 %v833
      %v910 = vunpack.c.h.b16 %v833
      %v911 = vunpack.c.l.b16 %v834
      %v912 = vunpack.c.h.b16 %v834
      %v913 = vunpack.c.l.b16 %v835
      %v914 = vunpack.c.h.b16 %v835
      %v915 = vunpack.c.l.b16 %v836
      %v916 = vunpack.c.h.b16 %v836
      %v917 = vunpack.c.l.b16 %v837
      %v918 = vunpack.c.h.b16 %v837
      %v919 = vunpack.c.l.b16 %v838
      %v920 = vunpack.c.h.b16 %v838
      %v921 = vunpack.c.l.b16 %v839
      %v922 = vunpack.c.h.b16 %v839
      %v923 = vunpack.c.l.b16 %v840
      %v924 = vunpack.c.h.b16 %v840
      %v925 = vunpack.c.l.b16 %v841
      %v926 = vunpack.c.h.b16 %v841
      %v927 = vunpack.c.l.b16 %v842
      %v928 = vunpack.c.h.b16 %v842
      %v929 = vunpack.c.l.b16 %v843
      %v930 = vpack.c.b16 %v873, %v873
      %v931 = vpack.c.b16 %v874, %v874
      %v932 = vpack.c.b16 %v875, %v875
      %v933 = vpack.c.b16 %v876, %v876
      %v934 = vpack.c.b16 %v877, %v877
      %v935 = vpack.c.b16 %v878, %v878
      %v936 = vpack.c.b16 %v879, %v879
      %v937 = vpack.c.b16 %v880, %v880
      %v938 = vpack.c.b16 %v881, %v881
      %v939 = vpack.c.b16 %v882, %v882
      %v940 = vpack.c.b16 %v883, %v883
      %v941 = vpack.c.b16 %v884, %v884
      %v942 = vpack.c.b16 %v885, %v885
      %v943 = vpack.c.b16 %v886, %v886
      %v944 = vpack.c.b16 %v887, %v887
      %v945 = vpack.c.b16 %v888, %v888
      %v946 = vpack.c.b16 %v889, %v889
      %v947 = vpack.c.b16 %v890, %v890
      %v948 = vpack.c.b16 %v891, %v891
      %v949 = vpack.c.b16 %v892, %v892
      %v950 = vpack.c.b16 %v893, %v893
      %v951 = vpack.c.b16 %v894, %v894
      %v952 = vpack.c.b16 %v895, %v895
      %v953 = vpack.c.b16 %v896, %v896
      %v954 = vpack.c.b16 %v897, %v897
      %v955 = vpack.c.b16 %v898, %v898
      %v956 = vpack.c.b16 %v899, %v899
      %v957 = vpack.c.b16 %v900, %v900
      %v958 = vpack.c.b16 %v901, %v901
      %v959 = vpack.c.b16 %v902, %v902
      %v960 = vpack.c.b16 %v903, %v903
      %v961 = vpack.c.b16 %v904, %v904
      %v962 = vpack.c.b16 %v905, %v905
      %v963 = vpack.c.b16 %v906, %v906
      %v964 = vpack.c.b16 %v907, %v907
      %v965 = vpack.c.b16 %v908, %v908
      %v966 = vpack.c.b16 %v909, %v909
      %v967 = vpack.c.b16 %v910, %v910
      %v968 = vpack.c.b16 %v911, %v911
      %v969 = vpack.c.b16 %v912, %v912
      %v970 = vpack.c.b16 %v913, %v913
      %v971 = vpack.c.b16 %v914, %v914
      %v972 = vpack.c.b16 %v915, %v915
      %v973 = vpack.c.b16 %v916, %v916
      %v974 = vpack.c.b16 %v917, %v917
      %v975 = vpack.c.b16 %v918, %v918
      %v976 = vpack.c.b16 %v919, %v919
      %v977 = vpack.c.b16 %v920, %v920
      %v978 = vpack.c.b16 %v921, %v921
      %v979 = vpack.c.b16 %v922, %v922
      %v980 = vpack.c.b16 %v923, %v923
      %v981 = vpack.c.b16 %v924, %v924
      %v982 = vpack.c.b16 %v925, %v925
      %v983 = vpack.c.b16 %v926, %v926
      %v984 = vpack.c.b16 %v927, %v927
      %v985 = vpack.c.b16 %v928, %v928
      %v986 = vpack.c.b16 %v929, %v929
      %1044 = vst [vmem:[%s172] sm:$0xf] %v930
      %1045 = vst [vmem:[%s172 + $0x4] sm:$0xf] %v931
      %1046 = vst [vmem:[%s172 + $0x8] sm:$0xf] %v932
      %1047 = vst [vmem:[%s172 + $0xc] sm:$0xf] %v933
      %1048 = vst [vmem:[%s172 + $0x10] sm:$0xf] %v934
      %1049 = vst [vmem:[%s172 + $0x14] sm:$0xf] %v935
      %1050 = vst [vmem:[%s172 + $0x18] sm:$0xf] %v936
      %1051 = vst [vmem:[%s172 + $0x1c] sm:$0xf] %v937
      %1052 = vst [vmem:[%s172 + $0x20] sm:$0xf] %v938
      %1053 = vst [vmem:[%s172 + $0x24] sm:$0xf] %v939
      %1054 = vst [vmem:[%s172 + $0x28] sm:$0xf] %v940
      %1055 = vst [vmem:[%s172 + $0x2c] sm:$0xf] %v941
      %1056 = vst [vmem:[%s172 + $0x30] sm:$0xf] %v942
      %1057 = vst [vmem:[%s172 + $0x34] sm:$0xf] %v943
      %1058 = vst [vmem:[%s172 + $0x38] sm:$0xf] %v944
      %1059 = vst [vmem:[%s172 + $0x3c] sm:$0xf] %v945
      %1060 = vst [vmem:[%s172 + $0x40] sm:$0xf] %v946
      %1061 = vst [vmem:[%s172 + $0x44] sm:$0xf] %v947
      %1062 = vst [vmem:[%s172 + $0x48] sm:$0xf] %v948
      %1063 = vst [vmem:[%s172 + $0x4c] sm:$0xf] %v949
      %1064 = vst [vmem:[%s172 + $0x50] sm:$0xf] %v950
      %1065 = vst [vmem:[%s172 + $0x54] sm:$0xf] %v951
      %1066 = vst [vmem:[%s172 + $0x58] sm:$0xf] %v952
      %1067 = vst [vmem:[%s172 + $0x5c] sm:$0xf] %v953
      %1068 = vst [vmem:[%s172 + $0x60] sm:$0xf] %v954
      %1069 = vst [vmem:[%s172 + $0x64] sm:$0xf] %v955
      %1070 = vst [vmem:[%s172 + $0x68] sm:$0xf] %v956
      %1071 = vst [vmem:[%s172 + $0x6c] sm:$0xf] %v957
      %1072 = vst [vmem:[%s172 + $0x70] sm:$0xf] %v958
      %1073 = vst [vmem:[%s172 + $0x74] sm:$0xf] %v959
      %1074 = vst [vmem:[%s172 + $0x78] sm:$0xf] %v960
      %1075 = vst [vmem:[%s172 + $0x7c] sm:$0xf] %v961
      %1076 = vst [vmem:[%s172 + $0x80] sm:$0xf] %v962
      %1077 = vst [vmem:[%s172 + $0x84] sm:$0xf] %v963
      %1078 = vst [vmem:[%s172 + $0x88] sm:$0xf] %v964
      %1079 = vst [vmem:[%s172 + $0x8c] sm:$0xf] %v965
      %1080 = vst [vmem:[%s172 + $0x90] sm:$0xf] %v966
      %1081 = vst [vmem:[%s172 + $0x94] sm:$0xf] %v967
      %1082 = vst [vmem:[%s172 + $0x98] sm:$0xf] %v968
      %1083 = vst [vmem:[%s172 + $0x9c] sm:$0xf] %v969
      %1084 = vst [vmem:[%s172 + $0xa0] sm:$0xf] %v970
      %1085 = vst [vmem:[%s172 + $0xa4] sm:$0xf] %v971
      %1086 = vst [vmem:[%s172 + $0xa8] sm:$0xf] %v972
      %1087 = vst [vmem:[%s172 + $0xac] sm:$0xf] %v973
      %1088 = vst [vmem:[%s172 + $0xb0] sm:$0xf] %v974
      %1089 = vst [vmem:[%s172 + $0xb4] sm:$0xf] %v975
      %1090 = vst [vmem:[%s172 + $0xb8] sm:$0xf] %v976
      %1091 = vst [vmem:[%s172 + $0xbc] sm:$0xf] %v977
      %1092 = vst [vmem:[%s172 + $0xc0] sm:$0xf] %v978
      %1093 = vst [vmem:[%s172 + $0xc4] sm:$0xf] %v979
      %1094 = vst [vmem:[%s172 + $0xc8] sm:$0xf] %v980
      %1095 = vst [vmem:[%s172 + $0xcc] sm:$0xf] %v981
      %1096 = vst [vmem:[%s172 + $0xd0] sm:$0xf] %v982
      %1097 = vst [vmem:[%s172 + $0xd4] sm:$0xf] %v983
      %1098 = vst [vmem:[%s172 + $0xd8] sm:$0xf] %v984
      %1099 = vst [vmem:[%s172 + $0xdc] sm:$0xf] %v985
      %1100 = vst [vmem:[%s172 + $0xe0] sm:$0xf] %v986
      %s1101 = smul.u32 57, %s14
      %p1102 = scmp.lt.s32.totalorder %s1101, 113
      %s1103 = scalar_select %p1102, %s1101, 113
      %s1104 = smul.addr %s1103, 4
      %s1105 = scalar_lea.vmem %s3, %s1104
      // Predicated region
      $region33: #{encoder_forward.5} parent=31 // pred_check
        %p1106 = pneg %p100
      $region34: #{encoder_forward.5} parent=31 // pred_check_branch
        %1108 = sbr.rel (%p1106) target = $region36
      $region35: #{encoder_forward.5} parent=31 // pred_region
        %s1109 = smul.u32 57, %s14
      $region36: #{encoder_forward.5} parent=31 // pred_fallthru
        _
    $region32: #{encoder_forward.5} parent=5 // pred_fallthru
      _
    %p1110 = scmp.le.s32.totalorder 2, %s9
    // Predicated region
    $region37: #{encoder_forward.5} parent=5 // pred_check
      %p1111 = pneg %p1110
    $region38: #{encoder_forward.5} parent=5 // pred_check_branch
      %1113 = sbr.rel (%p1111) target = $region40
    $region39: #{encoder_forward.5} parent=5 // pred_region
      %s1114 = ssub.s32 %s9, 2
      // Predicated region
      $region41: #{encoder_forward.5} parent=39 // pred_check
        %p1115 = pneg %p106
      $region42: #{encoder_forward.5} parent=39 // pred_check_branch
        %1117 = sbr.rel (%p1115) target = $region44
      $region43: #{encoder_forward.5} parent=39 // pred_region
        %s1118 = smul.u32 57, %s15
        %p1119 = scmp.lt.s32.totalorder %s1118, 113
        %s1120 = scalar_select %p1119, %s1118, 113
        %s1121 = smul.addr %s1120, 4
        %s1122 = scalar_lea.vmem %s3, %s1121
      $region44: #{encoder_forward.5} parent=39 // pred_fallthru
        _
    $region40: #{encoder_forward.5} parent=5 // pred_fallthru
      _
  $region6: #{encoder_forward.5} parent=0 // loop_footer
    %s13 = sadd.s32 1, %s9
  $region7: #{encoder_forward.5} parent=0 // loop_footer_branch
    %8 = sbr.rel target = $region3
  $region8: #{encoder_forward.5} parent=0 // loop_exit
    _

// kernel: encoder_forward.6
$region0: #{encoder_forward.6}
  #allocation0 [shape = 'u32[]', space=smem, size = 0x4, offset = 0x4, fixed_abs, tag = 'smem constant byte address 0x4 - core index']
  #allocation1 [shape = 'u32[144,128]{1,0:T(1,128)}', space=vmem, size = 0x12000, scoped, tag = 'internal scratch']
  %s0 = inlined_call_operand.vmem [shape: bf16[208,512], index: 0, kind: input, shape index: {}]
  %s1 = inlined_call_operand.vmem [shape: bf16[512,128], index: 1, kind: input, shape index: {}]
  %s2 = inlined_call_operand.vmem [shape: f32[1,128], index: 2, kind: input, shape index: {}]
  %s3 = inlined_call_operand.vmem [shape: bf16[208,128], index: 3, kind: output, shape index: {}]
  %s4 = sld [smem:[#allocation0]]
  $region45: #{encoder_forward.6} parent=0
    _
  %s6 = ssub.s32 1, %s4
  %s7 = scalar_select 0, %s6, %s4
  loop: start=0, step=1, limit=4
  $region2: #{encoder_forward.6} parent=0 // loop_pre_header
    _
  $region3: #{encoder_forward.6} parent=0 // loop_header
    %s9 = sphi 0, %s13
    %p10 = scmp.ge.s32.totalorder %s9, 4
    %s19 = sphi 0, %s21
    %s22 = sphi 0, %s19
    %s23 = sphi 0, %s22
    %s39 = sphi 0, %s23
    %s43 = sphi 0, %s43
    %s45 = sphi 0, %s43
    %s46 = sphi 0, %s45
    %s60 = sphi 0, %s46
    %s64 = sphi 0, %s64
    %s66 = sphi 0, %s64
    %s67 = sphi 0, %s66
    %s81 = sphi 0, %s67
    %s87 = sphi 0, %s89
    %s90 = sphi 0, %s87
    %s91 = sphi 0, %s90
    %s107 = sphi 0, %s91
  $region4: #{encoder_forward.6} parent=0 // loop_header_branch
    %12 = sbr.rel (%p10) target = $region8
  $region5: #{encoder_forward.6} parent=0 // loop_body
    %s14 = ssub.s32 %s9, 1
    %s15 = ssub.s32 %s9, 2
    %s16 = sadd.s32 %s9, 1
    %s17 = ssub.s32 %s9, %s16
    %p18 = scmp.eq.s32.totalorder %s17, 0
    %s20 = sadd.s32 %s19, 1
    %s21 = scalar_select %p18, %s19, %s20
    %p24 = pneg %p18
    %p25 = scmp.eq.s32.totalorder %s9, 1
    %p26 = por %p24, %p25
    %p27 = scmp.ne.s32.totalorder %s19, %s22
    %p28 = scmp.eq.s32.totalorder %s9, 0
    %p29 = por %p27, %p28
    %p30 = scmp.ne.s32.totalorder %s19, %s22
    %p31 = scmp.eq.s32.totalorder %s14, 1
    %p32 = por %p30, %p31
    %p33 = scmp.ne.s32.totalorder %s22, %s23
    %p34 = scmp.eq.s32.totalorder %s14, 0
    %p35 = por %p33, %p34
    %p36 = scmp.ne.s32.totalorder %s22, %s23
    %p37 = scmp.eq.s32.totalorder %s15, 1
    %p38 = por %p36, %p37
    %p40 = scmp.ne.s32.totalorder %s23, %s39
    %p41 = scmp.eq.s32.totalorder %s15, 0
    %p42 = por %p40, %p41
    %s44 = sadd.s32 %s43, 1
    %p47 = scmp.eq.s32.totalorder %s9, 1
    %p48 = scmp.ne.s32.totalorder %s43, %s45
    %p49 = scmp.eq.s32.totalorder %s9, 0
    %p50 = por %p48, %p49
    %p51 = scmp.ne.s32.totalorder %s43, %s45
    %p52 = scmp.eq.s32.totalorder %s14, 1
    %p53 = por %p51, %p52
    %p54 = scmp.ne.s32.totalorder %s45, %s46
    %p55 = scmp.eq.s32.totalorder %s14, 0
    %p56 = por %p54, %p55
    %p57 = scmp.ne.s32.totalorder %s45, %s46
    %p58 = scmp.eq.s32.totalorder %s15, 1
    %p59 = por %p57, %p58
    %p61 = scmp.ne.s32.totalorder %s46, %s60
    %p62 = scmp.eq.s32.totalorder %s15, 0
    %p63 = por %p61, %p62
    %s65 = sadd.s32 %s64, 1
    %p68 = scmp.eq.s32.totalorder %s9, 1
    %p69 = scmp.ne.s32.totalorder %s64, %s66
    %p70 = scmp.eq.s32.totalorder %s9, 0
    %p71 = por %p69, %p70
    %p72 = scmp.ne.s32.totalorder %s64, %s66
    %p73 = scmp.eq.s32.totalorder %s14, 1
    %p74 = por %p72, %p73
    %p75 = scmp.ne.s32.totalorder %s66, %s67
    %p76 = scmp.eq.s32.totalorder %s14, 0
    %p77 = por %p75, %p76
    %p78 = scmp.ne.s32.totalorder %s66, %s67
    %p79 = scmp.eq.s32.totalorder %s15, 1
    %p80 = por %p78, %p79
    %p82 = scmp.ne.s32.totalorder %s67, %s81
    %p83 = scmp.eq.s32.totalorder %s15, 0
    %p84 = por %p82, %p83
    %s85 = ssub.s32 %s9, %s16
    %p86 = scmp.eq.s32.totalorder %s85, 0
    %s88 = sadd.s32 %s87, 1
    %s89 = scalar_select %p86, %s87, %s88
    %p92 = pneg %p86
    %p93 = scmp.eq.s32.totalorder %s9, 1
    %p94 = por %p92, %p93
    %p95 = scmp.ne.s32.totalorder %s87, %s90
    %p96 = scmp.eq.s32.totalorder %s9, 0
    %p97 = por %p95, %p96
    %p98 = scmp.ne.s32.totalorder %s87, %s90
    %p99 = scmp.eq.s32.totalorder %s14, 1
    %p100 = por %p98, %p99
    %p101 = scmp.ne.s32.totalorder %s90, %s91
    %p102 = scmp.eq.s32.totalorder %s14, 0
    %p103 = por %p101, %p102
    %p104 = scmp.ne.s32.totalorder %s90, %s91
    %p105 = scmp.eq.s32.totalorder %s15, 1
    %p106 = por %p104, %p105
    %p108 = scmp.ne.s32.totalorder %s91, %s107
    %p109 = scmp.eq.s32.totalorder %s15, 0
    %p110 = por %p108, %p109
    %p111 = scmp.le.s32.totalorder 1, %s9
    %p112 = scmp.lt.s32.totalorder %s9, 3
    %p113 = pnand %p111, %p112
    %p114 = pneg %p113
    // Predicated region
    $region9: #{encoder_forward.6} parent=5 // pred_check
      _
    $region10: #{encoder_forward.6} parent=5 // pred_check_branch
      %116 = sbr.rel (%p113) target = $region12
    $region11: #{encoder_forward.6} parent=5 // pred_region
      %s117 = ssub.s32 %s9, 1
      // Predicated region
      $region13: #{encoder_forward.6} parent=11 // pred_check
        %p118 = pneg %p56
      $region14: #{encoder_forward.6} parent=11 // pred_check_branch
        %120 = sbr.rel (%p118) target = $region16
      $region15: #{encoder_forward.6} parent=11 // pred_region
        _
      $region16: #{encoder_forward.6} parent=11 // pred_fallthru
        _
      // Predicated region
      $region17: #{encoder_forward.6} parent=11 // pred_check
        %p121 = pneg %p77
      $region18: #{encoder_forward.6} parent=11 // pred_check_branch
        %123 = sbr.rel (%p121) target = $region20
      $region19: #{encoder_forward.6} parent=11 // pred_region
        _
      $region20: #{encoder_forward.6} parent=11 // pred_fallthru
        _
    $region12: #{encoder_forward.6} parent=5 // pred_fallthru
      _
    %p124 = scmp.lt.s32.totalorder %s9, 2
    // Predicated region
    $region21: #{encoder_forward.6} parent=5 // pred_check
      %p125 = pneg %p124
    $region22: #{encoder_forward.6} parent=5 // pred_check_branch
      %127 = sbr.rel (%p125) target = $region24
    $region23: #{encoder_forward.6} parent=5 // pred_region
      // Predicated region
      $region25: #{encoder_forward.6} parent=23 // pred_check
        %p128 = pneg %p29
      $region26: #{encoder_forward.6} parent=23 // pred_check_branch
        %130 = sbr.rel (%p128) target = $region28
      $region27: #{encoder_forward.6} parent=23 // pred_region
        %s131 = smul.u32 13, %s9
        %p132 = scmp.lt.s32.totalorder %s131, 25
        %s133 = scalar_select %p132, %s131, 25
        %s134 = smul.addr %s133, 4
        %s135 = smul.addr %s134, 4
        %s136 = scalar_lea.vmem %s0, %s135
        %s137 = smul.u32 13, %s9
      $region28: #{encoder_forward.6} parent=23 // pred_fallthru
        _
    $region24: #{encoder_forward.6} parent=5 // pred_fallthru
      _
    %p138 = scmp.le.s32.totalorder 1, %s9
    %p139 = scmp.lt.s32.totalorder %s9, 3
    %p140 = pnand %p138, %p139
    %p141 = pneg %p140
    // Predicated region
    $region29: #{encoder_forward.6} parent=5 // pred_check
      _
    $region30: #{encoder_forward.6} parent=5 // pred_check_branch
      %143 = sbr.rel (%p140) target = $region32
    $region31: #{encoder_forward.6} parent=5 // pred_region
      %s144 = ssub.s32 %s9, 1
      %s145 = smul.u32 13, %s14
      %p146 = scmp.lt.s32.totalorder %s145, 25
      %s147 = scalar_select %p146, %s145, 25
      %s148 = smul.addr %s147, 4
      %s149 = smul.addr %s148, 4
      %s150 = scalar_lea.vmem %s0, %s149
      %p151 = pneg %p35
      %p152 = pneg %p32
      %p153 = pneg %p56
      %p154 = pneg %p53
      %p155 = pneg %p77
      %p156 = pneg %p74
      %p157 = pneg %p103
      %p158 = pneg %p100
      %s159 = smul.u32 13, %s14
      %p160 = scmp.lt.s32.totalorder %s159, 25
      %s161 = scalar_select %p160, %s159, 25
      %s162 = smul.addr %s161, 4
      %s163 = scalar_lea.vmem %s3, %s162
      %s164 = smul.u32 13, %s14
      %p165 = scmp.lt.s32.totalorder %s164, 25
      %s166 = scalar_select %p165, %s164, 25
      %s167 = smul.addr %s166, 4
      %s168 = smul.addr %s167, 4
      %s169 = scalar_lea.vmem %s0, %s168
      %s170 = smul.u32 13, %s14
      %s171 = smul.u32 13, %s14
      %p172 = scmp.lt.s32.totalorder %s171, 25
      %s173 = scalar_select %p172, %s171, 25
      %s174 = smul.addr %s173, 4
      %s175 = scalar_lea.vmem %s3, %s174
      %s176 = smul.u32 13, %s14
      %v178 = vld [vmem:[%s169] sm:$0xff]
      %v179 = vld [vmem:[%s169 + $0x8] sm:$0xff]
      %v180 = vld [vmem:[%s169 + $0x10] sm:$0xff]
      %v181 = vld [vmem:[%s169 + $0x18] sm:$0xff]
      %v182 = vld [vmem:[%s169 + $0x20] sm:$0xff]
      %v183 = vld [vmem:[%s169 + $0x28] sm:$0xff]
      %v184 = vld [vmem:[%s169 + $0x30] sm:$0xff]
      %v185 = vld [vmem:[%s169 + $0x38] sm:$0xff]
      %v186 = vld [vmem:[%s169 + $0x40] sm:$0xff]
      %v187 = vld [vmem:[%s169 + $0x48] sm:$0xff]
      %v188 = vld [vmem:[%s169 + $0x50] sm:$0xff]
      %v189 = vld [vmem:[%s169 + $0x58] sm:$0xff]
      %v190 = vld [vmem:[%s169 + $0x60] sm:$0xff]
      %v191 = vld [vmem:[%s169 + $0x68] sm:$0xff]
      %v192 = vld [vmem:[%s169 + $0x70] sm:$0xff]
      %v193 = vld [vmem:[%s169 + $0x78] sm:$0xff]
      %v194 = vld [vmem:[%s169 + $0x80] sm:$0xff]
      %v195 = vld [vmem:[%s169 + $0x88] sm:$0xff]
      %v196 = vld [vmem:[%s169 + $0x90] sm:$0xff]
      %v197 = vld [vmem:[%s169 + $0x98] sm:$0xff]
      %v198 = vld [vmem:[%s169 + $0xa0] sm:$0xff]
      %v199 = vld [vmem:[%s169 + $0xa8] sm:$0xff]
      %v200 = vld [vmem:[%s169 + $0xb0] sm:$0xff]
      %v201 = vld [vmem:[%s169 + $0xb8] sm:$0xff]
      %v202 = vld [vmem:[%s169 + $0xc0] sm:$0xff]
      %v203 = vld [vmem:[%s169 + $0xc8] sm:$0xff]
      %v204 = vld [vmem:[%s1] sm:$0xf]
      %v205 = vld [vmem:[%s1 + $0x4] sm:$0xf]
      %v206 = vld [vmem:[%s1 + $0x8] sm:$0xf]
      %v207 = vld [vmem:[%s1 + $0xc] sm:$0xf]
      %v208 = vld [vmem:[%s1 + $0x10] sm:$0xf]
      %v209 = vld [vmem:[%s1 + $0x14] sm:$0xf]
      %v210 = vld [vmem:[%s1 + $0x18] sm:$0xf]
      %v211 = vld [vmem:[%s1 + $0x1c] sm:$0xf]
      %v212 = vld [vmem:[%s1 + $0x20] sm:$0xf]
      %v213 = vld [vmem:[%s1 + $0x24] sm:$0xf]
      %v214 = vld [vmem:[%s1 + $0x28] sm:$0xf]
      %v215 = vld [vmem:[%s1 + $0x2c] sm:$0xf]
      %v216 = vld [vmem:[%s1 + $0x30] sm:$0xf]
      %v217 = vld [vmem:[%s1 + $0x34] sm:$0xf]
      %v218 = vld [vmem:[%s1 + $0x38] sm:$0xf]
      %v219 = vld [vmem:[%s1 + $0x3c] sm:$0xf]
      %v220 = vld [vmem:[%s1 + $0x40] sm:$0xf]
      %v221 = vld [vmem:[%s1 + $0x44] sm:$0xf]
      %v222 = vld [vmem:[%s1 + $0x48] sm:$0xf]
      %v223 = vld [vmem:[%s1 + $0x4c] sm:$0xf]
      %v224 = vld [vmem:[%s1 + $0x50] sm:$0xf]
      %v225 = vld [vmem:[%s1 + $0x54] sm:$0xf]
      %v226 = vld [vmem:[%s1 + $0x58] sm:$0xf]
      %v227 = vld [vmem:[%s1 + $0x5c] sm:$0xf]
      %v228 = vld [vmem:[%s1 + $0x60] sm:$0xf]
      %v229 = vld [vmem:[%s1 + $0x64] sm:$0xf]
      %v230 = vld [vmem:[%s1 + $0x68] sm:$0xf]
      %v231 = vld [vmem:[%s1 + $0x6c] sm:$0xf]
      %v232 = vld [vmem:[%s1 + $0x70] sm:$0xf]
      %v233 = vld [vmem:[%s1 + $0x74] sm:$0xf]
      %v234 = vld [vmem:[%s1 + $0x78] sm:$0xf]
      %v235 = vld [vmem:[%s1 + $0x7c] sm:$0xf]
      %v236 = vld [vmem:[%s1 + $0x80] sm:$0xf]
      %v237 = vld [vmem:[%s1 + $0x84] sm:$0xf]
      %v238 = vld [vmem:[%s1 + $0x88] sm:$0xf]
      %v239 = vld [vmem:[%s1 + $0x8c] sm:$0xf]
      %v240 = vld [vmem:[%s1 + $0x90] sm:$0xf]
      %v241 = vld [vmem:[%s1 + $0x94] sm:$0xf]
      %v242 = vld [vmem:[%s1 + $0x98] sm:$0xf]
      %v243 = vld [vmem:[%s1 + $0x9c] sm:$0xf]
      %v244 = vld [vmem:[%s1 + $0xa0] sm:$0xf]
      %v245 = vld [vmem:[%s1 + $0xa4] sm:$0xf]
      %v246 = vld [vmem:[%s1 + $0xa8] sm:$0xf]
      %v247 = vld [vmem:[%s1 + $0xac] sm:$0xf]
      %v248 = vld [vmem:[%s1 + $0xb0] sm:$0xf]
      %v249 = vld [vmem:[%s1 + $0xb4] sm:$0xf]
      %v250 = vld [vmem:[%s1 + $0xb8] sm:$0xf]
      %v251 = vld [vmem:[%s1 + $0xbc] sm:$0xf]
      %v252 = vld [vmem:[%s1 + $0xc0] sm:$0xf]
      %v253 = vld [vmem:[%s1 + $0xc4] sm:$0xf]
      %v254 = vld [vmem:[%s1 + $0xc8] sm:$0xf]
      %v255 = vld [vmem:[%s1 + $0xcc] sm:$0xf]
      %v256 = vld [vmem:[%s1 + $0xd0] sm:$0xf]
      %v257 = vld [vmem:[%s1 + $0xd4] sm:$0xf]
      %v258 = vld [vmem:[%s1 + $0xd8] sm:$0xf]
      %v259 = vld [vmem:[%s1 + $0xdc] sm:$0xf]
      %v260 = vld [vmem:[%s1 + $0xe0] sm:$0xf]
      %v261 = vld [vmem:[%s1 + $0xe4] sm:$0xf]
      %v262 = vld [vmem:[%s1 + $0xe8] sm:$0xf]
      %v263 = vld [vmem:[%s1 + $0xec] sm:$0xf]
      %v264 = vld [vmem:[%s1 + $0xf0] sm:$0xf]
      %v265 = vld [vmem:[%s1 + $0xf4] sm:$0xf]
      %v266 = vld [vmem:[%s1 + $0xf8] sm:$0xf]
      %v267 = vld [vmem:[%s1 + $0xfc] sm:$0xf]
      %v268 = vld [vmem:[%s2] sm:$0x1]
      %v270 = vlaneseq
      %v271 = vshrl.u32 %v270, 7
      %v272 = vsub.s32 0, %v271
      %v273 = vrot.slane %v268, %v272
      %v301 = vunpack.c.l.b16 %v178
      %v302 = vunpack.c.h.b16 %v178
      %v303 = vunpack.c.l.b16 %v179
      %v304 = vunpack.c.h.b16 %v179
      %v305 = vunpack.c.l.b16 %v180
      %v306 = vunpack.c.h.b16 %v180
      %v307 = vunpack.c.l.b16 %v181
      %v308 = vunpack.c.h.b16 %v181
      %v309 = vunpack.c.l.b16 %v182
      %v310 = vunpack.c.h.b16 %v182
      %v311 = vunpack.c.l.b16 %v183
      %v312 = vunpack.c.h.b16 %v183
      %v313 = vunpack.c.l.b16 %v184
      %v314 = vunpack.c.h.b16 %v184
      %v315 = vunpack.c.l.b16 %v185
      %v316 = vunpack.c.h.b16 %v185
      %v317 = vunpack.c.l.b16 %v186
      %v318 = vunpack.c.h.b16 %v186
      %v319 = vunpack.c.l.b16 %v187
      %v320 = vunpack.c.h.b16 %v187
      %v321 = vunpack.c.l.b16 %v188
      %v322 = vunpack.c.h.b16 %v188
      %v323 = vunpack.c.l.b16 %v189
      %v324 = vunpack.c.h.b16 %v189
      %v325 = vunpack.c.l.b16 %v190
      %v326 = vunpack.c.h.b16 %v190
      %v327 = vunpack.c.l.b16 %v191
      %v328 = vunpack.c.h.b16 %v191
      %v329 = vunpack.c.l.b16 %v192
      %v330 = vunpack.c.h.b16 %v192
      %v331 = vunpack.c.l.b16 %v193
      %v332 = vunpack.c.h.b16 %v193
      %v333 = vunpack.c.l.b16 %v194
      %v334 = vunpack.c.h.b16 %v194
      %v335 = vunpack.c.l.b16 %v195
      %v336 = vunpack.c.h.b16 %v195
      %v337 = vunpack.c.l.b16 %v196
      %v338 = vunpack.c.h.b16 %v196
      %v339 = vunpack.c.l.b16 %v197
      %v340 = vunpack.c.h.b16 %v197
      %v341 = vunpack.c.l.b16 %v198
      %v342 = vunpack.c.h.b16 %v198
      %v343 = vunpack.c.l.b16 %v199
      %v344 = vunpack.c.h.b16 %v199
      %v345 = vunpack.c.l.b16 %v200
      %v346 = vunpack.c.h.b16 %v200
      %v347 = vunpack.c.l.b16 %v201
      %v348 = vunpack.c.h.b16 %v201
      %v349 = vunpack.c.l.b16 %v202
      %v350 = vunpack.c.h.b16 %v202
      %v351 = vunpack.c.l.b16 %v203
      %v352 = vunpack.c.h.b16 %v203
      %v353 = vpack.c.b16 %v305, %v301
      %v354 = vpack.c.b16 %v306, %v302
      %v355 = vpack.c.b16 %v307, %v303
      %v356 = vpack.c.b16 %v308, %v304
      %v357 = vpack.c.b16 %v313, %v309
      %v358 = vpack.c.b16 %v314, %v310
      %v359 = vpack.c.b16 %v315, %v311
      %v360 = vpack.c.b16 %v316, %v312
      %v361 = vpack.c.b16 %v321, %v317
      %v362 = vpack.c.b16 %v322, %v318
      %v363 = vpack.c.b16 %v323, %v319
      %v364 = vpack.c.b16 %v324, %v320
      %v365 = vpack.c.b16 %v329, %v325
      %v366 = vpack.c.b16 %v330, %v326
      %v367 = vpack.c.b16 %v331, %v327
      %v368 = vpack.c.b16 %v332, %v328
      %v369 = vpack.c.b16 %v337, %v333
      %v370 = vpack.c.b16 %v338, %v334
      %v371 = vpack.c.b16 %v339, %v335
      %v372 = vpack.c.b16 %v340, %v336
      %v373 = vpack.c.b16 %v345, %v341
      %v374 = vpack.c.b16 %v346, %v342
      %v375 = vpack.c.b16 %v347, %v343
      %v376 = vpack.c.b16 %v348, %v344
      %v377 = vpack.c.b16 %v349, %v349
      %v378 = vpack.c.b16 %v350, %v350
      %v379 = vpack.c.b16 %v351, %v351
      %v380 = vpack.c.b16 %v352, %v352
      %v473 = vunpack.c.l.b16 %v204
      %v474 = vunpack.c.l.b16 %v205
      %v475 = vunpack.c.l.b16 %v206
      %v476 = vunpack.c.l.b16 %v207
      %v477 = vunpack.c.l.b16 %v208
      %v478 = vunpack.c.l.b16 %v209
      %v479 = vunpack.c.l.b16 %v210
      %v480 = vunpack.c.l.b16 %v211
      %v481 = vunpack.c.l.b16 %v212
      %v482 = vunpack.c.l.b16 %v213
      %v483 = vunpack.c.l.b16 %v214
      %v484 = vunpack.c.l.b16 %v215
      %v485 = vunpack.c.l.b16 %v216
      %v486 = vunpack.c.l.b16 %v217
      %v487 = vunpack.c.l.b16 %v218
      %v488 = vunpack.c.l.b16 %v219
      %v489 = vunpack.c.l.b16 %v220
      %v490 = vunpack.c.l.b16 %v221
      %v491 = vunpack.c.l.b16 %v222
      %v492 = vunpack.c.l.b16 %v223
      %v493 = vunpack.c.l.b16 %v224
      %v494 = vunpack.c.l.b16 %v225
      %v495 = vunpack.c.l.b16 %v226
      %v496 = vunpack.c.l.b16 %v227
      %v497 = vunpack.c.l.b16 %v228
      %v498 = vunpack.c.l.b16 %v229
      %v499 = vunpack.c.l.b16 %v230
      %v500 = vunpack.c.l.b16 %v231
      %v501 = vunpack.c.l.b16 %v232
      %v502 = vunpack.c.l.b16 %v233
      %v503 = vunpack.c.l.b16 %v234
      %v504 = vunpack.c.l.b16 %v235
      %v505 = vunpack.c.l.b16 %v236
      %v506 = vunpack.c.l.b16 %v237
      %v507 = vunpack.c.l.b16 %v238
      %v508 = vunpack.c.l.b16 %v239
      %v509 = vunpack.c.l.b16 %v240
      %v510 = vunpack.c.l.b16 %v241
      %v511 = vunpack.c.l.b16 %v242
      %v512 = vunpack.c.l.b16 %v243
      %v513 = vunpack.c.l.b16 %v244
      %v514 = vunpack.c.l.b16 %v245
      %v515 = vunpack.c.l.b16 %v246
      %v516 = vunpack.c.l.b16 %v247
      %v517 = vunpack.c.l.b16 %v248
      %v518 = vunpack.c.l.b16 %v249
      %v519 = vunpack.c.l.b16 %v250
      %v520 = vunpack.c.l.b16 %v251
      %v521 = vunpack.c.l.b16 %v252
      %v522 = vunpack.c.l.b16 %v253
      %v523 = vunpack.c.l.b16 %v254
      %v524 = vunpack.c.l.b16 %v255
      %v525 = vunpack.c.l.b16 %v256
      %v526 = vunpack.c.l.b16 %v257
      %v527 = vunpack.c.l.b16 %v258
      %v528 = vunpack.c.l.b16 %v259
      %v529 = vunpack.c.l.b16 %v260
      %v530 = vunpack.c.l.b16 %v261
      %v531 = vunpack.c.l.b16 %v262
      %v532 = vunpack.c.l.b16 %v263
      %v533 = vunpack.c.l.b16 %v264
      %v534 = vunpack.c.l.b16 %v265
      %v535 = vunpack.c.l.b16 %v266
      %v536 = vunpack.c.l.b16 %v267
      %v537 = vpack.c.b16 %v474, %v473
      %v538 = vpack.c.b16 %v476, %v475
      %v539 = vpack.c.b16 %v478, %v477
      %v540 = vpack.c.b16 %v480, %v479
      %v541 = vpack.c.b16 %v482, %v481
      %v542 = vpack.c.b16 %v484, %v483
      %v543 = vpack.c.b16 %v486, %v485
      %v544 = vpack.c.b16 %v488, %v487
      %v545 = vpack.c.b16 %v490, %v489
      %v546 = vpack.c.b16 %v492, %v491
      %v547 = vpack.c.b16 %v494, %v493
      %v548 = vpack.c.b16 %v496, %v495
      %v549 = vpack.c.b16 %v498, %v497
      %v550 = vpack.c.b16 %v500, %v499
      %v551 = vpack.c.b16 %v502, %v501
      %v552 = vpack.c.b16 %v504, %v503
      %v553 = vpack.c.b16 %v506, %v505
      %v554 = vpack.c.b16 %v508, %v507
      %v555 = vpack.c.b16 %v510, %v509
      %v556 = vpack.c.b16 %v512, %v511
      %v557 = vpack.c.b16 %v514, %v513
      %v558 = vpack.c.b16 %v516, %v515
      %v559 = vpack.c.b16 %v518, %v517
      %v560 = vpack.c.b16 %v520, %v519
      %v561 = vpack.c.b16 %v522, %v521
      %v562 = vpack.c.b16 %v524, %v523
      %v563 = vpack.c.b16 %v526, %v525
      %v564 = vpack.c.b16 %v528, %v527
      %v565 = vpack.c.b16 %v530, %v529
      %v566 = vpack.c.b16 %v532, %v531
      %v567 = vpack.c.b16 %v534, %v533
      %v568 = vpack.c.b16 %v536, %v535
      %601 = vmatprep.subr.bf16.mxu0 0
      %602 = vmatpush1.bf16.msra.mxu0 %v537
      %603 = vmatprep.subr.bf16.mxu0 0
      %604 = vmatpush1.bf16.msra.mxu0 %v538
      %605 = vmatprep.subr.bf16.mxu0 0
      %606 = vmatpush1.bf16.msra.mxu0 %v539
      %607 = vmatprep.subr.bf16.mxu0 0
      %608 = vmatpush1.bf16.msra.mxu0 %v540
      %609 = vmatprep.subr.bf16.mxu0 0
      %610 = vmatpush1.bf16.msra.mxu0 %v541
      %611 = vmatprep.subr.bf16.mxu0 0
      %612 = vmatpush1.bf16.msra.mxu0 %v542
      %613 = vmatprep.subr.bf16.mxu0 0
      %614 = vmatpush1.bf16.msra.mxu0 %v543
      %615 = vmatprep.subr.bf16.mxu0 0
      %616 = vmatpush1.bf16.msra.mxu0 %v544
      %617 = vmatprep.subr.bf16.mxu0 0
      %618 = vmatpush1.bf16.msra.mxu0 %v545
      %619 = vmatprep.subr.bf16.mxu0 0
      %620 = vmatpush1.bf16.msra.mxu0 %v546
      %621 = vmatprep.subr.bf16.mxu0 0
      %622 = vmatpush1.bf16.msra.mxu0 %v547
      %623 = vmatprep.subr.bf16.mxu0 0
      %624 = vmatpush1.bf16.msra.mxu0 %v548
      %625 = vmatprep.subr.bf16.mxu0 0
      %626 = vmatpush1.bf16.msra.mxu0 %v549
      %627 = vmatprep.subr.bf16.mxu0 0
      %628 = vmatpush1.bf16.msra.mxu0 %v550
      %629 = vmatprep.subr.bf16.mxu0 0
      %630 = vmatpush1.bf16.msra.mxu0 %v551
      %631 = vmatprep.subr.bf16.mxu0 0
      %632 = vmatpush1.bf16.msra.mxu0 %v552
      %633 = vmatprep.mubr.bf16.mxu0 %v354
      %634 = vmatmul.mubr.bf16.gmra.mrb[0].mxu0 %v353
      %v635 = vpop.f32.mrb[0].mxu0
      %v636 = vadd.f32 %v273, %v635
      %v637 = vpop.f32.mrb[0].mxu0
      %v638 = vpop.f32.mrb[0].mxu0
      %v639 = vadd.f32 %v273, %v638
      %v640 = vpop.f32.mrb[0].mxu0
      %641 = vmatprep.mubr.bf16.mxu0 %v358
      %642 = vmatmul.mubr.bf16.gmra.mrb[0].mxu0 %v357
      %v643 = vpop.f32.mrb[0].mxu0
      %v644 = vadd.f32 %v273, %v643
      %v645 = vpop.f32.mrb[0].mxu0
      %v646 = vpop.f32.mrb[0].mxu0
      %v647 = vadd.f32 %v273, %v646
      %v648 = vpop.f32.mrb[0].mxu0
      %649 = vmatprep.mubr.bf16.mxu0 %v362
      %650 = vmatmul.mubr.bf16.gmra.mrb[0].mxu0 %v361
      %v651 = vpop.f32.mrb[0].mxu0
      %v652 = vadd.f32 %v273, %v651
      %v653 = vpop.f32.mrb[0].mxu0
      %v654 = vpop.f32.mrb[0].mxu0
      %v655 = vadd.f32 %v273, %v654
      %v656 = vpop.f32.mrb[0].mxu0
      %657 = vmatprep.mubr.bf16.mxu0 %v366
      %658 = vmatmul.mubr.bf16.gmra.mrb[0].mxu0 %v365
      %v659 = vpop.f32.mrb[0].mxu0
      %v660 = vadd.f32 %v273, %v659
      %v661 = vpop.f32.mrb[0].mxu0
      %v662 = vpop.f32.mrb[0].mxu0
      %v663 = vadd.f32 %v273, %v662
      %v664 = vpop.f32.mrb[0].mxu0
      %665 = vmatprep.mubr.bf16.mxu0 %v370
      %666 = vmatmul.mubr.bf16.gmra.mrb[0].mxu0 %v369
      %v667 = vpop.f32.mrb[0].mxu0
      %v668 = vadd.f32 %v273, %v667
      %v669 = vpop.f32.mrb[0].mxu0
      %v670 = vpop.f32.mrb[0].mxu0
      %v671 = vadd.f32 %v273, %v670
      %v672 = vpop.f32.mrb[0].mxu0
      %673 = vmatprep.mubr.bf16.mxu0 %v374
      %674 = vmatmul.mubr.bf16.gmra.mrb[0].mxu0 %v373
      %v675 = vpop.f32.mrb[0].mxu0
      %v676 = vadd.f32 %v273, %v675
      %v677 = vpop.f32.mrb[0].mxu0
      %v678 = vpop.f32.mrb[0].mxu0
      %v679 = vadd.f32 %v273, %v678
      %v680 = vpop.f32.mrb[0].mxu0
      %681 = vmatprep.mubr.bf16.mxu0 %v378
      %682 = vmatmul.mubr.bf16.gmra.mrb[0].mxu0 %v377
      %v683 = vpop.f32.mrb[0].mxu0
      %v684 = vadd.f32 %v273, %v683
      %v685 = vpop.f32.mrb[0].mxu0
      %v686 = vpop.f32.mrb[0].mxu0
      %v687 = vpop.f32.mrb[0].mxu0
      %688 = vdwg.mxu0
      %689 = vmatprep.subr.bf16.mxu0 0
      %690 = vmatpush1.bf16.msra.mxu0 %v553
      %691 = vmatprep.subr.bf16.mxu0 0
      %692 = vmatpush1.bf16.msra.mxu0 %v554
      %693 = vmatprep.subr.bf16.mxu0 0
      %694 = vmatpush1.bf16.msra.mxu0 %v555
      %695 = vmatprep.subr.bf16.mxu0 0
      %696 = vmatpush1.bf16.msra.mxu0 %v556
      %697 = vmatprep.subr.bf16.mxu0 0
      %698 = vmatpush1.bf16.msra.mxu0 %v557
      %699 = vmatprep.subr.bf16.mxu0 0
      %700 = vmatpush1.bf16.msra.mxu0 %v558
      %701 = vmatprep.subr.bf16.mxu0 0
      %702 = vmatpush1.bf16.msra.mxu0 %v559
      %703 = vmatprep.subr.bf16.mxu0 0
      %704 = vmatpush1.bf16.msra.mxu0 %v560
      %705 = vmatprep.subr.bf16.mxu0 0
      %706 = vmatpush1.bf16.msra.mxu0 %v561
      %707 = vmatprep.subr.bf16.mxu0 0
      %708 = vmatpush1.bf16.msra.mxu0 %v562
      %709 = vmatprep.subr.bf16.mxu0 0
      %710 = vmatpush1.bf16.msra.mxu0 %v563
      %711 = vmatprep.subr.bf16.mxu0 0
      %712 = vmatpush1.bf16.msra.mxu0 %v564
      %713 = vmatprep.subr.bf16.mxu0 0
      %714 = vmatpush1.bf16.msra.mxu0 %v565
      %715 = vmatprep.subr.bf16.mxu0 0
      %716 = vmatpush1.bf16.msra.mxu0 %v566
      %717 = vmatprep.subr.bf16.mxu0 0
      %718 = vmatpush1.bf16.msra.mxu0 %v567
      %719 = vmatprep.subr.bf16.mxu0 0
      %720 = vmatpush1.bf16.msra.mxu0 %v568
      %721 = vmatprep.mubr.bf16.mxu0 %v356
      %722 = vmatmul.mubr.bf16.gmra.mrb[0].mxu0 %v355
      %v723 = vpop.f32.mrb[0].mxu0
      %v724 = vadd.f32 %v636, %v723
      %v725 = vpop.f32.mrb[0].mxu0
      %v726 = vpop.f32.mrb[0].mxu0
      %v727 = vadd.f32 %v639, %v726
      %v728 = vpop.f32.mrb[0].mxu0
      %729 = vmatprep.mubr.bf16.mxu0 %v360
      %730 = vmatmul.mubr.bf16.gmra.mrb[0].mxu0 %v359
      %v731 = vpop.f32.mrb[0].mxu0
      %v732 = vadd.f32 %v644, %v731
      %v733 = vpop.f32.mrb[0].mxu0
      %v734 = vpop.f32.mrb[0].mxu0
      %v735 = vadd.f32 %v647, %v734
      %v736 = vpop.f32.mrb[0].mxu0
      %737 = vmatprep.mubr.bf16.mxu0 %v364
      %738 = vmatmul.mubr.bf16.gmra.mrb[0].mxu0 %v363
      %v739 = vpop.f32.mrb[0].mxu0
      %v740 = vadd.f32 %v652, %v739
      %v741 = vpop.f32.mrb[0].mxu0
      %v742 = vpop.f32.mrb[0].mxu0
      %v743 = vadd.f32 %v655, %v742
      %v744 = vpop.f32.mrb[0].mxu0
      %745 = vmatprep.mubr.bf16.mxu0 %v368
      %746 = vmatmul.mubr.bf16.gmra.mrb[0].mxu0 %v367
      %v747 = vpop.f32.mrb[0].mxu0
      %v748 = vadd.f32 %v660, %v747
      %v749 = vpop.f32.mrb[0].mxu0
      %v750 = vpop.f32.mrb[0].mxu0
      %v751 = vadd.f32 %v663, %v750
      %v752 = vpop.f32.mrb[0].mxu0
      %753 = vmatprep.mubr.bf16.mxu0 %v372
      %754 = vmatmul.mubr.bf16.gmra.mrb[0].mxu0 %v371
      %v755 = vpop.f32.mrb[0].mxu0
      %v756 = vadd.f32 %v668, %v755
      %v757 = vpop.f32.mrb[0].mxu0
      %v758 = vpop.f32.mrb[0].mxu0
      %v759 = vadd.f32 %v671, %v758
      %v760 = vpop.f32.mrb[0].mxu0
      %761 = vmatprep.mubr.bf16.mxu0 %v376
      %762 = vmatmul.mubr.bf16.gmra.mrb[0].mxu0 %v375
      %v763 = vpop.f32.mrb[0].mxu0
      %v764 = vadd.f32 %v676, %v763
      %v765 = vpop.f32.mrb[0].mxu0
      %v766 = vpop.f32.mrb[0].mxu0
      %v767 = vadd.f32 %v679, %v766
      %v768 = vpop.f32.mrb[0].mxu0
      %769 = vmatprep.mubr.bf16.mxu0 %v380
      %770 = vmatmul.mubr.bf16.gmra.mrb[0].mxu0 %v379
      %v771 = vpop.f32.mrb[0].mxu0
      %v772 = vadd.f32 %v684, %v771
      %v773 = vpop.f32.mrb[0].mxu0
      %v774 = vpop.f32.mrb[0].mxu0
      %v775 = vpop.f32.mrb[0].mxu0
      %776 = vdwg.mxu0
      %v777 = vmax.f32 %v724, 0.0
      %v778 = vmax.f32 %v727, 0.0
      %v779 = vmax.f32 %v732, 0.0
      %v780 = vmax.f32 %v735, 0.0
      %v781 = vmax.f32 %v740, 0.0
      %v782 = vmax.f32 %v743, 0.0
      %v783 = vmax.f32 %v748, 0.0
      %v784 = vmax.f32 %v751, 0.0
      %v785 = vmax.f32 %v756, 0.0
      %v786 = vmax.f32 %v759, 0.0
      %v787 = vmax.f32 %v764, 0.0
      %v788 = vmax.f32 %v767, 0.0
      %v789 = vmax.f32 %v772, 0.0
      %v790 = vpack.c.bf16 %v778, %v777
      %v791 = vpack.c.bf16 %v780, %v779
      %v792 = vpack.c.bf16 %v782, %v781
      %v793 = vpack.c.bf16 %v784, %v783
      %v794 = vpack.c.bf16 %v786, %v785
      %v795 = vpack.c.bf16 %v788, %v787
      %v796 = vpack.c.bf16 %v789, %v789
      %v804 = vunpack.c.l.b16 %v790
      %v805 = vunpack.c.h.b16 %v790
      %v806 = vunpack.c.l.b16 %v791
      %v807 = vunpack.c.h.b16 %v791
      %v808 = vunpack.c.l.b16 %v792
      %v809 = vunpack.c.h.b16 %v792
      %v810 = vunpack.c.l.b16 %v793
      %v811 = vunpack.c.h.b16 %v793
      %v812 = vunpack.c.l.b16 %v794
      %v813 = vunpack.c.h.b16 %v794
      %v814 = vunpack.c.l.b16 %v795
      %v815 = vunpack.c.h.b16 %v795
      %v816 = vunpack.c.l.b16 %v796
      %v817 = vpack.c.b16 %v804, %v804
      %v818 = vpack.c.b16 %v805, %v805
      %v819 = vpack.c.b16 %v806, %v806
      %v820 = vpack.c.b16 %v807, %v807
      %v821 = vpack.c.b16 %v808, %v808
      %v822 = vpack.c.b16 %v809, %v809
      %v823 = vpack.c.b16 %v810, %v810
      %v824 = vpack.c.b16 %v811, %v811
      %v825 = vpack.c.b16 %v812, %v812
      %v826 = vpack.c.b16 %v813, %v813
      %v827 = vpack.c.b16 %v814, %v814
      %v828 = vpack.c.b16 %v815, %v815
      %v829 = vpack.c.b16 %v816, %v816
      %843 = vst [vmem:[%s175] sm:$0xf] %v817
      %844 = vst [vmem:[%s175 + $0x4] sm:$0xf] %v818
      %845 = vst [vmem:[%s175 + $0x8] sm:$0xf] %v819
      %846 = vst [vmem:[%s175 + $0xc] sm:$0xf] %v820
      %847 = vst [vmem:[%s175 + $0x10] sm:$0xf] %v821
      %848 = vst [vmem:[%s175 + $0x14] sm:$0xf] %v822
      %849 = vst [vmem:[%s175 + $0x18] sm:$0xf] %v823
      %850 = vst [vmem:[%s175 + $0x1c] sm:$0xf] %v824
      %851 = vst [vmem:[%s175 + $0x20] sm:$0xf] %v825
      %852 = vst [vmem:[%s175 + $0x24] sm:$0xf] %v826
      %853 = vst [vmem:[%s175 + $0x28] sm:$0xf] %v827
      %854 = vst [vmem:[%s175 + $0x2c] sm:$0xf] %v828
      %855 = vst [vmem:[%s175 + $0x30] sm:$0xf] %v829
      %s856 = smul.u32 13, %s14
      %p857 = scmp.lt.s32.totalorder %s856, 25
      %s858 = scalar_select %p857, %s856, 25
      %s859 = smul.addr %s858, 4
      %s860 = scalar_lea.vmem %s3, %s859
      // Predicated region
      $region33: #{encoder_forward.6} parent=31 // pred_check
        %p861 = pneg %p100
      $region34: #{encoder_forward.6} parent=31 // pred_check_branch
        %863 = sbr.rel (%p861) target = $region36
      $region35: #{encoder_forward.6} parent=31 // pred_region
        %s864 = smul.u32 13, %s14
      $region36: #{encoder_forward.6} parent=31 // pred_fallthru
        _
    $region32: #{encoder_forward.6} parent=5 // pred_fallthru
      _
    %p865 = scmp.le.s32.totalorder 2, %s9
    // Predicated region
    $region37: #{encoder_forward.6} parent=5 // pred_check
      %p866 = pneg %p865
    $region38: #{encoder_forward.6} parent=5 // pred_check_branch
      %868 = sbr.rel (%p866) target = $region40
    $region39: #{encoder_forward.6} parent=5 // pred_region
      %s869 = ssub.s32 %s9, 2
      // Predicated region
      $region41: #{encoder_forward.6} parent=39 // pred_check
        %p870 = pneg %p106
      $region42: #{encoder_forward.6} parent=39 // pred_check_branch
        %872 = sbr.rel (%p870) target = $region44
      $region43: #{encoder_forward.6} parent=39 // pred_region
        %s873 = smul.u32 13, %s15
        %p874 = scmp.lt.s32.totalorder %s873, 25
        %s875 = scalar_select %p874, %s873, 25
        %s876 = smul.addr %s875, 4
        %s877 = scalar_lea.vmem %s3, %s876
      $region44: #{encoder_forward.6} parent=39 // pred_fallthru
        _
    $region40: #{encoder_forward.6} parent=5 // pred_fallthru
      _
  $region6: #{encoder_forward.6} parent=0 // loop_footer
    %s13 = sadd.s32 1, %s9
  $region7: #{encoder_forward.6} parent=0 // loop_footer_branch
    %8 = sbr.rel target = $region3
  $region8: #{encoder_forward.6} parent=0 // loop_exit
    _

// kernel: encoder_forward.7
$region0: #{encoder_forward.7}
  #allocation0 [shape = 'u32[]', space=smem, size = 0x4, offset = 0x4, fixed_abs, tag = 'smem constant byte address 0x4 - core index']
  #allocation1 [shape = 'u32[144,128]{1,0:T(1,128)}', space=vmem, size = 0x12000, scoped, tag = 'internal scratch']
  %s0 = inlined_call_operand.vmem [shape: bf16[4,120,128], index: 0, kind: input, shape index: {}]
  %s1 = inlined_call_operand.vmem [shape: bf16[9,128,128], index: 1, kind: input, shape index: {}]
  %s2 = inlined_call_operand.vmem [shape: f32[1,128], index: 2, kind: input, shape index: {}]
  %s3 = inlined_call_operand.vmem [shape: f32[88,1], index: 3, kind: input, shape index: {}]
  %s4 = inlined_call_operand.vmem [shape: bf16[4,120,128], index: 4, kind: output, shape index: {}]
  %s5 = sld [smem:[#allocation0]]
  $region49: #{encoder_forward.7} parent=0
    _
  %s7 = ssub.s32 1, %s5
  %s8 = scalar_select 0, %s7, %s5
  loop: start=0, step=1, limit=6
  $region2: #{encoder_forward.7} parent=0 // loop_pre_header
    _
  $region3: #{encoder_forward.7} parent=0 // loop_header
    %s10 = sphi 0, %s14
    %p11 = scmp.ge.s32.totalorder %s10, 6
    %s20 = sphi 0, %s22
    %s23 = sphi 0, %s20
    %s24 = sphi 0, %s23
    %s40 = sphi 0, %s24
    %s44 = sphi 0, %s44
    %s46 = sphi 0, %s44
    %s47 = sphi 0, %s46
    %s61 = sphi 0, %s47
    %s65 = sphi 0, %s65
    %s67 = sphi 0, %s65
    %s68 = sphi 0, %s67
    %s82 = sphi 0, %s68
    %s86 = sphi 0, %s86
    %s88 = sphi 0, %s86
    %s89 = sphi 0, %s88
    %s103 = sphi 0, %s89
    %s109 = sphi 0, %s111
    %s112 = sphi 0, %s109
    %s113 = sphi 0, %s112
    %s129 = sphi 0, %s113
  $region4: #{encoder_forward.7} parent=0 // loop_header_branch
    %13 = sbr.rel (%p11) target = $region8
  $region5: #{encoder_forward.7} parent=0 // loop_body
    %s15 = ssub.s32 %s10, 1
    %s16 = ssub.s32 %s10, 2
    %s17 = sadd.s32 %s10, 1
    %s18 = ssub.s32 %s10, %s17
    %p19 = scmp.eq.s32.totalorder %s18, 0
    %s21 = sadd.s32 %s20, 1
    %s22 = scalar_select %p19, %s20, %s21
    %p25 = pneg %p19
    %p26 = scmp.eq.s32.totalorder %s10, 3
    %p27 = por %p25, %p26
    %p28 = scmp.ne.s32.totalorder %s20, %s23
    %p29 = scmp.eq.s32.totalorder %s10, 0
    %p30 = por %p28, %p29
    %p31 = scmp.ne.s32.totalorder %s20, %s23
    %p32 = scmp.eq.s32.totalorder %s15, 3
    %p33 = por %p31, %p32
    %p34 = scmp.ne.s32.totalorder %s23, %s24
    %p35 = scmp.eq.s32.totalorder %s15, 0
    %p36 = por %p34, %p35
    %p37 = scmp.ne.s32.totalorder %s23, %s24
    %p38 = scmp.eq.s32.totalorder %s16, 3
    %p39 = por %p37, %p38
    %p41 = scmp.ne.s32.totalorder %s24, %s40
    %p42 = scmp.eq.s32.totalorder %s16, 0
    %p43 = por %p41, %p42
    %s45 = sadd.s32 %s44, 1
    %p48 = scmp.eq.s32.totalorder %s10, 3
    %p49 = scmp.ne.s32.totalorder %s44, %s46
    %p50 = scmp.eq.s32.totalorder %s10, 0
    %p51 = por %p49, %p50
    %p52 = scmp.ne.s32.totalorder %s44, %s46
    %p53 = scmp.eq.s32.totalorder %s15, 3
    %p54 = por %p52, %p53
    %p55 = scmp.ne.s32.totalorder %s46, %s47
    %p56 = scmp.eq.s32.totalorder %s15, 0
    %p57 = por %p55, %p56
    %p58 = scmp.ne.s32.totalorder %s46, %s47
    %p59 = scmp.eq.s32.totalorder %s16, 3
    %p60 = por %p58, %p59
    %p62 = scmp.ne.s32.totalorder %s47, %s61
    %p63 = scmp.eq.s32.totalorder %s16, 0
    %p64 = por %p62, %p63
    %s66 = sadd.s32 %s65, 1
    %p69 = scmp.eq.s32.totalorder %s10, 3
    %p70 = scmp.ne.s32.totalorder %s65, %s67
    %p71 = scmp.eq.s32.totalorder %s10, 0
    %p72 = por %p70, %p71
    %p73 = scmp.ne.s32.totalorder %s65, %s67
    %p74 = scmp.eq.s32.totalorder %s15, 3
    %p75 = por %p73, %p74
    %p76 = scmp.ne.s32.totalorder %s67, %s68
    %p77 = scmp.eq.s32.totalorder %s15, 0
    %p78 = por %p76, %p77
    %p79 = scmp.ne.s32.totalorder %s67, %s68
    %p80 = scmp.eq.s32.totalorder %s16, 3
    %p81 = por %p79, %p80
    %p83 = scmp.ne.s32.totalorder %s68, %s82
    %p84 = scmp.eq.s32.totalorder %s16, 0
    %p85 = por %p83, %p84
    %s87 = sadd.s32 %s86, 1
    %p90 = scmp.eq.s32.totalorder %s10, 3
    %p91 = scmp.ne.s32.totalorder %s86, %s88
    %p92 = scmp.eq.s32.totalorder %s10, 0
    %p93 = por %p91, %p92
    %p94 = scmp.ne.s32.totalorder %s86, %s88
    %p95 = scmp.eq.s32.totalorder %s15, 3
    %p96 = por %p94, %p95
    %p97 = scmp.ne.s32.totalorder %s88, %s89
    %p98 = scmp.eq.s32.totalorder %s15, 0
    %p99 = por %p97, %p98
    %p100 = scmp.ne.s32.totalorder %s88, %s89
    %p101 = scmp.eq.s32.totalorder %s16, 3
    %p102 = por %p100, %p101
    %p104 = scmp.ne.s32.totalorder %s89, %s103
    %p105 = scmp.eq.s32.totalorder %s16, 0
    %p106 = por %p104, %p105
    %s107 = ssub.s32 %s10, %s17
    %p108 = scmp.eq.s32.totalorder %s107, 0
    %s110 = sadd.s32 %s109, 1
    %s111 = scalar_select %p108, %s109, %s110
    %p114 = pneg %p108
    %p115 = scmp.eq.s32.totalorder %s10, 3
    %p116 = por %p114, %p115
    %p117 = scmp.ne.s32.totalorder %s109, %s112
    %p118 = scmp.eq.s32.totalorder %s10, 0
    %p119 = por %p117, %p118
    %p120 = scmp.ne.s32.totalorder %s109, %s112
    %p121 = scmp.eq.s32.totalorder %s15, 3
    %p122 = por %p120, %p121
    %p123 = scmp.ne.s32.totalorder %s112, %s113
    %p124 = scmp.eq.s32.totalorder %s15, 0
    %p125 = por %p123, %p124
    %p126 = scmp.ne.s32.totalorder %s112, %s113
    %p127 = scmp.eq.s32.totalorder %s16, 3
    %p128 = por %p126, %p127
    %p130 = scmp.ne.s32.totalorder %s113, %s129
    %p131 = scmp.eq.s32.totalorder %s16, 0
    %p132 = por %p130, %p131
    %p133 = scmp.le.s32.totalorder 1, %s10
    %p134 = scmp.lt.s32.totalorder %s10, 5
    %p135 = pnand %p133, %p134
    %p136 = pneg %p135
    // Predicated region
    $region9: #{encoder_forward.7} parent=5 // pred_check
      _
    $region10: #{encoder_forward.7} parent=5 // pred_check_branch
      %138 = sbr.rel (%p135) target = $region12
    $region11: #{encoder_forward.7} parent=5 // pred_region
      %s139 = ssub.s32 %s10, 1
      // Predicated region
      $region13: #{encoder_forward.7} parent=11 // pred_check
        %p140 = pneg %p57
      $region14: #{encoder_forward.7} parent=11 // pred_check_branch
        %142 = sbr.rel (%p140) target = $region16
      $region15: #{encoder_forward.7} parent=11 // pred_region
        _
      $region16: #{encoder_forward.7} parent=11 // pred_fallthru
        _
      // Predicated region
      $region17: #{encoder_forward.7} parent=11 // pred_check
        %p143 = pneg %p78
      $region18: #{encoder_forward.7} parent=11 // pred_check_branch
        %145 = sbr.rel (%p143) target = $region20
      $region19: #{encoder_forward.7} parent=11 // pred_region
        _
      $region20: #{encoder_forward.7} parent=11 // pred_fallthru
        _
      // Predicated region
      $region21: #{encoder_forward.7} parent=11 // pred_check
        %p146 = pneg %p99
      $region22: #{encoder_forward.7} parent=11 // pred_check_branch
        %148 = sbr.rel (%p146) target = $region24
      $region23: #{encoder_forward.7} parent=11 // pred_region
        _
      $region24: #{encoder_forward.7} parent=11 // pred_fallthru
        _
    $region12: #{encoder_forward.7} parent=5 // pred_fallthru
      _
    %p149 = scmp.lt.s32.totalorder %s10, 4
    // Predicated region
    $region25: #{encoder_forward.7} parent=5 // pred_check
      %p150 = pneg %p149
    $region26: #{encoder_forward.7} parent=5 // pred_check_branch
      %152 = sbr.rel (%p150) target = $region28
    $region27: #{encoder_forward.7} parent=5 // pred_region
      // Predicated region
      $region29: #{encoder_forward.7} parent=27 // pred_check
        %p153 = pneg %p30
      $region30: #{encoder_forward.7} parent=27 // pred_check_branch
        %155 = sbr.rel (%p153) target = $region32
      $region31: #{encoder_forward.7} parent=27 // pred_region
        %p156 = scmp.lt.s32.totalorder %s10, 3
        %s157 = scalar_select %p156, %s10, 3
        %s158 = smul.addr %s157, 15
        %s159 = smul.addr %s158, 4
        %s160 = scalar_lea.vmem %s0, %s159
      $region32: #{encoder_forward.7} parent=27 // pred_fallthru
        _
    $region28: #{encoder_forward.7} parent=5 // pred_fallthru
      _
    %p161 = scmp.le.s32.totalorder 1, %s10
    %p162 = scmp.lt.s32.totalorder %s10, 5
    %p163 = pnand %p161, %p162
    %p164 = pneg %p163
    // Predicated region
    $region33: #{encoder_forward.7} parent=5 // pred_check
      _
    $region34: #{encoder_forward.7} parent=5 // pred_check_branch
      %166 = sbr.rel (%p163) target = $region36
    $region35: #{encoder_forward.7} parent=5 // pred_region
      %s167 = ssub.s32 %s10, 1
      %p168 = scmp.lt.s32.totalorder %s15, 3
      %s169 = scalar_select %p168, %s15, 3
      %s170 = smul.addr %s169, 15
      %s171 = smul.addr %s170, 4
      %s172 = scalar_lea.vmem %s0, %s171
      %p173 = pneg %p36
      %p174 = pneg %p33
      %p175 = pneg %p57
      %p176 = pneg %p54
      %p177 = pneg %p78
      %p178 = pneg %p75
      %p179 = pneg %p99
      %p180 = pneg %p96
      %p181 = pneg %p125
      %p182 = pneg %p122
      %p183 = scmp.lt.s32.totalorder %s15, 3
      %s184 = scalar_select %p183, %s15, 3
      %s185 = smul.addr %s184, 15
      %s186 = smul.addr %s185, 4
      %s187 = scalar_lea.vmem %s4, %s186
      %p188 = scmp.lt.s32.totalorder %s15, 3
      %s189 = scalar_select %p188, %s15, 3
      %s190 = smul.addr %s189, 15
      %s191 = smul.addr %s190, 4
      %s192 = scalar_lea.vmem %s0, %s191
      %p193 = scmp.lt.s32.totalorder %s15, 3
      %s194 = scalar_select %p193, %s15, 3
      %s195 = smul.addr %s194, 15
      %s196 = smul.addr %s195, 4
      %s197 = scalar_lea.vmem %s4, %s196
      %v199 = vld [vmem:[%s192] sm:$0x8]
      %v200 = vld [vmem:[%s192 + $0x4] sm:$0xf]
      %v201 = vld [vmem:[%s192 + $0x8] sm:$0xf]
      %v202 = vld [vmem:[%s192 + $0xc] sm:$0xf]
      %v203 = vld [vmem:[%s192 + $0x10] sm:$0xf]
      %v204 = vld [vmem:[%s192 + $0x14] sm:$0xf]
      %v205 = vld [vmem:[%s192 + $0x18] sm:$0xf]
      %v206 = vld [vmem:[%s192 + $0x1c] sm:$0xf]
      %v207 = vld [vmem:[%s192 + $0x20] sm:$0xf]
      %v208 = vld [vmem:[%s192 + $0x24] sm:$0xf]
      %v209 = vld [vmem:[%s192 + $0x28] sm:$0xf]
      %v210 = vld [vmem:[%s192 + $0x2c] sm:$0x7]
      %v211 = vld [vmem:[%s1] sm:$0xf]
      %v212 = vld [vmem:[%s1 + $0x4] sm:$0xf]
      %v213 = vld [vmem:[%s1 + $0x8] sm:$0xf]
      %v214 = vld [vmem:[%s1 + $0xc] sm:$0xf]
      %v215 = vld [vmem:[%s1 + $0x10] sm:$0xf]
      %v216 = vld [vmem:[%s1 + $0x14] sm:$0xf]
      %v217 = vld [vmem:[%s1 + $0x18] sm:$0xf]
      %v218 = vld [vmem:[%s1 + $0x1c] sm:$0xf]
      %v219 = vld [vmem:[%s1 + $0x20] sm:$0xf]
      %v220 = vld [vmem:[%s1 + $0x24] sm:$0xf]
      %v221 = vld [vmem:[%s1 + $0x28] sm:$0xf]
      %v222 = vld [vmem:[%s1 + $0x2c] sm:$0xf]
      %v223 = vld [vmem:[%s1 + $0x30] sm:$0xf]
      %v224 = vld [vmem:[%s1 + $0x34] sm:$0xf]
      %v225 = vld [vmem:[%s1 + $0x38] sm:$0xf]
      %v226 = vld [vmem:[%s1 + $0x3c] sm:$0xf]
      %v227 = vld [vmem:[%s192 + $0x2c] sm:$0xf]
      %s228 = scalar_lea.vmem %s1, 64
      %v229 = vld [vmem:[%s228] sm:$0xf]
      %v230 = vld [vmem:[%s228 + $0x4] sm:$0xf]
      %v231 = vld [vmem:[%s228 + $0x8] sm:$0xf]
      %v232 = vld [vmem:[%s228 + $0xc] sm:$0xf]
      %v233 = vld [vmem:[%s228 + $0x10] sm:$0xf]
      %v234 = vld [vmem:[%s228 + $0x14] sm:$0xf]
      %v235 = vld [vmem:[%s228 + $0x18] sm:$0xf]
      %v236 = vld [vmem:[%s228 + $0x1c] sm:$0xf]
      %v237 = vld [vmem:[%s228 + $0x20] sm:$0xf]
      %v238 = vld [vmem:[%s228 + $0x24] sm:$0xf]
      %v239 = vld [vmem:[%s228 + $0x28] sm:$0xf]
      %v240 = vld [vmem:[%s228 + $0x2c] sm:$0xf]
      %v241 = vld [vmem:[%s228 + $0x30] sm:$0xf]
      %v242 = vld [vmem:[%s228 + $0x34] sm:$0xf]
      %v243 = vld [vmem:[%s228 + $0x38] sm:$0xf]
      %v244 = vld [vmem:[%s228 + $0x3c] sm:$0xf]
      %v257 = vunpack.c.l.b16 %v199
      %v258 = vunpack.c.l.b16 %v200
      %v259 = vunpack.c.l.b16 %v201
      %v260 = vunpack.c.l.b16 %v202
      %v261 = vunpack.c.l.b16 %v203
      %v262 = vunpack.c.l.b16 %v204
      %v263 = vunpack.c.l.b16 %v205
      %v264 = vunpack.c.l.b16 %v206
      %v265 = vunpack.c.l.b16 %v207
      %v266 = vunpack.c.l.b16 %v208
      %v267 = vunpack.c.l.b16 %v209
      %v268 = vunpack.c.l.b16 %v227
      %v269 = vpack.c.b16 %v258, %v257
      %v270 = vpack.c.b16 %v260, %v259
      %v271 = vpack.c.b16 %v262, %v261
      %v272 = vpack.c.b16 %v264, %v263
      %v273 = vpack.c.b16 %v266, %v265
      %v274 = vpack.c.b16 %v268, %v267
      %vm275 = vsmask.f32 4352
      %v277 = vshrl.u32 %v269, 16
      %v279 = vrot.slane %v277, 3
      %v280 = vshll.u32 %v269, 16
      %v282 = vrot.slane %v280, 4
      %v283 = vor.u32 %v279, %v282
      %v285 = vshrl.u32 %v270, 16
      %v287 = vrot.slane %v285, 3
      %v288 = vshll.u32 %v270, 16
      %v290 = vrot.slane %v288, 4
      %v291 = vor.u32 %v287, %v290
      %v292 = vsel %vm275, %v283, %v291
      %v294 = vshrl.u32 %v271, 16
      %v296 = vrot.slane %v294, 3
      %v297 = vshll.u32 %v271, 16
      %v299 = vrot.slane %v297, 4
      %v300 = vor.u32 %v296, %v299
      %v301 = vsel %vm275, %v291, %v300
      %v303 = vshrl.u32 %v272, 16
      %v305 = vrot.slane %v303, 3
      %v306 = vshll.u32 %v272, 16
      %v308 = vrot.slane %v306, 4
      %v309 = vor.u32 %v305, %v308
      %v310 = vsel %vm275, %v300, %v309
      %v312 = vshrl.u32 %v273, 16
      %v314 = vrot.slane %v312, 3
      %v315 = vshll.u32 %v273, 16
      %v317 = vrot.slane %v315, 4
      %v318 = vor.u32 %v314, %v317
      %v319 = vsel %vm275, %v309, %v318
      %v321 = vshrl.u32 %v274, 16
      %v323 = vrot.slane %v321, 3
      %v324 = vshll.u32 %v274, 16
      %v326 = vrot.slane %v324, 4
      %v327 = vor.u32 %v323, %v326
      %v328 = vsel %vm275, %v318, %v327
      %v351 = vunpack.c.l.b16 %v229
      %v352 = vunpack.c.l.b16 %v230
      %v353 = vunpack.c.l.b16 %v231
      %v354 = vunpack.c.l.b16 %v232
      %v355 = vunpack.c.l.b16 %v233
      %v356 = vunpack.c.l.b16 %v234
      %v357 = vunpack.c.l.b16 %v235
      %v358 = vunpack.c.l.b16 %v236
      %v359 = vunpack.c.l.b16 %v237
      %v360 = vunpack.c.l.b16 %v238
      %v361 = vunpack.c.l.b16 %v239
      %v362 = vunpack.c.l.b16 %v240
      %v363 = vunpack.c.l.b16 %v241
      %v364 = vunpack.c.l.b16 %v242
      %v365 = vunpack.c.l.b16 %v243
      %v366 = vunpack.c.l.b16 %v244
      %v367 = vpack.c.b16 %v352, %v351
      %v368 = vpack.c.b16 %v354, %v353
      %v369 = vpack.c.b16 %v356, %v355
      %v370 = vpack.c.b16 %v358, %v357
      %v371 = vpack.c.b16 %v360, %v359
      %v372 = vpack.c.b16 %v362, %v361
      %v373 = vpack.c.b16 %v364, %v363
      %v374 = vpack.c.b16 %v366, %v365
      %383 = vmatprep.subr.bf16.mxu0 0
      %384 = vmatpush1.bf16.msra.mxu0 %v367
      %385 = vmatprep.subr.bf16.mxu0 0
      %386 = vmatpush1.bf16.msra.mxu0 %v368
      %387 = vmatprep.subr.bf16.mxu0 0
      %388 = vmatpush1.bf16.msra.mxu0 %v369
      %389 = vmatprep.subr.bf16.mxu0 0
      %390 = vmatpush1.bf16.msra.mxu0 %v370
      %391 = vmatprep.subr.bf16.mxu0 0
      %392 = vmatpush1.bf16.msra.mxu0 %v371
      %393 = vmatprep.subr.bf16.mxu0 0
      %394 = vmatpush1.bf16.msra.mxu0 %v372
      %395 = vmatprep.subr.bf16.mxu0 0
      %396 = vmatpush1.bf16.msra.mxu0 %v373
      %397 = vmatprep.subr.bf16.mxu0 0
      %398 = vmatpush1.bf16.msra.mxu0 %v374
      %399 = vmatprep.subr.bf16.mxu0 0
      %400 = vmatpush1.bf16.msra.mxu0 0
      %401 = vmatprep.subr.bf16.mxu0 0
      %402 = vmatpush1.bf16.msra.mxu0 0
      %403 = vmatprep.subr.bf16.mxu0 0
      %404 = vmatpush1.bf16.msra.mxu0 0
      %405 = vmatprep.subr.bf16.mxu0 0
      %406 = vmatpush1.bf16.msra.mxu0 0
      %407 = vmatprep.subr.bf16.mxu0 0
      %408 = vmatpush1.bf16.msra.mxu0 0
      %409 = vmatprep.subr.bf16.mxu0 0
      %410 = vmatpush1.bf16.msra.mxu0 0
      %411 = vmatprep.subr.bf16.mxu0 0
      %412 = vmatpush1.bf16.msra.mxu0 0
      %413 = vmatprep.subr.bf16.mxu0 0
      %414 = vmatpush1.bf16.msra.mxu0 0
      %415 = vmatprep.mubr.bf16.mxu0 0
      %416 = vmatmul.mubr.bf16.gmra.mrb[0].mxu0 %v292
      %v417 = vpop.f32.mrb[0].mxu0
      %v418 = vadd.f32 0.0, %v417
      %v419 = vpop.f32.mrb[0].mxu0
      %v420 = vpop.f32.mrb[0].mxu0
      %v421 = vadd.f32 0.0, %v420
      %v422 = vpop.f32.mrb[0].mxu0
      %423 = vmatprep.mubr.bf16.mxu0 0
      %424 = vmatmul.mubr.bf16.gmra.mrb[0].mxu0 %v301
      %v425 = vpop.f32.mrb[0].mxu0
      %v426 = vadd.f32 0.0, %v425
      %v427 = vpop.f32.mrb[0].mxu0
      %v428 = vpop.f32.mrb[0].mxu0
      %v429 = vadd.f32 0.0, %v428
      %v430 = vpop.f32.mrb[0].mxu0
      %431 = vmatprep.mubr.bf16.mxu0 0
      %432 = vmatmul.mubr.bf16.gmra.mrb[0].mxu0 %v310
      %v433 = vpop.f32.mrb[0].mxu0
      %v434 = vadd.f32 0.0, %v433
      %v435 = vpop.f32.mrb[0].mxu0
      %v436 = vpop.f32.mrb[0].mxu0
      %v437 = vadd.f32 0.0, %v436
      %v438 = vpop.f32.mrb[0].mxu0
      %439 = vmatprep.mubr.bf16.mxu0 0
      %440 = vmatmul.mubr.bf16.gmra.mrb[0].mxu0 %v319
      %v441 = vpop.f32.mrb[0].mxu0
      %v442 = vadd.f32 0.0, %v441
      %v443 = vpop.f32.mrb[0].mxu0
      %v444 = vpop.f32.mrb[0].mxu0
      %v445 = vadd.f32 0.0, %v444
      %v446 = vpop.f32.mrb[0].mxu0
      %447 = vmatprep.mubr.bf16.mxu0 0
      %448 = vmatmul.mubr.bf16.gmra.mrb[0].mxu0 %v328
      %v449 = vpop.f32.mrb[0].mxu0
      %v450 = vadd.f32 0.0, %v449
      %v451 = vpop.f32.mrb[0].mxu0
      %v452 = vpop.f32.mrb[0].mxu0
      %v453 = vadd.f32 0.0, %v452
      %v454 = vpop.f32.mrb[0].mxu0
      %455 = vmatprep.mubr.bf16.mxu0 0
      %456 = vmatmul.mubr.bf16.gmra.mrb[0].mxu0 %v327
      %v457 = vpop.f32.mrb[0].mxu0
      %v458 = vadd.f32 0.0, %v457
      %v459 = vpop.f32.mrb[0].mxu0
      %v460 = vpop.f32.mrb[0].mxu0
      %v461 = vpop.f32.mrb[0].mxu0
      %462 = vdwg.mxu0
      %v464 = vunpack.c.l.b16 %v210
      %v465 = vpack.c.b16 %v464, %v267
      %vm466 = vcmask 1044480
      %v467 = vrot.slane %v269, 3
      %v468 = vrot.slane %v270, 3
      %v469 = vsel %vm466, %v467, %v468
      %v470 = vrot.slane %v271, 3
      %v471 = vsel %vm466, %v468, %v470
      %v472 = vrot.slane %v272, 3
      %v473 = vsel %vm466, %v470, %v472
      %v474 = vrot.slane %v273, 3
      %v475 = vsel %vm466, %v472, %v474
      %v476 = vrot.slane %v465, 3
      %v477 = vsel %vm466, %v474, %v476
      %v500 = vunpack.c.l.b16 %v211
      %v501 = vunpack.c.l.b16 %v212
      %v502 = vunpack.c.l.b16 %v213
      %v503 = vunpack.c.l.b16 %v214
      %v504 = vunpack.c.l.b16 %v215
      %v505 = vunpack.c.l.b16 %v216
      %v506 = vunpack.c.l.b16 %v217
      %v507 = vunpack.c.l.b16 %v218
      %v508 = vunpack.c.l.b16 %v219
      %v509 = vunpack.c.l.b16 %v220
      %v510 = vunpack.c.l.b16 %v221
      %v511 = vunpack.c.l.b16 %v222
      %v512 = vunpack.c.l.b16 %v223
      %v513 = vunpack.c.l.b16 %v224
      %v514 = vunpack.c.l.b16 %v225
      %v515 = vunpack.c.l.b16 %v226
      %v516 = vpack.c.b16 %v501, %v500
      %v517 = vpack.c.b16 %v503, %v502
      %v518 = vpack.c.b16 %v505, %v504
      %v519 = vpack.c.b16 %v507, %v506
      %v520 = vpack.c.b16 %v509, %v508
      %v521 = vpack.c.b16 %v511, %v510
      %v522 = vpack.c.b16 %v513, %v512
      %v523 = vpack.c.b16 %v515, %v514
      %532 = vmatprep.subr.bf16.mxu0 0
      %533 = vmatpush1.bf16.msra.mxu0 %v516
      %534 = vmatprep.subr.bf16.mxu0 0
      %535 = vmatpush1.bf16.msra.mxu0 %v517
      %536 = vmatprep.subr.bf16.mxu0 0
      %537 = vmatpush1.bf16.msra.mxu0 %v518
      %538 = vmatprep.subr.bf16.mxu0 0
      %539 = vmatpush1.bf16.msra.mxu0 %v519
      %540 = vmatprep.subr.bf16.mxu0 0
      %541 = vmatpush1.bf16.msra.mxu0 %v520
      %542 = vmatprep.subr.bf16.mxu0 0
      %543 = vmatpush1.bf16.msra.mxu0 %v521
      %544 = vmatprep.subr.bf16.mxu0 0
      %545 = vmatpush1.bf16.msra.mxu0 %v522
      %546 = vmatprep.subr.bf16.mxu0 0
      %547 = vmatpush1.bf16.msra.mxu0 %v523
      %548 = vmatprep.subr.bf16.mxu0 0
      %549 = vmatpush1.bf16.msra.mxu0 0
      %550 = vmatprep.subr.bf16.mxu0 0
      %551 = vmatpush1.bf16.msra.mxu0 0
      %552 = vmatprep.subr.bf16.mxu0 0
      %553 = vmatpush1.bf16.msra.mxu0 0
      %554 = vmatprep.subr.bf16.mxu0 0
      %555 = vmatpush1.bf16.msra.mxu0 0
      %556 = vmatprep.subr.bf16.mxu0 0
      %557 = vmatpush1.bf16.msra.mxu0 0
      %558 = vmatprep.subr.bf16.mxu0 0
      %559 = vmatpush1.bf16.msra.mxu0 0
      %560 = vmatprep.subr.bf16.mxu0 0
      %561 = vmatpush1.bf16.msra.mxu0 0
      %562 = vmatprep.subr.bf16.mxu0 0
      %563 = vmatpush1.bf16.msra.mxu0 0
      %564 = vmatprep.mubr.bf16.mxu0 0
      %565 = vmatmul.mubr.bf16.gmra.mrb[0].mxu0 %v469
      %v566 = vpop.f32.mrb[0].mxu0
      %v567 = vadd.f32 %v418, %v566
      %v568 = vpop.f32.mrb[0].mxu0
      %v569 = vpop.f32.mrb[0].mxu0
      %v570 = vadd.f32 %v421, %v569
      %v571 = vpop.f32.mrb[0].mxu0
      %572 = vmatprep.mubr.bf16.mxu0 0
      %573 = vmatmul.mubr.bf16.gmra.mrb[0].mxu0 %v471
      %v574 = vpop.f32.mrb[0].mxu0
      %v575 = vadd.f32 %v426, %v574
      %v576 = vpop.f32.mrb[0].mxu0
      %v577 = vpop.f32.mrb[0].mxu0
      %v578 = vadd.f32 %v429, %v577
      %v579 = vpop.f32.mrb[0].mxu0
      %580 = vmatprep.mubr.bf16.mxu0 0
      %581 = vmatmul.mubr.bf16.gmra.mrb[0].mxu0 %v473
      %v582 = vpop.f32.mrb[0].mxu0
      %v583 = vadd.f32 %v434, %v582
      %v584 = vpop.f32.mrb[0].mxu0
      %v585 = vpop.f32.mrb[0].mxu0
      %v586 = vadd.f32 %v437, %v585
      %v587 = vpop.f32.mrb[0].mxu0
      %588 = vmatprep.mubr.bf16.mxu0 0
      %589 = vmatmul.mubr.bf16.gmra.mrb[0].mxu0 %v475
      %v590 = vpop.f32.mrb[0].mxu0
      %v591 = vadd.f32 %v442, %v590
      %v592 = vpop.f32.mrb[0].mxu0
      %v593 = vpop.f32.mrb[0].mxu0
      %v594 = vadd.f32 %v445, %v593
      %v595 = vpop.f32.mrb[0].mxu0
      %596 = vmatprep.mubr.bf16.mxu0 0
      %597 = vmatmul.mubr.bf16.gmra.mrb[0].mxu0 %v477
      %v598 = vpop.f32.mrb[0].mxu0
      %v599 = vadd.f32 %v450, %v598
      %v600 = vpop.f32.mrb[0].mxu0
      %v601 = vpop.f32.mrb[0].mxu0
      %v602 = vadd.f32 %v453, %v601
      %v603 = vpop.f32.mrb[0].mxu0
      %604 = vmatprep.mubr.bf16.mxu0 0
      %605 = vmatmul.mubr.bf16.gmra.mrb[0].mxu0 %v476
      %v606 = vpop.f32.mrb[0].mxu0
      %v607 = vadd.f32 %v458, %v606
      %v608 = vpop.f32.mrb[0].mxu0
      %v609 = vpop.f32.mrb[0].mxu0
      %v610 = vpop.f32.mrb[0].mxu0
      %611 = vdwg.mxu0
      %s612 = scalar_lea.vmem %s1, 128
      %v613 = vld [vmem:[%s612] sm:$0xf]
      %v614 = vld [vmem:[%s612 + $0x4] sm:$0xf]
      %v615 = vld [vmem:[%s612 + $0x8] sm:$0xf]
      %v616 = vld [vmem:[%s612 + $0xc] sm:$0xf]
      %v617 = vld [vmem:[%s612 + $0x10] sm:$0xf]
      %v618 = vld [vmem:[%s612 + $0x14] sm:$0xf]
      %v619 = vld [vmem:[%s612 + $0x18] sm:$0xf]
      %v620 = vld [vmem:[%s612 + $0x1c] sm:$0xf]
      %v621 = vld [vmem:[%s612 + $0x20] sm:$0xf]
      %v622 = vld [vmem:[%s612 + $0x24] sm:$0xf]
      %v623 = vld [vmem:[%s612 + $0x28] sm:$0xf]
      %v624 = vld [vmem:[%s612 + $0x2c] sm:$0xf]
      %v625 = vld [vmem:[%s612 + $0x30] sm:$0xf]
      %v626 = vld [vmem:[%s612 + $0x34] sm:$0xf]
      %v627 = vld [vmem:[%s612 + $0x38] sm:$0xf]
      %v628 = vld [vmem:[%s612 + $0x3c] sm:$0xf]
      %v629 = vpack.c.b16 %v259, %v258
      %v630 = vpack.c.b16 %v261, %v260
      %v631 = vpack.c.b16 %v263, %v262
      %v632 = vpack.c.b16 %v265, %v264
      %v633 = vpack.c.b16 %v267, %v266
      %v634 = vpack.c.b16 %v268, %v268
      %v657 = vunpack.c.l.b16 %v613
      %v658 = vunpack.c.l.b16 %v614
      %v659 = vunpack.c.l.b16 %v615
      %v660 = vunpack.c.l.b16 %v616
      %v661 = vunpack.c.l.b16 %v617
      %v662 = vunpack.c.l.b16 %v618
      %v663 = vunpack.c.l.b16 %v619
      %v664 = vunpack.c.l.b16 %v620
      %v665 = vunpack.c.l.b16 %v621
      %v666 = vunpack.c.l.b16 %v622
      %v667 = vunpack.c.l.b16 %v623
      %v668 = vunpack.c.l.b16 %v624
      %v669 = vunpack.c.l.b16 %v625
      %v670 = vunpack.c.l.b16 %v626
      %v671 = vunpack.c.l.b16 %v627
      %v672 = vunpack.c.l.b16 %v628
      %v673 = vpack.c.b16 %v658, %v657
      %v674 = vpack.c.b16 %v660, %v659
      %v675 = vpack.c.b16 %v662, %v661
      %v676 = vpack.c.b16 %v664, %v663
      %v677 = vpack.c.b16 %v666, %v665
      %v678 = vpack.c.b16 %v668, %v667
      %v679 = vpack.c.b16 %v670, %v669
      %v680 = vpack.c.b16 %v672, %v671
      %689 = vmatprep.subr.bf16.mxu0 0
      %690 = vmatpush1.bf16.msra.mxu0 %v673
      %691 = vmatprep.subr.bf16.mxu0 0
      %692 = vmatpush1.bf16.msra.mxu0 %v674
      %693 = vmatprep.subr.bf16.mxu0 0
      %694 = vmatpush1.bf16.msra.mxu0 %v675
      %695 = vmatprep.subr.bf16.mxu0 0
      %696 = vmatpush1.bf16.msra.mxu0 %v676
      %697 = vmatprep.subr.bf16.mxu0 0
      %698 = vmatpush1.bf16.msra.mxu0 %v677
      %699 = vmatprep.subr.bf16.mxu0 0
      %700 = vmatpush1.bf16.msra.mxu0 %v678
      %701 = vmatprep.subr.bf16.mxu0 0
      %702 = vmatpush1.bf16.msra.mxu0 %v679
      %703 = vmatprep.subr.bf16.mxu0 0
      %704 = vmatpush1.bf16.msra.mxu0 %v680
      %705 = vmatprep.subr.bf16.mxu0 0
      %706 = vmatpush1.bf16.msra.mxu0 0
      %707 = vmatprep.subr.bf16.mxu0 0
      %708 = vmatpush1.bf16.msra.mxu0 0
      %709 = vmatprep.subr.bf16.mxu0 0
      %710 = vmatpush1.bf16.msra.mxu0 0
      %711 = vmatprep.subr.bf16.mxu0 0
      %712 = vmatpush1.bf16.msra.mxu0 0
      %713 = vmatprep.subr.bf16.mxu0 0
      %714 = vmatpush1.bf16.msra.mxu0 0
      %715 = vmatprep.subr.bf16.mxu0 0
      %716 = vmatpush1.bf16.msra.mxu0 0
      %717 = vmatprep.subr.bf16.mxu0 0
      %718 = vmatpush1.bf16.msra.mxu0 0
      %719 = vmatprep.subr.bf16.mxu0 0
      %720 = vmatpush1.bf16.msra.mxu0 0
      %721 = vmatprep.mubr.bf16.mxu0 0
      %722 = vmatmul.mubr.bf16.gmra.mrb[0].mxu0 %v629
      %v723 = vpop.f32.mrb[0].mxu0
      %v724 = vadd.f32 0.0, %v723
      %v725 = vpop.f32.mrb[0].mxu0
      %v726 = vpop.f32.mrb[0].mxu0
      %v727 = vadd.f32 0.0, %v726
      %v728 = vpop.f32.mrb[0].mxu0
      %729 = vmatprep.mubr.bf16.mxu0 0
      %730 = vmatmul.mubr.bf16.gmra.mrb[0].mxu0 %v630
      %v731 = vpop.f32.mrb[0].mxu0
      %v732 = vadd.f32 0.0, %v731
      %v733 = vpop.f32.mrb[0].mxu0
      %v734 = vpop.f32.mrb[0].mxu0
      %v735 = vadd.f32 0.0, %v734
      %v736 = vpop.f32.mrb[0].mxu0
      %737 = vmatprep.mubr.bf16.mxu0 0
      %738 = vmatmul.mubr.bf16.gmra.mrb[0].mxu0 %v631
      %v739 = vpop.f32.mrb[0].mxu0
      %v740 = vadd.f32 0.0, %v739
      %v741 = vpop.f32.mrb[0].mxu0
      %v742 = vpop.f32.mrb[0].mxu0
      %v743 = vadd.f32 0.0, %v742
      %v744 = vpop.f32.mrb[0].mxu0
      %745 = vmatprep.mubr.bf16.mxu0 0
      %746 = vmatmul.mubr.bf16.gmra.mrb[0].mxu0 %v632
      %v747 = vpop.f32.mrb[0].mxu0
      %v748 = vadd.f32 0.0, %v747
      %v749 = vpop.f32.mrb[0].mxu0
      %v750 = vpop.f32.mrb[0].mxu0
      %v751 = vadd.f32 0.0, %v750
      %v752 = vpop.f32.mrb[0].mxu0
      %753 = vmatprep.mubr.bf16.mxu0 0
      %754 = vmatmul.mubr.bf16.gmra.mrb[0].mxu0 %v633
      %v755 = vpop.f32.mrb[0].mxu0
      %v756 = vadd.f32 0.0, %v755
      %v757 = vpop.f32.mrb[0].mxu0
      %v758 = vpop.f32.mrb[0].mxu0
      %v759 = vadd.f32 0.0, %v758
      %v760 = vpop.f32.mrb[0].mxu0
      %761 = vmatprep.mubr.bf16.mxu0 0
      %762 = vmatmul.mubr.bf16.gmra.mrb[0].mxu0 %v634
      %v763 = vpop.f32.mrb[0].mxu0
      %v764 = vadd.f32 0.0, %v763
      %v765 = vpop.f32.mrb[0].mxu0
      %v766 = vpop.f32.mrb[0].mxu0
      %v767 = vpop.f32.mrb[0].mxu0
      %768 = vdwg.mxu0
      %v769 = vadd.f32 %v567, %v724
      %v770 = vadd.f32 %v570, %v727
      %v771 = vadd.f32 %v575, %v732
      %v772 = vadd.f32 %v578, %v735
      %v773 = vadd.f32 %v583, %v740
      %v774 = vadd.f32 %v586, %v743
      %v775 = vadd.f32 %v591, %v748
      %v776 = vadd.f32 %v594, %v751
      %v777 = vadd.f32 %v599, %v756
      %v778 = vadd.f32 %v602, %v759
      %v779 = vadd.f32 %v607, %v764
      %v780 = vld [vmem:[%s192 + $0x4] sm:$0x8]
      %v781 = vld [vmem:[%s192 + $0x8] sm:$0xf]
      %v782 = vld [vmem:[%s192 + $0xc] sm:$0xf]
      %v783 = vld [vmem:[%s192 + $0x10] sm:$0xf]
      %v784 = vld [vmem:[%s192 + $0x14] sm:$0xf]
      %v785 = vld [vmem:[%s192 + $0x18] sm:$0xf]
      %v786 = vld [vmem:[%s192 + $0x1c] sm:$0xf]
      %v787 = vld [vmem:[%s192 + $0x20] sm:$0xf]
      %v788 = vld [vmem:[%s192 + $0x24] sm:$0xf]
      %v789 = vld [vmem:[%s192 + $0x28] sm:$0xf]
      %v790 = vld [vmem:[%s192 + $0x2c] sm:$0xf]
      %v791 = vld [vmem:[%s192 + $0x30] sm:$0xf]
      %s792 = scalar_lea.vmem %s1, 192
      %v793 = vld [vmem:[%s792] sm:$0xf]
      %v794 = vld [vmem:[%s792 + $0x4] sm:$0xf]
      %v795 = vld [vmem:[%s792 + $0x8] sm:$0xf]
      %v796 = vld [vmem:[%s792 + $0xc] sm:$0xf]
      %v797 = vld [vmem:[%s792 + $0x10] sm:$0xf]
      %v798 = vld [vmem:[%s792 + $0x14] sm:$0xf]
      %v799 = vld [vmem:[%s792 + $0x18] sm:$0xf]
      %v800 = vld [vmem:[%s792 + $0x1c] sm:$0xf]
      %v801 = vld [vmem:[%s792 + $0x20] sm:$0xf]
      %v802 = vld [vmem:[%s792 + $0x24] sm:$0xf]
      %v803 = vld [vmem:[%s792 + $0x28] sm:$0xf]
      %v804 = vld [vmem:[%s792 + $0x2c] sm:$0xf]
      %v805 = vld [vmem:[%s792 + $0x30] sm:$0xf]
      %v806 = vld [vmem:[%s792 + $0x34] sm:$0xf]
      %v807 = vld [vmem:[%s792 + $0x38] sm:$0xf]
      %v808 = vld [vmem:[%s792 + $0x3c] sm:$0xf]
      %v821 = vunpack.c.l.b16 %v780
      %v822 = vunpack.c.l.b16 %v781
      %v823 = vunpack.c.l.b16 %v782
      %v824 = vunpack.c.l.b16 %v783
      %v825 = vunpack.c.l.b16 %v784
      %v826 = vunpack.c.l.b16 %v785
      %v827 = vunpack.c.l.b16 %v786
      %v828 = vunpack.c.l.b16 %v787
      %v829 = vunpack.c.l.b16 %v788
      %v830 = vunpack.c.l.b16 %v789
      %v831 = vunpack.c.l.b16 %v790
      %v832 = vunpack.c.l.b16 %v791
      %v833 = vpack.c.b16 %v822, %v821
      %v834 = vpack.c.b16 %v824, %v823
      %v835 = vpack.c.b16 %v826, %v825
      %v836 = vpack.c.b16 %v828, %v827
      %v837 = vpack.c.b16 %v830, %v829
      %v838 = vpack.c.b16 %v832, %v831
      %v840 = vshrl.u32 %v833, 16
      %v842 = vrot.slane %v840, 3
      %v843 = vshll.u32 %v833, 16
      %v845 = vrot.slane %v843, 4
      %v846 = vor.u32 %v842, %v845
      %v848 = vshrl.u32 %v834, 16
      %v850 = vrot.slane %v848, 3
      %v851 = vshll.u32 %v834, 16
      %v853 = vrot.slane %v851, 4
      %v854 = vor.u32 %v850, %v853
      %v855 = vsel %vm275, %v846, %v854
      %v857 = vshrl.u32 %v835, 16
      %v859 = vrot.slane %v857, 3
      %v860 = vshll.u32 %v835, 16
      %v862 = vrot.slane %v860, 4
      %v863 = vor.u32 %v859, %v862
      %v864 = vsel %vm275, %v854, %v863
      %v866 = vshrl.u32 %v836, 16
      %v868 = vrot.slane %v866, 3
      %v869 = vshll.u32 %v836, 16
      %v871 = vrot.slane %v869, 4
      %v872 = vor.u32 %v868, %v871
      %v873 = vsel %vm275, %v863, %v872
      %v875 = vshrl.u32 %v837, 16
      %v877 = vrot.slane %v875, 3
      %v878 = vshll.u32 %v837, 16
      %v880 = vrot.slane %v878, 4
      %v881 = vor.u32 %v877, %v880
      %v882 = vsel %vm275, %v872, %v881
      %v884 = vshrl.u32 %v838, 16
      %v886 = vrot.slane %v884, 3
      %v887 = vshll.u32 %v838, 16
      %v889 = vrot.slane %v887, 4
      %v890 = vor.u32 %v886, %v889
      %v891 = vsel %vm275, %v881, %v890
      %v914 = vunpack.c.l.b16 %v793
      %v915 = vunpack.c.l.b16 %v794
      %v916 = vunpack.c.l.b16 %v795
      %v917 = vunpack.c.l.b16 %v796
      %v918 = vunpack.c.l.b16 %v797
      %v919 = vunpack.c.l.b16 %v798
      %v920 = vunpack.c.l.b16 %v799
      %v921 = vunpack.c.l.b16 %v800
      %v922 = vunpack.c.l.b16 %v801
      %v923 = vunpack.c.l.b16 %v802
      %v924 = vunpack.c.l.b16 %v803
      %v925 = vunpack.c.l.b16 %v804
      %v926 = vunpack.c.l.b16 %v805
      %v927 = vunpack.c.l.b16 %v806
      %v928 = vunpack.c.l.b16 %v807
      %v929 = vunpack.c.l.b16 %v808
      %v930 = vpack.c.b16 %v915, %v914
      %v931 = vpack.c.b16 %v917, %v916
      %v932 = vpack.c.b16 %v919, %v918
      %v933 = vpack.c.b16 %v921, %v920
      %v934 = vpack.c.b16 %v923, %v922
      %v935 = vpack.c.b16 %v925, %v924
      %v936 = vpack.c.b16 %v927, %v926
      %v937 = vpack.c.b16 %v929, %v928
      %946 = vmatprep.subr.bf16.mxu0 0
      %947 = vmatpush1.bf16.msra.mxu0 %v930
      %948 = vmatprep.subr.bf16.mxu0 0
      %949 = vmatpush1.bf16.msra.mxu0 %v931
      %950 = vmatprep.subr.bf16.mxu0 0
      %951 = vmatpush1.bf16.msra.mxu0 %v932
      %952 = vmatprep.subr.bf16.mxu0 0
      %953 = vmatpush1.bf16.msra.mxu0 %v933
      %954 = vmatprep.subr.bf16.mxu0 0
      %955 = vmatpush1.bf16.msra.mxu0 %v934
      %956 = vmatprep.subr.bf16.mxu0 0
      %957 = vmatpush1.bf16.msra.mxu0 %v935
      %958 = vmatprep.subr.bf16.mxu0 0
      %959 = vmatpush1.bf16.msra.mxu0 %v936
      %960 = vmatprep.subr.bf16.mxu0 0
      %961 = vmatpush1.bf16.msra.mxu0 %v937
      %962 = vmatprep.subr.bf16.mxu0 0
      %963 = vmatpush1.bf16.msra.mxu0 0
      %964 = vmatprep.subr.bf16.mxu0 0
      %965 = vmatpush1.bf16.msra.mxu0 0
      %966 = vmatprep.subr.bf16.mxu0 0
      %967 = vmatpush1.bf16.msra.mxu0 0
      %968 = vmatprep.subr.bf16.mxu0 0
      %969 = vmatpush1.bf16.msra.mxu0 0
      %970 = vmatprep.subr.bf16.mxu0 0
      %971 = vmatpush1.bf16.msra.mxu0 0
      %972 = vmatprep.subr.bf16.mxu0 0
      %973 = vmatpush1.bf16.msra.mxu0 0
      %974 = vmatprep.subr.bf16.mxu0 0
      %975 = vmatpush1.bf16.msra.mxu0 0
      %976 = vmatprep.subr.bf16.mxu0 0
      %977 = vmatpush1.bf16.msra.mxu0 0
      %978 = vmatprep.mubr.bf16.mxu0 0
      %979 = vmatmul.mubr.bf16.gmra.mrb[0].mxu0 %v855
      %v980 = vpop.f32.mrb[0].mxu0
      %v981 = vadd.f32 0.0, %v980
      %v982 = vpop.f32.mrb[0].mxu0
      %v983 = vpop.f32.mrb[0].mxu0
      %v984 = vadd.f32 0.0, %v983
      %v985 = vpop.f32.mrb[0].mxu0
      %986 = vmatprep.mubr.bf16.mxu0 0
      %987 = vmatmul.mubr.bf16.gmra.mrb[0].mxu0 %v864
      %v988 = vpop.f32.mrb[0].mxu0
      %v989 = vadd.f32 0.0, %v988
      %v990 = vpop.f32.mrb[0].mxu0
      %v991 = vpop.f32.mrb[0].mxu0
      %v992 = vadd.f32 0.0, %v991
      %v993 = vpop.f32.mrb[0].mxu0
      %994 = vmatprep.mubr.bf16.mxu0 0
      %995 = vmatmul.mubr.bf16.gmra.mrb[0].mxu0 %v873
      %v996 = vpop.f32.mrb[0].mxu0
      %v997 = vadd.f32 0.0, %v996
      %v998 = vpop.f32.mrb[0].mxu0
      %v999 = vpop.f32.mrb[0].mxu0
      %v1000 = vadd.f32 0.0, %v999
      %v1001 = vpop.f32.mrb[0].mxu0
      %1002 = vmatprep.mubr.bf16.mxu0 0
      %1003 = vmatmul.mubr.bf16.gmra.mrb[0].mxu0 %v882
      %v1004 = vpop.f32.mrb[0].mxu0
      %v1005 = vadd.f32 0.0, %v1004
      %v1006 = vpop.f32.mrb[0].mxu0
      %v1007 = vpop.f32.mrb[0].mxu0
      %v1008 = vadd.f32 0.0, %v1007
      %v1009 = vpop.f32.mrb[0].mxu0
      %1010 = vmatprep.mubr.bf16.mxu0 0
      %1011 = vmatmul.mubr.bf16.gmra.mrb[0].mxu0 %v891
      %v1012 = vpop.f32.mrb[0].mxu0
      %v1013 = vadd.f32 0.0, %v1012
      %v1014 = vpop.f32.mrb[0].mxu0
      %v1015 = vpop.f32.mrb[0].mxu0
      %v1016 = vadd.f32 0.0, %v1015
      %v1017 = vpop.f32.mrb[0].mxu0
      %1018 = vmatprep.mubr.bf16.mxu0 0
      %1019 = vmatmul.mubr.bf16.gmra.mrb[0].mxu0 %v890
      %v1020 = vpop.f32.mrb[0].mxu0
      %v1021 = vadd.f32 0.0, %v1020
      %v1022 = vpop.f32.mrb[0].mxu0
      %v1023 = vpop.f32.mrb[0].mxu0
      %v1024 = vpop.f32.mrb[0].mxu0
      %1025 = vdwg.mxu0
      %v1026 = vadd.f32 %v769, %v981
      %v1027 = vadd.f32 %v770, %v984
      %v1028 = vadd.f32 %v771, %v989
      %v1029 = vadd.f32 %v772, %v992
      %v1030 = vadd.f32 %v773, %v997
      %v1031 = vadd.f32 %v774, %v1000
      %v1032 = vadd.f32 %v775, %v1005
      %v1033 = vadd.f32 %v776, %v1008
      %v1034 = vadd.f32 %v777, %v1013
      %v1035 = vadd.f32 %v778, %v1016
      %v1036 = vadd.f32 %v779, %v1021
      %s1037 = scalar_lea.vmem %s1, 256
      %v1038 = vld [vmem:[%s1037] sm:$0xf]
      %v1039 = vld [vmem:[%s1037 + $0x4] sm:$0xf]
      %v1040 = vld [vmem:[%s1037 + $0x8] sm:$0xf]
      %v1041 = vld [vmem:[%s1037 + $0xc] sm:$0xf]
      %v1042 = vld [vmem:[%s1037 + $0x10] sm:$0xf]
      %v1043 = vld [vmem:[%s1037 + $0x14] sm:$0xf]
      %v1044 = vld [vmem:[%s1037 + $0x18] sm:$0xf]
      %v1045 = vld [vmem:[%s1037 + $0x1c] sm:$0xf]
      %v1046 = vld [vmem:[%s1037 + $0x20] sm:$0xf]
      %v1047 = vld [vmem:[%s1037 + $0x24] sm:$0xf]
      %v1048 = vld [vmem:[%s1037 + $0x28] sm:$0xf]
      %v1049 = vld [vmem:[%s1037 + $0x2c] sm:$0xf]
      %v1050 = vld [vmem:[%s1037 + $0x30] sm:$0xf]
      %v1051 = vld [vmem:[%s1037 + $0x34] sm:$0xf]
      %v1052 = vld [vmem:[%s1037 + $0x38] sm:$0xf]
      %v1053 = vld [vmem:[%s1037 + $0x3c] sm:$0xf]
      %v1054 = vpack.c.b16 %v823, %v822
      %v1055 = vpack.c.b16 %v825, %v824
      %v1056 = vpack.c.b16 %v827, %v826
      %v1057 = vpack.c.b16 %v829, %v828
      %v1058 = vpack.c.b16 %v831, %v830
      %v1059 = vpack.c.b16 %v832, %v832
      %v1082 = vunpack.c.l.b16 %v1038
      %v1083 = vunpack.c.l.b16 %v1039
      %v1084 = vunpack.c.l.b16 %v1040
      %v1085 = vunpack.c.l.b16 %v1041
      %v1086 = vunpack.c.l.b16 %v1042
      %v1087 = vunpack.c.l.b16 %v1043
      %v1088 = vunpack.c.l.b16 %v1044
      %v1089 = vunpack.c.l.b16 %v1045
      %v1090 = vunpack.c.l.b16 %v1046
      %v1091 = vunpack.c.l.b16 %v1047
      %v1092 = vunpack.c.l.b16 %v1048
      %v1093 = vunpack.c.l.b16 %v1049
      %v1094 = vunpack.c.l.b16 %v1050
      %v1095 = vunpack.c.l.b16 %v1051
      %v1096 = vunpack.c.l.b16 %v1052
      %v1097 = vunpack.c.l.b16 %v1053
      %v1098 = vpack.c.b16 %v1083, %v1082
      %v1099 = vpack.c.b16 %v1085, %v1084
      %v1100 = vpack.c.b16 %v1087, %v1086
      %v1101 = vpack.c.b16 %v1089, %v1088
      %v1102 = vpack.c.b16 %v1091, %v1090
      %v1103 = vpack.c.b16 %v1093, %v1092
      %v1104 = vpack.c.b16 %v1095, %v1094
      %v1105 = vpack.c.b16 %v1097, %v1096
      %1114 = vmatprep.subr.bf16.mxu0 0
      %1115 = vmatpush1.bf16.msra.mxu0 %v1098
      %1116 = vmatprep.subr.bf16.mxu0 0
      %1117 = vmatpush1.bf16.msra.mxu0 %v1099
      %1118 = vmatprep.subr.bf16.mxu0 0
      %1119 = vmatpush1.bf16.msra.mxu0 %v1100
      %1120 = vmatprep.subr.bf16.mxu0 0
      %1121 = vmatpush1.bf16.msra.mxu0 %v1101
      %1122 = vmatprep.subr.bf16.mxu0 0
      %1123 = vmatpush1.bf16.msra.mxu0 %v1102
      %1124 = vmatprep.subr.bf16.mxu0 0
      %1125 = vmatpush1.bf16.msra.mxu0 %v1103
      %1126 = vmatprep.subr.bf16.mxu0 0
      %1127 = vmatpush1.bf16.msra.mxu0 %v1104
      %1128 = vmatprep.subr.bf16.mxu0 0
      %1129 = vmatpush1.bf16.msra.mxu0 %v1105
      %1130 = vmatprep.subr.bf16.mxu0 0
      %1131 = vmatpush1.bf16.msra.mxu0 0
      %1132 = vmatprep.subr.bf16.mxu0 0
      %1133 = vmatpush1.bf16.msra.mxu0 0
      %1134 = vmatprep.subr.bf16.mxu0 0
      %1135 = vmatpush1.bf16.msra.mxu0 0
      %1136 = vmatprep.subr.bf16.mxu0 0
      %1137 = vmatpush1.bf16.msra.mxu0 0
      %1138 = vmatprep.subr.bf16.mxu0 0
      %1139 = vmatpush1.bf16.msra.mxu0 0
      %1140 = vmatprep.subr.bf16.mxu0 0
      %1141 = vmatpush1.bf16.msra.mxu0 0
      %1142 = vmatprep.subr.bf16.mxu0 0
      %1143 = vmatpush1.bf16.msra.mxu0 0
      %1144 = vmatprep.subr.bf16.mxu0 0
      %1145 = vmatpush1.bf16.msra.mxu0 0
      %1146 = vmatprep.mubr.bf16.mxu0 0
      %1147 = vmatmul.mubr.bf16.gmra.mrb[0].mxu0 %v1054
      %v1148 = vpop.f32.mrb[0].mxu0
      %v1149 = vadd.f32 0.0, %v1148
      %v1150 = vpop.f32.mrb[0].mxu0
      %v1151 = vpop.f32.mrb[0].mxu0
      %v1152 = vadd.f32 0.0, %v1151
      %v1153 = vpop.f32.mrb[0].mxu0
      %1154 = vmatprep.mubr.bf16.mxu0 0
      %1155 = vmatmul.mubr.bf16.gmra.mrb[0].mxu0 %v1055
      %v1156 = vpop.f32.mrb[0].mxu0
      %v1157 = vadd.f32 0.0, %v1156
      %v1158 = vpop.f32.mrb[0].mxu0
      %v1159 = vpop.f32.mrb[0].mxu0
      %v1160 = vadd.f32 0.0, %v1159
      %v1161 = vpop.f32.mrb[0].mxu0
      %1162 = vmatprep.mubr.bf16.mxu0 0
      %1163 = vmatmul.mubr.bf16.gmra.mrb[0].mxu0 %v1056
      %v1164 = vpop.f32.mrb[0].mxu0
      %v1165 = vadd.f32 0.0, %v1164
      %v1166 = vpop.f32.mrb[0].mxu0
      %v1167 = vpop.f32.mrb[0].mxu0
      %v1168 = vadd.f32 0.0, %v1167
      %v1169 = vpop.f32.mrb[0].mxu0
      %1170 = vmatprep.mubr.bf16.mxu0 0
      %1171 = vmatmul.mubr.bf16.gmra.mrb[0].mxu0 %v1057
      %v1172 = vpop.f32.mrb[0].mxu0
      %v1173 = vadd.f32 0.0, %v1172
      %v1174 = vpop.f32.mrb[0].mxu0
      %v1175 = vpop.f32.mrb[0].mxu0
      %v1176 = vadd.f32 0.0, %v1175
      %v1177 = vpop.f32.mrb[0].mxu0
      %1178 = vmatprep.mubr.bf16.mxu0 0
      %1179 = vmatmul.mubr.bf16.gmra.mrb[0].mxu0 %v1058
      %v1180 = vpop.f32.mrb[0].mxu0
      %v1181 = vadd.f32 0.0, %v1180
      %v1182 = vpop.f32.mrb[0].mxu0
      %v1183 = vpop.f32.mrb[0].mxu0
      %v1184 = vadd.f32 0.0, %v1183
      %v1185 = vpop.f32.mrb[0].mxu0
      %1186 = vmatprep.mubr.bf16.mxu0 0
      %1187 = vmatmul.mubr.bf16.gmra.mrb[0].mxu0 %v1059
      %v1188 = vpop.f32.mrb[0].mxu0
      %v1189 = vadd.f32 0.0, %v1188
      %v1190 = vpop.f32.mrb[0].mxu0
      %v1191 = vpop.f32.mrb[0].mxu0
      %v1192 = vpop.f32.mrb[0].mxu0
      %1193 = vdwg.mxu0
      %v1194 = vadd.f32 %v1026, %v1149
      %v1195 = vadd.f32 %v1027, %v1152
      %v1196 = vadd.f32 %v1028, %v1157
      %v1197 = vadd.f32 %v1029, %v1160
      %v1198 = vadd.f32 %v1030, %v1165
      %v1199 = vadd.f32 %v1031, %v1168
      %v1200 = vadd.f32 %v1032, %v1173
      %v1201 = vadd.f32 %v1033, %v1176
      %v1202 = vadd.f32 %v1034, %v1181
      %v1203 = vadd.f32 %v1035, %v1184
      %v1204 = vadd.f32 %v1036, %v1189
      %v1205 = vld [vmem:[%s192 + $0x8] sm:$0xf]
      %v1206 = vld [vmem:[%s192 + $0xc] sm:$0xf]
      %v1207 = vld [vmem:[%s192 + $0x10] sm:$0xf]
      %v1208 = vld [vmem:[%s192 + $0x14] sm:$0xf]
      %v1209 = vld [vmem:[%s192 + $0x18] sm:$0xf]
      %v1210 = vld [vmem:[%s192 + $0x1c] sm:$0xf]
      %v1211 = vld [vmem:[%s192 + $0x20] sm:$0xf]
      %v1212 = vld [vmem:[%s192 + $0x24] sm:$0xf]
      %v1213 = vld [vmem:[%s192 + $0x28] sm:$0xf]
      %v1214 = vld [vmem:[%s192 + $0x2c] sm:$0xf]
      %v1215 = vld [vmem:[%s192 + $0x30] sm:$0xf]
      %v1216 = vld [vmem:[%s192 + $0x34] sm:$0x1]
      %s1217 = scalar_lea.vmem %s1, 320
      %v1218 = vld [vmem:[%s1217] sm:$0xf]
      %v1219 = vld [vmem:[%s1217 + $0x4] sm:$0xf]
      %v1220 = vld [vmem:[%s1217 + $0x8] sm:$0xf]
      %v1221 = vld [vmem:[%s1217 + $0xc] sm:$0xf]
      %v1222 = vld [vmem:[%s1217 + $0x10] sm:$0xf]
      %v1223 = vld [vmem:[%s1217 + $0x14] sm:$0xf]
      %v1224 = vld [vmem:[%s1217 + $0x18] sm:$0xf]
      %v1225 = vld [vmem:[%s1217 + $0x1c] sm:$0xf]
      %v1226 = vld [vmem:[%s1217 + $0x20] sm:$0xf]
      %v1227 = vld [vmem:[%s1217 + $0x24] sm:$0xf]
      %v1228 = vld [vmem:[%s1217 + $0x28] sm:$0xf]
      %v1229 = vld [vmem:[%s1217 + $0x2c] sm:$0xf]
      %v1230 = vld [vmem:[%s1217 + $0x30] sm:$0xf]
      %v1231 = vld [vmem:[%s1217 + $0x34] sm:$0xf]
      %v1232 = vld [vmem:[%s1217 + $0x38] sm:$0xf]
      %v1233 = vld [vmem:[%s1217 + $0x3c] sm:$0xf]
      %v1246 = vunpack.c.l.b16 %v1205
      %v1247 = vunpack.c.l.b16 %v1206
      %v1248 = vunpack.c.l.b16 %v1207
      %v1249 = vunpack.c.l.b16 %v1208
      %v1250 = vunpack.c.l.b16 %v1209
      %v1251 = vunpack.c.l.b16 %v1210
      %v1252 = vunpack.c.l.b16 %v1211
      %v1253 = vunpack.c.l.b16 %v1212
      %v1254 = vunpack.c.l.b16 %v1213
      %v1255 = vunpack.c.l.b16 %v1214
      %v1256 = vunpack.c.l.b16 %v1215
      %v1257 = vunpack.c.l.b16 %v1216
      %v1258 = vpack.c.b16 %v1247, %v1246
      %v1259 = vpack.c.b16 %v1249, %v1248
      %v1260 = vpack.c.b16 %v1251, %v1250
      %v1261 = vpack.c.b16 %v1253, %v1252
      %v1262 = vpack.c.b16 %v1255, %v1254
      %v1263 = vpack.c.b16 %v1257, %v1256
      %vm1264 = vsmask.f32 7424
      %v1266 = vshrl.u32 %v1258, 16
      %v1268 = vshll.u32 %v1258, 16
      %v1270 = vrot.slane %v1268, 1
      %v1271 = vor.u32 %v1266, %v1270
      %v1273 = vshll.u32 %v1259, 16
      %v1275 = vrot.slane %v1273, 1
      %v1276 = vsel %vm1264, %v1271, %v1275
      %v1277 = vshrl.u32 %v1259, 16
      %v1279 = vor.u32 %v1277, %v1275
      %v1281 = vshll.u32 %v1260, 16
      %v1283 = vrot.slane %v1281, 1
      %v1284 = vsel %vm1264, %v1279, %v1283
      %v1285 = vshrl.u32 %v1260, 16
      %v1287 = vor.u32 %v1285, %v1283
      %v1289 = vshll.u32 %v1261, 16
      %v1291 = vrot.slane %v1289, 1
      %v1292 = vsel %vm1264, %v1287, %v1291
      %v1293 = vshrl.u32 %v1261, 16
      %v1295 = vor.u32 %v1293, %v1291
      %v1297 = vshll.u32 %v1262, 16
      %v1299 = vrot.slane %v1297, 1
      %v1300 = vsel %vm1264, %v1295, %v1299
      %v1301 = vshrl.u32 %v1262, 16
      %v1303 = vor.u32 %v1301, %v1299
      %v1305 = vshll.u32 %v1263, 16
      %v1307 = vrot.slane %v1305, 1
      %v1308 = vsel %vm1264, %v1303, %v1307
      %v1309 = vshrl.u32 %v1263, 16
      %v1311 = vor.u32 %v1309, %v1307
      %v1334 = vunpack.c.l.b16 %v1218
      %v1335 = vunpack.c.l.b16 %v1219
      %v1336 = vunpack.c.l.b16 %v1220
      %v1337 = vunpack.c.l.b16 %v1221
      %v1338 = vunpack.c.l.b16 %v1222
      %v1339 = vunpack.c.l.b16 %v1223
      %v1340 = vunpack.c.l.b16 %v1224
      %v1341 = vunpack.c.l.b16 %v1225
      %v1342 = vunpack.c.l.b16 %v1226
      %v1343 = vunpack.c.l.b16 %v1227
      %v1344 = vunpack.c.l.b16 %v1228
      %v1345 = vunpack.c.l.b16 %v1229
      %v1346 = vunpack.c.l.b16 %v1230
      %v1347 = vunpack.c.l.b16 %v1231
      %v1348 = vunpack.c.l.b16 %v1232
      %v1349 = vunpack.c.l.b16 %v1233
      %v1350 = vpack.c.b16 %v1335, %v1334
      %v1351 = vpack.c.b16 %v1337, %v1336
      %v1352 = vpack.c.b16 %v1339, %v1338
      %v1353 = vpack.c.b16 %v1341, %v1340
      %v1354 = vpack.c.b16 %v1343, %v1342
      %v1355 = vpack.c.b16 %v1345, %v1344
      %v1356 = vpack.c.b16 %v1347, %v1346
      %v1357 = vpack.c.b16 %v1349, %v1348
      %1366 = vmatprep.subr.bf16.mxu0 0
      %1367 = vmatpush1.bf16.msra.mxu0 %v1350
      %1368 = vmatprep.subr.bf16.mxu0 0
      %1369 = vmatpush1.bf16.msra.mxu0 %v1351
      %1370 = vmatprep.subr.bf16.mxu0 0
      %1371 = vmatpush1.bf16.msra.mxu0 %v1352
      %1372 = vmatprep.subr.bf16.mxu0 0
      %1373 = vmatpush1.bf16.msra.mxu0 %v1353
      %1374 = vmatprep.subr.bf16.mxu0 0
      %1375 = vmatpush1.bf16.msra.mxu0 %v1354
      %1376 = vmatprep.subr.bf16.mxu0 0
      %1377 = vmatpush1.bf16.msra.mxu0 %v1355
      %1378 = vmatprep.subr.bf16.mxu0 0
      %1379 = vmatpush1.bf16.msra.mxu0 %v1356
      %1380 = vmatprep.subr.bf16.mxu0 0
      %1381 = vmatpush1.bf16.msra.mxu0 %v1357
      %1382 = vmatprep.subr.bf16.mxu0 0
      %1383 = vmatpush1.bf16.msra.mxu0 0
      %1384 = vmatprep.subr.bf16.mxu0 0
      %1385 = vmatpush1.bf16.msra.mxu0 0
      %1386 = vmatprep.subr.bf16.mxu0 0
      %1387 = vmatpush1.bf16.msra.mxu0 0
      %1388 = vmatprep.subr.bf16.mxu0 0
      %1389 = vmatpush1.bf16.msra.mxu0 0
      %1390 = vmatprep.subr.bf16.mxu0 0
      %1391 = vmatpush1.bf16.msra.mxu0 0
      %1392 = vmatprep.subr.bf16.mxu0 0
      %1393 = vmatpush1.bf16.msra.mxu0 0
      %1394 = vmatprep.subr.bf16.mxu0 0
      %1395 = vmatpush1.bf16.msra.mxu0 0
      %1396 = vmatprep.subr.bf16.mxu0 0
      %1397 = vmatpush1.bf16.msra.mxu0 0
      %1398 = vmatprep.mubr.bf16.mxu0 0
      %1399 = vmatmul.mubr.bf16.gmra.mrb[0].mxu0 %v1276
      %v1400 = vpop.f32.mrb[0].mxu0
      %v1401 = vadd.f32 0.0, %v1400
      %v1402 = vpop.f32.mrb[0].mxu0
      %v1403 = vpop.f32.mrb[0].mxu0
      %v1404 = vadd.f32 0.0, %v1403
      %v1405 = vpop.f32.mrb[0].mxu0
      %1406 = vmatprep.mubr.bf16.mxu0 0
      %1407 = vmatmul.mubr.bf16.gmra.mrb[0].mxu0 %v1284
      %v1408 = vpop.f32.mrb[0].mxu0
      %v1409 = vadd.f32 0.0, %v1408
      %v1410 = vpop.f32.mrb[0].mxu0
      %v1411 = vpop.f32.mrb[0].mxu0
      %v1412 = vadd.f32 0.0, %v1411
      %v1413 = vpop.f32.mrb[0].mxu0
      %1414 = vmatprep.mubr.bf16.mxu0 0
      %1415 = vmatmul.mubr.bf16.gmra.mrb[0].mxu0 %v1292
      %v1416 = vpop.f32.mrb[0].mxu0
      %v1417 = vadd.f32 0.0, %v1416
      %v1418 = vpop.f32.mrb[0].mxu0
      %v1419 = vpop.f32.mrb[0].mxu0
      %v1420 = vadd.f32 0.0, %v1419
      %v1421 = vpop.f32.mrb[0].mxu0
      %1422 = vmatprep.mubr.bf16.mxu0 0
      %1423 = vmatmul.mubr.bf16.gmra.mrb[0].mxu0 %v1300
      %v1424 = vpop.f32.mrb[0].mxu0
      %v1425 = vadd.f32 0.0, %v1424
      %v1426 = vpop.f32.mrb[0].mxu0
      %v1427 = vpop.f32.mrb[0].mxu0
      %v1428 = vadd.f32 0.0, %v1427
      %v1429 = vpop.f32.mrb[0].mxu0
      %1430 = vmatprep.mubr.bf16.mxu0 0
      %1431 = vmatmul.mubr.bf16.gmra.mrb[0].mxu0 %v1308
      %v1432 = vpop.f32.mrb[0].mxu0
      %v1433 = vadd.f32 0.0, %v1432
      %v1434 = vpop.f32.mrb[0].mxu0
      %v1435 = vpop.f32.mrb[0].mxu0
      %v1436 = vadd.f32 0.0, %v1435
      %v1437 = vpop.f32.mrb[0].mxu0
      %1438 = vmatprep.mubr.bf16.mxu0 0
      %1439 = vmatmul.mubr.bf16.gmra.mrb[0].mxu0 %v1311
      %v1440 = vpop.f32.mrb[0].mxu0
      %v1441 = vadd.f32 0.0, %v1440
      %v1442 = vpop.f32.mrb[0].mxu0
      %v1443 = vpop.f32.mrb[0].mxu0
      %v1444 = vpop.f32.mrb[0].mxu0
      %1445 = vdwg.mxu0
      %v1446 = vadd.f32 %v1194, %v1401
      %v1447 = vadd.f32 %v1195, %v1404
      %v1448 = vadd.f32 %v1196, %v1409
      %v1449 = vadd.f32 %v1197, %v1412
      %v1450 = vadd.f32 %v1198, %v1417
      %v1451 = vadd.f32 %v1199, %v1420
      %v1452 = vadd.f32 %v1200, %v1425
      %v1453 = vadd.f32 %v1201, %v1428
      %v1454 = vadd.f32 %v1202, %v1433
      %v1455 = vadd.f32 %v1203, %v1436
      %v1456 = vadd.f32 %v1204, %v1441
      %v1457 = vld [vmem:[%s192 + $0x34] sm:$0xf]
      %s1458 = scalar_lea.vmem %s1, 384
      %v1459 = vld [vmem:[%s1458] sm:$0xf]
      %v1460 = vld [vmem:[%s1458 + $0x4] sm:$0xf]
      %v1461 = vld [vmem:[%s1458 + $0x8] sm:$0xf]
      %v1462 = vld [vmem:[%s1458 + $0xc] sm:$0xf]
      %v1463 = vld [vmem:[%s1458 + $0x10] sm:$0xf]
      %v1464 = vld [vmem:[%s1458 + $0x14] sm:$0xf]
      %v1465 = vld [vmem:[%s1458 + $0x18] sm:$0xf]
      %v1466 = vld [vmem:[%s1458 + $0x1c] sm:$0xf]
      %v1467 = vld [vmem:[%s1458 + $0x20] sm:$0xf]
      %v1468 = vld [vmem:[%s1458 + $0x24] sm:$0xf]
      %v1469 = vld [vmem:[%s1458 + $0x28] sm:$0xf]
      %v1470 = vld [vmem:[%s1458 + $0x2c] sm:$0xf]
      %v1471 = vld [vmem:[%s1458 + $0x30] sm:$0xf]
      %v1472 = vld [vmem:[%s1458 + $0x34] sm:$0xf]
      %v1473 = vld [vmem:[%s1458 + $0x38] sm:$0xf]
      %v1474 = vld [vmem:[%s1458 + $0x3c] sm:$0xf]
      %v1476 = vunpack.c.l.b16 %v1457
      %v1477 = vpack.c.b16 %v1248, %v1247
      %v1478 = vpack.c.b16 %v1250, %v1249
      %v1479 = vpack.c.b16 %v1252, %v1251
      %v1480 = vpack.c.b16 %v1254, %v1253
      %v1481 = vpack.c.b16 %v1256, %v1255
      %v1482 = vpack.c.b16 %v1476, %v1476
      %v1505 = vunpack.c.l.b16 %v1459
      %v1506 = vunpack.c.l.b16 %v1460
      %v1507 = vunpack.c.l.b16 %v1461
      %v1508 = vunpack.c.l.b16 %v1462
      %v1509 = vunpack.c.l.b16 %v1463
      %v1510 = vunpack.c.l.b16 %v1464
      %v1511 = vunpack.c.l.b16 %v1465
      %v1512 = vunpack.c.l.b16 %v1466
      %v1513 = vunpack.c.l.b16 %v1467
      %v1514 = vunpack.c.l.b16 %v1468
      %v1515 = vunpack.c.l.b16 %v1469
      %v1516 = vunpack.c.l.b16 %v1470
      %v1517 = vunpack.c.l.b16 %v1471
      %v1518 = vunpack.c.l.b16 %v1472
      %v1519 = vunpack.c.l.b16 %v1473
      %v1520 = vunpack.c.l.b16 %v1474
      %v1521 = vpack.c.b16 %v1506, %v1505
      %v1522 = vpack.c.b16 %v1508, %v1507
      %v1523 = vpack.c.b16 %v1510, %v1509
      %v1524 = vpack.c.b16 %v1512, %v1511
      %v1525 = vpack.c.b16 %v1514, %v1513
      %v1526 = vpack.c.b16 %v1516, %v1515
      %v1527 = vpack.c.b16 %v1518, %v1517
      %v1528 = vpack.c.b16 %v1520, %v1519
      %1537 = vmatprep.subr.bf16.mxu0 0
      %1538 = vmatpush1.bf16.msra.mxu0 %v1521
      %1539 = vmatprep.subr.bf16.mxu0 0
      %1540 = vmatpush1.bf16.msra.mxu0 %v1522
      %1541 = vmatprep.subr.bf16.mxu0 0
      %1542 = vmatpush1.bf16.msra.mxu0 %v1523
      %1543 = vmatprep.subr.bf16.mxu0 0
      %1544 = vmatpush1.bf16.msra.mxu0 %v1524
      %1545 = vmatprep.subr.bf16.mxu0 0
      %1546 = vmatpush1.bf16.msra.mxu0 %v1525
      %1547 = vmatprep.subr.bf16.mxu0 0
      %1548 = vmatpush1.bf16.msra.mxu0 %v1526
      %1549 = vmatprep.subr.bf16.mxu0 0
      %1550 = vmatpush1.bf16.msra.mxu0 %v1527
      %1551 = vmatprep.subr.bf16.mxu0 0
      %1552 = vmatpush1.bf16.msra.mxu0 %v1528
      %1553 = vmatprep.subr.bf16.mxu0 0
      %1554 = vmatpush1.bf16.msra.mxu0 0
      %1555 = vmatprep.subr.bf16.mxu0 0
      %1556 = vmatpush1.bf16.msra.mxu0 0
      %1557 = vmatprep.subr.bf16.mxu0 0
      %1558 = vmatpush1.bf16.msra.mxu0 0
      %1559 = vmatprep.subr.bf16.mxu0 0
      %1560 = vmatpush1.bf16.msra.mxu0 0
      %1561 = vmatprep.subr.bf16.mxu0 0
      %1562 = vmatpush1.bf16.msra.mxu0 0
      %1563 = vmatprep.subr.bf16.mxu0 0
      %1564 = vmatpush1.bf16.msra.mxu0 0
      %1565 = vmatprep.subr.bf16.mxu0 0
      %1566 = vmatpush1.bf16.msra.mxu0 0
      %1567 = vmatprep.subr.bf16.mxu0 0
      %1568 = vmatpush1.bf16.msra.mxu0 0
      %1569 = vmatprep.mubr.bf16.mxu0 0
      %1570 = vmatmul.mubr.bf16.gmra.mrb[0].mxu0 %v1477
      %v1571 = vpop.f32.mrb[0].mxu0
      %v1572 = vadd.f32 0.0, %v1571
      %v1573 = vpop.f32.mrb[0].mxu0
      %v1574 = vpop.f32.mrb[0].mxu0
      %v1575 = vadd.f32 0.0, %v1574
      %v1576 = vpop.f32.mrb[0].mxu0
      %1577 = vmatprep.mubr.bf16.mxu0 0
      %1578 = vmatmul.mubr.bf16.gmra.mrb[0].mxu0 %v1478
      %v1579 = vpop.f32.mrb[0].mxu0
      %v1580 = vadd.f32 0.0, %v1579
      %v1581 = vpop.f32.mrb[0].mxu0
      %v1582 = vpop.f32.mrb[0].mxu0
      %v1583 = vadd.f32 0.0, %v1582
      %v1584 = vpop.f32.mrb[0].mxu0
      %1585 = vmatprep.mubr.bf16.mxu0 0
      %1586 = vmatmul.mubr.bf16.gmra.mrb[0].mxu0 %v1479
      %v1587 = vpop.f32.mrb[0].mxu0
      %v1588 = vadd.f32 0.0, %v1587
      %v1589 = vpop.f32.mrb[0].mxu0
      %v1590 = vpop.f32.mrb[0].mxu0
      %v1591 = vadd.f32 0.0, %v1590
      %v1592 = vpop.f32.mrb[0].mxu0
      %1593 = vmatprep.mubr.bf16.mxu0 0
      %1594 = vmatmul.mubr.bf16.gmra.mrb[0].mxu0 %v1480
      %v1595 = vpop.f32.mrb[0].mxu0
      %v1596 = vadd.f32 0.0, %v1595
      %v1597 = vpop.f32.mrb[0].mxu0
      %v1598 = vpop.f32.mrb[0].mxu0
      %v1599 = vadd.f32 0.0, %v1598
      %v1600 = vpop.f32.mrb[0].mxu0
      %1601 = vmatprep.mubr.bf16.mxu0 0
      %1602 = vmatmul.mubr.bf16.gmra.mrb[0].mxu0 %v1481
      %v1603 = vpop.f32.mrb[0].mxu0
      %v1604 = vadd.f32 0.0, %v1603
      %v1605 = vpop.f32.mrb[0].mxu0
      %v1606 = vpop.f32.mrb[0].mxu0
      %v1607 = vadd.f32 0.0, %v1606
      %v1608 = vpop.f32.mrb[0].mxu0
      %1609 = vmatprep.mubr.bf16.mxu0 0
      %1610 = vmatmul.mubr.bf16.gmra.mrb[0].mxu0 %v1482
      %v1611 = vpop.f32.mrb[0].mxu0
      %v1612 = vadd.f32 0.0, %v1611
      %v1613 = vpop.f32.mrb[0].mxu0
      %v1614 = vpop.f32.mrb[0].mxu0
      %v1615 = vpop.f32.mrb[0].mxu0
      %1616 = vdwg.mxu0
      %v1617 = vadd.f32 %v1446, %v1572
      %v1618 = vadd.f32 %v1447, %v1575
      %v1619 = vadd.f32 %v1448, %v1580
      %v1620 = vadd.f32 %v1449, %v1583
      %v1621 = vadd.f32 %v1450, %v1588
      %v1622 = vadd.f32 %v1451, %v1591
      %v1623 = vadd.f32 %v1452, %v1596
      %v1624 = vadd.f32 %v1453, %v1599
      %v1625 = vadd.f32 %v1454, %v1604
      %v1626 = vadd.f32 %v1455, %v1607
      %v1627 = vadd.f32 %v1456, %v1612
      %v1628 = vld [vmem:[%s192 + $0xc] sm:$0xf]
      %v1629 = vld [vmem:[%s192 + $0x10] sm:$0xf]
      %v1630 = vld [vmem:[%s192 + $0x14] sm:$0xf]
      %v1631 = vld [vmem:[%s192 + $0x18] sm:$0xf]
      %v1632 = vld [vmem:[%s192 + $0x1c] sm:$0xf]
      %v1633 = vld [vmem:[%s192 + $0x20] sm:$0xf]
      %v1634 = vld [vmem:[%s192 + $0x24] sm:$0xf]
      %v1635 = vld [vmem:[%s192 + $0x28] sm:$0xf]
      %v1636 = vld [vmem:[%s192 + $0x2c] sm:$0xf]
      %v1637 = vld [vmem:[%s192 + $0x30] sm:$0xf]
      %v1638 = vld [vmem:[%s192 + $0x34] sm:$0xf]
      %v1639 = vld [vmem:[%s192 + $0x38] sm:$0x1]
      %s1640 = scalar_lea.vmem %s1, 448
      %v1641 = vld [vmem:[%s1640] sm:$0xf]
      %v1642 = vld [vmem:[%s1640 + $0x4] sm:$0xf]
      %v1643 = vld [vmem:[%s1640 + $0x8] sm:$0xf]
      %v1644 = vld [vmem:[%s1640 + $0xc] sm:$0xf]
      %v1645 = vld [vmem:[%s1640 + $0x10] sm:$0xf]
      %v1646 = vld [vmem:[%s1640 + $0x14] sm:$0xf]
      %v1647 = vld [vmem:[%s1640 + $0x18] sm:$0xf]
      %v1648 = vld [vmem:[%s1640 + $0x1c] sm:$0xf]
      %v1649 = vld [vmem:[%s1640 + $0x20] sm:$0xf]
      %v1650 = vld [vmem:[%s1640 + $0x24] sm:$0xf]
      %v1651 = vld [vmem:[%s1640 + $0x28] sm:$0xf]
      %v1652 = vld [vmem:[%s1640 + $0x2c] sm:$0xf]
      %v1653 = vld [vmem:[%s1640 + $0x30] sm:$0xf]
      %v1654 = vld [vmem:[%s1640 + $0x34] sm:$0xf]
      %v1655 = vld [vmem:[%s1640 + $0x38] sm:$0xf]
      %v1656 = vld [vmem:[%s1640 + $0x3c] sm:$0xf]
      %v1669 = vunpack.c.l.b16 %v1628
      %v1670 = vunpack.c.l.b16 %v1629
      %v1671 = vunpack.c.l.b16 %v1630
      %v1672 = vunpack.c.l.b16 %v1631
      %v1673 = vunpack.c.l.b16 %v1632
      %v1674 = vunpack.c.l.b16 %v1633
      %v1675 = vunpack.c.l.b16 %v1634
      %v1676 = vunpack.c.l.b16 %v1635
      %v1677 = vunpack.c.l.b16 %v1636
      %v1678 = vunpack.c.l.b16 %v1637
      %v1679 = vunpack.c.l.b16 %v1638
      %v1680 = vunpack.c.l.b16 %v1639
      %v1681 = vpack.c.b16 %v1670, %v1669
      %v1682 = vpack.c.b16 %v1672, %v1671
      %v1683 = vpack.c.b16 %v1674, %v1673
      %v1684 = vpack.c.b16 %v1676, %v1675
      %v1685 = vpack.c.b16 %v1678, %v1677
      %v1686 = vpack.c.b16 %v1680, %v1679
      %v1688 = vshrl.u32 %v1681, 16
      %v1690 = vshll.u32 %v1681, 16
      %v1692 = vrot.slane %v1690, 1
      %v1693 = vor.u32 %v1688, %v1692
      %v1695 = vshll.u32 %v1682, 16
      %v1697 = vrot.slane %v1695, 1
      %v1698 = vsel %vm1264, %v1693, %v1697
      %v1699 = vshrl.u32 %v1682, 16
      %v1701 = vor.u32 %v1699, %v1697
      %v1703 = vshll.u32 %v1683, 16
      %v1705 = vrot.slane %v1703, 1
      %v1706 = vsel %vm1264, %v1701, %v1705
      %v1707 = vshrl.u32 %v1683, 16
      %v1709 = vor.u32 %v1707, %v1705
      %v1711 = vshll.u32 %v1684, 16
      %v1713 = vrot.slane %v1711, 1
      %v1714 = vsel %vm1264, %v1709, %v1713
      %v1715 = vshrl.u32 %v1684, 16
      %v1717 = vor.u32 %v1715, %v1713
      %v1719 = vshll.u32 %v1685, 16
      %v1721 = vrot.slane %v1719, 1
      %v1722 = vsel %vm1264, %v1717, %v1721
      %v1723 = vshrl.u32 %v1685, 16
      %v1725 = vor.u32 %v1723, %v1721
      %v1727 = vshll.u32 %v1686, 16
      %v1729 = vrot.slane %v1727, 1
      %v1730 = vsel %vm1264, %v1725, %v1729
      %v1731 = vshrl.u32 %v1686, 16
      %v1733 = vor.u32 %v1731, %v1729
      %v1756 = vunpack.c.l.b16 %v1641
      %v1757 = vunpack.c.l.b16 %v1642
      %v1758 = vunpack.c.l.b16 %v1643
      %v1759 = vunpack.c.l.b16 %v1644
      %v1760 = vunpack.c.l.b16 %v1645
      %v1761 = vunpack.c.l.b16 %v1646
      %v1762 = vunpack.c.l.b16 %v1647
      %v1763 = vunpack.c.l.b16 %v1648
      %v1764 = vunpack.c.l.b16 %v1649
      %v1765 = vunpack.c.l.b16 %v1650
      %v1766 = vunpack.c.l.b16 %v1651
      %v1767 = vunpack.c.l.b16 %v1652
      %v1768 = vunpack.c.l.b16 %v1653
      %v1769 = vunpack.c.l.b16 %v1654
      %v1770 = vunpack.c.l.b16 %v1655
      %v1771 = vunpack.c.l.b16 %v1656
      %v1772 = vpack.c.b16 %v1757, %v1756
      %v1773 = vpack.c.b16 %v1759, %v1758
      %v1774 = vpack.c.b16 %v1761, %v1760
      %v1775 = vpack.c.b16 %v1763, %v1762
      %v1776 = vpack.c.b16 %v1765, %v1764
      %v1777 = vpack.c.b16 %v1767, %v1766
      %v1778 = vpack.c.b16 %v1769, %v1768
      %v1779 = vpack.c.b16 %v1771, %v1770
      %1788 = vmatprep.subr.bf16.mxu0 0
      %1789 = vmatpush1.bf16.msra.mxu0 %v1772
      %1790 = vmatprep.subr.bf16.mxu0 0
      %1791 = vmatpush1.bf16.msra.mxu0 %v1773
      %1792 = vmatprep.subr.bf16.mxu0 0
      %1793 = vmatpush1.bf16.msra.mxu0 %v1774
      %1794 = vmatprep.subr.bf16.mxu0 0
      %1795 = vmatpush1.bf16.msra.mxu0 %v1775
      %1796 = vmatprep.subr.bf16.mxu0 0
      %1797 = vmatpush1.bf16.msra.mxu0 %v1776
      %1798 = vmatprep.subr.bf16.mxu0 0
      %1799 = vmatpush1.bf16.msra.mxu0 %v1777
      %1800 = vmatprep.subr.bf16.mxu0 0
      %1801 = vmatpush1.bf16.msra.mxu0 %v1778
      %1802 = vmatprep.subr.bf16.mxu0 0
      %1803 = vmatpush1.bf16.msra.mxu0 %v1779
      %1804 = vmatprep.subr.bf16.mxu0 0
      %1805 = vmatpush1.bf16.msra.mxu0 0
      %1806 = vmatprep.subr.bf16.mxu0 0
      %1807 = vmatpush1.bf16.msra.mxu0 0
      %1808 = vmatprep.subr.bf16.mxu0 0
      %1809 = vmatpush1.bf16.msra.mxu0 0
      %1810 = vmatprep.subr.bf16.mxu0 0
      %1811 = vmatpush1.bf16.msra.mxu0 0
      %1812 = vmatprep.subr.bf16.mxu0 0
      %1813 = vmatpush1.bf16.msra.mxu0 0
      %1814 = vmatprep.subr.bf16.mxu0 0
      %1815 = vmatpush1.bf16.msra.mxu0 0
      %1816 = vmatprep.subr.bf16.mxu0 0
      %1817 = vmatpush1.bf16.msra.mxu0 0
      %1818 = vmatprep.subr.bf16.mxu0 0
      %1819 = vmatpush1.bf16.msra.mxu0 0
      %1820 = vmatprep.mubr.bf16.mxu0 0
      %1821 = vmatmul.mubr.bf16.gmra.mrb[0].mxu0 %v1698
      %v1822 = vpop.f32.mrb[0].mxu0
      %v1823 = vadd.f32 0.0, %v1822
      %v1824 = vpop.f32.mrb[0].mxu0
      %v1825 = vpop.f32.mrb[0].mxu0
      %v1826 = vadd.f32 0.0, %v1825
      %v1827 = vpop.f32.mrb[0].mxu0
      %1828 = vmatprep.mubr.bf16.mxu0 0
      %1829 = vmatmul.mubr.bf16.gmra.mrb[0].mxu0 %v1706
      %v1830 = vpop.f32.mrb[0].mxu0
      %v1831 = vadd.f32 0.0, %v1830
      %v1832 = vpop.f32.mrb[0].mxu0
      %v1833 = vpop.f32.mrb[0].mxu0
      %v1834 = vadd.f32 0.0, %v1833
      %v1835 = vpop.f32.mrb[0].mxu0
      %1836 = vmatprep.mubr.bf16.mxu0 0
      %1837 = vmatmul.mubr.bf16.gmra.mrb[0].mxu0 %v1714
      %v1838 = vpop.f32.mrb[0].mxu0
      %v1839 = vadd.f32 0.0, %v1838
      %v1840 = vpop.f32.mrb[0].mxu0
      %v1841 = vpop.f32.mrb[0].mxu0
      %v1842 = vadd.f32 0.0, %v1841
      %v1843 = vpop.f32.mrb[0].mxu0
      %1844 = vmatprep.mubr.bf16.mxu0 0
      %1845 = vmatmul.mubr.bf16.gmra.mrb[0].mxu0 %v1722
      %v1846 = vpop.f32.mrb[0].mxu0
      %v1847 = vadd.f32 0.0, %v1846
      %v1848 = vpop.f32.mrb[0].mxu0
      %v1849 = vpop.f32.mrb[0].mxu0
      %v1850 = vadd.f32 0.0, %v1849
      %v1851 = vpop.f32.mrb[0].mxu0
      %1852 = vmatprep.mubr.bf16.mxu0 0
      %1853 = vmatmul.mubr.bf16.gmra.mrb[0].mxu0 %v1730
      %v1854 = vpop.f32.mrb[0].mxu0
      %v1855 = vadd.f32 0.0, %v1854
      %v1856 = vpop.f32.mrb[0].mxu0
      %v1857 = vpop.f32.mrb[0].mxu0
      %v1858 = vadd.f32 0.0, %v1857
      %v1859 = vpop.f32.mrb[0].mxu0
      %1860 = vmatprep.mubr.bf16.mxu0 0
      %1861 = vmatmul.mubr.bf16.gmra.mrb[0].mxu0 %v1733
      %v1862 = vpop.f32.mrb[0].mxu0
      %v1863 = vadd.f32 0.0, %v1862
      %v1864 = vpop.f32.mrb[0].mxu0
      %v1865 = vpop.f32.mrb[0].mxu0
      %v1866 = vpop.f32.mrb[0].mxu0
      %1867 = vdwg.mxu0
      %v1868 = vadd.f32 %v1617, %v1823
      %v1869 = vadd.f32 %v1618, %v1826
      %v1870 = vadd.f32 %v1619, %v1831
      %v1871 = vadd.f32 %v1620, %v1834
      %v1872 = vadd.f32 %v1621, %v1839
      %v1873 = vadd.f32 %v1622, %v1842
      %v1874 = vadd.f32 %v1623, %v1847
      %v1875 = vadd.f32 %v1624, %v1850
      %v1876 = vadd.f32 %v1625, %v1855
      %v1877 = vadd.f32 %v1626, %v1858
      %v1878 = vadd.f32 %v1627, %v1863
      %v1879 = vld [vmem:[%s192 + $0xc] sm:$0xe]
      %s1880 = scalar_lea.vmem %s1, 512
      %v1881 = vld [vmem:[%s1880] sm:$0xf]
      %v1882 = vld [vmem:[%s1880 + $0x4] sm:$0xf]
      %v1883 = vld [vmem:[%s1880 + $0x8] sm:$0xf]
      %v1884 = vld [vmem:[%s1880 + $0xc] sm:$0xf]
      %v1885 = vld [vmem:[%s1880 + $0x10] sm:$0xf]
      %v1886 = vld [vmem:[%s1880 + $0x14] sm:$0xf]
      %v1887 = vld [vmem:[%s1880 + $0x18] sm:$0xf]
      %v1888 = vld [vmem:[%s1880 + $0x1c] sm:$0xf]
      %v1889 = vld [vmem:[%s1880 + $0x20] sm:$0xf]
      %v1890 = vld [vmem:[%s1880 + $0x24] sm:$0xf]
      %v1891 = vld [vmem:[%s1880 + $0x28] sm:$0xf]
      %v1892 = vld [vmem:[%s1880 + $0x2c] sm:$0xf]
      %v1893 = vld [vmem:[%s1880 + $0x30] sm:$0xf]
      %v1894 = vld [vmem:[%s1880 + $0x34] sm:$0xf]
      %v1895 = vld [vmem:[%s1880 + $0x38] sm:$0xf]
      %v1896 = vld [vmem:[%s1880 + $0x3c] sm:$0xf]
      %v1898 = vunpack.c.l.b16 %v1879
      %v1899 = vpack.c.b16 %v1670, %v1898
      %vm1900 = vcmask 1046528
      %v1901 = vrot.slane %v1899, 1
      %v1902 = vrot.slane %v1682, 1
      %v1903 = vsel %vm1900, %v1901, %v1902
      %v1904 = vrot.slane %v1683, 1
      %v1905 = vsel %vm1900, %v1902, %v1904
      %v1906 = vrot.slane %v1684, 1
      %v1907 = vsel %vm1900, %v1904, %v1906
      %v1908 = vrot.slane %v1685, 1
      %v1909 = vsel %vm1900, %v1906, %v1908
      %v1910 = vrot.slane %v1686, 1
      %v1911 = vsel %vm1900, %v1908, %v1910
      %v1934 = vunpack.c.l.b16 %v1881
      %v1935 = vunpack.c.l.b16 %v1882
      %v1936 = vunpack.c.l.b16 %v1883
      %v1937 = vunpack.c.l.b16 %v1884
      %v1938 = vunpack.c.l.b16 %v1885
      %v1939 = vunpack.c.l.b16 %v1886
      %v1940 = vunpack.c.l.b16 %v1887
      %v1941 = vunpack.c.l.b16 %v1888
      %v1942 = vunpack.c.l.b16 %v1889
      %v1943 = vunpack.c.l.b16 %v1890
      %v1944 = vunpack.c.l.b16 %v1891
      %v1945 = vunpack.c.l.b16 %v1892
      %v1946 = vunpack.c.l.b16 %v1893
      %v1947 = vunpack.c.l.b16 %v1894
      %v1948 = vunpack.c.l.b16 %v1895
      %v1949 = vunpack.c.l.b16 %v1896
      %v1950 = vpack.c.b16 %v1935, %v1934
      %v1951 = vpack.c.b16 %v1937, %v1936
      %v1952 = vpack.c.b16 %v1939, %v1938
      %v1953 = vpack.c.b16 %v1941, %v1940
      %v1954 = vpack.c.b16 %v1943, %v1942
      %v1955 = vpack.c.b16 %v1945, %v1944
      %v1956 = vpack.c.b16 %v1947, %v1946
      %v1957 = vpack.c.b16 %v1949, %v1948
      %1966 = vmatprep.subr.bf16.mxu0 0
      %1967 = vmatpush1.bf16.msra.mxu0 %v1950
      %1968 = vmatprep.subr.bf16.mxu0 0
      %1969 = vmatpush1.bf16.msra.mxu0 %v1951
      %1970 = vmatprep.subr.bf16.mxu0 0
      %1971 = vmatpush1.bf16.msra.mxu0 %v1952
      %1972 = vmatprep.subr.bf16.mxu0 0
      %1973 = vmatpush1.bf16.msra.mxu0 %v1953
      %1974 = vmatprep.subr.bf16.mxu0 0
      %1975 = vmatpush1.bf16.msra.mxu0 %v1954
      %1976 = vmatprep.subr.bf16.mxu0 0
      %1977 = vmatpush1.bf16.msra.mxu0 %v1955
      %1978 = vmatprep.subr.bf16.mxu0 0
      %1979 = vmatpush1.bf16.msra.mxu0 %v1956
      %1980 = vmatprep.subr.bf16.mxu0 0
      %1981 = vmatpush1.bf16.msra.mxu0 %v1957
      %1982 = vmatprep.subr.bf16.mxu0 0
      %1983 = vmatpush1.bf16.msra.mxu0 0
      %1984 = vmatprep.subr.bf16.mxu0 0
      %1985 = vmatpush1.bf16.msra.mxu0 0
      %1986 = vmatprep.subr.bf16.mxu0 0
      %1987 = vmatpush1.bf16.msra.mxu0 0
      %1988 = vmatprep.subr.bf16.mxu0 0
      %1989 = vmatpush1.bf16.msra.mxu0 0
      %1990 = vmatprep.subr.bf16.mxu0 0
      %1991 = vmatpush1.bf16.msra.mxu0 0
      %1992 = vmatprep.subr.bf16.mxu0 0
      %1993 = vmatpush1.bf16.msra.mxu0 0
      %1994 = vmatprep.subr.bf16.mxu0 0
      %1995 = vmatpush1.bf16.msra.mxu0 0
      %1996 = vmatprep.subr.bf16.mxu0 0
      %1997 = vmatpush1.bf16.msra.mxu0 0
      %1998 = vmatprep.mubr.bf16.mxu0 0
      %1999 = vmatmul.mubr.bf16.gmra.mrb[0].mxu0 %v1903
      %v2000 = vpop.f32.mrb[0].mxu0
      %v2001 = vadd.f32 0.0, %v2000
      %v2002 = vpop.f32.mrb[0].mxu0
      %v2003 = vpop.f32.mrb[0].mxu0
      %v2004 = vadd.f32 0.0, %v2003
      %v2005 = vpop.f32.mrb[0].mxu0
      %2006 = vmatprep.mubr.bf16.mxu0 0
      %2007 = vmatmul.mubr.bf16.gmra.mrb[0].mxu0 %v1905
      %v2008 = vpop.f32.mrb[0].mxu0
      %v2009 = vadd.f32 0.0, %v2008
      %v2010 = vpop.f32.mrb[0].mxu0
      %v2011 = vpop.f32.mrb[0].mxu0
      %v2012 = vadd.f32 0.0, %v2011
      %v2013 = vpop.f32.mrb[0].mxu0
      %2014 = vmatprep.mubr.bf16.mxu0 0
      %2015 = vmatmul.mubr.bf16.gmra.mrb[0].mxu0 %v1907
      %v2016 = vpop.f32.mrb[0].mxu0
      %v2017 = vadd.f32 0.0, %v2016
      %v2018 = vpop.f32.mrb[0].mxu0
      %v2019 = vpop.f32.mrb[0].mxu0
      %v2020 = vadd.f32 0.0, %v2019
      %v2021 = vpop.f32.mrb[0].mxu0
      %2022 = vmatprep.mubr.bf16.mxu0 0
      %2023 = vmatmul.mubr.bf16.gmra.mrb[0].mxu0 %v1909
      %v2024 = vpop.f32.mrb[0].mxu0
      %v2025 = vadd.f32 0.0, %v2024
      %v2026 = vpop.f32.mrb[0].mxu0
      %v2027 = vpop.f32.mrb[0].mxu0
      %v2028 = vadd.f32 0.0, %v2027
      %v2029 = vpop.f32.mrb[0].mxu0
      %2030 = vmatprep.mubr.bf16.mxu0 0
      %2031 = vmatmul.mubr.bf16.gmra.mrb[0].mxu0 %v1911
      %v2032 = vpop.f32.mrb[0].mxu0
      %v2033 = vadd.f32 0.0, %v2032
      %v2034 = vpop.f32.mrb[0].mxu0
      %v2035 = vpop.f32.mrb[0].mxu0
      %v2036 = vadd.f32 0.0, %v2035
      %v2037 = vpop.f32.mrb[0].mxu0
      %2038 = vmatprep.mubr.bf16.mxu0 0
      %2039 = vmatmul.mubr.bf16.gmra.mrb[0].mxu0 %v1910
      %v2040 = vpop.f32.mrb[0].mxu0
      %v2041 = vadd.f32 0.0, %v2040
      %v2042 = vpop.f32.mrb[0].mxu0
      %v2043 = vpop.f32.mrb[0].mxu0
      %v2044 = vpop.f32.mrb[0].mxu0
      %2045 = vdwg.mxu0
      %v2046 = vadd.f32 %v1868, %v2001
      %v2047 = vadd.f32 %v1869, %v2004
      %v2048 = vadd.f32 %v1870, %v2009
      %v2049 = vadd.f32 %v1871, %v2012
      %v2050 = vadd.f32 %v1872, %v2017
      %v2051 = vadd.f32 %v1873, %v2020
      %v2052 = vadd.f32 %v1874, %v2025
      %v2053 = vadd.f32 %v1875, %v2028
      %v2054 = vadd.f32 %v1876, %v2033
      %v2055 = vadd.f32 %v1877, %v2036
      %v2056 = vadd.f32 %v1878, %v2041
      %v2057 = vld [vmem:[%s2] sm:$0x1]
      %v2059 = vlaneseq
      %v2060 = vshrl.u32 %v2059, 7
      %v2061 = vsub.s32 0, %v2060
      %v2062 = vrot.slane %v2057, %v2061
      %v2064 = vadd.f32 %v2046, %v2062
      %v2065 = vadd.f32 %v2047, %v2062
      %v2066 = vadd.f32 %v2048, %v2062
      %v2067 = vadd.f32 %v2049, %v2062
      %v2068 = vadd.f32 %v2050, %v2062
      %v2069 = vadd.f32 %v2051, %v2062
      %v2070 = vadd.f32 %v2052, %v2062
      %v2071 = vadd.f32 %v2053, %v2062
      %v2072 = vadd.f32 %v2054, %v2062
      %v2073 = vadd.f32 %v2055, %v2062
      %v2074 = vadd.f32 %v2056, %v2062
      %v2075 = vld [vmem:[%s3] sm:$0xff]
      %v2076 = vld [vmem:[%s3 + $0x8] sm:$0xff]
      %v2077 = vld [vmem:[%s3 + $0x10] sm:$0xff]
      %v2078 = vld [vmem:[%s3 + $0x18] sm:$0xff]
      %v2079 = vld [vmem:[%s3 + $0x20] sm:$0xff]
      %v2080 = vld [vmem:[%s3 + $0x28] sm:$0xff]
      %v2081 = vld [vmem:[%s3 + $0x30] sm:$0xff]
      %v2082 = vld [vmem:[%s3 + $0x38] sm:$0xff]
      %v2083 = vld [vmem:[%s3 + $0x40] sm:$0xff]
      %v2084 = vld [vmem:[%s3 + $0x48] sm:$0xff]
      %v2085 = vld [vmem:[%s3 + $0x50] sm:$0xff]
      %2087 = vset.pattern.permute.xlu0 0
      %2088 = vperm.xlu0 %2087, %v2075
      %v2089 = vpop.permute.xlu0 %2088
      %2092 = vset.pattern.permute.xlu0 0
      %2093 = vperm.xlu0 %2092, %v2076
      %v2094 = vpop.permute.xlu0 %2093
      %2097 = vset.pattern.permute.xlu0 0
      %2098 = vperm.xlu0 %2097, %v2077
      %v2099 = vpop.permute.xlu0 %2098
      %2102 = vset.pattern.permute.xlu0 0
      %2103 = vperm.xlu0 %2102, %v2078
      %v2104 = vpop.permute.xlu0 %2103
      %2107 = vset.pattern.permute.xlu0 0
      %2108 = vperm.xlu0 %2107, %v2079
      %v2109 = vpop.permute.xlu0 %2108
      %2112 = vset.pattern.permute.xlu0 0
      %2113 = vperm.xlu0 %2112, %v2080
      %v2114 = vpop.permute.xlu0 %2113
      %2117 = vset.pattern.permute.xlu0 0
      %2118 = vperm.xlu0 %2117, %v2081
      %v2119 = vpop.permute.xlu0 %2118
      %2122 = vset.pattern.permute.xlu0 0
      %2123 = vperm.xlu0 %2122, %v2082
      %v2124 = vpop.permute.xlu0 %2123
      %2127 = vset.pattern.permute.xlu0 0
      %2128 = vperm.xlu0 %2127, %v2083
      %v2129 = vpop.permute.xlu0 %2128
      %2132 = vset.pattern.permute.xlu0 0
      %2133 = vperm.xlu0 %2132, %v2084
      %v2134 = vpop.permute.xlu0 %2133
      %2137 = vset.pattern.permute.xlu0 0
      %2138 = vperm.xlu0 %2137, %v2085
      %v2139 = vpop.permute.xlu0 %2138
      %v2141 = vmul.f32 %v2064, %v2089
      %v2142 = vmul.f32 %v2065, %v2094
      %v2143 = vmul.f32 %v2066, %v2099
      %v2144 = vmul.f32 %v2067, %v2104
      %v2145 = vmul.f32 %v2068, %v2109
      %v2146 = vmul.f32 %v2069, %v2114
      %v2147 = vmul.f32 %v2070, %v2119
      %v2148 = vmul.f32 %v2071, %v2124
      %v2149 = vmul.f32 %v2072, %v2129
      %v2150 = vmul.f32 %v2073, %v2134
      %v2151 = vmul.f32 %v2074, %v2139
      %2152 = vst [vmem:[%s197] sm:$0xf] 0
      %2153 = vst [vmem:[%s197 + $0x4] sm:$0xf] 0
      %v2154 = vpack.c.bf16 %v2142, %v2141
      %v2155 = vpack.c.bf16 %v2144, %v2143
      %v2156 = vpack.c.bf16 %v2146, %v2145
      %v2157 = vpack.c.bf16 %v2148, %v2147
      %v2158 = vpack.c.bf16 %v2150, %v2149
      %v2159 = vpack.c.bf16 %v2151, %v2151
      %v2166 = vunpack.c.l.b16 %v2154
      %v2167 = vunpack.c.h.b16 %v2154
      %v2168 = vunpack.c.l.b16 %v2155
      %v2169 = vunpack.c.h.b16 %v2155
      %v2170 = vunpack.c.l.b16 %v2156
      %v2171 = vunpack.c.h.b16 %v2156
      %v2172 = vunpack.c.l.b16 %v2157
      %v2173 = vunpack.c.h.b16 %v2157
      %v2174 = vunpack.c.l.b16 %v2158
      %v2175 = vunpack.c.h.b16 %v2158
      %v2176 = vunpack.c.l.b16 %v2159
      %v2177 = vpack.c.b16 %v2166, %v2166
      %v2178 = vpack.c.b16 %v2167, %v2167
      %v2179 = vpack.c.b16 %v2168, %v2168
      %v2180 = vpack.c.b16 %v2169, %v2169
      %v2181 = vpack.c.b16 %v2170, %v2170
      %v2182 = vpack.c.b16 %v2171, %v2171
      %v2183 = vpack.c.b16 %v2172, %v2172
      %v2184 = vpack.c.b16 %v2173, %v2173
      %v2185 = vpack.c.b16 %v2174, %v2174
      %v2186 = vpack.c.b16 %v2175, %v2175
      %v2187 = vpack.c.b16 %v2176, %v2176
      %2199 = vst [vmem:[%s197 + $0x8] sm:$0xf] %v2177
      %2200 = vst [vmem:[%s197 + $0xc] sm:$0xf] %v2178
      %2201 = vst [vmem:[%s197 + $0x10] sm:$0xf] %v2179
      %2202 = vst [vmem:[%s197 + $0x14] sm:$0xf] %v2180
      %2203 = vst [vmem:[%s197 + $0x18] sm:$0xf] %v2181
      %2204 = vst [vmem:[%s197 + $0x1c] sm:$0xf] %v2182
      %2205 = vst [vmem:[%s197 + $0x20] sm:$0xf] %v2183
      %2206 = vst [vmem:[%s197 + $0x24] sm:$0xf] %v2184
      %2207 = vst [vmem:[%s197 + $0x28] sm:$0xf] %v2185
      %2208 = vst [vmem:[%s197 + $0x2c] sm:$0xf] %v2186
      %2209 = vst [vmem:[%s197 + $0x30] sm:$0xf] %v2187
      %2210 = vst [vmem:[%s197 + $0x34] sm:$0xf] 0
      %2211 = vst [vmem:[%s197 + $0x38] sm:$0xf] 0
      %p2212 = scmp.lt.s32.totalorder %s15, 3
      %s2213 = scalar_select %p2212, %s15, 3
      %s2214 = smul.addr %s2213, 15
      %s2215 = smul.addr %s2214, 4
      %s2216 = scalar_lea.vmem %s4, %s2215
      // Predicated region
      $region37: #{encoder_forward.7} parent=35 // pred_check
        %p2217 = pneg %p122
      $region38: #{encoder_forward.7} parent=35 // pred_check_branch
        %2219 = sbr.rel (%p2217) target = $region40
      $region39: #{encoder_forward.7} parent=35 // pred_region
        _
      $region40: #{encoder_forward.7} parent=35 // pred_fallthru
        _
    $region36: #{encoder_forward.7} parent=5 // pred_fallthru
      _
    %p2220 = scmp.le.s32.totalorder 2, %s10
    // Predicated region
    $region41: #{encoder_forward.7} parent=5 // pred_check
      %p2221 = pneg %p2220
    $region42: #{encoder_forward.7} parent=5 // pred_check_branch
      %2223 = sbr.rel (%p2221) target = $region44
    $region43: #{encoder_forward.7} parent=5 // pred_region
      %s2224 = ssub.s32 %s10, 2
      // Predicated region
      $region45: #{encoder_forward.7} parent=43 // pred_check
        %p2225 = pneg %p128
      $region46: #{encoder_forward.7} parent=43 // pred_check_branch
        %2227 = sbr.rel (%p2225) target = $region48
      $region47: #{encoder_forward.7} parent=43 // pred_region
        %p2228 = scmp.lt.s32.totalorder %s16, 3
        %s2229 = scalar_select %p2228, %s16, 3
        %s2230 = smul.addr %s2229, 15
        %s2231 = smul.addr %s2230, 4
        %s2232 = scalar_lea.vmem %s4, %s2231
      $region48: #{encoder_forward.7} parent=43 // pred_fallthru
        _
    $region44: #{encoder_forward.7} parent=5 // pred_fallthru
      _
  $region6: #{encoder_forward.7} parent=0 // loop_footer
    %s14 = sadd.s32 1, %s10
  $region7: #{encoder_forward.7} parent=0 // loop_footer_branch
    %9 = sbr.rel target = $region3
  $region8: #{encoder_forward.7} parent=0 // loop_exit
    _

// kernel: encoder_forward.8
$region0: #{encoder_forward.8}
  #allocation0 [shape = 'u32[]', space=smem, size = 0x4, offset = 0x4, fixed_abs, tag = 'smem constant byte address 0x4 - core index']
  #allocation1 [shape = 'u32[144,128]{1,0:T(1,128)}', space=vmem, size = 0x12000, scoped, tag = 'internal scratch']
  %s0 = inlined_call_operand.vmem [shape: bf16[4,120,128], index: 0, kind: input, shape index: {}]
  %s1 = inlined_call_operand.vmem [shape: bf16[9,128,32], index: 1, kind: input, shape index: {}]
  %s2 = inlined_call_operand.vmem [shape: bf16[32,128], index: 2, kind: input, shape index: {}]
  %s3 = inlined_call_operand.vmem [shape: f32[88,1], index: 3, kind: input, shape index: {}]
  %s4 = inlined_call_operand.vmem [shape: bf16[4,120,128], index: 4, kind: output, shape index: {}]
  %s5 = sld [smem:[#allocation0]]
  $region49: #{encoder_forward.8} parent=0
    _
  %s7 = ssub.s32 1, %s5
  %s8 = scalar_select 0, %s7, %s5
  loop: start=0, step=1, limit=6
  $region2: #{encoder_forward.8} parent=0 // loop_pre_header
    _
  $region3: #{encoder_forward.8} parent=0 // loop_header
    %s10 = sphi 0, %s14
    %p11 = scmp.ge.s32.totalorder %s10, 6
    %s20 = sphi 0, %s22
    %s23 = sphi 0, %s20
    %s24 = sphi 0, %s23
    %s40 = sphi 0, %s24
    %s44 = sphi 0, %s44
    %s46 = sphi 0, %s44
    %s47 = sphi 0, %s46
    %s61 = sphi 0, %s47
    %s65 = sphi 0, %s65
    %s67 = sphi 0, %s65
    %s68 = sphi 0, %s67
    %s82 = sphi 0, %s68
    %s86 = sphi 0, %s86
    %s88 = sphi 0, %s86
    %s89 = sphi 0, %s88
    %s103 = sphi 0, %s89
    %s109 = sphi 0, %s111
    %s112 = sphi 0, %s109
    %s113 = sphi 0, %s112
    %s129 = sphi 0, %s113
  $region4: #{encoder_forward.8} parent=0 // loop_header_branch
    %13 = sbr.rel (%p11) target = $region8
  $region5: #{encoder_forward.8} parent=0 // loop_body
    %s15 = ssub.s32 %s10, 1
    %s16 = ssub.s32 %s10, 2
    %s17 = sadd.s32 %s10, 1
    %s18 = ssub.s32 %s10, %s17
    %p19 = scmp.eq.s32.totalorder %s18, 0
    %s21 = sadd.s32 %s20, 1
    %s22 = scalar_select %p19, %s20, %s21
    %p25 = pneg %p19
    %p26 = scmp.eq.s32.totalorder %s10, 3
    %p27 = por %p25, %p26
    %p28 = scmp.ne.s32.totalorder %s20, %s23
    %p29 = scmp.eq.s32.totalorder %s10, 0
    %p30 = por %p28, %p29
    %p31 = scmp.ne.s32.totalorder %s20, %s23
    %p32 = scmp.eq.s32.totalorder %s15, 3
    %p33 = por %p31, %p32
    %p34 = scmp.ne.s32.totalorder %s23, %s24
    %p35 = scmp.eq.s32.totalorder %s15, 0
    %p36 = por %p34, %p35
    %p37 = scmp.ne.s32.totalorder %s23, %s24
    %p38 = scmp.eq.s32.totalorder %s16, 3
    %p39 = por %p37, %p38
    %p41 = scmp.ne.s32.totalorder %s24, %s40
    %p42 = scmp.eq.s32.totalorder %s16, 0
    %p43 = por %p41, %p42
    %s45 = sadd.s32 %s44, 1
    %p48 = scmp.eq.s32.totalorder %s10, 3
    %p49 = scmp.ne.s32.totalorder %s44, %s46
    %p50 = scmp.eq.s32.totalorder %s10, 0
    %p51 = por %p49, %p50
    %p52 = scmp.ne.s32.totalorder %s44, %s46
    %p53 = scmp.eq.s32.totalorder %s15, 3
    %p54 = por %p52, %p53
    %p55 = scmp.ne.s32.totalorder %s46, %s47
    %p56 = scmp.eq.s32.totalorder %s15, 0
    %p57 = por %p55, %p56
    %p58 = scmp.ne.s32.totalorder %s46, %s47
    %p59 = scmp.eq.s32.totalorder %s16, 3
    %p60 = por %p58, %p59
    %p62 = scmp.ne.s32.totalorder %s47, %s61
    %p63 = scmp.eq.s32.totalorder %s16, 0
    %p64 = por %p62, %p63
    %s66 = sadd.s32 %s65, 1
    %p69 = scmp.eq.s32.totalorder %s10, 3
    %p70 = scmp.ne.s32.totalorder %s65, %s67
    %p71 = scmp.eq.s32.totalorder %s10, 0
    %p72 = por %p70, %p71
    %p73 = scmp.ne.s32.totalorder %s65, %s67
    %p74 = scmp.eq.s32.totalorder %s15, 3
    %p75 = por %p73, %p74
    %p76 = scmp.ne.s32.totalorder %s67, %s68
    %p77 = scmp.eq.s32.totalorder %s15, 0
    %p78 = por %p76, %p77
    %p79 = scmp.ne.s32.totalorder %s67, %s68
    %p80 = scmp.eq.s32.totalorder %s16, 3
    %p81 = por %p79, %p80
    %p83 = scmp.ne.s32.totalorder %s68, %s82
    %p84 = scmp.eq.s32.totalorder %s16, 0
    %p85 = por %p83, %p84
    %s87 = sadd.s32 %s86, 1
    %p90 = scmp.eq.s32.totalorder %s10, 3
    %p91 = scmp.ne.s32.totalorder %s86, %s88
    %p92 = scmp.eq.s32.totalorder %s10, 0
    %p93 = por %p91, %p92
    %p94 = scmp.ne.s32.totalorder %s86, %s88
    %p95 = scmp.eq.s32.totalorder %s15, 3
    %p96 = por %p94, %p95
    %p97 = scmp.ne.s32.totalorder %s88, %s89
    %p98 = scmp.eq.s32.totalorder %s15, 0
    %p99 = por %p97, %p98
    %p100 = scmp.ne.s32.totalorder %s88, %s89
    %p101 = scmp.eq.s32.totalorder %s16, 3
    %p102 = por %p100, %p101
    %p104 = scmp.ne.s32.totalorder %s89, %s103
    %p105 = scmp.eq.s32.totalorder %s16, 0
    %p106 = por %p104, %p105
    %s107 = ssub.s32 %s10, %s17
    %p108 = scmp.eq.s32.totalorder %s107, 0
    %s110 = sadd.s32 %s109, 1
    %s111 = scalar_select %p108, %s109, %s110
    %p114 = pneg %p108
    %p115 = scmp.eq.s32.totalorder %s10, 3
    %p116 = por %p114, %p115
    %p117 = scmp.ne.s32.totalorder %s109, %s112
    %p118 = scmp.eq.s32.totalorder %s10, 0
    %p119 = por %p117, %p118
    %p120 = scmp.ne.s32.totalorder %s109, %s112
    %p121 = scmp.eq.s32.totalorder %s15, 3
    %p122 = por %p120, %p121
    %p123 = scmp.ne.s32.totalorder %s112, %s113
    %p124 = scmp.eq.s32.totalorder %s15, 0
    %p125 = por %p123, %p124
    %p126 = scmp.ne.s32.totalorder %s112, %s113
    %p127 = scmp.eq.s32.totalorder %s16, 3
    %p128 = por %p126, %p127
    %p130 = scmp.ne.s32.totalorder %s113, %s129
    %p131 = scmp.eq.s32.totalorder %s16, 0
    %p132 = por %p130, %p131
    %p133 = scmp.le.s32.totalorder 1, %s10
    %p134 = scmp.lt.s32.totalorder %s10, 5
    %p135 = pnand %p133, %p134
    %p136 = pneg %p135
    // Predicated region
    $region9: #{encoder_forward.8} parent=5 // pred_check
      _
    $region10: #{encoder_forward.8} parent=5 // pred_check_branch
      %138 = sbr.rel (%p135) target = $region12
    $region11: #{encoder_forward.8} parent=5 // pred_region
      %s139 = ssub.s32 %s10, 1
      // Predicated region
      $region13: #{encoder_forward.8} parent=11 // pred_check
        %p140 = pneg %p57
      $region14: #{encoder_forward.8} parent=11 // pred_check_branch
        %142 = sbr.rel (%p140) target = $region16
      $region15: #{encoder_forward.8} parent=11 // pred_region
        _
      $region16: #{encoder_forward.8} parent=11 // pred_fallthru
        _
      // Predicated region
      $region17: #{encoder_forward.8} parent=11 // pred_check
        %p143 = pneg %p78
      $region18: #{encoder_forward.8} parent=11 // pred_check_branch
        %145 = sbr.rel (%p143) target = $region20
      $region19: #{encoder_forward.8} parent=11 // pred_region
        _
      $region20: #{encoder_forward.8} parent=11 // pred_fallthru
        _
      // Predicated region
      $region21: #{encoder_forward.8} parent=11 // pred_check
        %p146 = pneg %p99
      $region22: #{encoder_forward.8} parent=11 // pred_check_branch
        %148 = sbr.rel (%p146) target = $region24
      $region23: #{encoder_forward.8} parent=11 // pred_region
        _
      $region24: #{encoder_forward.8} parent=11 // pred_fallthru
        _
    $region12: #{encoder_forward.8} parent=5 // pred_fallthru
      _
    %p149 = scmp.lt.s32.totalorder %s10, 4
    // Predicated region
    $region25: #{encoder_forward.8} parent=5 // pred_check
      %p150 = pneg %p149
    $region26: #{encoder_forward.8} parent=5 // pred_check_branch
      %152 = sbr.rel (%p150) target = $region28
    $region27: #{encoder_forward.8} parent=5 // pred_region
      // Predicated region
      $region29: #{encoder_forward.8} parent=27 // pred_check
        %p153 = pneg %p30
      $region30: #{encoder_forward.8} parent=27 // pred_check_branch
        %155 = sbr.rel (%p153) target = $region32
      $region31: #{encoder_forward.8} parent=27 // pred_region
        %p156 = scmp.lt.s32.totalorder %s10, 3
        %s157 = scalar_select %p156, %s10, 3
        %s158 = smul.addr %s157, 15
        %s159 = smul.addr %s158, 4
        %s160 = scalar_lea.vmem %s0, %s159
      $region32: #{encoder_forward.8} parent=27 // pred_fallthru
        _
    $region28: #{encoder_forward.8} parent=5 // pred_fallthru
      _
    %p161 = scmp.le.s32.totalorder 1, %s10
    %p162 = scmp.lt.s32.totalorder %s10, 5
    %p163 = pnand %p161, %p162
    %p164 = pneg %p163
    // Predicated region
    $region33: #{encoder_forward.8} parent=5 // pred_check
      _
    $region34: #{encoder_forward.8} parent=5 // pred_check_branch
      %166 = sbr.rel (%p163) target = $region36
    $region35: #{encoder_forward.8} parent=5 // pred_region
      %s167 = ssub.s32 %s10, 1
      %p168 = scmp.lt.s32.totalorder %s15, 3
      %s169 = scalar_select %p168, %s15, 3
      %s170 = smul.addr %s169, 15
      %s171 = smul.addr %s170, 4
      %s172 = scalar_lea.vmem %s0, %s171
      %p173 = pneg %p36
      %p174 = pneg %p33
      %p175 = pneg %p57
      %p176 = pneg %p54
      %p177 = pneg %p78
      %p178 = pneg %p75
      %p179 = pneg %p99
      %p180 = pneg %p96
      %p181 = pneg %p125
      %p182 = pneg %p122
      %p183 = scmp.lt.s32.totalorder %s15, 3
      %s184 = scalar_select %p183, %s15, 3
      %s185 = smul.addr %s184, 15
      %s186 = smul.addr %s185, 4
      %s187 = scalar_lea.vmem %s4, %s186
      %p188 = scmp.lt.s32.totalorder %s15, 3
      %s189 = scalar_select %p188, %s15, 3
      %s190 = smul.addr %s189, 15
      %s191 = smul.addr %s190, 4
      %s192 = scalar_lea.vmem %s0, %s191
      %p193 = scmp.lt.s32.totalorder %s15, 3
      %s194 = scalar_select %p193, %s15, 3
      %s195 = smul.addr %s194, 15
      %s196 = smul.addr %s195, 4
      %s197 = scalar_lea.vmem %s4, %s196
      %v199 = vld [vmem:[%s192] sm:$0x8]
      %v200 = vld [vmem:[%s192 + $0x4] sm:$0xf]
      %v201 = vld [vmem:[%s192 + $0x8] sm:$0xf]
      %v202 = vld [vmem:[%s192 + $0xc] sm:$0xf]
      %v203 = vld [vmem:[%s192 + $0x10] sm:$0xf]
      %v204 = vld [vmem:[%s192 + $0x14] sm:$0xf]
      %v205 = vld [vmem:[%s192 + $0x18] sm:$0xf]
      %v206 = vld [vmem:[%s192 + $0x1c] sm:$0xf]
      %v207 = vld [vmem:[%s192 + $0x20] sm:$0xf]
      %v208 = vld [vmem:[%s192 + $0x24] sm:$0xf]
      %v209 = vld [vmem:[%s192 + $0x28] sm:$0xf]
      %v210 = vld [vmem:[%s192 + $0x2c] sm:$0x7]
      %v211 = vmax.bf16 %v199, 0
      %v212 = vmax.bf16 %v200, 0
      %v213 = vmax.bf16 %v201, 0
      %v214 = vmax.bf16 %v202, 0
      %v215 = vmax.bf16 %v203, 0
      %v216 = vmax.bf16 %v204, 0
      %v217 = vmax.bf16 %v205, 0
      %v218 = vmax.bf16 %v206, 0
      %v219 = vmax.bf16 %v207, 0
      %v220 = vmax.bf16 %v208, 0
      %v221 = vmax.bf16 %v209, 0
      %v222 = vmax.bf16 %v210, 0
      %v223 = vld [vmem:[%s1] sm:$0xf]
      %v224 = vld [vmem:[%s1 + $0x4] sm:$0xf]
      %v225 = vld [vmem:[%s1 + $0x8] sm:$0xf]
      %v226 = vld [vmem:[%s1 + $0xc] sm:$0xf]
      %v227 = vld [vmem:[%s1 + $0x10] sm:$0xf]
      %v228 = vld [vmem:[%s1 + $0x14] sm:$0xf]
      %v229 = vld [vmem:[%s1 + $0x18] sm:$0xf]
      %v230 = vld [vmem:[%s1 + $0x1c] sm:$0xf]
      %v231 = vld [vmem:[%s1 + $0x20] sm:$0xf]
      %v232 = vld [vmem:[%s1 + $0x24] sm:$0xf]
      %v233 = vld [vmem:[%s1 + $0x28] sm:$0xf]
      %v234 = vld [vmem:[%s1 + $0x2c] sm:$0xf]
      %v235 = vld [vmem:[%s1 + $0x30] sm:$0xf]
      %v236 = vld [vmem:[%s1 + $0x34] sm:$0xf]
      %v237 = vld [vmem:[%s1 + $0x38] sm:$0xf]
      %v238 = vld [vmem:[%s1 + $0x3c] sm:$0xf]
      %v239 = vld [vmem:[%s192 + $0x2c] sm:$0xf]
      %v240 = vmax.bf16 %v239, 0
      %s241 = scalar_lea.vmem %s1, 64
      %v242 = vld [vmem:[%s241] sm:$0xf]
      %v243 = vld [vmem:[%s241 + $0x4] sm:$0xf]
      %v244 = vld [vmem:[%s241 + $0x8] sm:$0xf]
      %v245 = vld [vmem:[%s241 + $0xc] sm:$0xf]
      %v246 = vld [vmem:[%s241 + $0x10] sm:$0xf]
      %v247 = vld [vmem:[%s241 + $0x14] sm:$0xf]
      %v248 = vld [vmem:[%s241 + $0x18] sm:$0xf]
      %v249 = vld [vmem:[%s241 + $0x1c] sm:$0xf]
      %v250 = vld [vmem:[%s241 + $0x20] sm:$0xf]
      %v251 = vld [vmem:[%s241 + $0x24] sm:$0xf]
      %v252 = vld [vmem:[%s241 + $0x28] sm:$0xf]
      %v253 = vld [vmem:[%s241 + $0x2c] sm:$0xf]
      %v254 = vld [vmem:[%s241 + $0x30] sm:$0xf]
      %v255 = vld [vmem:[%s241 + $0x34] sm:$0xf]
      %v256 = vld [vmem:[%s241 + $0x38] sm:$0xf]
      %v257 = vld [vmem:[%s241 + $0x3c] sm:$0xf]
      %v270 = vunpack.c.l.b16 %v211
      %v271 = vunpack.c.l.b16 %v212
      %v272 = vunpack.c.l.b16 %v213
      %v273 = vunpack.c.l.b16 %v214
      %v274 = vunpack.c.l.b16 %v215
      %v275 = vunpack.c.l.b16 %v216
      %v276 = vunpack.c.l.b16 %v217
      %v277 = vunpack.c.l.b16 %v218
      %v278 = vunpack.c.l.b16 %v219
      %v279 = vunpack.c.l.b16 %v220
      %v280 = vunpack.c.l.b16 %v221
      %v281 = vunpack.c.l.b16 %v240
      %v282 = vpack.c.b16 %v271, %v270
      %v283 = vpack.c.b16 %v273, %v272
      %v284 = vpack.c.b16 %v275, %v274
      %v285 = vpack.c.b16 %v277, %v276
      %v286 = vpack.c.b16 %v279, %v278
      %v287 = vpack.c.b16 %v281, %v280
      %vm288 = vsmask.f32 4352
      %v290 = vshrl.u32 %v282, 16
      %v292 = vrot.slane %v290, 3
      %v293 = vshll.u32 %v282, 16
      %v295 = vrot.slane %v293, 4
      %v296 = vor.u32 %v292, %v295
      %v298 = vshrl.u32 %v283, 16
      %v300 = vrot.slane %v298, 3
      %v301 = vshll.u32 %v283, 16
      %v303 = vrot.slane %v301, 4
      %v304 = vor.u32 %v300, %v303
      %v305 = vsel %vm288, %v296, %v304
      %v307 = vshrl.u32 %v284, 16
      %v309 = vrot.slane %v307, 3
      %v310 = vshll.u32 %v284, 16
      %v312 = vrot.slane %v310, 4
      %v313 = vor.u32 %v309, %v312
      %v314 = vsel %vm288, %v304, %v313
      %v316 = vshrl.u32 %v285, 16
      %v318 = vrot.slane %v316, 3
      %v319 = vshll.u32 %v285, 16
      %v321 = vrot.slane %v319, 4
      %v322 = vor.u32 %v318, %v321
      %v323 = vsel %vm288, %v313, %v322
      %v325 = vshrl.u32 %v286, 16
      %v327 = vrot.slane %v325, 3
      %v328 = vshll.u32 %v286, 16
      %v330 = vrot.slane %v328, 4
      %v331 = vor.u32 %v327, %v330
      %v332 = vsel %vm288, %v322, %v331
      %v334 = vshrl.u32 %v287, 16
      %v336 = vrot.slane %v334, 3
      %v337 = vshll.u32 %v287, 16
      %v339 = vrot.slane %v337, 4
      %v340 = vor.u32 %v336, %v339
      %v341 = vsel %vm288, %v331, %v340
      %v364 = vunpack.c.l.b16 %v242
      %v365 = vunpack.c.l.b16 %v243
      %v366 = vunpack.c.l.b16 %v244
      %v367 = vunpack.c.l.b16 %v245
      %v368 = vunpack.c.l.b16 %v246
      %v369 = vunpack.c.l.b16 %v247
      %v370 = vunpack.c.l.b16 %v248
      %v371 = vunpack.c.l.b16 %v249
      %v372 = vunpack.c.l.b16 %v250
      %v373 = vunpack.c.l.b16 %v251
      %v374 = vunpack.c.l.b16 %v252
      %v375 = vunpack.c.l.b16 %v253
      %v376 = vunpack.c.l.b16 %v254
      %v377 = vunpack.c.l.b16 %v255
      %v378 = vunpack.c.l.b16 %v256
      %v379 = vunpack.c.l.b16 %v257
      %v380 = vpack.c.b16 %v365, %v364
      %v381 = vpack.c.b16 %v367, %v366
      %v382 = vpack.c.b16 %v369, %v368
      %v383 = vpack.c.b16 %v371, %v370
      %v384 = vpack.c.b16 %v373, %v372
      %v385 = vpack.c.b16 %v375, %v374
      %v386 = vpack.c.b16 %v377, %v376
      %v387 = vpack.c.b16 %v379, %v378
      %396 = vmatprep.subr.bf16.mxu0 0
      %397 = vmatpush1.bf16.msra.mxu0 %v380
      %398 = vmatprep.subr.bf16.mxu0 0
      %399 = vmatpush1.bf16.msra.mxu0 %v381
      %400 = vmatprep.subr.bf16.mxu0 0
      %401 = vmatpush1.bf16.msra.mxu0 %v382
      %402 = vmatprep.subr.bf16.mxu0 0
      %403 = vmatpush1.bf16.msra.mxu0 %v383
      %404 = vmatprep.subr.bf16.mxu0 0
      %405 = vmatpush1.bf16.msra.mxu0 %v384
      %406 = vmatprep.subr.bf16.mxu0 0
      %407 = vmatpush1.bf16.msra.mxu0 %v385
      %408 = vmatprep.subr.bf16.mxu0 0
      %409 = vmatpush1.bf16.msra.mxu0 %v386
      %410 = vmatprep.subr.bf16.mxu0 0
      %411 = vmatpush1.bf16.msra.mxu0 %v387
      %412 = vmatprep.subr.bf16.mxu0 0
      %413 = vmatpush1.bf16.msra.mxu0 0
      %414 = vmatprep.subr.bf16.mxu0 0
      %415 = vmatpush1.bf16.msra.mxu0 0
      %416 = vmatprep.subr.bf16.mxu0 0
      %417 = vmatpush1.bf16.msra.mxu0 0
      %418 = vmatprep.subr.bf16.mxu0 0
      %419 = vmatpush1.bf16.msra.mxu0 0
      %420 = vmatprep.subr.bf16.mxu0 0
      %421 = vmatpush1.bf16.msra.mxu0 0
      %422 = vmatprep.subr.bf16.mxu0 0
      %423 = vmatpush1.bf16.msra.mxu0 0
      %424 = vmatprep.subr.bf16.mxu0 0
      %425 = vmatpush1.bf16.msra.mxu0 0
      %426 = vmatprep.subr.bf16.mxu0 0
      %427 = vmatpush1.bf16.msra.mxu0 0
      %428 = vmatprep.mubr.bf16.mxu0 0
      %429 = vmatmul.mubr.bf16.gmra.mrb[0].mxu0 %v305
      %v430 = vpop.f32.mrb[0].mxu0
      %v431 = vadd.f32 0.0, %v430
      %v432 = vpop.f32.mrb[0].mxu0
      %v433 = vpop.f32.mrb[0].mxu0
      %v434 = vadd.f32 0.0, %v433
      %v435 = vpop.f32.mrb[0].mxu0
      %436 = vmatprep.mubr.bf16.mxu0 0
      %437 = vmatmul.mubr.bf16.gmra.mrb[0].mxu0 %v314
      %v438 = vpop.f32.mrb[0].mxu0
      %v439 = vadd.f32 0.0, %v438
      %v440 = vpop.f32.mrb[0].mxu0
      %v441 = vpop.f32.mrb[0].mxu0
      %v442 = vadd.f32 0.0, %v441
      %v443 = vpop.f32.mrb[0].mxu0
      %444 = vmatprep.mubr.bf16.mxu0 0
      %445 = vmatmul.mubr.bf16.gmra.mrb[0].mxu0 %v323
      %v446 = vpop.f32.mrb[0].mxu0
      %v447 = vadd.f32 0.0, %v446
      %v448 = vpop.f32.mrb[0].mxu0
      %v449 = vpop.f32.mrb[0].mxu0
      %v450 = vadd.f32 0.0, %v449
      %v451 = vpop.f32.mrb[0].mxu0
      %452 = vmatprep.mubr.bf16.mxu0 0
      %453 = vmatmul.mubr.bf16.gmra.mrb[0].mxu0 %v332
      %v454 = vpop.f32.mrb[0].mxu0
      %v455 = vadd.f32 0.0, %v454
      %v456 = vpop.f32.mrb[0].mxu0
      %v457 = vpop.f32.mrb[0].mxu0
      %v458 = vadd.f32 0.0, %v457
      %v459 = vpop.f32.mrb[0].mxu0
      %460 = vmatprep.mubr.bf16.mxu0 0
      %461 = vmatmul.mubr.bf16.gmra.mrb[0].mxu0 %v341
      %v462 = vpop.f32.mrb[0].mxu0
      %v463 = vadd.f32 0.0, %v462
      %v464 = vpop.f32.mrb[0].mxu0
      %v465 = vpop.f32.mrb[0].mxu0
      %v466 = vadd.f32 0.0, %v465
      %v467 = vpop.f32.mrb[0].mxu0
      %468 = vmatprep.mubr.bf16.mxu0 0
      %469 = vmatmul.mubr.bf16.gmra.mrb[0].mxu0 %v340
      %v470 = vpop.f32.mrb[0].mxu0
      %v471 = vadd.f32 0.0, %v470
      %v472 = vpop.f32.mrb[0].mxu0
      %v473 = vpop.f32.mrb[0].mxu0
      %v474 = vpop.f32.mrb[0].mxu0
      %475 = vdwg.mxu0
      %v477 = vunpack.c.l.b16 %v222
      %v478 = vpack.c.b16 %v477, %v280
      %vm479 = vcmask 1044480
      %v480 = vrot.slane %v282, 3
      %v481 = vrot.slane %v283, 3
      %v482 = vsel %vm479, %v480, %v481
      %v483 = vrot.slane %v284, 3
      %v484 = vsel %vm479, %v481, %v483
      %v485 = vrot.slane %v285, 3
      %v486 = vsel %vm479, %v483, %v485
      %v487 = vrot.slane %v286, 3
      %v488 = vsel %vm479, %v485, %v487
      %v489 = vrot.slane %v478, 3
      %v490 = vsel %vm479, %v487, %v489
      %v513 = vunpack.c.l.b16 %v223
      %v514 = vunpack.c.l.b16 %v224
      %v515 = vunpack.c.l.b16 %v225
      %v516 = vunpack.c.l.b16 %v226
      %v517 = vunpack.c.l.b16 %v227
      %v518 = vunpack.c.l.b16 %v228
      %v519 = vunpack.c.l.b16 %v229
      %v520 = vunpack.c.l.b16 %v230
      %v521 = vunpack.c.l.b16 %v231
      %v522 = vunpack.c.l.b16 %v232
      %v523 = vunpack.c.l.b16 %v233
      %v524 = vunpack.c.l.b16 %v234
      %v525 = vunpack.c.l.b16 %v235
      %v526 = vunpack.c.l.b16 %v236
      %v527 = vunpack.c.l.b16 %v237
      %v528 = vunpack.c.l.b16 %v238
      %v529 = vpack.c.b16 %v514, %v513
      %v530 = vpack.c.b16 %v516, %v515
      %v531 = vpack.c.b16 %v518, %v517
      %v532 = vpack.c.b16 %v520, %v519
      %v533 = vpack.c.b16 %v522, %v521
      %v534 = vpack.c.b16 %v524, %v523
      %v535 = vpack.c.b16 %v526, %v525
      %v536 = vpack.c.b16 %v528, %v527
      %545 = vmatprep.subr.bf16.mxu0 0
      %546 = vmatpush1.bf16.msra.mxu0 %v529
      %547 = vmatprep.subr.bf16.mxu0 0
      %548 = vmatpush1.bf16.msra.mxu0 %v530
      %549 = vmatprep.subr.bf16.mxu0 0
      %550 = vmatpush1.bf16.msra.mxu0 %v531
      %551 = vmatprep.subr.bf16.mxu0 0
      %552 = vmatpush1.bf16.msra.mxu0 %v532
      %553 = vmatprep.subr.bf16.mxu0 0
      %554 = vmatpush1.bf16.msra.mxu0 %v533
      %555 = vmatprep.subr.bf16.mxu0 0
      %556 = vmatpush1.bf16.msra.mxu0 %v534
      %557 = vmatprep.subr.bf16.mxu0 0
      %558 = vmatpush1.bf16.msra.mxu0 %v535
      %559 = vmatprep.subr.bf16.mxu0 0
      %560 = vmatpush1.bf16.msra.mxu0 %v536
      %561 = vmatprep.subr.bf16.mxu0 0
      %562 = vmatpush1.bf16.msra.mxu0 0
      %563 = vmatprep.subr.bf16.mxu0 0
      %564 = vmatpush1.bf16.msra.mxu0 0
      %565 = vmatprep.subr.bf16.mxu0 0
      %566 = vmatpush1.bf16.msra.mxu0 0
      %567 = vmatprep.subr.bf16.mxu0 0
      %568 = vmatpush1.bf16.msra.mxu0 0
      %569 = vmatprep.subr.bf16.mxu0 0
      %570 = vmatpush1.bf16.msra.mxu0 0
      %571 = vmatprep.subr.bf16.mxu0 0
      %572 = vmatpush1.bf16.msra.mxu0 0
      %573 = vmatprep.subr.bf16.mxu0 0
      %574 = vmatpush1.bf16.msra.mxu0 0
      %575 = vmatprep.subr.bf16.mxu0 0
      %576 = vmatpush1.bf16.msra.mxu0 0
      %577 = vmatprep.mubr.bf16.mxu0 0
      %578 = vmatmul.mubr.bf16.gmra.mrb[0].mxu0 %v482
      %v579 = vpop.f32.mrb[0].mxu0
      %v580 = vadd.f32 %v431, %v579
      %v581 = vpop.f32.mrb[0].mxu0
      %v582 = vpop.f32.mrb[0].mxu0
      %v583 = vadd.f32 %v434, %v582
      %v584 = vpop.f32.mrb[0].mxu0
      %585 = vmatprep.mubr.bf16.mxu0 0
      %586 = vmatmul.mubr.bf16.gmra.mrb[0].mxu0 %v484
      %v587 = vpop.f32.mrb[0].mxu0
      %v588 = vadd.f32 %v439, %v587
      %v589 = vpop.f32.mrb[0].mxu0
      %v590 = vpop.f32.mrb[0].mxu0
      %v591 = vadd.f32 %v442, %v590
      %v592 = vpop.f32.mrb[0].mxu0
      %593 = vmatprep.mubr.bf16.mxu0 0
      %594 = vmatmul.mubr.bf16.gmra.mrb[0].mxu0 %v486
      %v595 = vpop.f32.mrb[0].mxu0
      %v596 = vadd.f32 %v447, %v595
      %v597 = vpop.f32.mrb[0].mxu0
      %v598 = vpop.f32.mrb[0].mxu0
      %v599 = vadd.f32 %v450, %v598
      %v600 = vpop.f32.mrb[0].mxu0
      %601 = vmatprep.mubr.bf16.mxu0 0
      %602 = vmatmul.mubr.bf16.gmra.mrb[0].mxu0 %v488
      %v603 = vpop.f32.mrb[0].mxu0
      %v604 = vadd.f32 %v455, %v603
      %v605 = vpop.f32.mrb[0].mxu0
      %v606 = vpop.f32.mrb[0].mxu0
      %v607 = vadd.f32 %v458, %v606
      %v608 = vpop.f32.mrb[0].mxu0
      %609 = vmatprep.mubr.bf16.mxu0 0
      %610 = vmatmul.mubr.bf16.gmra.mrb[0].mxu0 %v490
      %v611 = vpop.f32.mrb[0].mxu0
      %v612 = vadd.f32 %v463, %v611
      %v613 = vpop.f32.mrb[0].mxu0
      %v614 = vpop.f32.mrb[0].mxu0
      %v615 = vadd.f32 %v466, %v614
      %v616 = vpop.f32.mrb[0].mxu0
      %617 = vmatprep.mubr.bf16.mxu0 0
      %618 = vmatmul.mubr.bf16.gmra.mrb[0].mxu0 %v489
      %v619 = vpop.f32.mrb[0].mxu0
      %v620 = vadd.f32 %v471, %v619
      %v621 = vpop.f32.mrb[0].mxu0
      %v622 = vpop.f32.mrb[0].mxu0
      %v623 = vpop.f32.mrb[0].mxu0
      %624 = vdwg.mxu0
      %s625 = scalar_lea.vmem %s1, 128
      %v626 = vld [vmem:[%s625] sm:$0xf]
      %v627 = vld [vmem:[%s625 + $0x4] sm:$0xf]
      %v628 = vld [vmem:[%s625 + $0x8] sm:$0xf]
      %v629 = vld [vmem:[%s625 + $0xc] sm:$0xf]
      %v630 = vld [vmem:[%s625 + $0x10] sm:$0xf]
      %v631 = vld [vmem:[%s625 + $0x14] sm:$0xf]
      %v632 = vld [vmem:[%s625 + $0x18] sm:$0xf]
      %v633 = vld [vmem:[%s625 + $0x1c] sm:$0xf]
      %v634 = vld [vmem:[%s625 + $0x20] sm:$0xf]
      %v635 = vld [vmem:[%s625 + $0x24] sm:$0xf]
      %v636 = vld [vmem:[%s625 + $0x28] sm:$0xf]
      %v637 = vld [vmem:[%s625 + $0x2c] sm:$0xf]
      %v638 = vld [vmem:[%s625 + $0x30] sm:$0xf]
      %v639 = vld [vmem:[%s625 + $0x34] sm:$0xf]
      %v640 = vld [vmem:[%s625 + $0x38] sm:$0xf]
      %v641 = vld [vmem:[%s625 + $0x3c] sm:$0xf]
      %v642 = vpack.c.b16 %v272, %v271
      %v643 = vpack.c.b16 %v274, %v273
      %v644 = vpack.c.b16 %v276, %v275
      %v645 = vpack.c.b16 %v278, %v277
      %v646 = vpack.c.b16 %v280, %v279
      %v647 = vpack.c.b16 %v281, %v281
      %v670 = vunpack.c.l.b16 %v626
      %v671 = vunpack.c.l.b16 %v627
      %v672 = vunpack.c.l.b16 %v628
      %v673 = vunpack.c.l.b16 %v629
      %v674 = vunpack.c.l.b16 %v630
      %v675 = vunpack.c.l.b16 %v631
      %v676 = vunpack.c.l.b16 %v632
      %v677 = vunpack.c.l.b16 %v633
      %v678 = vunpack.c.l.b16 %v634
      %v679 = vunpack.c.l.b16 %v635
      %v680 = vunpack.c.l.b16 %v636
      %v681 = vunpack.c.l.b16 %v637
      %v682 = vunpack.c.l.b16 %v638
      %v683 = vunpack.c.l.b16 %v639
      %v684 = vunpack.c.l.b16 %v640
      %v685 = vunpack.c.l.b16 %v641
      %v686 = vpack.c.b16 %v671, %v670
      %v687 = vpack.c.b16 %v673, %v672
      %v688 = vpack.c.b16 %v675, %v674
      %v689 = vpack.c.b16 %v677, %v676
      %v690 = vpack.c.b16 %v679, %v678
      %v691 = vpack.c.b16 %v681, %v680
      %v692 = vpack.c.b16 %v683, %v682
      %v693 = vpack.c.b16 %v685, %v684
      %702 = vmatprep.subr.bf16.mxu0 0
      %703 = vmatpush1.bf16.msra.mxu0 %v686
      %704 = vmatprep.subr.bf16.mxu0 0
      %705 = vmatpush1.bf16.msra.mxu0 %v687
      %706 = vmatprep.subr.bf16.mxu0 0
      %707 = vmatpush1.bf16.msra.mxu0 %v688
      %708 = vmatprep.subr.bf16.mxu0 0
      %709 = vmatpush1.bf16.msra.mxu0 %v689
      %710 = vmatprep.subr.bf16.mxu0 0
      %711 = vmatpush1.bf16.msra.mxu0 %v690
      %712 = vmatprep.subr.bf16.mxu0 0
      %713 = vmatpush1.bf16.msra.mxu0 %v691
      %714 = vmatprep.subr.bf16.mxu0 0
      %715 = vmatpush1.bf16.msra.mxu0 %v692
      %716 = vmatprep.subr.bf16.mxu0 0
      %717 = vmatpush1.bf16.msra.mxu0 %v693
      %718 = vmatprep.subr.bf16.mxu0 0
      %719 = vmatpush1.bf16.msra.mxu0 0
      %720 = vmatprep.subr.bf16.mxu0 0
      %721 = vmatpush1.bf16.msra.mxu0 0
      %722 = vmatprep.subr.bf16.mxu0 0
      %723 = vmatpush1.bf16.msra.mxu0 0
      %724 = vmatprep.subr.bf16.mxu0 0
      %725 = vmatpush1.bf16.msra.mxu0 0
      %726 = vmatprep.subr.bf16.mxu0 0
      %727 = vmatpush1.bf16.msra.mxu0 0
      %728 = vmatprep.subr.bf16.mxu0 0
      %729 = vmatpush1.bf16.msra.mxu0 0
      %730 = vmatprep.subr.bf16.mxu0 0
      %731 = vmatpush1.bf16.msra.mxu0 0
      %732 = vmatprep.subr.bf16.mxu0 0
      %733 = vmatpush1.bf16.msra.mxu0 0
      %734 = vmatprep.mubr.bf16.mxu0 0
      %735 = vmatmul.mubr.bf16.gmra.mrb[0].mxu0 %v642
      %v736 = vpop.f32.mrb[0].mxu0
      %v737 = vadd.f32 0.0, %v736
      %v738 = vpop.f32.mrb[0].mxu0
      %v739 = vpop.f32.mrb[0].mxu0
      %v740 = vadd.f32 0.0, %v739
      %v741 = vpop.f32.mrb[0].mxu0
      %742 = vmatprep.mubr.bf16.mxu0 0
      %743 = vmatmul.mubr.bf16.gmra.mrb[0].mxu0 %v643
      %v744 = vpop.f32.mrb[0].mxu0
      %v745 = vadd.f32 0.0, %v744
      %v746 = vpop.f32.mrb[0].mxu0
      %v747 = vpop.f32.mrb[0].mxu0
      %v748 = vadd.f32 0.0, %v747
      %v749 = vpop.f32.mrb[0].mxu0
      %750 = vmatprep.mubr.bf16.mxu0 0
      %751 = vmatmul.mubr.bf16.gmra.mrb[0].mxu0 %v644
      %v752 = vpop.f32.mrb[0].mxu0
      %v753 = vadd.f32 0.0, %v752
      %v754 = vpop.f32.mrb[0].mxu0
      %v755 = vpop.f32.mrb[0].mxu0
      %v756 = vadd.f32 0.0, %v755
      %v757 = vpop.f32.mrb[0].mxu0
      %758 = vmatprep.mubr.bf16.mxu0 0
      %759 = vmatmul.mubr.bf16.gmra.mrb[0].mxu0 %v645
      %v760 = vpop.f32.mrb[0].mxu0
      %v761 = vadd.f32 0.0, %v760
      %v762 = vpop.f32.mrb[0].mxu0
      %v763 = vpop.f32.mrb[0].mxu0
      %v764 = vadd.f32 0.0, %v763
      %v765 = vpop.f32.mrb[0].mxu0
      %766 = vmatprep.mubr.bf16.mxu0 0
      %767 = vmatmul.mubr.bf16.gmra.mrb[0].mxu0 %v646
      %v768 = vpop.f32.mrb[0].mxu0
      %v769 = vadd.f32 0.0, %v768
      %v770 = vpop.f32.mrb[0].mxu0
      %v771 = vpop.f32.mrb[0].mxu0
      %v772 = vadd.f32 0.0, %v771
      %v773 = vpop.f32.mrb[0].mxu0
      %774 = vmatprep.mubr.bf16.mxu0 0
      %775 = vmatmul.mubr.bf16.gmra.mrb[0].mxu0 %v647
      %v776 = vpop.f32.mrb[0].mxu0
      %v777 = vadd.f32 0.0, %v776
      %v778 = vpop.f32.mrb[0].mxu0
      %v779 = vpop.f32.mrb[0].mxu0
      %v780 = vpop.f32.mrb[0].mxu0
      %781 = vdwg.mxu0
      %v782 = vadd.f32 %v580, %v737
      %v783 = vadd.f32 %v583, %v740
      %v784 = vadd.f32 %v588, %v745
      %v785 = vadd.f32 %v591, %v748
      %v786 = vadd.f32 %v596, %v753
      %v787 = vadd.f32 %v599, %v756
      %v788 = vadd.f32 %v604, %v761
      %v789 = vadd.f32 %v607, %v764
      %v790 = vadd.f32 %v612, %v769
      %v791 = vadd.f32 %v615, %v772
      %v792 = vadd.f32 %v620, %v777
      %v793 = vld [vmem:[%s192 + $0x4] sm:$0x8]
      %v794 = vld [vmem:[%s192 + $0x8] sm:$0xf]
      %v795 = vld [vmem:[%s192 + $0xc] sm:$0xf]
      %v796 = vld [vmem:[%s192 + $0x10] sm:$0xf]
      %v797 = vld [vmem:[%s192 + $0x14] sm:$0xf]
      %v798 = vld [vmem:[%s192 + $0x18] sm:$0xf]
      %v799 = vld [vmem:[%s192 + $0x1c] sm:$0xf]
      %v800 = vld [vmem:[%s192 + $0x20] sm:$0xf]
      %v801 = vld [vmem:[%s192 + $0x24] sm:$0xf]
      %v802 = vld [vmem:[%s192 + $0x28] sm:$0xf]
      %v803 = vld [vmem:[%s192 + $0x2c] sm:$0xf]
      %v804 = vld [vmem:[%s192 + $0x30] sm:$0xf]
      %v805 = vmax.bf16 %v793, 0
      %v806 = vmax.bf16 %v794, 0
      %v807 = vmax.bf16 %v795, 0
      %v808 = vmax.bf16 %v796, 0
      %v809 = vmax.bf16 %v797, 0
      %v810 = vmax.bf16 %v798, 0
      %v811 = vmax.bf16 %v799, 0
      %v812 = vmax.bf16 %v800, 0
      %v813 = vmax.bf16 %v801, 0
      %v814 = vmax.bf16 %v802, 0
      %v815 = vmax.bf16 %v803, 0
      %v816 = vmax.bf16 %v804, 0
      %s817 = scalar_lea.vmem %s1, 192
      %v818 = vld [vmem:[%s817] sm:$0xf]
      %v819 = vld [vmem:[%s817 + $0x4] sm:$0xf]
      %v820 = vld [vmem:[%s817 + $0x8] sm:$0xf]
      %v821 = vld [vmem:[%s817 + $0xc] sm:$0xf]
      %v822 = vld [vmem:[%s817 + $0x10] sm:$0xf]
      %v823 = vld [vmem:[%s817 + $0x14] sm:$0xf]
      %v824 = vld [vmem:[%s817 + $0x18] sm:$0xf]
      %v825 = vld [vmem:[%s817 + $0x1c] sm:$0xf]
      %v826 = vld [vmem:[%s817 + $0x20] sm:$0xf]
      %v827 = vld [vmem:[%s817 + $0x24] sm:$0xf]
      %v828 = vld [vmem:[%s817 + $0x28] sm:$0xf]
      %v829 = vld [vmem:[%s817 + $0x2c] sm:$0xf]
      %v830 = vld [vmem:[%s817 + $0x30] sm:$0xf]
      %v831 = vld [vmem:[%s817 + $0x34] sm:$0xf]
      %v832 = vld [vmem:[%s817 + $0x38] sm:$0xf]
      %v833 = vld [vmem:[%s817 + $0x3c] sm:$0xf]
      %v846 = vunpack.c.l.b16 %v805
      %v847 = vunpack.c.l.b16 %v806
      %v848 = vunpack.c.l.b16 %v807
      %v849 = vunpack.c.l.b16 %v808
      %v850 = vunpack.c.l.b16 %v809
      %v851 = vunpack.c.l.b16 %v810
      %v852 = vunpack.c.l.b16 %v811
      %v853 = vunpack.c.l.b16 %v812
      %v854 = vunpack.c.l.b16 %v813
      %v855 = vunpack.c.l.b16 %v814
      %v856 = vunpack.c.l.b16 %v815
      %v857 = vunpack.c.l.b16 %v816
      %v858 = vpack.c.b16 %v847, %v846
      %v859 = vpack.c.b16 %v849, %v848
      %v860 = vpack.c.b16 %v851, %v850
      %v861 = vpack.c.b16 %v853, %v852
      %v862 = vpack.c.b16 %v855, %v854
      %v863 = vpack.c.b16 %v857, %v856
      %v865 = vshrl.u32 %v858, 16
      %v867 = vrot.slane %v865, 3
      %v868 = vshll.u32 %v858, 16
      %v870 = vrot.slane %v868, 4
      %v871 = vor.u32 %v867, %v870
      %v873 = vshrl.u32 %v859, 16
      %v875 = vrot.slane %v873, 3
      %v876 = vshll.u32 %v859, 16
      %v878 = vrot.slane %v876, 4
      %v879 = vor.u32 %v875, %v878
      %v880 = vsel %vm288, %v871, %v879
      %v882 = vshrl.u32 %v860, 16
      %v884 = vrot.slane %v882, 3
      %v885 = vshll.u32 %v860, 16
      %v887 = vrot.slane %v885, 4
      %v888 = vor.u32 %v884, %v887
      %v889 = vsel %vm288, %v879, %v888
      %v891 = vshrl.u32 %v861, 16
      %v893 = vrot.slane %v891, 3
      %v894 = vshll.u32 %v861, 16
      %v896 = vrot.slane %v894, 4
      %v897 = vor.u32 %v893, %v896
      %v898 = vsel %vm288, %v888, %v897
      %v900 = vshrl.u32 %v862, 16
      %v902 = vrot.slane %v900, 3
      %v903 = vshll.u32 %v862, 16
      %v905 = vrot.slane %v903, 4
      %v906 = vor.u32 %v902, %v905
      %v907 = vsel %vm288, %v897, %v906
      %v909 = vshrl.u32 %v863, 16
      %v911 = vrot.slane %v909, 3
      %v912 = vshll.u32 %v863, 16
      %v914 = vrot.slane %v912, 4
      %v915 = vor.u32 %v911, %v914
      %v916 = vsel %vm288, %v906, %v915
      %v939 = vunpack.c.l.b16 %v818
      %v940 = vunpack.c.l.b16 %v819
      %v941 = vunpack.c.l.b16 %v820
      %v942 = vunpack.c.l.b16 %v821
      %v943 = vunpack.c.l.b16 %v822
      %v944 = vunpack.c.l.b16 %v823
      %v945 = vunpack.c.l.b16 %v824
      %v946 = vunpack.c.l.b16 %v825
      %v947 = vunpack.c.l.b16 %v826
      %v948 = vunpack.c.l.b16 %v827
      %v949 = vunpack.c.l.b16 %v828
      %v950 = vunpack.c.l.b16 %v829
      %v951 = vunpack.c.l.b16 %v830
      %v952 = vunpack.c.l.b16 %v831
      %v953 = vunpack.c.l.b16 %v832
      %v954 = vunpack.c.l.b16 %v833
      %v955 = vpack.c.b16 %v940, %v939
      %v956 = vpack.c.b16 %v942, %v941
      %v957 = vpack.c.b16 %v944, %v943
      %v958 = vpack.c.b16 %v946, %v945
      %v959 = vpack.c.b16 %v948, %v947
      %v960 = vpack.c.b16 %v950, %v949
      %v961 = vpack.c.b16 %v952, %v951
      %v962 = vpack.c.b16 %v954, %v953
      %971 = vmatprep.subr.bf16.mxu0 0
      %972 = vmatpush1.bf16.msra.mxu0 %v955
      %973 = vmatprep.subr.bf16.mxu0 0
      %974 = vmatpush1.bf16.msra.mxu0 %v956
      %975 = vmatprep.subr.bf16.mxu0 0
      %976 = vmatpush1.bf16.msra.mxu0 %v957
      %977 = vmatprep.subr.bf16.mxu0 0
      %978 = vmatpush1.bf16.msra.mxu0 %v958
      %979 = vmatprep.subr.bf16.mxu0 0
      %980 = vmatpush1.bf16.msra.mxu0 %v959
      %981 = vmatprep.subr.bf16.mxu0 0
      %982 = vmatpush1.bf16.msra.mxu0 %v960
      %983 = vmatprep.subr.bf16.mxu0 0
      %984 = vmatpush1.bf16.msra.mxu0 %v961
      %985 = vmatprep.subr.bf16.mxu0 0
      %986 = vmatpush1.bf16.msra.mxu0 %v962
      %987 = vmatprep.subr.bf16.mxu0 0
      %988 = vmatpush1.bf16.msra.mxu0 0
      %989 = vmatprep.subr.bf16.mxu0 0
      %990 = vmatpush1.bf16.msra.mxu0 0
      %991 = vmatprep.subr.bf16.mxu0 0
      %992 = vmatpush1.bf16.msra.mxu0 0
      %993 = vmatprep.subr.bf16.mxu0 0
      %994 = vmatpush1.bf16.msra.mxu0 0
      %995 = vmatprep.subr.bf16.mxu0 0
      %996 = vmatpush1.bf16.msra.mxu0 0
      %997 = vmatprep.subr.bf16.mxu0 0
      %998 = vmatpush1.bf16.msra.mxu0 0
      %999 = vmatprep.subr.bf16.mxu0 0
      %1000 = vmatpush1.bf16.msra.mxu0 0
      %1001 = vmatprep.subr.bf16.mxu0 0
      %1002 = vmatpush1.bf16.msra.mxu0 0
      %1003 = vmatprep.mubr.bf16.mxu0 0
      %1004 = vmatmul.mubr.bf16.gmra.mrb[0].mxu0 %v880
      %v1005 = vpop.f32.mrb[0].mxu0
      %v1006 = vadd.f32 0.0, %v1005
      %v1007 = vpop.f32.mrb[0].mxu0
      %v1008 = vpop.f32.mrb[0].mxu0
      %v1009 = vadd.f32 0.0, %v1008
      %v1010 = vpop.f32.mrb[0].mxu0
      %1011 = vmatprep.mubr.bf16.mxu0 0
      %1012 = vmatmul.mubr.bf16.gmra.mrb[0].mxu0 %v889
      %v1013 = vpop.f32.mrb[0].mxu0
      %v1014 = vadd.f32 0.0, %v1013
      %v1015 = vpop.f32.mrb[0].mxu0
      %v1016 = vpop.f32.mrb[0].mxu0
      %v1017 = vadd.f32 0.0, %v1016
      %v1018 = vpop.f32.mrb[0].mxu0
      %1019 = vmatprep.mubr.bf16.mxu0 0
      %1020 = vmatmul.mubr.bf16.gmra.mrb[0].mxu0 %v898
      %v1021 = vpop.f32.mrb[0].mxu0
      %v1022 = vadd.f32 0.0, %v1021
      %v1023 = vpop.f32.mrb[0].mxu0
      %v1024 = vpop.f32.mrb[0].mxu0
      %v1025 = vadd.f32 0.0, %v1024
      %v1026 = vpop.f32.mrb[0].mxu0
      %1027 = vmatprep.mubr.bf16.mxu0 0
      %1028 = vmatmul.mubr.bf16.gmra.mrb[0].mxu0 %v907
      %v1029 = vpop.f32.mrb[0].mxu0
      %v1030 = vadd.f32 0.0, %v1029
      %v1031 = vpop.f32.mrb[0].mxu0
      %v1032 = vpop.f32.mrb[0].mxu0
      %v1033 = vadd.f32 0.0, %v1032
      %v1034 = vpop.f32.mrb[0].mxu0
      %1035 = vmatprep.mubr.bf16.mxu0 0
      %1036 = vmatmul.mubr.bf16.gmra.mrb[0].mxu0 %v916
      %v1037 = vpop.f32.mrb[0].mxu0
      %v1038 = vadd.f32 0.0, %v1037
      %v1039 = vpop.f32.mrb[0].mxu0
      %v1040 = vpop.f32.mrb[0].mxu0
      %v1041 = vadd.f32 0.0, %v1040
      %v1042 = vpop.f32.mrb[0].mxu0
      %1043 = vmatprep.mubr.bf16.mxu0 0
      %1044 = vmatmul.mubr.bf16.gmra.mrb[0].mxu0 %v915
      %v1045 = vpop.f32.mrb[0].mxu0
      %v1046 = vadd.f32 0.0, %v1045
      %v1047 = vpop.f32.mrb[0].mxu0
      %v1048 = vpop.f32.mrb[0].mxu0
      %v1049 = vpop.f32.mrb[0].mxu0
      %1050 = vdwg.mxu0
      %v1051 = vadd.f32 %v782, %v1006
      %v1052 = vadd.f32 %v783, %v1009
      %v1053 = vadd.f32 %v784, %v1014
      %v1054 = vadd.f32 %v785, %v1017
      %v1055 = vadd.f32 %v786, %v1022
      %v1056 = vadd.f32 %v787, %v1025
      %v1057 = vadd.f32 %v788, %v1030
      %v1058 = vadd.f32 %v789, %v1033
      %v1059 = vadd.f32 %v790, %v1038
      %v1060 = vadd.f32 %v791, %v1041
      %v1061 = vadd.f32 %v792, %v1046
      %s1062 = scalar_lea.vmem %s1, 256
      %v1063 = vld [vmem:[%s1062] sm:$0xf]
      %v1064 = vld [vmem:[%s1062 + $0x4] sm:$0xf]
      %v1065 = vld [vmem:[%s1062 + $0x8] sm:$0xf]
      %v1066 = vld [vmem:[%s1062 + $0xc] sm:$0xf]
      %v1067 = vld [vmem:[%s1062 + $0x10] sm:$0xf]
      %v1068 = vld [vmem:[%s1062 + $0x14] sm:$0xf]
      %v1069 = vld [vmem:[%s1062 + $0x18] sm:$0xf]
      %v1070 = vld [vmem:[%s1062 + $0x1c] sm:$0xf]
      %v1071 = vld [vmem:[%s1062 + $0x20] sm:$0xf]
      %v1072 = vld [vmem:[%s1062 + $0x24] sm:$0xf]
      %v1073 = vld [vmem:[%s1062 + $0x28] sm:$0xf]
      %v1074 = vld [vmem:[%s1062 + $0x2c] sm:$0xf]
      %v1075 = vld [vmem:[%s1062 + $0x30] sm:$0xf]
      %v1076 = vld [vmem:[%s1062 + $0x34] sm:$0xf]
      %v1077 = vld [vmem:[%s1062 + $0x38] sm:$0xf]
      %v1078 = vld [vmem:[%s1062 + $0x3c] sm:$0xf]
      %v1079 = vpack.c.b16 %v848, %v847
      %v1080 = vpack.c.b16 %v850, %v849
      %v1081 = vpack.c.b16 %v852, %v851
      %v1082 = vpack.c.b16 %v854, %v853
      %v1083 = vpack.c.b16 %v856, %v855
      %v1084 = vpack.c.b16 %v857, %v857
      %v1107 = vunpack.c.l.b16 %v1063
      %v1108 = vunpack.c.l.b16 %v1064
      %v1109 = vunpack.c.l.b16 %v1065
      %v1110 = vunpack.c.l.b16 %v1066
      %v1111 = vunpack.c.l.b16 %v1067
      %v1112 = vunpack.c.l.b16 %v1068
      %v1113 = vunpack.c.l.b16 %v1069
      %v1114 = vunpack.c.l.b16 %v1070
      %v1115 = vunpack.c.l.b16 %v1071
      %v1116 = vunpack.c.l.b16 %v1072
      %v1117 = vunpack.c.l.b16 %v1073
      %v1118 = vunpack.c.l.b16 %v1074
      %v1119 = vunpack.c.l.b16 %v1075
      %v1120 = vunpack.c.l.b16 %v1076
      %v1121 = vunpack.c.l.b16 %v1077
      %v1122 = vunpack.c.l.b16 %v1078
      %v1123 = vpack.c.b16 %v1108, %v1107
      %v1124 = vpack.c.b16 %v1110, %v1109
      %v1125 = vpack.c.b16 %v1112, %v1111
      %v1126 = vpack.c.b16 %v1114, %v1113
      %v1127 = vpack.c.b16 %v1116, %v1115
      %v1128 = vpack.c.b16 %v1118, %v1117
      %v1129 = vpack.c.b16 %v1120, %v1119
      %v1130 = vpack.c.b16 %v1122, %v1121
      %1139 = vmatprep.subr.bf16.mxu0 0
      %1140 = vmatpush1.bf16.msra.mxu0 %v1123
      %1141 = vmatprep.subr.bf16.mxu0 0
      %1142 = vmatpush1.bf16.msra.mxu0 %v1124
      %1143 = vmatprep.subr.bf16.mxu0 0
      %1144 = vmatpush1.bf16.msra.mxu0 %v1125
      %1145 = vmatprep.subr.bf16.mxu0 0
      %1146 = vmatpush1.bf16.msra.mxu0 %v1126
      %1147 = vmatprep.subr.bf16.mxu0 0
      %1148 = vmatpush1.bf16.msra.mxu0 %v1127
      %1149 = vmatprep.subr.bf16.mxu0 0
      %1150 = vmatpush1.bf16.msra.mxu0 %v1128
      %1151 = vmatprep.subr.bf16.mxu0 0
      %1152 = vmatpush1.bf16.msra.mxu0 %v1129
      %1153 = vmatprep.subr.bf16.mxu0 0
      %1154 = vmatpush1.bf16.msra.mxu0 %v1130
      %1155 = vmatprep.subr.bf16.mxu0 0
      %1156 = vmatpush1.bf16.msra.mxu0 0
      %1157 = vmatprep.subr.bf16.mxu0 0
      %1158 = vmatpush1.bf16.msra.mxu0 0
      %1159 = vmatprep.subr.bf16.mxu0 0
      %1160 = vmatpush1.bf16.msra.mxu0 0
      %1161 = vmatprep.subr.bf16.mxu0 0
      %1162 = vmatpush1.bf16.msra.mxu0 0
      %1163 = vmatprep.subr.bf16.mxu0 0
      %1164 = vmatpush1.bf16.msra.mxu0 0
      %1165 = vmatprep.subr.bf16.mxu0 0
      %1166 = vmatpush1.bf16.msra.mxu0 0
      %1167 = vmatprep.subr.bf16.mxu0 0
      %1168 = vmatpush1.bf16.msra.mxu0 0
      %1169 = vmatprep.subr.bf16.mxu0 0
      %1170 = vmatpush1.bf16.msra.mxu0 0
      %1171 = vmatprep.mubr.bf16.mxu0 0
      %1172 = vmatmul.mubr.bf16.gmra.mrb[0].mxu0 %v1079
      %v1173 = vpop.f32.mrb[0].mxu0
      %v1174 = vadd.f32 0.0, %v1173
      %v1175 = vpop.f32.mrb[0].mxu0
      %v1176 = vpop.f32.mrb[0].mxu0
      %v1177 = vadd.f32 0.0, %v1176
      %v1178 = vpop.f32.mrb[0].mxu0
      %1179 = vmatprep.mubr.bf16.mxu0 0
      %1180 = vmatmul.mubr.bf16.gmra.mrb[0].mxu0 %v1080
      %v1181 = vpop.f32.mrb[0].mxu0
      %v1182 = vadd.f32 0.0, %v1181
      %v1183 = vpop.f32.mrb[0].mxu0
      %v1184 = vpop.f32.mrb[0].mxu0
      %v1185 = vadd.f32 0.0, %v1184
      %v1186 = vpop.f32.mrb[0].mxu0
      %1187 = vmatprep.mubr.bf16.mxu0 0
      %1188 = vmatmul.mubr.bf16.gmra.mrb[0].mxu0 %v1081
      %v1189 = vpop.f32.mrb[0].mxu0
      %v1190 = vadd.f32 0.0, %v1189
      %v1191 = vpop.f32.mrb[0].mxu0
      %v1192 = vpop.f32.mrb[0].mxu0
      %v1193 = vadd.f32 0.0, %v1192
      %v1194 = vpop.f32.mrb[0].mxu0
      %1195 = vmatprep.mubr.bf16.mxu0 0
      %1196 = vmatmul.mubr.bf16.gmra.mrb[0].mxu0 %v1082
      %v1197 = vpop.f32.mrb[0].mxu0
      %v1198 = vadd.f32 0.0, %v1197
      %v1199 = vpop.f32.mrb[0].mxu0
      %v1200 = vpop.f32.mrb[0].mxu0
      %v1201 = vadd.f32 0.0, %v1200
      %v1202 = vpop.f32.mrb[0].mxu0
      %1203 = vmatprep.mubr.bf16.mxu0 0
      %1204 = vmatmul.mubr.bf16.gmra.mrb[0].mxu0 %v1083
      %v1205 = vpop.f32.mrb[0].mxu0
      %v1206 = vadd.f32 0.0, %v1205
      %v1207 = vpop.f32.mrb[0].mxu0
      %v1208 = vpop.f32.mrb[0].mxu0
      %v1209 = vadd.f32 0.0, %v1208
      %v1210 = vpop.f32.mrb[0].mxu0
      %1211 = vmatprep.mubr.bf16.mxu0 0
      %1212 = vmatmul.mubr.bf16.gmra.mrb[0].mxu0 %v1084
      %v1213 = vpop.f32.mrb[0].mxu0
      %v1214 = vadd.f32 0.0, %v1213
      %v1215 = vpop.f32.mrb[0].mxu0
      %v1216 = vpop.f32.mrb[0].mxu0
      %v1217 = vpop.f32.mrb[0].mxu0
      %1218 = vdwg.mxu0
      %v1219 = vadd.f32 %v1051, %v1174
      %v1220 = vadd.f32 %v1052, %v1177
      %v1221 = vadd.f32 %v1053, %v1182
      %v1222 = vadd.f32 %v1054, %v1185
      %v1223 = vadd.f32 %v1055, %v1190
      %v1224 = vadd.f32 %v1056, %v1193
      %v1225 = vadd.f32 %v1057, %v1198
      %v1226 = vadd.f32 %v1058, %v1201
      %v1227 = vadd.f32 %v1059, %v1206
      %v1228 = vadd.f32 %v1060, %v1209
      %v1229 = vadd.f32 %v1061, %v1214
      %v1230 = vld [vmem:[%s192 + $0x8] sm:$0xf]
      %v1231 = vld [vmem:[%s192 + $0xc] sm:$0xf]
      %v1232 = vld [vmem:[%s192 + $0x10] sm:$0xf]
      %v1233 = vld [vmem:[%s192 + $0x14] sm:$0xf]
      %v1234 = vld [vmem:[%s192 + $0x18] sm:$0xf]
      %v1235 = vld [vmem:[%s192 + $0x1c] sm:$0xf]
      %v1236 = vld [vmem:[%s192 + $0x20] sm:$0xf]
      %v1237 = vld [vmem:[%s192 + $0x24] sm:$0xf]
      %v1238 = vld [vmem:[%s192 + $0x28] sm:$0xf]
      %v1239 = vld [vmem:[%s192 + $0x2c] sm:$0xf]
      %v1240 = vld [vmem:[%s192 + $0x30] sm:$0xf]
      %v1241 = vld [vmem:[%s192 + $0x34] sm:$0x1]
      %v1242 = vmax.bf16 %v1230, 0
      %v1243 = vmax.bf16 %v1231, 0
      %v1244 = vmax.bf16 %v1232, 0
      %v1245 = vmax.bf16 %v1233, 0
      %v1246 = vmax.bf16 %v1234, 0
      %v1247 = vmax.bf16 %v1235, 0
      %v1248 = vmax.bf16 %v1236, 0
      %v1249 = vmax.bf16 %v1237, 0
      %v1250 = vmax.bf16 %v1238, 0
      %v1251 = vmax.bf16 %v1239, 0
      %v1252 = vmax.bf16 %v1240, 0
      %v1253 = vmax.bf16 %v1241, 0
      %s1254 = scalar_lea.vmem %s1, 320
      %v1255 = vld [vmem:[%s1254] sm:$0xf]
      %v1256 = vld [vmem:[%s1254 + $0x4] sm:$0xf]
      %v1257 = vld [vmem:[%s1254 + $0x8] sm:$0xf]
      %v1258 = vld [vmem:[%s1254 + $0xc] sm:$0xf]
      %v1259 = vld [vmem:[%s1254 + $0x10] sm:$0xf]
      %v1260 = vld [vmem:[%s1254 + $0x14] sm:$0xf]
      %v1261 = vld [vmem:[%s1254 + $0x18] sm:$0xf]
      %v1262 = vld [vmem:[%s1254 + $0x1c] sm:$0xf]
      %v1263 = vld [vmem:[%s1254 + $0x20] sm:$0xf]
      %v1264 = vld [vmem:[%s1254 + $0x24] sm:$0xf]
      %v1265 = vld [vmem:[%s1254 + $0x28] sm:$0xf]
      %v1266 = vld [vmem:[%s1254 + $0x2c] sm:$0xf]
      %v1267 = vld [vmem:[%s1254 + $0x30] sm:$0xf]
      %v1268 = vld [vmem:[%s1254 + $0x34] sm:$0xf]
      %v1269 = vld [vmem:[%s1254 + $0x38] sm:$0xf]
      %v1270 = vld [vmem:[%s1254 + $0x3c] sm:$0xf]
      %v1283 = vunpack.c.l.b16 %v1242
      %v1284 = vunpack.c.l.b16 %v1243
      %v1285 = vunpack.c.l.b16 %v1244
      %v1286 = vunpack.c.l.b16 %v1245
      %v1287 = vunpack.c.l.b16 %v1246
      %v1288 = vunpack.c.l.b16 %v1247
      %v1289 = vunpack.c.l.b16 %v1248
      %v1290 = vunpack.c.l.b16 %v1249
      %v1291 = vunpack.c.l.b16 %v1250
      %v1292 = vunpack.c.l.b16 %v1251
      %v1293 = vunpack.c.l.b16 %v1252
      %v1294 = vunpack.c.l.b16 %v1253
      %v1295 = vpack.c.b16 %v1284, %v1283
      %v1296 = vpack.c.b16 %v1286, %v1285
      %v1297 = vpack.c.b16 %v1288, %v1287
      %v1298 = vpack.c.b16 %v1290, %v1289
      %v1299 = vpack.c.b16 %v1292, %v1291
      %v1300 = vpack.c.b16 %v1294, %v1293
      %vm1301 = vsmask.f32 7424
      %v1303 = vshrl.u32 %v1295, 16
      %v1305 = vshll.u32 %v1295, 16
      %v1307 = vrot.slane %v1305, 1
      %v1308 = vor.u32 %v1303, %v1307
      %v1310 = vshll.u32 %v1296, 16
      %v1312 = vrot.slane %v1310, 1
      %v1313 = vsel %vm1301, %v1308, %v1312
      %v1314 = vshrl.u32 %v1296, 16
      %v1316 = vor.u32 %v1314, %v1312
      %v1318 = vshll.u32 %v1297, 16
      %v1320 = vrot.slane %v1318, 1
      %v1321 = vsel %vm1301, %v1316, %v1320
      %v1322 = vshrl.u32 %v1297, 16
      %v1324 = vor.u32 %v1322, %v1320
      %v1326 = vshll.u32 %v1298, 16
      %v1328 = vrot.slane %v1326, 1
      %v1329 = vsel %vm1301, %v1324, %v1328
      %v1330 = vshrl.u32 %v1298, 16
      %v1332 = vor.u32 %v1330, %v1328
      %v1334 = vshll.u32 %v1299, 16
      %v1336 = vrot.slane %v1334, 1
      %v1337 = vsel %vm1301, %v1332, %v1336
      %v1338 = vshrl.u32 %v1299, 16
      %v1340 = vor.u32 %v1338, %v1336
      %v1342 = vshll.u32 %v1300, 16
      %v1344 = vrot.slane %v1342, 1
      %v1345 = vsel %vm1301, %v1340, %v1344
      %v1346 = vshrl.u32 %v1300, 16
      %v1348 = vor.u32 %v1346, %v1344
      %v1371 = vunpack.c.l.b16 %v1255
      %v1372 = vunpack.c.l.b16 %v1256
      %v1373 = vunpack.c.l.b16 %v1257
      %v1374 = vunpack.c.l.b16 %v1258
      %v1375 = vunpack.c.l.b16 %v1259
      %v1376 = vunpack.c.l.b16 %v1260
      %v1377 = vunpack.c.l.b16 %v1261
      %v1378 = vunpack.c.l.b16 %v1262
      %v1379 = vunpack.c.l.b16 %v1263
      %v1380 = vunpack.c.l.b16 %v1264
      %v1381 = vunpack.c.l.b16 %v1265
      %v1382 = vunpack.c.l.b16 %v1266
      %v1383 = vunpack.c.l.b16 %v1267
      %v1384 = vunpack.c.l.b16 %v1268
      %v1385 = vunpack.c.l.b16 %v1269
      %v1386 = vunpack.c.l.b16 %v1270
      %v1387 = vpack.c.b16 %v1372, %v1371
      %v1388 = vpack.c.b16 %v1374, %v1373
      %v1389 = vpack.c.b16 %v1376, %v1375
      %v1390 = vpack.c.b16 %v1378, %v1377
      %v1391 = vpack.c.b16 %v1380, %v1379
      %v1392 = vpack.c.b16 %v1382, %v1381
      %v1393 = vpack.c.b16 %v1384, %v1383
      %v1394 = vpack.c.b16 %v1386, %v1385
      %1403 = vmatprep.subr.bf16.mxu0 0
      %1404 = vmatpush1.bf16.msra.mxu0 %v1387
      %1405 = vmatprep.subr.bf16.mxu0 0
      %1406 = vmatpush1.bf16.msra.mxu0 %v1388
      %1407 = vmatprep.subr.bf16.mxu0 0
      %1408 = vmatpush1.bf16.msra.mxu0 %v1389
      %1409 = vmatprep.subr.bf16.mxu0 0
      %1410 = vmatpush1.bf16.msra.mxu0 %v1390
      %1411 = vmatprep.subr.bf16.mxu0 0
      %1412 = vmatpush1.bf16.msra.mxu0 %v1391
      %1413 = vmatprep.subr.bf16.mxu0 0
      %1414 = vmatpush1.bf16.msra.mxu0 %v1392
      %1415 = vmatprep.subr.bf16.mxu0 0
      %1416 = vmatpush1.bf16.msra.mxu0 %v1393
      %1417 = vmatprep.subr.bf16.mxu0 0
      %1418 = vmatpush1.bf16.msra.mxu0 %v1394
      %1419 = vmatprep.subr.bf16.mxu0 0
      %1420 = vmatpush1.bf16.msra.mxu0 0
      %1421 = vmatprep.subr.bf16.mxu0 0
      %1422 = vmatpush1.bf16.msra.mxu0 0
      %1423 = vmatprep.subr.bf16.mxu0 0
      %1424 = vmatpush1.bf16.msra.mxu0 0
      %1425 = vmatprep.subr.bf16.mxu0 0
      %1426 = vmatpush1.bf16.msra.mxu0 0
      %1427 = vmatprep.subr.bf16.mxu0 0
      %1428 = vmatpush1.bf16.msra.mxu0 0
      %1429 = vmatprep.subr.bf16.mxu0 0
      %1430 = vmatpush1.bf16.msra.mxu0 0
      %1431 = vmatprep.subr.bf16.mxu0 0
      %1432 = vmatpush1.bf16.msra.mxu0 0
      %1433 = vmatprep.subr.bf16.mxu0 0
      %1434 = vmatpush1.bf16.msra.mxu0 0
      %1435 = vmatprep.mubr.bf16.mxu0 0
      %1436 = vmatmul.mubr.bf16.gmra.mrb[0].mxu0 %v1313
      %v1437 = vpop.f32.mrb[0].mxu0
      %v1438 = vadd.f32 0.0, %v1437
      %v1439 = vpop.f32.mrb[0].mxu0
      %v1440 = vpop.f32.mrb[0].mxu0
      %v1441 = vadd.f32 0.0, %v1440
      %v1442 = vpop.f32.mrb[0].mxu0
      %1443 = vmatprep.mubr.bf16.mxu0 0
      %1444 = vmatmul.mubr.bf16.gmra.mrb[0].mxu0 %v1321
      %v1445 = vpop.f32.mrb[0].mxu0
      %v1446 = vadd.f32 0.0, %v1445
      %v1447 = vpop.f32.mrb[0].mxu0
      %v1448 = vpop.f32.mrb[0].mxu0
      %v1449 = vadd.f32 0.0, %v1448
      %v1450 = vpop.f32.mrb[0].mxu0
      %1451 = vmatprep.mubr.bf16.mxu0 0
      %1452 = vmatmul.mubr.bf16.gmra.mrb[0].mxu0 %v1329
      %v1453 = vpop.f32.mrb[0].mxu0
      %v1454 = vadd.f32 0.0, %v1453
      %v1455 = vpop.f32.mrb[0].mxu0
      %v1456 = vpop.f32.mrb[0].mxu0
      %v1457 = vadd.f32 0.0, %v1456
      %v1458 = vpop.f32.mrb[0].mxu0
      %1459 = vmatprep.mubr.bf16.mxu0 0
      %1460 = vmatmul.mubr.bf16.gmra.mrb[0].mxu0 %v1337
      %v1461 = vpop.f32.mrb[0].mxu0
      %v1462 = vadd.f32 0.0, %v1461
      %v1463 = vpop.f32.mrb[0].mxu0
      %v1464 = vpop.f32.mrb[0].mxu0
      %v1465 = vadd.f32 0.0, %v1464
      %v1466 = vpop.f32.mrb[0].mxu0
      %1467 = vmatprep.mubr.bf16.mxu0 0
      %1468 = vmatmul.mubr.bf16.gmra.mrb[0].mxu0 %v1345
      %v1469 = vpop.f32.mrb[0].mxu0
      %v1470 = vadd.f32 0.0, %v1469
      %v1471 = vpop.f32.mrb[0].mxu0
      %v1472 = vpop.f32.mrb[0].mxu0
      %v1473 = vadd.f32 0.0, %v1472
      %v1474 = vpop.f32.mrb[0].mxu0
      %1475 = vmatprep.mubr.bf16.mxu0 0
      %1476 = vmatmul.mubr.bf16.gmra.mrb[0].mxu0 %v1348
      %v1477 = vpop.f32.mrb[0].mxu0
      %v1478 = vadd.f32 0.0, %v1477
      %v1479 = vpop.f32.mrb[0].mxu0
      %v1480 = vpop.f32.mrb[0].mxu0
      %v1481 = vpop.f32.mrb[0].mxu0
      %1482 = vdwg.mxu0
      %v1483 = vadd.f32 %v1219, %v1438
      %v1484 = vadd.f32 %v1220, %v1441
      %v1485 = vadd.f32 %v1221, %v1446
      %v1486 = vadd.f32 %v1222, %v1449
      %v1487 = vadd.f32 %v1223, %v1454
      %v1488 = vadd.f32 %v1224, %v1457
      %v1489 = vadd.f32 %v1225, %v1462
      %v1490 = vadd.f32 %v1226, %v1465
      %v1491 = vadd.f32 %v1227, %v1470
      %v1492 = vadd.f32 %v1228, %v1473
      %v1493 = vadd.f32 %v1229, %v1478
      %v1494 = vld [vmem:[%s192 + $0x34] sm:$0xf]
      %v1495 = vmax.bf16 %v1494, 0
      %s1496 = scalar_lea.vmem %s1, 384
      %v1497 = vld [vmem:[%s1496] sm:$0xf]
      %v1498 = vld [vmem:[%s1496 + $0x4] sm:$0xf]
      %v1499 = vld [vmem:[%s1496 + $0x8] sm:$0xf]
      %v1500 = vld [vmem:[%s1496 + $0xc] sm:$0xf]
      %v1501 = vld [vmem:[%s1496 + $0x10] sm:$0xf]
      %v1502 = vld [vmem:[%s1496 + $0x14] sm:$0xf]
      %v1503 = vld [vmem:[%s1496 + $0x18] sm:$0xf]
      %v1504 = vld [vmem:[%s1496 + $0x1c] sm:$0xf]
      %v1505 = vld [vmem:[%s1496 + $0x20] sm:$0xf]
      %v1506 = vld [vmem:[%s1496 + $0x24] sm:$0xf]
      %v1507 = vld [vmem:[%s1496 + $0x28] sm:$0xf]
      %v1508 = vld [vmem:[%s1496 + $0x2c] sm:$0xf]
      %v1509 = vld [vmem:[%s1496 + $0x30] sm:$0xf]
      %v1510 = vld [vmem:[%s1496 + $0x34] sm:$0xf]
      %v1511 = vld [vmem:[%s1496 + $0x38] sm:$0xf]
      %v1512 = vld [vmem:[%s1496 + $0x3c] sm:$0xf]
      %v1514 = vunpack.c.l.b16 %v1495
      %v1515 = vpack.c.b16 %v1285, %v1284
      %v1516 = vpack.c.b16 %v1287, %v1286
      %v1517 = vpack.c.b16 %v1289, %v1288
      %v1518 = vpack.c.b16 %v1291, %v1290
      %v1519 = vpack.c.b16 %v1293, %v1292
      %v1520 = vpack.c.b16 %v1514, %v1514
      %v1543 = vunpack.c.l.b16 %v1497
      %v1544 = vunpack.c.l.b16 %v1498
      %v1545 = vunpack.c.l.b16 %v1499
      %v1546 = vunpack.c.l.b16 %v1500
      %v1547 = vunpack.c.l.b16 %v1501
      %v1548 = vunpack.c.l.b16 %v1502
      %v1549 = vunpack.c.l.b16 %v1503
      %v1550 = vunpack.c.l.b16 %v1504
      %v1551 = vunpack.c.l.b16 %v1505
      %v1552 = vunpack.c.l.b16 %v1506
      %v1553 = vunpack.c.l.b16 %v1507
      %v1554 = vunpack.c.l.b16 %v1508
      %v1555 = vunpack.c.l.b16 %v1509
      %v1556 = vunpack.c.l.b16 %v1510
      %v1557 = vunpack.c.l.b16 %v1511
      %v1558 = vunpack.c.l.b16 %v1512
      %v1559 = vpack.c.b16 %v1544, %v1543
      %v1560 = vpack.c.b16 %v1546, %v1545
      %v1561 = vpack.c.b16 %v1548, %v1547
      %v1562 = vpack.c.b16 %v1550, %v1549
      %v1563 = vpack.c.b16 %v1552, %v1551
      %v1564 = vpack.c.b16 %v1554, %v1553
      %v1565 = vpack.c.b16 %v1556, %v1555
      %v1566 = vpack.c.b16 %v1558, %v1557
      %1575 = vmatprep.subr.bf16.mxu0 0
      %1576 = vmatpush1.bf16.msra.mxu0 %v1559
      %1577 = vmatprep.subr.bf16.mxu0 0
      %1578 = vmatpush1.bf16.msra.mxu0 %v1560
      %1579 = vmatprep.subr.bf16.mxu0 0
      %1580 = vmatpush1.bf16.msra.mxu0 %v1561
      %1581 = vmatprep.subr.bf16.mxu0 0
      %1582 = vmatpush1.bf16.msra.mxu0 %v1562
      %1583 = vmatprep.subr.bf16.mxu0 0
      %1584 = vmatpush1.bf16.msra.mxu0 %v1563
      %1585 = vmatprep.subr.bf16.mxu0 0
      %1586 = vmatpush1.bf16.msra.mxu0 %v1564
      %1587 = vmatprep.subr.bf16.mxu0 0
      %1588 = vmatpush1.bf16.msra.mxu0 %v1565
      %1589 = vmatprep.subr.bf16.mxu0 0
      %1590 = vmatpush1.bf16.msra.mxu0 %v1566
      %1591 = vmatprep.subr.bf16.mxu0 0
      %1592 = vmatpush1.bf16.msra.mxu0 0
      %1593 = vmatprep.subr.bf16.mxu0 0
      %1594 = vmatpush1.bf16.msra.mxu0 0
      %1595 = vmatprep.subr.bf16.mxu0 0
      %1596 = vmatpush1.bf16.msra.mxu0 0
      %1597 = vmatprep.subr.bf16.mxu0 0
      %1598 = vmatpush1.bf16.msra.mxu0 0
      %1599 = vmatprep.subr.bf16.mxu0 0
      %1600 = vmatpush1.bf16.msra.mxu0 0
      %1601 = vmatprep.subr.bf16.mxu0 0
      %1602 = vmatpush1.bf16.msra.mxu0 0
      %1603 = vmatprep.subr.bf16.mxu0 0
      %1604 = vmatpush1.bf16.msra.mxu0 0
      %1605 = vmatprep.subr.bf16.mxu0 0
      %1606 = vmatpush1.bf16.msra.mxu0 0
      %1607 = vmatprep.mubr.bf16.mxu0 0
      %1608 = vmatmul.mubr.bf16.gmra.mrb[0].mxu0 %v1515
      %v1609 = vpop.f32.mrb[0].mxu0
      %v1610 = vadd.f32 0.0, %v1609
      %v1611 = vpop.f32.mrb[0].mxu0
      %v1612 = vpop.f32.mrb[0].mxu0
      %v1613 = vadd.f32 0.0, %v1612
      %v1614 = vpop.f32.mrb[0].mxu0
      %1615 = vmatprep.mubr.bf16.mxu0 0
      %1616 = vmatmul.mubr.bf16.gmra.mrb[0].mxu0 %v1516
      %v1617 = vpop.f32.mrb[0].mxu0
      %v1618 = vadd.f32 0.0, %v1617
      %v1619 = vpop.f32.mrb[0].mxu0
      %v1620 = vpop.f32.mrb[0].mxu0
      %v1621 = vadd.f32 0.0, %v1620
      %v1622 = vpop.f32.mrb[0].mxu0
      %1623 = vmatprep.mubr.bf16.mxu0 0
      %1624 = vmatmul.mubr.bf16.gmra.mrb[0].mxu0 %v1517
      %v1625 = vpop.f32.mrb[0].mxu0
      %v1626 = vadd.f32 0.0, %v1625
      %v1627 = vpop.f32.mrb[0].mxu0
      %v1628 = vpop.f32.mrb[0].mxu0
      %v1629 = vadd.f32 0.0, %v1628
      %v1630 = vpop.f32.mrb[0].mxu0
      %1631 = vmatprep.mubr.bf16.mxu0 0
      %1632 = vmatmul.mubr.bf16.gmra.mrb[0].mxu0 %v1518
      %v1633 = vpop.f32.mrb[0].mxu0
      %v1634 = vadd.f32 0.0, %v1633
      %v1635 = vpop.f32.mrb[0].mxu0
      %v1636 = vpop.f32.mrb[0].mxu0
      %v1637 = vadd.f32 0.0, %v1636
      %v1638 = vpop.f32.mrb[0].mxu0
      %1639 = vmatprep.mubr.bf16.mxu0 0
      %1640 = vmatmul.mubr.bf16.gmra.mrb[0].mxu0 %v1519
      %v1641 = vpop.f32.mrb[0].mxu0
      %v1642 = vadd.f32 0.0, %v1641
      %v1643 = vpop.f32.mrb[0].mxu0
      %v1644 = vpop.f32.mrb[0].mxu0
      %v1645 = vadd.f32 0.0, %v1644
      %v1646 = vpop.f32.mrb[0].mxu0
      %1647 = vmatprep.mubr.bf16.mxu0 0
      %1648 = vmatmul.mubr.bf16.gmra.mrb[0].mxu0 %v1520
      %v1649 = vpop.f32.mrb[0].mxu0
      %v1650 = vadd.f32 0.0, %v1649
      %v1651 = vpop.f32.mrb[0].mxu0
      %v1652 = vpop.f32.mrb[0].mxu0
      %v1653 = vpop.f32.mrb[0].mxu0
      %1654 = vdwg.mxu0
      %v1655 = vadd.f32 %v1483, %v1610
      %v1656 = vadd.f32 %v1484, %v1613
      %v1657 = vadd.f32 %v1485, %v1618
      %v1658 = vadd.f32 %v1486, %v1621
      %v1659 = vadd.f32 %v1487, %v1626
      %v1660 = vadd.f32 %v1488, %v1629
      %v1661 = vadd.f32 %v1489, %v1634
      %v1662 = vadd.f32 %v1490, %v1637
      %v1663 = vadd.f32 %v1491, %v1642
      %v1664 = vadd.f32 %v1492, %v1645
      %v1665 = vadd.f32 %v1493, %v1650
      %v1666 = vld [vmem:[%s192 + $0xc] sm:$0xf]
      %v1667 = vld [vmem:[%s192 + $0x10] sm:$0xf]
      %v1668 = vld [vmem:[%s192 + $0x14] sm:$0xf]
      %v1669 = vld [vmem:[%s192 + $0x18] sm:$0xf]
      %v1670 = vld [vmem:[%s192 + $0x1c] sm:$0xf]
      %v1671 = vld [vmem:[%s192 + $0x20] sm:$0xf]
      %v1672 = vld [vmem:[%s192 + $0x24] sm:$0xf]
      %v1673 = vld [vmem:[%s192 + $0x28] sm:$0xf]
      %v1674 = vld [vmem:[%s192 + $0x2c] sm:$0xf]
      %v1675 = vld [vmem:[%s192 + $0x30] sm:$0xf]
      %v1676 = vld [vmem:[%s192 + $0x34] sm:$0xf]
      %v1677 = vld [vmem:[%s192 + $0x38] sm:$0x1]
      %v1678 = vmax.bf16 %v1666, 0
      %v1679 = vmax.bf16 %v1667, 0
      %v1680 = vmax.bf16 %v1668, 0
      %v1681 = vmax.bf16 %v1669, 0
      %v1682 = vmax.bf16 %v1670, 0
      %v1683 = vmax.bf16 %v1671, 0
      %v1684 = vmax.bf16 %v1672, 0
      %v1685 = vmax.bf16 %v1673, 0
      %v1686 = vmax.bf16 %v1674, 0
      %v1687 = vmax.bf16 %v1675, 0
      %v1688 = vmax.bf16 %v1676, 0
      %v1689 = vmax.bf16 %v1677, 0
      %s1690 = scalar_lea.vmem %s1, 448
      %v1691 = vld [vmem:[%s1690] sm:$0xf]
      %v1692 = vld [vmem:[%s1690 + $0x4] sm:$0xf]
      %v1693 = vld [vmem:[%s1690 + $0x8] sm:$0xf]
      %v1694 = vld [vmem:[%s1690 + $0xc] sm:$0xf]
      %v1695 = vld [vmem:[%s1690 + $0x10] sm:$0xf]
      %v1696 = vld [vmem:[%s1690 + $0x14] sm:$0xf]
      %v1697 = vld [vmem:[%s1690 + $0x18] sm:$0xf]
      %v1698 = vld [vmem:[%s1690 + $0x1c] sm:$0xf]
      %v1699 = vld [vmem:[%s1690 + $0x20] sm:$0xf]
      %v1700 = vld [vmem:[%s1690 + $0x24] sm:$0xf]
      %v1701 = vld [vmem:[%s1690 + $0x28] sm:$0xf]
      %v1702 = vld [vmem:[%s1690 + $0x2c] sm:$0xf]
      %v1703 = vld [vmem:[%s1690 + $0x30] sm:$0xf]
      %v1704 = vld [vmem:[%s1690 + $0x34] sm:$0xf]
      %v1705 = vld [vmem:[%s1690 + $0x38] sm:$0xf]
      %v1706 = vld [vmem:[%s1690 + $0x3c] sm:$0xf]
      %v1719 = vunpack.c.l.b16 %v1678
      %v1720 = vunpack.c.l.b16 %v1679
      %v1721 = vunpack.c.l.b16 %v1680
      %v1722 = vunpack.c.l.b16 %v1681
      %v1723 = vunpack.c.l.b16 %v1682
      %v1724 = vunpack.c.l.b16 %v1683
      %v1725 = vunpack.c.l.b16 %v1684
      %v1726 = vunpack.c.l.b16 %v1685
      %v1727 = vunpack.c.l.b16 %v1686
      %v1728 = vunpack.c.l.b16 %v1687
      %v1729 = vunpack.c.l.b16 %v1688
      %v1730 = vunpack.c.l.b16 %v1689
      %v1731 = vpack.c.b16 %v1720, %v1719
      %v1732 = vpack.c.b16 %v1722, %v1721
      %v1733 = vpack.c.b16 %v1724, %v1723
      %v1734 = vpack.c.b16 %v1726, %v1725
      %v1735 = vpack.c.b16 %v1728, %v1727
      %v1736 = vpack.c.b16 %v1730, %v1729
      %v1738 = vshrl.u32 %v1731, 16
      %v1740 = vshll.u32 %v1731, 16
      %v1742 = vrot.slane %v1740, 1
      %v1743 = vor.u32 %v1738, %v1742
      %v1745 = vshll.u32 %v1732, 16
      %v1747 = vrot.slane %v1745, 1
      %v1748 = vsel %vm1301, %v1743, %v1747
      %v1749 = vshrl.u32 %v1732, 16
      %v1751 = vor.u32 %v1749, %v1747
      %v1753 = vshll.u32 %v1733, 16
      %v1755 = vrot.slane %v1753, 1
      %v1756 = vsel %vm1301, %v1751, %v1755
      %v1757 = vshrl.u32 %v1733, 16
      %v1759 = vor.u32 %v1757, %v1755
      %v1761 = vshll.u32 %v1734, 16
      %v1763 = vrot.slane %v1761, 1
      %v1764 = vsel %vm1301, %v1759, %v1763
      %v1765 = vshrl.u32 %v1734, 16
      %v1767 = vor.u32 %v1765, %v1763
      %v1769 = vshll.u32 %v1735, 16
      %v1771 = vrot.slane %v1769, 1
      %v1772 = vsel %vm1301, %v1767, %v1771
      %v1773 = vshrl.u32 %v1735, 16
      %v1775 = vor.u32 %v1773, %v1771
      %v1777 = vshll.u32 %v1736, 16
      %v1779 = vrot.slane %v1777, 1
      %v1780 = vsel %vm1301, %v1775, %v1779
      %v1781 = vshrl.u32 %v1736, 16
      %v1783 = vor.u32 %v1781, %v1779
      %v1806 = vunpack.c.l.b16 %v1691
      %v1807 = vunpack.c.l.b16 %v1692
      %v1808 = vunpack.c.l.b16 %v1693
      %v1809 = vunpack.c.l.b16 %v1694
      %v1810 = vunpack.c.l.b16 %v1695
      %v1811 = vunpack.c.l.b16 %v1696
      %v1812 = vunpack.c.l.b16 %v1697
      %v1813 = vunpack.c.l.b16 %v1698
      %v1814 = vunpack.c.l.b16 %v1699
      %v1815 = vunpack.c.l.b16 %v1700
      %v1816 = vunpack.c.l.b16 %v1701
      %v1817 = vunpack.c.l.b16 %v1702
      %v1818 = vunpack.c.l.b16 %v1703
      %v1819 = vunpack.c.l.b16 %v1704
      %v1820 = vunpack.c.l.b16 %v1705
      %v1821 = vunpack.c.l.b16 %v1706
      %v1822 = vpack.c.b16 %v1807, %v1806
      %v1823 = vpack.c.b16 %v1809, %v1808
      %v1824 = vpack.c.b16 %v1811, %v1810
      %v1825 = vpack.c.b16 %v1813, %v1812
      %v1826 = vpack.c.b16 %v1815, %v1814
      %v1827 = vpack.c.b16 %v1817, %v1816
      %v1828 = vpack.c.b16 %v1819, %v1818
      %v1829 = vpack.c.b16 %v1821, %v1820
      %1838 = vmatprep.subr.bf16.mxu0 0
      %1839 = vmatpush1.bf16.msra.mxu0 %v1822
      %1840 = vmatprep.subr.bf16.mxu0 0
      %1841 = vmatpush1.bf16.msra.mxu0 %v1823
      %1842 = vmatprep.subr.bf16.mxu0 0
      %1843 = vmatpush1.bf16.msra.mxu0 %v1824
      %1844 = vmatprep.subr.bf16.mxu0 0
      %1845 = vmatpush1.bf16.msra.mxu0 %v1825
      %1846 = vmatprep.subr.bf16.mxu0 0
      %1847 = vmatpush1.bf16.msra.mxu0 %v1826
      %1848 = vmatprep.subr.bf16.mxu0 0
      %1849 = vmatpush1.bf16.msra.mxu0 %v1827
      %1850 = vmatprep.subr.bf16.mxu0 0
      %1851 = vmatpush1.bf16.msra.mxu0 %v1828
      %1852 = vmatprep.subr.bf16.mxu0 0
      %1853 = vmatpush1.bf16.msra.mxu0 %v1829
      %1854 = vmatprep.subr.bf16.mxu0 0
      %1855 = vmatpush1.bf16.msra.mxu0 0
      %1856 = vmatprep.subr.bf16.mxu0 0
      %1857 = vmatpush1.bf16.msra.mxu0 0
      %1858 = vmatprep.subr.bf16.mxu0 0
      %1859 = vmatpush1.bf16.msra.mxu0 0
      %1860 = vmatprep.subr.bf16.mxu0 0
      %1861 = vmatpush1.bf16.msra.mxu0 0
      %1862 = vmatprep.subr.bf16.mxu0 0
      %1863 = vmatpush1.bf16.msra.mxu0 0
      %1864 = vmatprep.subr.bf16.mxu0 0
      %1865 = vmatpush1.bf16.msra.mxu0 0
      %1866 = vmatprep.subr.bf16.mxu0 0
      %1867 = vmatpush1.bf16.msra.mxu0 0
      %1868 = vmatprep.subr.bf16.mxu0 0
      %1869 = vmatpush1.bf16.msra.mxu0 0
      %1870 = vmatprep.mubr.bf16.mxu0 0
      %1871 = vmatmul.mubr.bf16.gmra.mrb[0].mxu0 %v1748
      %v1872 = vpop.f32.mrb[0].mxu0
      %v1873 = vadd.f32 0.0, %v1872
      %v1874 = vpop.f32.mrb[0].mxu0
      %v1875 = vpop.f32.mrb[0].mxu0
      %v1876 = vadd.f32 0.0, %v1875
      %v1877 = vpop.f32.mrb[0].mxu0
      %1878 = vmatprep.mubr.bf16.mxu0 0
      %1879 = vmatmul.mubr.bf16.gmra.mrb[0].mxu0 %v1756
      %v1880 = vpop.f32.mrb[0].mxu0
      %v1881 = vadd.f32 0.0, %v1880
      %v1882 = vpop.f32.mrb[0].mxu0
      %v1883 = vpop.f32.mrb[0].mxu0
      %v1884 = vadd.f32 0.0, %v1883
      %v1885 = vpop.f32.mrb[0].mxu0
      %1886 = vmatprep.mubr.bf16.mxu0 0
      %1887 = vmatmul.mubr.bf16.gmra.mrb[0].mxu0 %v1764
      %v1888 = vpop.f32.mrb[0].mxu0
      %v1889 = vadd.f32 0.0, %v1888
      %v1890 = vpop.f32.mrb[0].mxu0
      %v1891 = vpop.f32.mrb[0].mxu0
      %v1892 = vadd.f32 0.0, %v1891
      %v1893 = vpop.f32.mrb[0].mxu0
      %1894 = vmatprep.mubr.bf16.mxu0 0
      %1895 = vmatmul.mubr.bf16.gmra.mrb[0].mxu0 %v1772
      %v1896 = vpop.f32.mrb[0].mxu0
      %v1897 = vadd.f32 0.0, %v1896
      %v1898 = vpop.f32.mrb[0].mxu0
      %v1899 = vpop.f32.mrb[0].mxu0
      %v1900 = vadd.f32 0.0, %v1899
      %v1901 = vpop.f32.mrb[0].mxu0
      %1902 = vmatprep.mubr.bf16.mxu0 0
      %1903 = vmatmul.mubr.bf16.gmra.mrb[0].mxu0 %v1780
      %v1904 = vpop.f32.mrb[0].mxu0
      %v1905 = vadd.f32 0.0, %v1904
      %v1906 = vpop.f32.mrb[0].mxu0
      %v1907 = vpop.f32.mrb[0].mxu0
      %v1908 = vadd.f32 0.0, %v1907
      %v1909 = vpop.f32.mrb[0].mxu0
      %1910 = vmatprep.mubr.bf16.mxu0 0
      %1911 = vmatmul.mubr.bf16.gmra.mrb[0].mxu0 %v1783
      %v1912 = vpop.f32.mrb[0].mxu0
      %v1913 = vadd.f32 0.0, %v1912
      %v1914 = vpop.f32.mrb[0].mxu0
      %v1915 = vpop.f32.mrb[0].mxu0
      %v1916 = vpop.f32.mrb[0].mxu0
      %1917 = vdwg.mxu0
      %v1918 = vadd.f32 %v1655, %v1873
      %v1919 = vadd.f32 %v1656, %v1876
      %v1920 = vadd.f32 %v1657, %v1881
      %v1921 = vadd.f32 %v1658, %v1884
      %v1922 = vadd.f32 %v1659, %v1889
      %v1923 = vadd.f32 %v1660, %v1892
      %v1924 = vadd.f32 %v1661, %v1897
      %v1925 = vadd.f32 %v1662, %v1900
      %v1926 = vadd.f32 %v1663, %v1905
      %v1927 = vadd.f32 %v1664, %v1908
      %v1928 = vadd.f32 %v1665, %v1913
      %v1929 = vld [vmem:[%s192 + $0xc] sm:$0xe]
      %v1930 = vmax.bf16 %v1929, 0
      %s1931 = scalar_lea.vmem %s1, 512
      %v1932 = vld [vmem:[%s1931] sm:$0xf]
      %v1933 = vld [vmem:[%s1931 + $0x4] sm:$0xf]
      %v1934 = vld [vmem:[%s1931 + $0x8] sm:$0xf]
      %v1935 = vld [vmem:[%s1931 + $0xc] sm:$0xf]
      %v1936 = vld [vmem:[%s1931 + $0x10] sm:$0xf]
      %v1937 = vld [vmem:[%s1931 + $0x14] sm:$0xf]
      %v1938 = vld [vmem:[%s1931 + $0x18] sm:$0xf]
      %v1939 = vld [vmem:[%s1931 + $0x1c] sm:$0xf]
      %v1940 = vld [vmem:[%s1931 + $0x20] sm:$0xf]
      %v1941 = vld [vmem:[%s1931 + $0x24] sm:$0xf]
      %v1942 = vld [vmem:[%s1931 + $0x28] sm:$0xf]
      %v1943 = vld [vmem:[%s1931 + $0x2c] sm:$0xf]
      %v1944 = vld [vmem:[%s1931 + $0x30] sm:$0xf]
      %v1945 = vld [vmem:[%s1931 + $0x34] sm:$0xf]
      %v1946 = vld [vmem:[%s1931 + $0x38] sm:$0xf]
      %v1947 = vld [vmem:[%s1931 + $0x3c] sm:$0xf]
      %v1949 = vunpack.c.l.b16 %v1930
      %v1950 = vpack.c.b16 %v1720, %v1949
      %vm1951 = vcmask 1046528
      %v1952 = vrot.slane %v1950, 1
      %v1953 = vrot.slane %v1732, 1
      %v1954 = vsel %vm1951, %v1952, %v1953
      %v1955 = vrot.slane %v1733, 1
      %v1956 = vsel %vm1951, %v1953, %v1955
      %v1957 = vrot.slane %v1734, 1
      %v1958 = vsel %vm1951, %v1955, %v1957
      %v1959 = vrot.slane %v1735, 1
      %v1960 = vsel %vm1951, %v1957, %v1959
      %v1961 = vrot.slane %v1736, 1
      %v1962 = vsel %vm1951, %v1959, %v1961
      %v1985 = vunpack.c.l.b16 %v1932
      %v1986 = vunpack.c.l.b16 %v1933
      %v1987 = vunpack.c.l.b16 %v1934
      %v1988 = vunpack.c.l.b16 %v1935
      %v1989 = vunpack.c.l.b16 %v1936
      %v1990 = vunpack.c.l.b16 %v1937
      %v1991 = vunpack.c.l.b16 %v1938
      %v1992 = vunpack.c.l.b16 %v1939
      %v1993 = vunpack.c.l.b16 %v1940
      %v1994 = vunpack.c.l.b16 %v1941
      %v1995 = vunpack.c.l.b16 %v1942
      %v1996 = vunpack.c.l.b16 %v1943
      %v1997 = vunpack.c.l.b16 %v1944
      %v1998 = vunpack.c.l.b16 %v1945
      %v1999 = vunpack.c.l.b16 %v1946
      %v2000 = vunpack.c.l.b16 %v1947
      %v2001 = vpack.c.b16 %v1986, %v1985
      %v2002 = vpack.c.b16 %v1988, %v1987
      %v2003 = vpack.c.b16 %v1990, %v1989
      %v2004 = vpack.c.b16 %v1992, %v1991
      %v2005 = vpack.c.b16 %v1994, %v1993
      %v2006 = vpack.c.b16 %v1996, %v1995
      %v2007 = vpack.c.b16 %v1998, %v1997
      %v2008 = vpack.c.b16 %v2000, %v1999
      %2017 = vmatprep.subr.bf16.mxu0 0
      %2018 = vmatpush1.bf16.msra.mxu0 %v2001
      %2019 = vmatprep.subr.bf16.mxu0 0
      %2020 = vmatpush1.bf16.msra.mxu0 %v2002
      %2021 = vmatprep.subr.bf16.mxu0 0
      %2022 = vmatpush1.bf16.msra.mxu0 %v2003
      %2023 = vmatprep.subr.bf16.mxu0 0
      %2024 = vmatpush1.bf16.msra.mxu0 %v2004
      %2025 = vmatprep.subr.bf16.mxu0 0
      %2026 = vmatpush1.bf16.msra.mxu0 %v2005
      %2027 = vmatprep.subr.bf16.mxu0 0
      %2028 = vmatpush1.bf16.msra.mxu0 %v2006
      %2029 = vmatprep.subr.bf16.mxu0 0
      %2030 = vmatpush1.bf16.msra.mxu0 %v2007
      %2031 = vmatprep.subr.bf16.mxu0 0
      %2032 = vmatpush1.bf16.msra.mxu0 %v2008
      %2033 = vmatprep.subr.bf16.mxu0 0
      %2034 = vmatpush1.bf16.msra.mxu0 0
      %2035 = vmatprep.subr.bf16.mxu0 0
      %2036 = vmatpush1.bf16.msra.mxu0 0
      %2037 = vmatprep.subr.bf16.mxu0 0
      %2038 = vmatpush1.bf16.msra.mxu0 0
      %2039 = vmatprep.subr.bf16.mxu0 0
      %2040 = vmatpush1.bf16.msra.mxu0 0
      %2041 = vmatprep.subr.bf16.mxu0 0
      %2042 = vmatpush1.bf16.msra.mxu0 0
      %2043 = vmatprep.subr.bf16.mxu0 0
      %2044 = vmatpush1.bf16.msra.mxu0 0
      %2045 = vmatprep.subr.bf16.mxu0 0
      %2046 = vmatpush1.bf16.msra.mxu0 0
      %2047 = vmatprep.subr.bf16.mxu0 0
      %2048 = vmatpush1.bf16.msra.mxu0 0
      %2049 = vmatprep.mubr.bf16.mxu0 0
      %2050 = vmatmul.mubr.bf16.gmra.mrb[0].mxu0 %v1954
      %v2051 = vpop.f32.mrb[0].mxu0
      %v2052 = vadd.f32 0.0, %v2051
      %v2053 = vpop.f32.mrb[0].mxu0
      %v2054 = vpop.f32.mrb[0].mxu0
      %v2055 = vadd.f32 0.0, %v2054
      %v2056 = vpop.f32.mrb[0].mxu0
      %2057 = vmatprep.mubr.bf16.mxu0 0
      %2058 = vmatmul.mubr.bf16.gmra.mrb[0].mxu0 %v1956
      %v2059 = vpop.f32.mrb[0].mxu0
      %v2060 = vadd.f32 0.0, %v2059
      %v2061 = vpop.f32.mrb[0].mxu0
      %v2062 = vpop.f32.mrb[0].mxu0
      %v2063 = vadd.f32 0.0, %v2062
      %v2064 = vpop.f32.mrb[0].mxu0
      %2065 = vmatprep.mubr.bf16.mxu0 0
      %2066 = vmatmul.mubr.bf16.gmra.mrb[0].mxu0 %v1958
      %v2067 = vpop.f32.mrb[0].mxu0
      %v2068 = vadd.f32 0.0, %v2067
      %v2069 = vpop.f32.mrb[0].mxu0
      %v2070 = vpop.f32.mrb[0].mxu0
      %v2071 = vadd.f32 0.0, %v2070
      %v2072 = vpop.f32.mrb[0].mxu0
      %2073 = vmatprep.mubr.bf16.mxu0 0
      %2074 = vmatmul.mubr.bf16.gmra.mrb[0].mxu0 %v1960
      %v2075 = vpop.f32.mrb[0].mxu0
      %v2076 = vadd.f32 0.0, %v2075
      %v2077 = vpop.f32.mrb[0].mxu0
      %v2078 = vpop.f32.mrb[0].mxu0
      %v2079 = vadd.f32 0.0, %v2078
      %v2080 = vpop.f32.mrb[0].mxu0
      %2081 = vmatprep.mubr.bf16.mxu0 0
      %2082 = vmatmul.mubr.bf16.gmra.mrb[0].mxu0 %v1962
      %v2083 = vpop.f32.mrb[0].mxu0
      %v2084 = vadd.f32 0.0, %v2083
      %v2085 = vpop.f32.mrb[0].mxu0
      %v2086 = vpop.f32.mrb[0].mxu0
      %v2087 = vadd.f32 0.0, %v2086
      %v2088 = vpop.f32.mrb[0].mxu0
      %2089 = vmatprep.mubr.bf16.mxu0 0
      %2090 = vmatmul.mubr.bf16.gmra.mrb[0].mxu0 %v1961
      %v2091 = vpop.f32.mrb[0].mxu0
      %v2092 = vadd.f32 0.0, %v2091
      %v2093 = vpop.f32.mrb[0].mxu0
      %v2094 = vpop.f32.mrb[0].mxu0
      %v2095 = vpop.f32.mrb[0].mxu0
      %2096 = vdwg.mxu0
      %v2097 = vadd.f32 %v1918, %v2052
      %v2098 = vadd.f32 %v1919, %v2055
      %v2099 = vadd.f32 %v1920, %v2060
      %v2100 = vadd.f32 %v1921, %v2063
      %v2101 = vadd.f32 %v1922, %v2068
      %v2102 = vadd.f32 %v1923, %v2071
      %v2103 = vadd.f32 %v1924, %v2076
      %v2104 = vadd.f32 %v1925, %v2079
      %v2105 = vadd.f32 %v1926, %v2084
      %v2106 = vadd.f32 %v1927, %v2087
      %v2107 = vadd.f32 %v1928, %v2092
      %v2108 = vmax.f32 %v2097, 0.0
      %v2109 = vmax.f32 %v2098, 0.0
      %v2110 = vmax.f32 %v2099, 0.0
      %v2111 = vmax.f32 %v2100, 0.0
      %v2112 = vmax.f32 %v2101, 0.0
      %v2113 = vmax.f32 %v2102, 0.0
      %v2114 = vmax.f32 %v2103, 0.0
      %v2115 = vmax.f32 %v2104, 0.0
      %v2116 = vmax.f32 %v2105, 0.0
      %v2117 = vmax.f32 %v2106, 0.0
      %v2118 = vmax.f32 %v2107, 0.0
      %v2119 = vpack.c.bf16 %v2109, %v2108
      %v2120 = vpack.c.bf16 %v2111, %v2110
      %v2121 = vpack.c.bf16 %v2113, %v2112
      %v2122 = vpack.c.bf16 %v2115, %v2114
      %v2123 = vpack.c.bf16 %v2117, %v2116
      %v2124 = vpack.c.bf16 %v2118, %v2118
      %v2125 = vunpack.c.l.bf16 %v794
      %v2126 = vunpack.c.l.bf16 %v795
      %v2127 = vunpack.c.l.bf16 %v796
      %v2128 = vunpack.c.l.bf16 %v797
      %v2129 = vunpack.c.l.bf16 %v798
      %v2130 = vunpack.c.l.bf16 %v799
      %v2131 = vunpack.c.l.bf16 %v800
      %v2132 = vunpack.c.l.bf16 %v801
      %v2133 = vunpack.c.l.bf16 %v802
      %v2134 = vunpack.c.l.bf16 %v803
      %v2135 = vunpack.c.l.bf16 %v804
      %v2136 = vld [vmem:[%s2] sm:$0xf]
      %v2137 = vld [vmem:[%s2 + $0x4] sm:$0xf]
      %v2138 = vld [vmem:[%s2 + $0x8] sm:$0xf]
      %v2139 = vld [vmem:[%s2 + $0xc] sm:$0xf]
      %v2144 = vunpack.c.l.b16 %v2136
      %v2145 = vunpack.c.l.b16 %v2137
      %v2146 = vunpack.c.l.b16 %v2138
      %v2147 = vunpack.c.l.b16 %v2139
      %v2148 = vpack.c.b16 %v2145, %v2144
      %v2149 = vpack.c.b16 %v2147, %v2146
      %vm2152 = vcmask 261120
      %v2154 = vsel %vm2152, %v2119, 0
      %v2157 = vsel %vm2152, %v2120, 0
      %v2160 = vsel %vm2152, %v2121, 0
      %v2163 = vsel %vm2152, %v2122, 0
      %v2166 = vsel %vm2152, %v2123, 0
      %v2169 = vsel %vm2152, %v2124, 0
      %2171 = vmatprep.subr.bf16.mxu0 0
      %2172 = vmatpush1.bf16.msra.mxu0 %v2148
      %2173 = vmatprep.subr.bf16.mxu0 0
      %2174 = vmatpush1.bf16.msra.mxu0 %v2149
      %2175 = vmatprep.subr.bf16.mxu0 0
      %2176 = vmatpush1.bf16.msra.mxu0 0
      %2177 = vmatprep.subr.bf16.mxu0 0
      %2178 = vmatpush1.bf16.msra.mxu0 0
      %2179 = vmatprep.subr.bf16.mxu0 0
      %2180 = vmatpush1.bf16.msra.mxu0 0
      %2181 = vmatprep.subr.bf16.mxu0 0
      %2182 = vmatpush1.bf16.msra.mxu0 0
      %2183 = vmatprep.subr.bf16.mxu0 0
      %2184 = vmatpush1.bf16.msra.mxu0 0
      %2185 = vmatprep.subr.bf16.mxu0 0
      %2186 = vmatpush1.bf16.msra.mxu0 0
      %2187 = vmatprep.subr.bf16.mxu0 0
      %2188 = vmatpush1.bf16.msra.mxu0 0
      %2189 = vmatprep.subr.bf16.mxu0 0
      %2190 = vmatpush1.bf16.msra.mxu0 0
      %2191 = vmatprep.subr.bf16.mxu0 0
      %2192 = vmatpush1.bf16.msra.mxu0 0
      %2193 = vmatprep.subr.bf16.mxu0 0
      %2194 = vmatpush1.bf16.msra.mxu0 0
      %2195 = vmatprep.subr.bf16.mxu0 0
      %2196 = vmatpush1.bf16.msra.mxu0 0
      %2197 = vmatprep.subr.bf16.mxu0 0
      %2198 = vmatpush1.bf16.msra.mxu0 0
      %2199 = vmatprep.subr.bf16.mxu0 0
      %2200 = vmatpush1.bf16.msra.mxu0 0
      %2201 = vmatprep.subr.bf16.mxu0 0
      %2202 = vmatpush1.bf16.msra.mxu0 0
      %2203 = vmatprep.mubr.bf16.mxu0 0
      %2204 = vmatmul.mubr.bf16.gmra.mrb[0].mxu0 %v2154
      %v2205 = vpop.f32.mrb[0].mxu0
      %v2206 = vadd.f32 0.0, %v2205
      %v2207 = vpop.f32.mrb[0].mxu0
      %v2208 = vpop.f32.mrb[0].mxu0
      %v2209 = vadd.f32 0.0, %v2208
      %v2210 = vpop.f32.mrb[0].mxu0
      %2211 = vmatprep.mubr.bf16.mxu0 0
      %2212 = vmatmul.mubr.bf16.gmra.mrb[0].mxu0 %v2157
      %v2213 = vpop.f32.mrb[0].mxu0
      %v2214 = vadd.f32 0.0, %v2213
      %v2215 = vpop.f32.mrb[0].mxu0
      %v2216 = vpop.f32.mrb[0].mxu0
      %v2217 = vadd.f32 0.0, %v2216
      %v2218 = vpop.f32.mrb[0].mxu0
      %2219 = vmatprep.mubr.bf16.mxu0 0
      %2220 = vmatmul.mubr.bf16.gmra.mrb[0].mxu0 %v2160
      %v2221 = vpop.f32.mrb[0].mxu0
      %v2222 = vadd.f32 0.0, %v2221
      %v2223 = vpop.f32.mrb[0].mxu0
      %v2224 = vpop.f32.mrb[0].mxu0
      %v2225 = vadd.f32 0.0, %v2224
      %v2226 = vpop.f32.mrb[0].mxu0
      %2227 = vmatprep.mubr.bf16.mxu0 0
      %2228 = vmatmul.mubr.bf16.gmra.mrb[0].mxu0 %v2163
      %v2229 = vpop.f32.mrb[0].mxu0
      %v2230 = vadd.f32 0.0, %v2229
      %v2231 = vpop.f32.mrb[0].mxu0
      %v2232 = vpop.f32.mrb[0].mxu0
      %v2233 = vadd.f32 0.0, %v2232
      %v2234 = vpop.f32.mrb[0].mxu0
      %2235 = vmatprep.mubr.bf16.mxu0 0
      %2236 = vmatmul.mubr.bf16.gmra.mrb[0].mxu0 %v2166
      %v2237 = vpop.f32.mrb[0].mxu0
      %v2238 = vadd.f32 0.0, %v2237
      %v2239 = vpop.f32.mrb[0].mxu0
      %v2240 = vpop.f32.mrb[0].mxu0
      %v2241 = vadd.f32 0.0, %v2240
      %v2242 = vpop.f32.mrb[0].mxu0
      %2243 = vmatprep.mubr.bf16.mxu0 0
      %2244 = vmatmul.mubr.bf16.gmra.mrb[0].mxu0 %v2169
      %v2245 = vpop.f32.mrb[0].mxu0
      %v2246 = vadd.f32 0.0, %v2245
      %v2247 = vpop.f32.mrb[0].mxu0
      %v2248 = vpop.f32.mrb[0].mxu0
      %v2249 = vpop.f32.mrb[0].mxu0
      %2250 = vdwg.mxu0
      %v2251 = vadd.f32 %v2125, %v2206
      %v2252 = vadd.f32 %v2126, %v2209
      %v2253 = vadd.f32 %v2127, %v2214
      %v2254 = vadd.f32 %v2128, %v2217
      %v2255 = vadd.f32 %v2129, %v2222
      %v2256 = vadd.f32 %v2130, %v2225
      %v2257 = vadd.f32 %v2131, %v2230
      %v2258 = vadd.f32 %v2132, %v2233
      %v2259 = vadd.f32 %v2133, %v2238
      %v2260 = vadd.f32 %v2134, %v2241
      %v2261 = vadd.f32 %v2135, %v2246
      %v2262 = vld [vmem:[%s3] sm:$0xff]
      %v2263 = vld [vmem:[%s3 + $0x8] sm:$0xff]
      %v2264 = vld [vmem:[%s3 + $0x10] sm:$0xff]
      %v2265 = vld [vmem:[%s3 + $0x18] sm:$0xff]
      %v2266 = vld [vmem:[%s3 + $0x20] sm:$0xff]
      %v2267 = vld [vmem:[%s3 + $0x28] sm:$0xff]
      %v2268 = vld [vmem:[%s3 + $0x30] sm:$0xff]
      %v2269 = vld [vmem:[%s3 + $0x38] sm:$0xff]
      %v2270 = vld [vmem:[%s3 + $0x40] sm:$0xff]
      %v2271 = vld [vmem:[%s3 + $0x48] sm:$0xff]
      %v2272 = vld [vmem:[%s3 + $0x50] sm:$0xff]
      %2274 = vset.pattern.permute.xlu0 0
      %2275 = vperm.xlu0 %2274, %v2262
      %v2276 = vpop.permute.xlu0 %2275
      %2279 = vset.pattern.permute.xlu0 0
      %2280 = vperm.xlu0 %2279, %v2263
      %v2281 = vpop.permute.xlu0 %2280
      %2284 = vset.pattern.permute.xlu0 0
      %2285 = vperm.xlu0 %2284, %v2264
      %v2286 = vpop.permute.xlu0 %2285
      %2289 = vset.pattern.permute.xlu0 0
      %2290 = vperm.xlu0 %2289, %v2265
      %v2291 = vpop.permute.xlu0 %2290
      %2294 = vset.pattern.permute.xlu0 0
      %2295 = vperm.xlu0 %2294, %v2266
      %v2296 = vpop.permute.xlu0 %2295
      %2299 = vset.pattern.permute.xlu0 0
      %2300 = vperm.xlu0 %2299, %v2267
      %v2301 = vpop.permute.xlu0 %2300
      %2304 = vset.pattern.permute.xlu0 0
      %2305 = vperm.xlu0 %2304, %v2268
      %v2306 = vpop.permute.xlu0 %2305
      %2309 = vset.pattern.permute.xlu0 0
      %2310 = vperm.xlu0 %2309, %v2269
      %v2311 = vpop.permute.xlu0 %2310
      %2314 = vset.pattern.permute.xlu0 0
      %2315 = vperm.xlu0 %2314, %v2270
      %v2316 = vpop.permute.xlu0 %2315
      %2319 = vset.pattern.permute.xlu0 0
      %2320 = vperm.xlu0 %2319, %v2271
      %v2321 = vpop.permute.xlu0 %2320
      %2324 = vset.pattern.permute.xlu0 0
      %2325 = vperm.xlu0 %2324, %v2272
      %v2326 = vpop.permute.xlu0 %2325
      %v2328 = vmul.f32 %v2251, %v2276
      %v2329 = vmul.f32 %v2252, %v2281
      %v2330 = vmul.f32 %v2253, %v2286
      %v2331 = vmul.f32 %v2254, %v2291
      %v2332 = vmul.f32 %v2255, %v2296
      %v2333 = vmul.f32 %v2256, %v2301
      %v2334 = vmul.f32 %v2257, %v2306
      %v2335 = vmul.f32 %v2258, %v2311
      %v2336 = vmul.f32 %v2259, %v2316
      %v2337 = vmul.f32 %v2260, %v2321
      %v2338 = vmul.f32 %v2261, %v2326
      %2339 = vst [vmem:[%s197] sm:$0xf] 0
      %2340 = vst [vmem:[%s197 + $0x4] sm:$0xf] 0
      %v2341 = vpack.c.bf16 %v2329, %v2328
      %v2342 = vpack.c.bf16 %v2331, %v2330
      %v2343 = vpack.c.bf16 %v2333, %v2332
      %v2344 = vpack.c.bf16 %v2335, %v2334
      %v2345 = vpack.c.bf16 %v2337, %v2336
      %v2346 = vpack.c.bf16 %v2338, %v2338
      %v2353 = vunpack.c.l.b16 %v2341
      %v2354 = vunpack.c.h.b16 %v2341
      %v2355 = vunpack.c.l.b16 %v2342
      %v2356 = vunpack.c.h.b16 %v2342
      %v2357 = vunpack.c.l.b16 %v2343
      %v2358 = vunpack.c.h.b16 %v2343
      %v2359 = vunpack.c.l.b16 %v2344
      %v2360 = vunpack.c.h.b16 %v2344
      %v2361 = vunpack.c.l.b16 %v2345
      %v2362 = vunpack.c.h.b16 %v2345
      %v2363 = vunpack.c.l.b16 %v2346
      %v2364 = vpack.c.b16 %v2353, %v2353
      %v2365 = vpack.c.b16 %v2354, %v2354
      %v2366 = vpack.c.b16 %v2355, %v2355
      %v2367 = vpack.c.b16 %v2356, %v2356
      %v2368 = vpack.c.b16 %v2357, %v2357
      %v2369 = vpack.c.b16 %v2358, %v2358
      %v2370 = vpack.c.b16 %v2359, %v2359
      %v2371 = vpack.c.b16 %v2360, %v2360
      %v2372 = vpack.c.b16 %v2361, %v2361
      %v2373 = vpack.c.b16 %v2362, %v2362
      %v2374 = vpack.c.b16 %v2363, %v2363
      %2386 = vst [vmem:[%s197 + $0x8] sm:$0xf] %v2364
      %2387 = vst [vmem:[%s197 + $0xc] sm:$0xf] %v2365
      %2388 = vst [vmem:[%s197 + $0x10] sm:$0xf] %v2366
      %2389 = vst [vmem:[%s197 + $0x14] sm:$0xf] %v2367
      %2390 = vst [vmem:[%s197 + $0x18] sm:$0xf] %v2368
      %2391 = vst [vmem:[%s197 + $0x1c] sm:$0xf] %v2369
      %2392 = vst [vmem:[%s197 + $0x20] sm:$0xf] %v2370
      %2393 = vst [vmem:[%s197 + $0x24] sm:$0xf] %v2371
      %2394 = vst [vmem:[%s197 + $0x28] sm:$0xf] %v2372
      %2395 = vst [vmem:[%s197 + $0x2c] sm:$0xf] %v2373
      %2396 = vst [vmem:[%s197 + $0x30] sm:$0xf] %v2374
      %2397 = vst [vmem:[%s197 + $0x34] sm:$0xf] 0
      %2398 = vst [vmem:[%s197 + $0x38] sm:$0xf] 0
      %p2399 = scmp.lt.s32.totalorder %s15, 3
      %s2400 = scalar_select %p2399, %s15, 3
      %s2401 = smul.addr %s2400, 15
      %s2402 = smul.addr %s2401, 4
      %s2403 = scalar_lea.vmem %s4, %s2402
      // Predicated region
      $region37: #{encoder_forward.8} parent=35 // pred_check
        %p2404 = pneg %p122
      $region38: #{encoder_forward.8} parent=35 // pred_check_branch
        %2406 = sbr.rel (%p2404) target = $region40
      $region39: #{encoder_forward.8} parent=35 // pred_region
        _
      $region40: #{encoder_forward.8} parent=35 // pred_fallthru
        _
    $region36: #{encoder_forward.8} parent=5 // pred_fallthru
      _
    %p2407 = scmp.le.s32.totalorder 2, %s10
    // Predicated region
    $region41: #{encoder_forward.8} parent=5 // pred_check
      %p2408 = pneg %p2407
    $region42: #{encoder_forward.8} parent=5 // pred_check_branch
      %2410 = sbr.rel (%p2408) target = $region44
    $region43: #{encoder_forward.8} parent=5 // pred_region
      %s2411 = ssub.s32 %s10, 2
      // Predicated region
      $region45: #{encoder_forward.8} parent=43 // pred_check
        %p2412 = pneg %p128
      $region46: #{encoder_forward.8} parent=43 // pred_check_branch
        %2414 = sbr.rel (%p2412) target = $region48
      $region47: #{encoder_forward.8} parent=43 // pred_region
        %p2415 = scmp.lt.s32.totalorder %s16, 3
        %s2416 = scalar_select %p2415, %s16, 3
        %s2417 = smul.addr %s2416, 15
        %s2418 = smul.addr %s2417, 4
        %s2419 = scalar_lea.vmem %s4, %s2418
      $region48: #{encoder_forward.8} parent=43 // pred_fallthru
        _
    $region44: #{encoder_forward.8} parent=5 // pred_fallthru
      _
  $region6: #{encoder_forward.8} parent=0 // loop_footer
    %s14 = sadd.s32 1, %s10
  $region7: #{encoder_forward.8} parent=0 // loop_footer_branch
    %9 = sbr.rel target = $region3
  $region8: #{encoder_forward.8} parent=0 // loop_exit
    _

// kernel: encoder_forward.9
$region0: #{encoder_forward.9}
  #allocation0 [shape = 'u32[]', space=smem, size = 0x4, offset = 0x4, fixed_abs, tag = 'smem constant byte address 0x4 - core index']
  #allocation1 [shape = 'u32[144,128]{1,0:T(1,128)}', space=vmem, size = 0x12000, scoped, tag = 'internal scratch']
  %s0 = inlined_call_operand.vmem [shape: bf16[4,120,128], index: 0, kind: input, shape index: {}]
  %s1 = inlined_call_operand.vmem [shape: bf16[9,128,32], index: 1, kind: input, shape index: {}]
  %s2 = inlined_call_operand.vmem [shape: bf16[32,128], index: 2, kind: input, shape index: {}]
  %s3 = inlined_call_operand.vmem [shape: f32[88,1], index: 3, kind: input, shape index: {}]
  %s4 = inlined_call_operand.vmem [shape: bf16[4,120,128], index: 4, kind: output, shape index: {}]
  %s5 = sld [smem:[#allocation0]]
  $region49: #{encoder_forward.9} parent=0
    _
  %s7 = ssub.s32 1, %s5
  %s8 = scalar_select 0, %s7, %s5
  loop: start=0, step=1, limit=6
  $region2: #{encoder_forward.9} parent=0 // loop_pre_header
    _
  $region3: #{encoder_forward.9} parent=0 // loop_header
    %s10 = sphi 0, %s14
    %p11 = scmp.ge.s32.totalorder %s10, 6
    %s20 = sphi 0, %s22
    %s23 = sphi 0, %s20
    %s24 = sphi 0, %s23
    %s40 = sphi 0, %s24
    %s44 = sphi 0, %s44
    %s46 = sphi 0, %s44
    %s47 = sphi 0, %s46
    %s61 = sphi 0, %s47
    %s65 = sphi 0, %s65
    %s67 = sphi 0, %s65
    %s68 = sphi 0, %s67
    %s82 = sphi 0, %s68
    %s86 = sphi 0, %s86
    %s88 = sphi 0, %s86
    %s89 = sphi 0, %s88
    %s103 = sphi 0, %s89
    %s109 = sphi 0, %s111
    %s112 = sphi 0, %s109
    %s113 = sphi 0, %s112
    %s129 = sphi 0, %s113
  $region4: #{encoder_forward.9} parent=0 // loop_header_branch
    %13 = sbr.rel (%p11) target = $region8
  $region5: #{encoder_forward.9} parent=0 // loop_body
    %s15 = ssub.s32 %s10, 1
    %s16 = ssub.s32 %s10, 2
    %s17 = sadd.s32 %s10, 1
    %s18 = ssub.s32 %s10, %s17
    %p19 = scmp.eq.s32.totalorder %s18, 0
    %s21 = sadd.s32 %s20, 1
    %s22 = scalar_select %p19, %s20, %s21
    %p25 = pneg %p19
    %p26 = scmp.eq.s32.totalorder %s10, 3
    %p27 = por %p25, %p26
    %p28 = scmp.ne.s32.totalorder %s20, %s23
    %p29 = scmp.eq.s32.totalorder %s10, 0
    %p30 = por %p28, %p29
    %p31 = scmp.ne.s32.totalorder %s20, %s23
    %p32 = scmp.eq.s32.totalorder %s15, 3
    %p33 = por %p31, %p32
    %p34 = scmp.ne.s32.totalorder %s23, %s24
    %p35 = scmp.eq.s32.totalorder %s15, 0
    %p36 = por %p34, %p35
    %p37 = scmp.ne.s32.totalorder %s23, %s24
    %p38 = scmp.eq.s32.totalorder %s16, 3
    %p39 = por %p37, %p38
    %p41 = scmp.ne.s32.totalorder %s24, %s40
    %p42 = scmp.eq.s32.totalorder %s16, 0
    %p43 = por %p41, %p42
    %s45 = sadd.s32 %s44, 1
    %p48 = scmp.eq.s32.totalorder %s10, 3
    %p49 = scmp.ne.s32.totalorder %s44, %s46
    %p50 = scmp.eq.s32.totalorder %s10, 0
    %p51 = por %p49, %p50
    %p52 = scmp.ne.s32.totalorder %s44, %s46
    %p53 = scmp.eq.s32.totalorder %s15, 3
    %p54 = por %p52, %p53
    %p55 = scmp.ne.s32.totalorder %s46, %s47
    %p56 = scmp.eq.s32.totalorder %s15, 0
    %p57 = por %p55, %p56
    %p58 = scmp.ne.s32.totalorder %s46, %s47
    %p59 = scmp.eq.s32.totalorder %s16, 3
    %p60 = por %p58, %p59
    %p62 = scmp.ne.s32.totalorder %s47, %s61
    %p63 = scmp.eq.s32.totalorder %s16, 0
    %p64 = por %p62, %p63
    %s66 = sadd.s32 %s65, 1
    %p69 = scmp.eq.s32.totalorder %s10, 3
    %p70 = scmp.ne.s32.totalorder %s65, %s67
    %p71 = scmp.eq.s32.totalorder %s10, 0
    %p72 = por %p70, %p71
    %p73 = scmp.ne.s32.totalorder %s65, %s67
    %p74 = scmp.eq.s32.totalorder %s15, 3
    %p75 = por %p73, %p74
    %p76 = scmp.ne.s32.totalorder %s67, %s68
    %p77 = scmp.eq.s32.totalorder %s15, 0
    %p78 = por %p76, %p77
    %p79 = scmp.ne.s32.totalorder %s67, %s68
    %p80 = scmp.eq.s32.totalorder %s16, 3
    %p81 = por %p79, %p80
    %p83 = scmp.ne.s32.totalorder %s68, %s82
    %p84 = scmp.eq.s32.totalorder %s16, 0
    %p85 = por %p83, %p84
    %s87 = sadd.s32 %s86, 1
    %p90 = scmp.eq.s32.totalorder %s10, 3
    %p91 = scmp.ne.s32.totalorder %s86, %s88
    %p92 = scmp.eq.s32.totalorder %s10, 0
    %p93 = por %p91, %p92
    %p94 = scmp.ne.s32.totalorder %s86, %s88
    %p95 = scmp.eq.s32.totalorder %s15, 3
    %p96 = por %p94, %p95
    %p97 = scmp.ne.s32.totalorder %s88, %s89
    %p98 = scmp.eq.s32.totalorder %s15, 0
    %p99 = por %p97, %p98
    %p100 = scmp.ne.s32.totalorder %s88, %s89
    %p101 = scmp.eq.s32.totalorder %s16, 3
    %p102 = por %p100, %p101
    %p104 = scmp.ne.s32.totalorder %s89, %s103
    %p105 = scmp.eq.s32.totalorder %s16, 0
    %p106 = por %p104, %p105
    %s107 = ssub.s32 %s10, %s17
    %p108 = scmp.eq.s32.totalorder %s107, 0
    %s110 = sadd.s32 %s109, 1
    %s111 = scalar_select %p108, %s109, %s110
    %p114 = pneg %p108
    %p115 = scmp.eq.s32.totalorder %s10, 3
    %p116 = por %p114, %p115
    %p117 = scmp.ne.s32.totalorder %s109, %s112
    %p118 = scmp.eq.s32.totalorder %s10, 0
    %p119 = por %p117, %p118
    %p120 = scmp.ne.s32.totalorder %s109, %s112
    %p121 = scmp.eq.s32.totalorder %s15, 3
    %p122 = por %p120, %p121
    %p123 = scmp.ne.s32.totalorder %s112, %s113
    %p124 = scmp.eq.s32.totalorder %s15, 0
    %p125 = por %p123, %p124
    %p126 = scmp.ne.s32.totalorder %s112, %s113
    %p127 = scmp.eq.s32.totalorder %s16, 3
    %p128 = por %p126, %p127
    %p130 = scmp.ne.s32.totalorder %s113, %s129
    %p131 = scmp.eq.s32.totalorder %s16, 0
    %p132 = por %p130, %p131
    %p133 = scmp.le.s32.totalorder 1, %s10
    %p134 = scmp.lt.s32.totalorder %s10, 5
    %p135 = pnand %p133, %p134
    %p136 = pneg %p135
    // Predicated region
    $region9: #{encoder_forward.9} parent=5 // pred_check
      _
    $region10: #{encoder_forward.9} parent=5 // pred_check_branch
      %138 = sbr.rel (%p135) target = $region12
    $region11: #{encoder_forward.9} parent=5 // pred_region
      %s139 = ssub.s32 %s10, 1
      // Predicated region
      $region13: #{encoder_forward.9} parent=11 // pred_check
        %p140 = pneg %p57
      $region14: #{encoder_forward.9} parent=11 // pred_check_branch
        %142 = sbr.rel (%p140) target = $region16
      $region15: #{encoder_forward.9} parent=11 // pred_region
        _
      $region16: #{encoder_forward.9} parent=11 // pred_fallthru
        _
      // Predicated region
      $region17: #{encoder_forward.9} parent=11 // pred_check
        %p143 = pneg %p78
      $region18: #{encoder_forward.9} parent=11 // pred_check_branch
        %145 = sbr.rel (%p143) target = $region20
      $region19: #{encoder_forward.9} parent=11 // pred_region
        _
      $region20: #{encoder_forward.9} parent=11 // pred_fallthru
        _
      // Predicated region
      $region21: #{encoder_forward.9} parent=11 // pred_check
        %p146 = pneg %p99
      $region22: #{encoder_forward.9} parent=11 // pred_check_branch
        %148 = sbr.rel (%p146) target = $region24
      $region23: #{encoder_forward.9} parent=11 // pred_region
        _
      $region24: #{encoder_forward.9} parent=11 // pred_fallthru
        _
    $region12: #{encoder_forward.9} parent=5 // pred_fallthru
      _
    %p149 = scmp.lt.s32.totalorder %s10, 4
    // Predicated region
    $region25: #{encoder_forward.9} parent=5 // pred_check
      %p150 = pneg %p149
    $region26: #{encoder_forward.9} parent=5 // pred_check_branch
      %152 = sbr.rel (%p150) target = $region28
    $region27: #{encoder_forward.9} parent=5 // pred_region
      // Predicated region
      $region29: #{encoder_forward.9} parent=27 // pred_check
        %p153 = pneg %p30
      $region30: #{encoder_forward.9} parent=27 // pred_check_branch
        %155 = sbr.rel (%p153) target = $region32
      $region31: #{encoder_forward.9} parent=27 // pred_region
        %p156 = scmp.lt.s32.totalorder %s10, 3
        %s157 = scalar_select %p156, %s10, 3
        %s158 = smul.addr %s157, 15
        %s159 = smul.addr %s158, 4
        %s160 = scalar_lea.vmem %s0, %s159
      $region32: #{encoder_forward.9} parent=27 // pred_fallthru
        _
    $region28: #{encoder_forward.9} parent=5 // pred_fallthru
      _
    %p161 = scmp.le.s32.totalorder 1, %s10
    %p162 = scmp.lt.s32.totalorder %s10, 5
    %p163 = pnand %p161, %p162
    %p164 = pneg %p163
    // Predicated region
    $region33: #{encoder_forward.9} parent=5 // pred_check
      _
    $region34: #{encoder_forward.9} parent=5 // pred_check_branch
      %166 = sbr.rel (%p163) target = $region36
    $region35: #{encoder_forward.9} parent=5 // pred_region
      %s167 = ssub.s32 %s10, 1
      %p168 = scmp.lt.s32.totalorder %s15, 3
      %s169 = scalar_select %p168, %s15, 3
      %s170 = smul.addr %s169, 15
      %s171 = smul.addr %s170, 4
      %s172 = scalar_lea.vmem %s0, %s171
      %p173 = pneg %p36
      %p174 = pneg %p33
      %p175 = pneg %p57
      %p176 = pneg %p54
      %p177 = pneg %p78
      %p178 = pneg %p75
      %p179 = pneg %p99
      %p180 = pneg %p96
      %p181 = pneg %p125
      %p182 = pneg %p122
      %p183 = scmp.lt.s32.totalorder %s15, 3
      %s184 = scalar_select %p183, %s15, 3
      %s185 = smul.addr %s184, 15
      %s186 = smul.addr %s185, 4
      %s187 = scalar_lea.vmem %s4, %s186
      %p188 = scmp.lt.s32.totalorder %s15, 3
      %s189 = scalar_select %p188, %s15, 3
      %s190 = smul.addr %s189, 15
      %s191 = smul.addr %s190, 4
      %s192 = scalar_lea.vmem %s0, %s191
      %p193 = scmp.lt.s32.totalorder %s15, 3
      %s194 = scalar_select %p193, %s15, 3
      %s195 = smul.addr %s194, 15
      %s196 = smul.addr %s195, 4
      %s197 = scalar_lea.vmem %s4, %s196
      %v199 = vld [vmem:[%s192] sm:$0x8]
      %v200 = vld [vmem:[%s192 + $0x4] sm:$0xf]
      %v201 = vld [vmem:[%s192 + $0x8] sm:$0xf]
      %v202 = vld [vmem:[%s192 + $0xc] sm:$0xf]
      %v203 = vld [vmem:[%s192 + $0x10] sm:$0xf]
      %v204 = vld [vmem:[%s192 + $0x14] sm:$0xf]
      %v205 = vld [vmem:[%s192 + $0x18] sm:$0xf]
      %v206 = vld [vmem:[%s192 + $0x1c] sm:$0xf]
      %v207 = vld [vmem:[%s192 + $0x20] sm:$0xf]
      %v208 = vld [vmem:[%s192 + $0x24] sm:$0xf]
      %v209 = vld [vmem:[%s192 + $0x28] sm:$0xf]
      %v210 = vld [vmem:[%s192 + $0x2c] sm:$0x7]
      %v211 = vmax.bf16 %v199, 0
      %v212 = vmax.bf16 %v200, 0
      %v213 = vmax.bf16 %v201, 0
      %v214 = vmax.bf16 %v202, 0
      %v215 = vmax.bf16 %v203, 0
      %v216 = vmax.bf16 %v204, 0
      %v217 = vmax.bf16 %v205, 0
      %v218 = vmax.bf16 %v206, 0
      %v219 = vmax.bf16 %v207, 0
      %v220 = vmax.bf16 %v208, 0
      %v221 = vmax.bf16 %v209, 0
      %v222 = vmax.bf16 %v210, 0
      %v223 = vld [vmem:[%s1] sm:$0xf]
      %v224 = vld [vmem:[%s1 + $0x4] sm:$0xf]
      %v225 = vld [vmem:[%s1 + $0x8] sm:$0xf]
      %v226 = vld [vmem:[%s1 + $0xc] sm:$0xf]
      %v227 = vld [vmem:[%s1 + $0x10] sm:$0xf]
      %v228 = vld [vmem:[%s1 + $0x14] sm:$0xf]
      %v229 = vld [vmem:[%s1 + $0x18] sm:$0xf]
      %v230 = vld [vmem:[%s1 + $0x1c] sm:$0xf]
      %v231 = vld [vmem:[%s1 + $0x20] sm:$0xf]
      %v232 = vld [vmem:[%s1 + $0x24] sm:$0xf]
      %v233 = vld [vmem:[%s1 + $0x28] sm:$0xf]
      %v234 = vld [vmem:[%s1 + $0x2c] sm:$0xf]
      %v235 = vld [vmem:[%s1 + $0x30] sm:$0xf]
      %v236 = vld [vmem:[%s1 + $0x34] sm:$0xf]
      %v237 = vld [vmem:[%s1 + $0x38] sm:$0xf]
      %v238 = vld [vmem:[%s1 + $0x3c] sm:$0xf]
      %v239 = vld [vmem:[%s192 + $0x2c] sm:$0xf]
      %v240 = vmax.bf16 %v239, 0
      %s241 = scalar_lea.vmem %s1, 64
      %v242 = vld [vmem:[%s241] sm:$0xf]
      %v243 = vld [vmem:[%s241 + $0x4] sm:$0xf]
      %v244 = vld [vmem:[%s241 + $0x8] sm:$0xf]
      %v245 = vld [vmem:[%s241 + $0xc] sm:$0xf]
      %v246 = vld [vmem:[%s241 + $0x10] sm:$0xf]
      %v247 = vld [vmem:[%s241 + $0x14] sm:$0xf]
      %v248 = vld [vmem:[%s241 + $0x18] sm:$0xf]
      %v249 = vld [vmem:[%s241 + $0x1c] sm:$0xf]
      %v250 = vld [vmem:[%s241 + $0x20] sm:$0xf]
      %v251 = vld [vmem:[%s241 + $0x24] sm:$0xf]
      %v252 = vld [vmem:[%s241 + $0x28] sm:$0xf]
      %v253 = vld [vmem:[%s241 + $0x2c] sm:$0xf]
      %v254 = vld [vmem:[%s241 + $0x30] sm:$0xf]
      %v255 = vld [vmem:[%s241 + $0x34] sm:$0xf]
      %v256 = vld [vmem:[%s241 + $0x38] sm:$0xf]
      %v257 = vld [vmem:[%s241 + $0x3c] sm:$0xf]
      %v270 = vunpack.c.l.b16 %v211
      %v271 = vunpack.c.l.b16 %v212
      %v272 = vunpack.c.l.b16 %v213
      %v273 = vunpack.c.l.b16 %v214
      %v274 = vunpack.c.l.b16 %v215
      %v275 = vunpack.c.l.b16 %v216
      %v276 = vunpack.c.l.b16 %v217
      %v277 = vunpack.c.l.b16 %v218
      %v278 = vunpack.c.l.b16 %v219
      %v279 = vunpack.c.l.b16 %v220
      %v280 = vunpack.c.l.b16 %v221
      %v281 = vunpack.c.l.b16 %v240
      %v282 = vpack.c.b16 %v271, %v270
      %v283 = vpack.c.b16 %v273, %v272
      %v284 = vpack.c.b16 %v275, %v274
      %v285 = vpack.c.b16 %v277, %v276
      %v286 = vpack.c.b16 %v279, %v278
      %v287 = vpack.c.b16 %v281, %v280
      %vm288 = vsmask.f32 4352
      %v290 = vshrl.u32 %v282, 16
      %v292 = vrot.slane %v290, 3
      %v293 = vshll.u32 %v282, 16
      %v295 = vrot.slane %v293, 4
      %v296 = vor.u32 %v292, %v295
      %v298 = vshrl.u32 %v283, 16
      %v300 = vrot.slane %v298, 3
      %v301 = vshll.u32 %v283, 16
      %v303 = vrot.slane %v301, 4
      %v304 = vor.u32 %v300, %v303
      %v305 = vsel %vm288, %v296, %v304
      %v307 = vshrl.u32 %v284, 16
      %v309 = vrot.slane %v307, 3
      %v310 = vshll.u32 %v284, 16
      %v312 = vrot.slane %v310, 4
      %v313 = vor.u32 %v309, %v312
      %v314 = vsel %vm288, %v304, %v313
      %v316 = vshrl.u32 %v285, 16
      %v318 = vrot.slane %v316, 3
      %v319 = vshll.u32 %v285, 16
      %v321 = vrot.slane %v319, 4
      %v322 = vor.u32 %v318, %v321
      %v323 = vsel %vm288, %v313, %v322
      %v325 = vshrl.u32 %v286, 16
      %v327 = vrot.slane %v325, 3
      %v328 = vshll.u32 %v286, 16
      %v330 = vrot.slane %v328, 4
      %v331 = vor.u32 %v327, %v330
      %v332 = vsel %vm288, %v322, %v331
      %v334 = vshrl.u32 %v287, 16
      %v336 = vrot.slane %v334, 3
      %v337 = vshll.u32 %v287, 16
      %v339 = vrot.slane %v337, 4
      %v340 = vor.u32 %v336, %v339
      %v341 = vsel %vm288, %v331, %v340
      %v364 = vunpack.c.l.b16 %v242
      %v365 = vunpack.c.l.b16 %v243
      %v366 = vunpack.c.l.b16 %v244
      %v367 = vunpack.c.l.b16 %v245
      %v368 = vunpack.c.l.b16 %v246
      %v369 = vunpack.c.l.b16 %v247
      %v370 = vunpack.c.l.b16 %v248
      %v371 = vunpack.c.l.b16 %v249
      %v372 = vunpack.c.l.b16 %v250
      %v373 = vunpack.c.l.b16 %v251
      %v374 = vunpack.c.l.b16 %v252
      %v375 = vunpack.c.l.b16 %v253
      %v376 = vunpack.c.l.b16 %v254
      %v377 = vunpack.c.l.b16 %v255
      %v378 = vunpack.c.l.b16 %v256
      %v379 = vunpack.c.l.b16 %v257
      %v380 = vpack.c.b16 %v365, %v364
      %v381 = vpack.c.b16 %v367, %v366
      %v382 = vpack.c.b16 %v369, %v368
      %v383 = vpack.c.b16 %v371, %v370
      %v384 = vpack.c.b16 %v373, %v372
      %v385 = vpack.c.b16 %v375, %v374
      %v386 = vpack.c.b16 %v377, %v376
      %v387 = vpack.c.b16 %v379, %v378
      %396 = vmatprep.subr.bf16.mxu0 0
      %397 = vmatpush1.bf16.msra.mxu0 %v380
      %398 = vmatprep.subr.bf16.mxu0 0
      %399 = vmatpush1.bf16.msra.mxu0 %v381
      %400 = vmatprep.subr.bf16.mxu0 0
      %401 = vmatpush1.bf16.msra.mxu0 %v382
      %402 = vmatprep.subr.bf16.mxu0 0
      %403 = vmatpush1.bf16.msra.mxu0 %v383
      %404 = vmatprep.subr.bf16.mxu0 0
      %405 = vmatpush1.bf16.msra.mxu0 %v384
      %406 = vmatprep.subr.bf16.mxu0 0
      %407 = vmatpush1.bf16.msra.mxu0 %v385
      %408 = vmatprep.subr.bf16.mxu0 0
      %409 = vmatpush1.bf16.msra.mxu0 %v386
      %410 = vmatprep.subr.bf16.mxu0 0
      %411 = vmatpush1.bf16.msra.mxu0 %v387
      %412 = vmatprep.subr.bf16.mxu0 0
      %413 = vmatpush1.bf16.msra.mxu0 0
      %414 = vmatprep.subr.bf16.mxu0 0
      %415 = vmatpush1.bf16.msra.mxu0 0
      %416 = vmatprep.subr.bf16.mxu0 0
      %417 = vmatpush1.bf16.msra.mxu0 0
      %418 = vmatprep.subr.bf16.mxu0 0
      %419 = vmatpush1.bf16.msra.mxu0 0
      %420 = vmatprep.subr.bf16.mxu0 0
      %421 = vmatpush1.bf16.msra.mxu0 0
      %422 = vmatprep.subr.bf16.mxu0 0
      %423 = vmatpush1.bf16.msra.mxu0 0
      %424 = vmatprep.subr.bf16.mxu0 0
      %425 = vmatpush1.bf16.msra.mxu0 0
      %426 = vmatprep.subr.bf16.mxu0 0
      %427 = vmatpush1.bf16.msra.mxu0 0
      %428 = vmatprep.mubr.bf16.mxu0 0
      %429 = vmatmul.mubr.bf16.gmra.mrb[0].mxu0 %v305
      %v430 = vpop.f32.mrb[0].mxu0
      %v431 = vadd.f32 0.0, %v430
      %v432 = vpop.f32.mrb[0].mxu0
      %v433 = vpop.f32.mrb[0].mxu0
      %v434 = vadd.f32 0.0, %v433
      %v435 = vpop.f32.mrb[0].mxu0
      %436 = vmatprep.mubr.bf16.mxu0 0
      %437 = vmatmul.mubr.bf16.gmra.mrb[0].mxu0 %v314
      %v438 = vpop.f32.mrb[0].mxu0
      %v439 = vadd.f32 0.0, %v438
      %v440 = vpop.f32.mrb[0].mxu0
      %v441 = vpop.f32.mrb[0].mxu0
      %v442 = vadd.f32 0.0, %v441
      %v443 = vpop.f32.mrb[0].mxu0
      %444 = vmatprep.mubr.bf16.mxu0 0
      %445 = vmatmul.mubr.bf16.gmra.mrb[0].mxu0 %v323
      %v446 = vpop.f32.mrb[0].mxu0
      %v447 = vadd.f32 0.0, %v446
      %v448 = vpop.f32.mrb[0].mxu0
      %v449 = vpop.f32.mrb[0].mxu0
      %v450 = vadd.f32 0.0, %v449
      %v451 = vpop.f32.mrb[0].mxu0
      %452 = vmatprep.mubr.bf16.mxu0 0
      %453 = vmatmul.mubr.bf16.gmra.mrb[0].mxu0 %v332
      %v454 = vpop.f32.mrb[0].mxu0
      %v455 = vadd.f32 0.0, %v454
      %v456 = vpop.f32.mrb[0].mxu0
      %v457 = vpop.f32.mrb[0].mxu0
      %v458 = vadd.f32 0.0, %v457
      %v459 = vpop.f32.mrb[0].mxu0
      %460 = vmatprep.mubr.bf16.mxu0 0
      %461 = vmatmul.mubr.bf16.gmra.mrb[0].mxu0 %v341
      %v462 = vpop.f32.mrb[0].mxu0
      %v463 = vadd.f32 0.0, %v462
      %v464 = vpop.f32.mrb[0].mxu0
      %v465 = vpop.f32.mrb[0].mxu0
      %v466 = vadd.f32 0.0, %v465
      %v467 = vpop.f32.mrb[0].mxu0
      %468 = vmatprep.mubr.bf16.mxu0 0
      %469 = vmatmul.mubr.bf16.gmra.mrb[0].mxu0 %v340
      %v470 = vpop.f32.mrb[0].mxu0
      %v471 = vadd.f32 0.0, %v470
      %v472 = vpop.f32.mrb[0].mxu0
      %v473 = vpop.f32.mrb[0].mxu0
      %v474 = vpop.f32.mrb[0].mxu0
      %475 = vdwg.mxu0
      %v477 = vunpack.c.l.b16 %v222
      %v478 = vpack.c.b16 %v477, %v280
      %vm479 = vcmask 1044480
      %v480 = vrot.slane %v282, 3
      %v481 = vrot.slane %v283, 3
      %v482 = vsel %vm479, %v480, %v481
      %v483 = vrot.slane %v284, 3
      %v484 = vsel %vm479, %v481, %v483
      %v485 = vrot.slane %v285, 3
      %v486 = vsel %vm479, %v483, %v485
      %v487 = vrot.slane %v286, 3
      %v488 = vsel %vm479, %v485, %v487
      %v489 = vrot.slane %v478, 3
      %v490 = vsel %vm479, %v487, %v489
      %v513 = vunpack.c.l.b16 %v223
      %v514 = vunpack.c.l.b16 %v224
      %v515 = vunpack.c.l.b16 %v225
      %v516 = vunpack.c.l.b16 %v226
      %v517 = vunpack.c.l.b16 %v227
      %v518 = vunpack.c.l.b16 %v228
      %v519 = vunpack.c.l.b16 %v229
      %v520 = vunpack.c.l.b16 %v230
      %v521 = vunpack.c.l.b16 %v231
      %v522 = vunpack.c.l.b16 %v232
      %v523 = vunpack.c.l.b16 %v233
      %v524 = vunpack.c.l.b16 %v234
      %v525 = vunpack.c.l.b16 %v235
      %v526 = vunpack.c.l.b16 %v236
      %v527 = vunpack.c.l.b16 %v237
      %v528 = vunpack.c.l.b16 %v238
      %v529 = vpack.c.b16 %v514, %v513
      %v530 = vpack.c.b16 %v516, %v515
      %v531 = vpack.c.b16 %v518, %v517
      %v532 = vpack.c.b16 %v520, %v519
      %v533 = vpack.c.b16 %v522, %v521
      %v534 = vpack.c.b16 %v524, %v523
      %v535 = vpack.c.b16 %v526, %v525
      %v536 = vpack.c.b16 %v528, %v527
      %545 = vmatprep.subr.bf16.mxu0 0
      %546 = vmatpush1.bf16.msra.mxu0 %v529
      %547 = vmatprep.subr.bf16.mxu0 0
      %548 = vmatpush1.bf16.msra.mxu0 %v530
      %549 = vmatprep.subr.bf16.mxu0 0
      %550 = vmatpush1.bf16.msra.mxu0 %v531
      %551 = vmatprep.subr.bf16.mxu0 0
      %552 = vmatpush1.bf16.msra.mxu0 %v532
      %553 = vmatprep.subr.bf16.mxu0 0
      %554 = vmatpush1.bf16.msra.mxu0 %v533
      %555 = vmatprep.subr.bf16.mxu0 0
      %556 = vmatpush1.bf16.msra.mxu0 %v534
      %557 = vmatprep.subr.bf16.mxu0 0
      %558 = vmatpush1.bf16.msra.mxu0 %v535
      %559 = vmatprep.subr.bf16.mxu0 0
      %560 = vmatpush1.bf16.msra.mxu0 %v536
      %561 = vmatprep.subr.bf16.mxu0 0
      %562 = vmatpush1.bf16.msra.mxu0 0
      %563 = vmatprep.subr.bf16.mxu0 0
      %564 = vmatpush1.bf16.msra.mxu0 0
      %565 = vmatprep.subr.bf16.mxu0 0
      %566 = vmatpush1.bf16.msra.mxu0 0
      %567 = vmatprep.subr.bf16.mxu0 0
      %568 = vmatpush1.bf16.msra.mxu0 0
      %569 = vmatprep.subr.bf16.mxu0 0
      %570 = vmatpush1.bf16.msra.mxu0 0
      %571 = vmatprep.subr.bf16.mxu0 0
      %572 = vmatpush1.bf16.msra.mxu0 0
      %573 = vmatprep.subr.bf16.mxu0 0
      %574 = vmatpush1.bf16.msra.mxu0 0
      %575 = vmatprep.subr.bf16.mxu0 0
      %576 = vmatpush1.bf16.msra.mxu0 0
      %577 = vmatprep.mubr.bf16.mxu0 0
      %578 = vmatmul.mubr.bf16.gmra.mrb[0].mxu0 %v482
      %v579 = vpop.f32.mrb[0].mxu0
      %v580 = vadd.f32 %v431, %v579
      %v581 = vpop.f32.mrb[0].mxu0
      %v582 = vpop.f32.mrb[0].mxu0
      %v583 = vadd.f32 %v434, %v582
      %v584 = vpop.f32.mrb[0].mxu0
      %585 = vmatprep.mubr.bf16.mxu0 0
      %586 = vmatmul.mubr.bf16.gmra.mrb[0].mxu0 %v484
      %v587 = vpop.f32.mrb[0].mxu0
      %v588 = vadd.f32 %v439, %v587
      %v589 = vpop.f32.mrb[0].mxu0
      %v590 = vpop.f32.mrb[0].mxu0
      %v591 = vadd.f32 %v442, %v590
      %v592 = vpop.f32.mrb[0].mxu0
      %593 = vmatprep.mubr.bf16.mxu0 0
      %594 = vmatmul.mubr.bf16.gmra.mrb[0].mxu0 %v486
      %v595 = vpop.f32.mrb[0].mxu0
      %v596 = vadd.f32 %v447, %v595
      %v597 = vpop.f32.mrb[0].mxu0
      %v598 = vpop.f32.mrb[0].mxu0
      %v599 = vadd.f32 %v450, %v598
      %v600 = vpop.f32.mrb[0].mxu0
      %601 = vmatprep.mubr.bf16.mxu0 0
      %602 = vmatmul.mubr.bf16.gmra.mrb[0].mxu0 %v488
      %v603 = vpop.f32.mrb[0].mxu0
      %v604 = vadd.f32 %v455, %v603
      %v605 = vpop.f32.mrb[0].mxu0
      %v606 = vpop.f32.mrb[0].mxu0
      %v607 = vadd.f32 %v458, %v606
      %v608 = vpop.f32.mrb[0].mxu0
      %609 = vmatprep.mubr.bf16.mxu0 0
      %610 = vmatmul.mubr.bf16.gmra.mrb[0].mxu0 %v490
      %v611 = vpop.f32.mrb[0].mxu0
      %v612 = vadd.f32 %v463, %v611
      %v613 = vpop.f32.mrb[0].mxu0
      %v614 = vpop.f32.mrb[0].mxu0
      %v615 = vadd.f32 %v466, %v614
      %v616 = vpop.f32.mrb[0].mxu0
      %617 = vmatprep.mubr.bf16.mxu0 0
      %618 = vmatmul.mubr.bf16.gmra.mrb[0].mxu0 %v489
      %v619 = vpop.f32.mrb[0].mxu0
      %v620 = vadd.f32 %v471, %v619
      %v621 = vpop.f32.mrb[0].mxu0
      %v622 = vpop.f32.mrb[0].mxu0
      %v623 = vpop.f32.mrb[0].mxu0
      %624 = vdwg.mxu0
      %s625 = scalar_lea.vmem %s1, 128
      %v626 = vld [vmem:[%s625] sm:$0xf]
      %v627 = vld [vmem:[%s625 + $0x4] sm:$0xf]
      %v628 = vld [vmem:[%s625 + $0x8] sm:$0xf]
      %v629 = vld [vmem:[%s625 + $0xc] sm:$0xf]
      %v630 = vld [vmem:[%s625 + $0x10] sm:$0xf]
      %v631 = vld [vmem:[%s625 + $0x14] sm:$0xf]
      %v632 = vld [vmem:[%s625 + $0x18] sm:$0xf]
      %v633 = vld [vmem:[%s625 + $0x1c] sm:$0xf]
      %v634 = vld [vmem:[%s625 + $0x20] sm:$0xf]
      %v635 = vld [vmem:[%s625 + $0x24] sm:$0xf]
      %v636 = vld [vmem:[%s625 + $0x28] sm:$0xf]
      %v637 = vld [vmem:[%s625 + $0x2c] sm:$0xf]
      %v638 = vld [vmem:[%s625 + $0x30] sm:$0xf]
      %v639 = vld [vmem:[%s625 + $0x34] sm:$0xf]
      %v640 = vld [vmem:[%s625 + $0x38] sm:$0xf]
      %v641 = vld [vmem:[%s625 + $0x3c] sm:$0xf]
      %v642 = vpack.c.b16 %v272, %v271
      %v643 = vpack.c.b16 %v274, %v273
      %v644 = vpack.c.b16 %v276, %v275
      %v645 = vpack.c.b16 %v278, %v277
      %v646 = vpack.c.b16 %v280, %v279
      %v647 = vpack.c.b16 %v281, %v281
      %v670 = vunpack.c.l.b16 %v626
      %v671 = vunpack.c.l.b16 %v627
      %v672 = vunpack.c.l.b16 %v628
      %v673 = vunpack.c.l.b16 %v629
      %v674 = vunpack.c.l.b16 %v630
      %v675 = vunpack.c.l.b16 %v631
      %v676 = vunpack.c.l.b16 %v632
      %v677 = vunpack.c.l.b16 %v633
      %v678 = vunpack.c.l.b16 %v634
      %v679 = vunpack.c.l.b16 %v635
      %v680 = vunpack.c.l.b16 %v636
      %v681 = vunpack.c.l.b16 %v637
      %v682 = vunpack.c.l.b16 %v638
      %v683 = vunpack.c.l.b16 %v639
      %v684 = vunpack.c.l.b16 %v640
      %v685 = vunpack.c.l.b16 %v641
      %v686 = vpack.c.b16 %v671, %v670
      %v687 = vpack.c.b16 %v673, %v672
      %v688 = vpack.c.b16 %v675, %v674
      %v689 = vpack.c.b16 %v677, %v676
      %v690 = vpack.c.b16 %v679, %v678
      %v691 = vpack.c.b16 %v681, %v680
      %v692 = vpack.c.b16 %v683, %v682
      %v693 = vpack.c.b16 %v685, %v684
      %702 = vmatprep.subr.bf16.mxu0 0
      %703 = vmatpush1.bf16.msra.mxu0 %v686
      %704 = vmatprep.subr.bf16.mxu0 0
      %705 = vmatpush1.bf16.msra.mxu0 %v687
      %706 = vmatprep.subr.bf16.mxu0 0
      %707 = vmatpush1.bf16.msra.mxu0 %v688
      %708 = vmatprep.subr.bf16.mxu0 0
      %709 = vmatpush1.bf16.msra.mxu0 %v689
      %710 = vmatprep.subr.bf16.mxu0 0
      %711 = vmatpush1.bf16.msra.mxu0 %v690
      %712 = vmatprep.subr.bf16.mxu0 0
      %713 = vmatpush1.bf16.msra.mxu0 %v691
      %714 = vmatprep.subr.bf16.mxu0 0
      %715 = vmatpush1.bf16.msra.mxu0 %v692
      %716 = vmatprep.subr.bf16.mxu0 0
      %717 = vmatpush1.bf16.msra.mxu0 %v693
      %718 = vmatprep.subr.bf16.mxu0 0
      %719 = vmatpush1.bf16.msra.mxu0 0
      %720 = vmatprep.subr.bf16.mxu0 0
      %721 = vmatpush1.bf16.msra.mxu0 0
      %722 = vmatprep.subr.bf16.mxu0 0
      %723 = vmatpush1.bf16.msra.mxu0 0
      %724 = vmatprep.subr.bf16.mxu0 0
      %725 = vmatpush1.bf16.msra.mxu0 0
      %726 = vmatprep.subr.bf16.mxu0 0
      %727 = vmatpush1.bf16.msra.mxu0 0
      %728 = vmatprep.subr.bf16.mxu0 0
      %729 = vmatpush1.bf16.msra.mxu0 0
      %730 = vmatprep.subr.bf16.mxu0 0
      %731 = vmatpush1.bf16.msra.mxu0 0
      %732 = vmatprep.subr.bf16.mxu0 0
      %733 = vmatpush1.bf16.msra.mxu0 0
      %734 = vmatprep.mubr.bf16.mxu0 0
      %735 = vmatmul.mubr.bf16.gmra.mrb[0].mxu0 %v642
      %v736 = vpop.f32.mrb[0].mxu0
      %v737 = vadd.f32 0.0, %v736
      %v738 = vpop.f32.mrb[0].mxu0
      %v739 = vpop.f32.mrb[0].mxu0
      %v740 = vadd.f32 0.0, %v739
      %v741 = vpop.f32.mrb[0].mxu0
      %742 = vmatprep.mubr.bf16.mxu0 0
      %743 = vmatmul.mubr.bf16.gmra.mrb[0].mxu0 %v643
      %v744 = vpop.f32.mrb[0].mxu0
      %v745 = vadd.f32 0.0, %v744
      %v746 = vpop.f32.mrb[0].mxu0
      %v747 = vpop.f32.mrb[0].mxu0
      %v748 = vadd.f32 0.0, %v747
      %v749 = vpop.f32.mrb[0].mxu0
      %750 = vmatprep.mubr.bf16.mxu0 0
      %751 = vmatmul.mubr.bf16.gmra.mrb[0].mxu0 %v644
      %v752 = vpop.f32.mrb[0].mxu0
      %v753 = vadd.f32 0.0, %v752
      %v754 = vpop.f32.mrb[0].mxu0
      %v755 = vpop.f32.mrb[0].mxu0
      %v756 = vadd.f32 0.0, %v755
      %v757 = vpop.f32.mrb[0].mxu0
      %758 = vmatprep.mubr.bf16.mxu0 0
      %759 = vmatmul.mubr.bf16.gmra.mrb[0].mxu0 %v645
      %v760 = vpop.f32.mrb[0].mxu0
      %v761 = vadd.f32 0.0, %v760
      %v762 = vpop.f32.mrb[0].mxu0
      %v763 = vpop.f32.mrb[0].mxu0
      %v764 = vadd.f32 0.0, %v763
      %v765 = vpop.f32.mrb[0].mxu0
      %766 = vmatprep.mubr.bf16.mxu0 0
      %767 = vmatmul.mubr.bf16.gmra.mrb[0].mxu0 %v646
      %v768 = vpop.f32.mrb[0].mxu0
      %v769 = vadd.f32 0.0, %v768
      %v770 = vpop.f32.mrb[0].mxu0
      %v771 = vpop.f32.mrb[0].mxu0
      %v772 = vadd.f32 0.0, %v771
      %v773 = vpop.f32.mrb[0].mxu0
      %774 = vmatprep.mubr.bf16.mxu0 0
      %775 = vmatmul.mubr.bf16.gmra.mrb[0].mxu0 %v647
      %v776 = vpop.f32.mrb[0].mxu0
      %v777 = vadd.f32 0.0, %v776
      %v778 = vpop.f32.mrb[0].mxu0
      %v779 = vpop.f32.mrb[0].mxu0
      %v780 = vpop.f32.mrb[0].mxu0
      %781 = vdwg.mxu0
      %v782 = vadd.f32 %v580, %v737
      %v783 = vadd.f32 %v583, %v740
      %v784 = vadd.f32 %v588, %v745
      %v785 = vadd.f32 %v591, %v748
      %v786 = vadd.f32 %v596, %v753
      %v787 = vadd.f32 %v599, %v756
      %v788 = vadd.f32 %v604, %v761
      %v789 = vadd.f32 %v607, %v764
      %v790 = vadd.f32 %v612, %v769
      %v791 = vadd.f32 %v615, %v772
      %v792 = vadd.f32 %v620, %v777
      %v793 = vld [vmem:[%s192 + $0x4] sm:$0x8]
      %v794 = vld [vmem:[%s192 + $0x8] sm:$0xf]
      %v795 = vld [vmem:[%s192 + $0xc] sm:$0xf]
      %v796 = vld [vmem:[%s192 + $0x10] sm:$0xf]
      %v797 = vld [vmem:[%s192 + $0x14] sm:$0xf]
      %v798 = vld [vmem:[%s192 + $0x18] sm:$0xf]
      %v799 = vld [vmem:[%s192 + $0x1c] sm:$0xf]
      %v800 = vld [vmem:[%s192 + $0x20] sm:$0xf]
      %v801 = vld [vmem:[%s192 + $0x24] sm:$0xf]
      %v802 = vld [vmem:[%s192 + $0x28] sm:$0xf]
      %v803 = vld [vmem:[%s192 + $0x2c] sm:$0xf]
      %v804 = vld [vmem:[%s192 + $0x30] sm:$0xf]
      %v805 = vmax.bf16 %v793, 0
      %v806 = vmax.bf16 %v794, 0
      %v807 = vmax.bf16 %v795, 0
      %v808 = vmax.bf16 %v796, 0
      %v809 = vmax.bf16 %v797, 0
      %v810 = vmax.bf16 %v798, 0
      %v811 = vmax.bf16 %v799, 0
      %v812 = vmax.bf16 %v800, 0
      %v813 = vmax.bf16 %v801, 0
      %v814 = vmax.bf16 %v802, 0
      %v815 = vmax.bf16 %v803, 0
      %v816 = vmax.bf16 %v804, 0
      %s817 = scalar_lea.vmem %s1, 192
      %v818 = vld [vmem:[%s817] sm:$0xf]
      %v819 = vld [vmem:[%s817 + $0x4] sm:$0xf]
      %v820 = vld [vmem:[%s817 + $0x8] sm:$0xf]
      %v821 = vld [vmem:[%s817 + $0xc] sm:$0xf]
      %v822 = vld [vmem:[%s817 + $0x10] sm:$0xf]
      %v823 = vld [vmem:[%s817 + $0x14] sm:$0xf]
      %v824 = vld [vmem:[%s817 + $0x18] sm:$0xf]
      %v825 = vld [vmem:[%s817 + $0x1c] sm:$0xf]
      %v826 = vld [vmem:[%s817 + $0x20] sm:$0xf]
      %v827 = vld [vmem:[%s817 + $0x24] sm:$0xf]
      %v828 = vld [vmem:[%s817 + $0x28] sm:$0xf]
      %v829 = vld [vmem:[%s817 + $0x2c] sm:$0xf]
      %v830 = vld [vmem:[%s817 + $0x30] sm:$0xf]
      %v831 = vld [vmem:[%s817 + $0x34] sm:$0xf]
      %v832 = vld [vmem:[%s817 + $0x38] sm:$0xf]
      %v833 = vld [vmem:[%s817 + $0x3c] sm:$0xf]
      %v846 = vunpack.c.l.b16 %v805
      %v847 = vunpack.c.l.b16 %v806
      %v848 = vunpack.c.l.b16 %v807
      %v849 = vunpack.c.l.b16 %v808
      %v850 = vunpack.c.l.b16 %v809
      %v851 = vunpack.c.l.b16 %v810
      %v852 = vunpack.c.l.b16 %v811
      %v853 = vunpack.c.l.b16 %v812
      %v854 = vunpack.c.l.b16 %v813
      %v855 = vunpack.c.l.b16 %v814
      %v856 = vunpack.c.l.b16 %v815
      %v857 = vunpack.c.l.b16 %v816
      %v858 = vpack.c.b16 %v847, %v846
      %v859 = vpack.c.b16 %v849, %v848
      %v860 = vpack.c.b16 %v851, %v850
      %v861 = vpack.c.b16 %v853, %v852
      %v862 = vpack.c.b16 %v855, %v854
      %v863 = vpack.c.b16 %v857, %v856
      %v865 = vshrl.u32 %v858, 16
      %v867 = vrot.slane %v865, 3
      %v868 = vshll.u32 %v858, 16
      %v870 = vrot.slane %v868, 4
      %v871 = vor.u32 %v867, %v870
      %v873 = vshrl.u32 %v859, 16
      %v875 = vrot.slane %v873, 3
      %v876 = vshll.u32 %v859, 16
      %v878 = vrot.slane %v876, 4
      %v879 = vor.u32 %v875, %v878
      %v880 = vsel %vm288, %v871, %v879
      %v882 = vshrl.u32 %v860, 16
      %v884 = vrot.slane %v882, 3
      %v885 = vshll.u32 %v860, 16
      %v887 = vrot.slane %v885, 4
      %v888 = vor.u32 %v884, %v887
      %v889 = vsel %vm288, %v879, %v888
      %v891 = vshrl.u32 %v861, 16
      %v893 = vrot.slane %v891, 3
      %v894 = vshll.u32 %v861, 16
      %v896 = vrot.slane %v894, 4
      %v897 = vor.u32 %v893, %v896
      %v898 = vsel %vm288, %v888, %v897
      %v900 = vshrl.u32 %v862, 16
      %v902 = vrot.slane %v900, 3
      %v903 = vshll.u32 %v862, 16
      %v905 = vrot.slane %v903, 4
      %v906 = vor.u32 %v902, %v905
      %v907 = vsel %vm288, %v897, %v906
      %v909 = vshrl.u32 %v863, 16
      %v911 = vrot.slane %v909, 3
      %v912 = vshll.u32 %v863, 16
      %v914 = vrot.slane %v912, 4
      %v915 = vor.u32 %v911, %v914
      %v916 = vsel %vm288, %v906, %v915
      %v939 = vunpack.c.l.b16 %v818
      %v940 = vunpack.c.l.b16 %v819
      %v941 = vunpack.c.l.b16 %v820
      %v942 = vunpack.c.l.b16 %v821
      %v943 = vunpack.c.l.b16 %v822
      %v944 = vunpack.c.l.b16 %v823
      %v945 = vunpack.c.l.b16 %v824
      %v946 = vunpack.c.l.b16 %v825
      %v947 = vunpack.c.l.b16 %v826
      %v948 = vunpack.c.l.b16 %v827
      %v949 = vunpack.c.l.b16 %v828
      %v950 = vunpack.c.l.b16 %v829
      %v951 = vunpack.c.l.b16 %v830
      %v952 = vunpack.c.l.b16 %v831
      %v953 = vunpack.c.l.b16 %v832
      %v954 = vunpack.c.l.b16 %v833
      %v955 = vpack.c.b16 %v940, %v939
      %v956 = vpack.c.b16 %v942, %v941
      %v957 = vpack.c.b16 %v944, %v943
      %v958 = vpack.c.b16 %v946, %v945
      %v959 = vpack.c.b16 %v948, %v947
      %v960 = vpack.c.b16 %v950, %v949
      %v961 = vpack.c.b16 %v952, %v951
      %v962 = vpack.c.b16 %v954, %v953
      %971 = vmatprep.subr.bf16.mxu0 0
      %972 = vmatpush1.bf16.msra.mxu0 %v955
      %973 = vmatprep.subr.bf16.mxu0 0
      %974 = vmatpush1.bf16.msra.mxu0 %v956
      %975 = vmatprep.subr.bf16.mxu0 0
      %976 = vmatpush1.bf16.msra.mxu0 %v957
      %977 = vmatprep.subr.bf16.mxu0 0
      %978 = vmatpush1.bf16.msra.mxu0 %v958
      %979 = vmatprep.subr.bf16.mxu0 0
      %980 = vmatpush1.bf16.msra.mxu0 %v959
      %981 = vmatprep.subr.bf16.mxu0 0
      %982 = vmatpush1.bf16.msra.mxu0 %v960
      %983 = vmatprep.subr.bf16.mxu0 0
      %984 = vmatpush1.bf16.msra.mxu0 %v961
      %985 = vmatprep.subr.bf16.mxu0 0
      %986 = vmatpush1.bf16.msra.mxu0 %v962
      %987 = vmatprep.subr.bf16.mxu0 0
      %988 = vmatpush1.bf16.msra.mxu0 0
      %989 = vmatprep.subr.bf16.mxu0 0
      %990 = vmatpush1.bf16.msra.mxu0 0
      %991 = vmatprep.subr.bf16.mxu0 0
      %992 = vmatpush1.bf16.msra.mxu0 0
      %993 = vmatprep.subr.bf16.mxu0 0
      %994 = vmatpush1.bf16.msra.mxu0 0
      %995 = vmatprep.subr.bf16.mxu0 0
      %996 = vmatpush1.bf16.msra.mxu0 0
      %997 = vmatprep.subr.bf16.mxu0 0
      %998 = vmatpush1.bf16.msra.mxu0 0
      %999 = vmatprep.subr.bf16.mxu0 0
      %1000 = vmatpush1.bf16.msra.mxu0 0
      %1001 = vmatprep.subr.bf16.mxu0 0
      %1002 = vmatpush1.bf16.msra.mxu0 0
      %1003 = vmatprep.mubr.bf16.mxu0 0
      %1004 = vmatmul.mubr.bf16.gmra.mrb[0].mxu0 %v880
      %v1005 = vpop.f32.mrb[0].mxu0
      %v1006 = vadd.f32 0.0, %v1005
      %v1007 = vpop.f32.mrb[0].mxu0
      %v1008 = vpop.f32.mrb[0].mxu0
      %v1009 = vadd.f32 0.0, %v1008
      %v1010 = vpop.f32.mrb[0].mxu0
      %1011 = vmatprep.mubr.bf16.mxu0 0
      %1012 = vmatmul.mubr.bf16.gmra.mrb[0].mxu0 %v889
      %v1013 = vpop.f32.mrb[0].mxu0
      %v1014 = vadd.f32 0.0, %v1013
      %v1015 = vpop.f32.mrb[0].mxu0
      %v1016 = vpop.f32.mrb[0].mxu0
      %v1017 = vadd.f32 0.0, %v1016
      %v1018 = vpop.f32.mrb[0].mxu0
      %1019 = vmatprep.mubr.bf16.mxu0 0
      %1020 = vmatmul.mubr.bf16.gmra.mrb[0].mxu0 %v898
      %v1021 = vpop.f32.mrb[0].mxu0
      %v1022 = vadd.f32 0.0, %v1021
      %v1023 = vpop.f32.mrb[0].mxu0
      %v1024 = vpop.f32.mrb[0].mxu0
      %v1025 = vadd.f32 0.0, %v1024
      %v1026 = vpop.f32.mrb[0].mxu0
      %1027 = vmatprep.mubr.bf16.mxu0 0
      %1028 = vmatmul.mubr.bf16.gmra.mrb[0].mxu0 %v907
      %v1029 = vpop.f32.mrb[0].mxu0
      %v1030 = vadd.f32 0.0, %v1029
      %v1031 = vpop.f32.mrb[0].mxu0
      %v1032 = vpop.f32.mrb[0].mxu0
      %v1033 = vadd.f32 0.0, %v1032
      %v1034 = vpop.f32.mrb[0].mxu0
      %1035 = vmatprep.mubr.bf16.mxu0 0
      %1036 = vmatmul.mubr.bf16.gmra.mrb[0].mxu0 %v916
      %v1037 = vpop.f32.mrb[0].mxu0
      %v1038 = vadd.f32 0.0, %v1037
      %v1039 = vpop.f32.mrb[0].mxu0
      %v1040 = vpop.f32.mrb[0].mxu0
      %v1041 = vadd.f32 0.0, %v1040
      %v1042 = vpop.f32.mrb[0].mxu0
      %1043 = vmatprep.mubr.bf16.mxu0 0
      %1044 = vmatmul.mubr.bf16.gmra.mrb[0].mxu0 %v915
      %v1045 = vpop.f32.mrb[0].mxu0
      %v1046 = vadd.f32 0.0, %v1045
      %v1047 = vpop.f32.mrb[0].mxu0
      %v1048 = vpop.f32.mrb[0].mxu0
      %v1049 = vpop.f32.mrb[0].mxu0
      %1050 = vdwg.mxu0
      %v1051 = vadd.f32 %v782, %v1006
      %v1052 = vadd.f32 %v783, %v1009
      %v1053 = vadd.f32 %v784, %v1014
      %v1054 = vadd.f32 %v785, %v1017
      %v1055 = vadd.f32 %v786, %v1022
      %v1056 = vadd.f32 %v787, %v1025
      %v1057 = vadd.f32 %v788, %v1030
      %v1058 = vadd.f32 %v789, %v1033
      %v1059 = vadd.f32 %v790, %v1038
      %v1060 = vadd.f32 %v791, %v1041
      %v1061 = vadd.f32 %v792, %v1046
      %s1062 = scalar_lea.vmem %s1, 256
      %v1063 = vld [vmem:[%s1062] sm:$0xf]
      %v1064 = vld [vmem:[%s1062 + $0x4] sm:$0xf]
      %v1065 = vld [vmem:[%s1062 + $0x8] sm:$0xf]
      %v1066 = vld [vmem:[%s1062 + $0xc] sm:$0xf]
      %v1067 = vld [vmem:[%s1062 + $0x10] sm:$0xf]
      %v1068 = vld [vmem:[%s1062 + $0x14] sm:$0xf]
      %v1069 = vld [vmem:[%s1062 + $0x18] sm:$0xf]
      %v1070 = vld [vmem:[%s1062 + $0x1c] sm:$0xf]
      %v1071 = vld [vmem:[%s1062 + $0x20] sm:$0xf]
      %v1072 = vld [vmem:[%s1062 + $0x24] sm:$0xf]
      %v1073 = vld [vmem:[%s1062 + $0x28] sm:$0xf]
      %v1074 = vld [vmem:[%s1062 + $0x2c] sm:$0xf]
      %v1075 = vld [vmem:[%s1062 + $0x30] sm:$0xf]
      %v1076 = vld [vmem:[%s1062 + $0x34] sm:$0xf]
      %v1077 = vld [vmem:[%s1062 + $0x38] sm:$0xf]
      %v1078 = vld [vmem:[%s1062 + $0x3c] sm:$0xf]
      %v1079 = vpack.c.b16 %v848, %v847
      %v1080 = vpack.c.b16 %v850, %v849
      %v1081 = vpack.c.b16 %v852, %v851
      %v1082 = vpack.c.b16 %v854, %v853
      %v1083 = vpack.c.b16 %v856, %v855
      %v1084 = vpack.c.b16 %v857, %v857
      %v1107 = vunpack.c.l.b16 %v1063
      %v1108 = vunpack.c.l.b16 %v1064
      %v1109 = vunpack.c.l.b16 %v1065
      %v1110 = vunpack.c.l.b16 %v1066
      %v1111 = vunpack.c.l.b16 %v1067
      %v1112 = vunpack.c.l.b16 %v1068
      %v1113 = vunpack.c.l.b16 %v1069
      %v1114 = vunpack.c.l.b16 %v1070
      %v1115 = vunpack.c.l.b16 %v1071
      %v1116 = vunpack.c.l.b16 %v1072
      %v1117 = vunpack.c.l.b16 %v1073
      %v1118 = vunpack.c.l.b16 %v1074
      %v1119 = vunpack.c.l.b16 %v1075
      %v1120 = vunpack.c.l.b16 %v1076
      %v1121 = vunpack.c.l.b16 %v1077
      %v1122 = vunpack.c.l.b16 %v1078
      %v1123 = vpack.c.b16 %v1108, %v1107
      %v1124 = vpack.c.b16 %v1110, %v1109
      %v1125 = vpack.c.b16 %v1112, %v1111
      %v1126 = vpack.c.b16 %v1114, %v1113
      %v1127 = vpack.c.b16 %v1116, %v1115
      %v1128 = vpack.c.b16 %v1118, %v1117
      %v1129 = vpack.c.b16 %v1120, %v1119
      %v1130 = vpack.c.b16 %v1122, %v1121
      %1139 = vmatprep.subr.bf16.mxu0 0
      %1140 = vmatpush1.bf16.msra.mxu0 %v1123
      %1141 = vmatprep.subr.bf16.mxu0 0
      %1142 = vmatpush1.bf16.msra.mxu0 %v1124
      %1143 = vmatprep.subr.bf16.mxu0 0
      %1144 = vmatpush1.bf16.msra.mxu0 %v1125
      %1145 = vmatprep.subr.bf16.mxu0 0
      %1146 = vmatpush1.bf16.msra.mxu0 %v1126
      %1147 = vmatprep.subr.bf16.mxu0 0
      %1148 = vmatpush1.bf16.msra.mxu0 %v1127
      %1149 = vmatprep.subr.bf16.mxu0 0
      %1150 = vmatpush1.bf16.msra.mxu0 %v1128
      %1151 = vmatprep.subr.bf16.mxu0 0
      %1152 = vmatpush1.bf16.msra.mxu0 %v1129
      %1153 = vmatprep.subr.bf16.mxu0 0
      %1154 = vmatpush1.bf16.msra.mxu0 %v1130
      %1155 = vmatprep.subr.bf16.mxu0 0
      %1156 = vmatpush1.bf16.msra.mxu0 0
      %1157 = vmatprep.subr.bf16.mxu0 0
      %1158 = vmatpush1.bf16.msra.mxu0 0
      %1159 = vmatprep.subr.bf16.mxu0 0
      %1160 = vmatpush1.bf16.msra.mxu0 0
      %1161 = vmatprep.subr.bf16.mxu0 0
      %1162 = vmatpush1.bf16.msra.mxu0 0
      %1163 = vmatprep.subr.bf16.mxu0 0
      %1164 = vmatpush1.bf16.msra.mxu0 0
      %1165 = vmatprep.subr.bf16.mxu0 0
      %1166 = vmatpush1.bf16.msra.mxu0 0
      %1167 = vmatprep.subr.bf16.mxu0 0
      %1168 = vmatpush1.bf16.msra.mxu0 0
      %1169 = vmatprep.subr.bf16.mxu0 0
      %1170 = vmatpush1.bf16.msra.mxu0 0
      %1171 = vmatprep.mubr.bf16.mxu0 0
      %1172 = vmatmul.mubr.bf16.gmra.mrb[0].mxu0 %v1079
      %v1173 = vpop.f32.mrb[0].mxu0
      %v1174 = vadd.f32 0.0, %v1173
      %v1175 = vpop.f32.mrb[0].mxu0
      %v1176 = vpop.f32.mrb[0].mxu0
      %v1177 = vadd.f32 0.0, %v1176
      %v1178 = vpop.f32.mrb[0].mxu0
      %1179 = vmatprep.mubr.bf16.mxu0 0
      %1180 = vmatmul.mubr.bf16.gmra.mrb[0].mxu0 %v1080
      %v1181 = vpop.f32.mrb[0].mxu0
      %v1182 = vadd.f32 0.0, %v1181
      %v1183 = vpop.f32.mrb[0].mxu0
      %v1184 = vpop.f32.mrb[0].mxu0
      %v1185 = vadd.f32 0.0, %v1184
      %v1186 = vpop.f32.mrb[0].mxu0
      %1187 = vmatprep.mubr.bf16.mxu0 0
      %1188 = vmatmul.mubr.bf16.gmra.mrb[0].mxu0 %v1081
      %v1189 = vpop.f32.mrb[0].mxu0
      %v1190 = vadd.f32 0.0, %v1189
      %v1191 = vpop.f32.mrb[0].mxu0
      %v1192 = vpop.f32.mrb[0].mxu0
      %v1193 = vadd.f32 0.0, %v1192
      %v1194 = vpop.f32.mrb[0].mxu0
      %1195 = vmatprep.mubr.bf16.mxu0 0
      %1196 = vmatmul.mubr.bf16.gmra.mrb[0].mxu0 %v1082
      %v1197 = vpop.f32.mrb[0].mxu0
      %v1198 = vadd.f32 0.0, %v1197
      %v1199 = vpop.f32.mrb[0].mxu0
      %v1200 = vpop.f32.mrb[0].mxu0
      %v1201 = vadd.f32 0.0, %v1200
      %v1202 = vpop.f32.mrb[0].mxu0
      %1203 = vmatprep.mubr.bf16.mxu0 0
      %1204 = vmatmul.mubr.bf16.gmra.mrb[0].mxu0 %v1083
      %v1205 = vpop.f32.mrb[0].mxu0
      %v1206 = vadd.f32 0.0, %v1205
      %v1207 = vpop.f32.mrb[0].mxu0
      %v1208 = vpop.f32.mrb[0].mxu0
      %v1209 = vadd.f32 0.0, %v1208
      %v1210 = vpop.f32.mrb[0].mxu0
      %1211 = vmatprep.mubr.bf16.mxu0 0
      %1212 = vmatmul.mubr.bf16.gmra.mrb[0].mxu0 %v1084
      %v1213 = vpop.f32.mrb[0].mxu0
      %v1214 = vadd.f32 0.0, %v1213
      %v1215 = vpop.f32.mrb[0].mxu0
      %v1216 = vpop.f32.mrb[0].mxu0
      %v1217 = vpop.f32.mrb[0].mxu0
      %1218 = vdwg.mxu0
      %v1219 = vadd.f32 %v1051, %v1174
      %v1220 = vadd.f32 %v1052, %v1177
      %v1221 = vadd.f32 %v1053, %v1182
      %v1222 = vadd.f32 %v1054, %v1185
      %v1223 = vadd.f32 %v1055, %v1190
      %v1224 = vadd.f32 %v1056, %v1193
      %v1225 = vadd.f32 %v1057, %v1198
      %v1226 = vadd.f32 %v1058, %v1201
      %v1227 = vadd.f32 %v1059, %v1206
      %v1228 = vadd.f32 %v1060, %v1209
      %v1229 = vadd.f32 %v1061, %v1214
      %v1230 = vld [vmem:[%s192 + $0x8] sm:$0xf]
      %v1231 = vld [vmem:[%s192 + $0xc] sm:$0xf]
      %v1232 = vld [vmem:[%s192 + $0x10] sm:$0xf]
      %v1233 = vld [vmem:[%s192 + $0x14] sm:$0xf]
      %v1234 = vld [vmem:[%s192 + $0x18] sm:$0xf]
      %v1235 = vld [vmem:[%s192 + $0x1c] sm:$0xf]
      %v1236 = vld [vmem:[%s192 + $0x20] sm:$0xf]
      %v1237 = vld [vmem:[%s192 + $0x24] sm:$0xf]
      %v1238 = vld [vmem:[%s192 + $0x28] sm:$0xf]
      %v1239 = vld [vmem:[%s192 + $0x2c] sm:$0xf]
      %v1240 = vld [vmem:[%s192 + $0x30] sm:$0xf]
      %v1241 = vld [vmem:[%s192 + $0x34] sm:$0x1]
      %v1242 = vmax.bf16 %v1230, 0
      %v1243 = vmax.bf16 %v1231, 0
      %v1244 = vmax.bf16 %v1232, 0
      %v1245 = vmax.bf16 %v1233, 0
      %v1246 = vmax.bf16 %v1234, 0
      %v1247 = vmax.bf16 %v1235, 0
      %v1248 = vmax.bf16 %v1236, 0
      %v1249 = vmax.bf16 %v1237, 0
      %v1250 = vmax.bf16 %v1238, 0
      %v1251 = vmax.bf16 %v1239, 0
      %v1252 = vmax.bf16 %v1240, 0
      %v1253 = vmax.bf16 %v1241, 0
      %s1254 = scalar_lea.vmem %s1, 320
      %v1255 = vld [vmem:[%s1254] sm:$0xf]
      %v1256 = vld [vmem:[%s1254 + $0x4] sm:$0xf]
      %v1257 = vld [vmem:[%s1254 + $0x8] sm:$0xf]
      %v1258 = vld [vmem:[%s1254 + $0xc] sm:$0xf]
      %v1259 = vld [vmem:[%s1254 + $0x10] sm:$0xf]
      %v1260 = vld [vmem:[%s1254 + $0x14] sm:$0xf]
      %v1261 = vld [vmem:[%s1254 + $0x18] sm:$0xf]
      %v1262 = vld [vmem:[%s1254 + $0x1c] sm:$0xf]
      %v1263 = vld [vmem:[%s1254 + $0x20] sm:$0xf]
      %v1264 = vld [vmem:[%s1254 + $0x24] sm:$0xf]
      %v1265 = vld [vmem:[%s1254 + $0x28] sm:$0xf]
      %v1266 = vld [vmem:[%s1254 + $0x2c] sm:$0xf]
      %v1267 = vld [vmem:[%s1254 + $0x30] sm:$0xf]
      %v1268 = vld [vmem:[%s1254 + $0x34] sm:$0xf]
      %v1269 = vld [vmem:[%s1254 + $0x38] sm:$0xf]
      %v1270 = vld [vmem:[%s1254 + $0x3c] sm:$0xf]
      %v1283 = vunpack.c.l.b16 %v1242
      %v1284 = vunpack.c.l.b16 %v1243
      %v1285 = vunpack.c.l.b16 %v1244
      %v1286 = vunpack.c.l.b16 %v1245
      %v1287 = vunpack.c.l.b16 %v1246
      %v1288 = vunpack.c.l.b16 %v1247
      %v1289 = vunpack.c.l.b16 %v1248
      %v1290 = vunpack.c.l.b16 %v1249
      %v1291 = vunpack.c.l.b16 %v1250
      %v1292 = vunpack.c.l.b16 %v1251
      %v1293 = vunpack.c.l.b16 %v1252
      %v1294 = vunpack.c.l.b16 %v1253
      %v1295 = vpack.c.b16 %v1284, %v1283
      %v1296 = vpack.c.b16 %v1286, %v1285
      %v1297 = vpack.c.b16 %v1288, %v1287
      %v1298 = vpack.c.b16 %v1290, %v1289
      %v1299 = vpack.c.b16 %v1292, %v1291
      %v1300 = vpack.c.b16 %v1294, %v1293
      %vm1301 = vsmask.f32 7424
      %v1303 = vshrl.u32 %v1295, 16
      %v1305 = vshll.u32 %v1295, 16
      %v1307 = vrot.slane %v1305, 1
      %v1308 = vor.u32 %v1303, %v1307
      %v1310 = vshll.u32 %v1296, 16
      %v1312 = vrot.slane %v1310, 1
      %v1313 = vsel %vm1301, %v1308, %v1312
      %v1314 = vshrl.u32 %v1296, 16
      %v1316 = vor.u32 %v1314, %v1312
      %v1318 = vshll.u32 %v1297, 16
      %v1320 = vrot.slane %v1318, 1
      %v1321 = vsel %vm1301, %v1316, %v1320
      %v1322 = vshrl.u32 %v1297, 16
      %v1324 = vor.u32 %v1322, %v1320
      %v1326 = vshll.u32 %v1298, 16
      %v1328 = vrot.slane %v1326, 1
      %v1329 = vsel %vm1301, %v1324, %v1328
      %v1330 = vshrl.u32 %v1298, 16
      %v1332 = vor.u32 %v1330, %v1328
      %v1334 = vshll.u32 %v1299, 16
      %v1336 = vrot.slane %v1334, 1
      %v1337 = vsel %vm1301, %v1332, %v1336
      %v1338 = vshrl.u32 %v1299, 16
      %v1340 = vor.u32 %v1338, %v1336
      %v1342 = vshll.u32 %v1300, 16
      %v1344 = vrot.slane %v1342, 1
      %v1345 = vsel %vm1301, %v1340, %v1344
      %v1346 = vshrl.u32 %v1300, 16
      %v1348 = vor.u32 %v1346, %v1344
      %v1371 = vunpack.c.l.b16 %v1255
      %v1372 = vunpack.c.l.b16 %v1256
      %v1373 = vunpack.c.l.b16 %v1257
      %v1374 = vunpack.c.l.b16 %v1258
      %v1375 = vunpack.c.l.b16 %v1259
      %v1376 = vunpack.c.l.b16 %v1260
      %v1377 = vunpack.c.l.b16 %v1261
      %v1378 = vunpack.c.l.b16 %v1262
      %v1379 = vunpack.c.l.b16 %v1263
      %v1380 = vunpack.c.l.b16 %v1264
      %v1381 = vunpack.c.l.b16 %v1265
      %v1382 = vunpack.c.l.b16 %v1266
      %v1383 = vunpack.c.l.b16 %v1267
      %v1384 = vunpack.c.l.b16 %v1268
      %v1385 = vunpack.c.l.b16 %v1269
      %v1386 = vunpack.c.l.b16 %v1270
      %v1387 = vpack.c.b16 %v1372, %v1371
      %v1388 = vpack.c.b16 %v1374, %v1373
      %v1389 = vpack.c.b16 %v1376, %v1375
      %v1390 = vpack.c.b16 %v1378, %v1377
      %v1391 = vpack.c.b16 %v1380, %v1379
      %v1392 = vpack.c.b16 %v1382, %v1381
      %v1393 = vpack.c.b16 %v1384, %v1383
      %v1394 = vpack.c.b16 %v1386, %v1385
      %1403 = vmatprep.subr.bf16.mxu0 0
      %1404 = vmatpush1.bf16.msra.mxu0 %v1387
      %1405 = vmatprep.subr.bf16.mxu0 0
      %1406 = vmatpush1.bf16.msra.mxu0 %v1388
      %1407 = vmatprep.subr.bf16.mxu0 0
      %1408 = vmatpush1.bf16.msra.mxu0 %v1389
      %1409 = vmatprep.subr.bf16.mxu0 0
      %1410 = vmatpush1.bf16.msra.mxu0 %v1390
      %1411 = vmatprep.subr.bf16.mxu0 0
      %1412 = vmatpush1.bf16.msra.mxu0 %v1391
      %1413 = vmatprep.subr.bf16.mxu0 0
      %1414 = vmatpush1.bf16.msra.mxu0 %v1392
      %1415 = vmatprep.subr.bf16.mxu0 0
      %1416 = vmatpush1.bf16.msra.mxu0 %v1393
      %1417 = vmatprep.subr.bf16.mxu0 0
      %1418 = vmatpush1.bf16.msra.mxu0 %v1394
      %1419 = vmatprep.subr.bf16.mxu0 0
      %1420 = vmatpush1.bf16.msra.mxu0 0
      %1421 = vmatprep.subr.bf16.mxu0 0
      %1422 = vmatpush1.bf16.msra.mxu0 0
      %1423 = vmatprep.subr.bf16.mxu0 0
      %1424 = vmatpush1.bf16.msra.mxu0 0
      %1425 = vmatprep.subr.bf16.mxu0 0
      %1426 = vmatpush1.bf16.msra.mxu0 0
      %1427 = vmatprep.subr.bf16.mxu0 0
      %1428 = vmatpush1.bf16.msra.mxu0 0
      %1429 = vmatprep.subr.bf16.mxu0 0
      %1430 = vmatpush1.bf16.msra.mxu0 0
      %1431 = vmatprep.subr.bf16.mxu0 0
      %1432 = vmatpush1.bf16.msra.mxu0 0
      %1433 = vmatprep.subr.bf16.mxu0 0
      %1434 = vmatpush1.bf16.msra.mxu0 0
      %1435 = vmatprep.mubr.bf16.mxu0 0
      %1436 = vmatmul.mubr.bf16.gmra.mrb[0].mxu0 %v1313
      %v1437 = vpop.f32.mrb[0].mxu0
      %v1438 = vadd.f32 0.0, %v1437
      %v1439 = vpop.f32.mrb[0].mxu0
      %v1440 = vpop.f32.mrb[0].mxu0
      %v1441 = vadd.f32 0.0, %v1440
      %v1442 = vpop.f32.mrb[0].mxu0
      %1443 = vmatprep.mubr.bf16.mxu0 0
      %1444 = vmatmul.mubr.bf16.gmra.mrb[0].mxu0 %v1321
      %v1445 = vpop.f32.mrb[0].mxu0
      %v1446 = vadd.f32 0.0, %v1445
      %v1447 = vpop.f32.mrb[0].mxu0
      %v1448 = vpop.f32.mrb[0].mxu0
      %v1449 = vadd.f32 0.0, %v1448
      %v1450 = vpop.f32.mrb[0].mxu0
      %1451 = vmatprep.mubr.bf16.mxu0 0
      %1452 = vmatmul.mubr.bf16.gmra.mrb[0].mxu0 %v1329
      %v1453 = vpop.f32.mrb[0].mxu0
      %v1454 = vadd.f32 0.0, %v1453
      %v1455 = vpop.f32.mrb[0].mxu0
      %v1456 = vpop.f32.mrb[0].mxu0
      %v1457 = vadd.f32 0.0, %v1456
      %v1458 = vpop.f32.mrb[0].mxu0
      %1459 = vmatprep.mubr.bf16.mxu0 0
      %1460 = vmatmul.mubr.bf16.gmra.mrb[0].mxu0 %v1337
      %v1461 = vpop.f32.mrb[0].mxu0
      %v1462 = vadd.f32 0.0, %v1461
      %v1463 = vpop.f32.mrb[0].mxu0
      %v1464 = vpop.f32.mrb[0].mxu0
      %v1465 = vadd.f32 0.0, %v1464
      %v1466 = vpop.f32.mrb[0].mxu0
      %1467 = vmatprep.mubr.bf16.mxu0 0
      %1468 = vmatmul.mubr.bf16.gmra.mrb[0].mxu0 %v1345
      %v1469 = vpop.f32.mrb[0].mxu0
      %v1470 = vadd.f32 0.0, %v1469
      %v1471 = vpop.f32.mrb[0].mxu0
      %v1472 = vpop.f32.mrb[0].mxu0
      %v1473 = vadd.f32 0.0, %v1472
      %v1474 = vpop.f32.mrb[0].mxu0
      %1475 = vmatprep.mubr.bf16.mxu0 0
      %1476 = vmatmul.mubr.bf16.gmra.mrb[0].mxu0 %v1348
      %v1477 = vpop.f32.mrb[0].mxu0
      %v1478 = vadd.f32 0.0, %v1477
      %v1479 = vpop.f32.mrb[0].mxu0
      %v1480 = vpop.f32.mrb[0].mxu0
      %v1481 = vpop.f32.mrb[0].mxu0
      %1482 = vdwg.mxu0
      %v1483 = vadd.f32 %v1219, %v1438
      %v1484 = vadd.f32 %v1220, %v1441
      %v1485 = vadd.f32 %v1221, %v1446
      %v1486 = vadd.f32 %v1222, %v1449
      %v1487 = vadd.f32 %v1223, %v1454
      %v1488 = vadd.f32 %v1224, %v1457
      %v1489 = vadd.f32 %v1225, %v1462
      %v1490 = vadd.f32 %v1226, %v1465
      %v1491 = vadd.f32 %v1227, %v1470
      %v1492 = vadd.f32 %v1228, %v1473
      %v1493 = vadd.f32 %v1229, %v1478
      %v1494 = vld [vmem:[%s192 + $0x34] sm:$0xf]
      %v1495 = vmax.bf16 %v1494, 0
      %s1496 = scalar_lea.vmem %s1, 384
      %v1497 = vld [vmem:[%s1496] sm:$0xf]
      %v1498 = vld [vmem:[%s1496 + $0x4] sm:$0xf]
      %v1499 = vld [vmem:[%s1496 + $0x8] sm:$0xf]
      %v1500 = vld [vmem:[%s1496 + $0xc] sm:$0xf]
      %v1501 = vld [vmem:[%s1496 + $0x10] sm:$0xf]
      %v1502 = vld [vmem:[%s1496 + $0x14] sm:$0xf]
      %v1503 = vld [vmem:[%s1496 + $0x18] sm:$0xf]
      %v1504 = vld [vmem:[%s1496 + $0x1c] sm:$0xf]
      %v1505 = vld [vmem:[%s1496 + $0x20] sm:$0xf]
      %v1506 = vld [vmem:[%s1496 + $0x24] sm:$0xf]
      %v1507 = vld [vmem:[%s1496 + $0x28] sm:$0xf]
      %v1508 = vld [vmem:[%s1496 + $0x2c] sm:$0xf]
      %v1509 = vld [vmem:[%s1496 + $0x30] sm:$0xf]
      %v1510 = vld [vmem:[%s1496 + $0x34] sm:$0xf]
      %v1511 = vld [vmem:[%s1496 + $0x38] sm:$0xf]
      %v1512 = vld [vmem:[%s1496 + $0x3c] sm:$0xf]
      %v1514 = vunpack.c.l.b16 %v1495
      %v1515 = vpack.c.b16 %v1285, %v1284
      %v1516 = vpack.c.b16 %v1287, %v1286
      %v1517 = vpack.c.b16 %v1289, %v1288
      %v1518 = vpack.c.b16 %v1291, %v1290
      %v1519 = vpack.c.b16 %v1293, %v1292
      %v1520 = vpack.c.b16 %v1514, %v1514
      %v1543 = vunpack.c.l.b16 %v1497
      %v1544 = vunpack.c.l.b16 %v1498
      %v1545 = vunpack.c.l.b16 %v1499
      %v1546 = vunpack.c.l.b16 %v1500
      %v1547 = vunpack.c.l.b16 %v1501
      %v1548 = vunpack.c.l.b16 %v1502
      %v1549 = vunpack.c.l.b16 %v1503
      %v1550 = vunpack.c.l.b16 %v1504
      %v1551 = vunpack.c.l.b16 %v1505
      %v1552 = vunpack.c.l.b16 %v1506
      %v1553 = vunpack.c.l.b16 %v1507
      %v1554 = vunpack.c.l.b16 %v1508
      %v1555 = vunpack.c.l.b16 %v1509
      %v1556 = vunpack.c.l.b16 %v1510
      %v1557 = vunpack.c.l.b16 %v1511
      %v1558 = vunpack.c.l.b16 %v1512
      %v1559 = vpack.c.b16 %v1544, %v1543
      %v1560 = vpack.c.b16 %v1546, %v1545
      %v1561 = vpack.c.b16 %v1548, %v1547
      %v1562 = vpack.c.b16 %v1550, %v1549
      %v1563 = vpack.c.b16 %v1552, %v1551
      %v1564 = vpack.c.b16 %v1554, %v1553
      %v1565 = vpack.c.b16 %v1556, %v1555
      %v1566 = vpack.c.b16 %v1558, %v1557
      %1575 = vmatprep.subr.bf16.mxu0 0
      %1576 = vmatpush1.bf16.msra.mxu0 %v1559
      %1577 = vmatprep.subr.bf16.mxu0 0
      %1578 = vmatpush1.bf16.msra.mxu0 %v1560
      %1579 = vmatprep.subr.bf16.mxu0 0
      %1580 = vmatpush1.bf16.msra.mxu0 %v1561
      %1581 = vmatprep.subr.bf16.mxu0 0
      %1582 = vmatpush1.bf16.msra.mxu0 %v1562
      %1583 = vmatprep.subr.bf16.mxu0 0
      %1584 = vmatpush1.bf16.msra.mxu0 %v1563
      %1585 = vmatprep.subr.bf16.mxu0 0
      %1586 = vmatpush1.bf16.msra.mxu0 %v1564
      %1587 = vmatprep.subr.bf16.mxu0 0
      %1588 = vmatpush1.bf16.msra.mxu0 %v1565
      %1589 = vmatprep.subr.bf16.mxu0 0
      %1590 = vmatpush1.bf16.msra.mxu0 %v1566
      %1591 = vmatprep.subr.bf16.mxu0 0
      %1592 = vmatpush1.bf16.msra.mxu0 0
      %1593 = vmatprep.subr.bf16.mxu0 0
      %1594 = vmatpush1.bf16.msra.mxu0 0
      %1595 = vmatprep.subr.bf16.mxu0 0
      %1596 = vmatpush1.bf16.msra.mxu0 0
      %1597 = vmatprep.subr.bf16.mxu0 0
      %1598 = vmatpush1.bf16.msra.mxu0 0
      %1599 = vmatprep.subr.bf16.mxu0 0
      %1600 = vmatpush1.bf16.msra.mxu0 0
      %1601 = vmatprep.subr.bf16.mxu0 0
      %1602 = vmatpush1.bf16.msra.mxu0 0
      %1603 = vmatprep.subr.bf16.mxu0 0
      %1604 = vmatpush1.bf16.msra.mxu0 0
      %1605 = vmatprep.subr.bf16.mxu0 0
      %1606 = vmatpush1.bf16.msra.mxu0 0
      %1607 = vmatprep.mubr.bf16.mxu0 0
      %1608 = vmatmul.mubr.bf16.gmra.mrb[0].mxu0 %v1515
      %v1609 = vpop.f32.mrb[0].mxu0
      %v1610 = vadd.f32 0.0, %v1609
      %v1611 = vpop.f32.mrb[0].mxu0
      %v1612 = vpop.f32.mrb[0].mxu0
      %v1613 = vadd.f32 0.0, %v1612
      %v1614 = vpop.f32.mrb[0].mxu0
      %1615 = vmatprep.mubr.bf16.mxu0 0
      %1616 = vmatmul.mubr.bf16.gmra.mrb[0].mxu0 %v1516
      %v1617 = vpop.f32.mrb[0].mxu0
      %v1618 = vadd.f32 0.0, %v1617
      %v1619 = vpop.f32.mrb[0].mxu0
      %v1620 = vpop.f32.mrb[0].mxu0
      %v1621 = vadd.f32 0.0, %v1620
      %v1622 = vpop.f32.mrb[0].mxu0
      %1623 = vmatprep.mubr.bf16.mxu0 0
      %1624 = vmatmul.mubr.bf16.gmra.mrb[0].mxu0 %v1517
      %v1625 = vpop.f32.mrb[0].mxu0
      %v1626 = vadd.f32 0.0, %v1625
      %v1627 = vpop.f32.mrb[0].mxu0
      %v1628 = vpop.f32.mrb[0].mxu0
      %v1629 = vadd.f32 0.0, %v1628
      %v1630 = vpop.f32.mrb[0].mxu0
      %1631 = vmatprep.mubr.bf16.mxu0 0
      %1632 = vmatmul.mubr.bf16.gmra.mrb[0].mxu0 %v1518
      %v1633 = vpop.f32.mrb[0].mxu0
      %v1634 = vadd.f32 0.0, %v1633
      %v1635 = vpop.f32.mrb[0].mxu0
      %v1636 = vpop.f32.mrb[0].mxu0
      %v1637 = vadd.f32 0.0, %v1636
      %v1638 = vpop.f32.mrb[0].mxu0
      %1639 = vmatprep.mubr.bf16.mxu0 0
      %1640 = vmatmul.mubr.bf16.gmra.mrb[0].mxu0 %v1519
      %v1641 = vpop.f32.mrb[0].mxu0
      %v1642 = vadd.f32 0.0, %v1641
      %v1643 = vpop.f32.mrb[0].mxu0
      %v1644 = vpop.f32.mrb[0].mxu0
      %v1645 = vadd.f32 0.0, %v1644
      %v1646 = vpop.f32.mrb[0].mxu0
      %1647 = vmatprep.mubr.bf16.mxu0 0
      %1648 = vmatmul.mubr.bf16.gmra.mrb[0].mxu0 %v1520
      %v1649 = vpop.f32.mrb[0].mxu0
      %v1650 = vadd.f32 0.0, %v1649
      %v1651 = vpop.f32.mrb[0].mxu0
      %v1652 = vpop.f32.mrb[0].mxu0
      %v1653 = vpop.f32.mrb[0].mxu0
      %1654 = vdwg.mxu0
      %v1655 = vadd.f32 %v1483, %v1610
      %v1656 = vadd.f32 %v1484, %v1613
      %v1657 = vadd.f32 %v1485, %v1618
      %v1658 = vadd.f32 %v1486, %v1621
      %v1659 = vadd.f32 %v1487, %v1626
      %v1660 = vadd.f32 %v1488, %v1629
      %v1661 = vadd.f32 %v1489, %v1634
      %v1662 = vadd.f32 %v1490, %v1637
      %v1663 = vadd.f32 %v1491, %v1642
      %v1664 = vadd.f32 %v1492, %v1645
      %v1665 = vadd.f32 %v1493, %v1650
      %v1666 = vld [vmem:[%s192 + $0xc] sm:$0xf]
      %v1667 = vld [vmem:[%s192 + $0x10] sm:$0xf]
      %v1668 = vld [vmem:[%s192 + $0x14] sm:$0xf]
      %v1669 = vld [vmem:[%s192 + $0x18] sm:$0xf]
      %v1670 = vld [vmem:[%s192 + $0x1c] sm:$0xf]
      %v1671 = vld [vmem:[%s192 + $0x20] sm:$0xf]
      %v1672 = vld [vmem:[%s192 + $0x24] sm:$0xf]
      %v1673 = vld [vmem:[%s192 + $0x28] sm:$0xf]
      %v1674 = vld [vmem:[%s192 + $0x2c] sm:$0xf]
      %v1675 = vld [vmem:[%s192 + $0x30] sm:$0xf]
      %v1676 = vld [vmem:[%s192 + $0x34] sm:$0xf]
      %v1677 = vld [vmem:[%s192 + $0x38] sm:$0x1]
      %v1678 = vmax.bf16 %v1666, 0
      %v1679 = vmax.bf16 %v1667, 0
      %v1680 = vmax.bf16 %v1668, 0
      %v1681 = vmax.bf16 %v1669, 0
      %v1682 = vmax.bf16 %v1670, 0
      %v1683 = vmax.bf16 %v1671, 0
      %v1684 = vmax.bf16 %v1672, 0
      %v1685 = vmax.bf16 %v1673, 0
      %v1686 = vmax.bf16 %v1674, 0
      %v1687 = vmax.bf16 %v1675, 0
      %v1688 = vmax.bf16 %v1676, 0
      %v1689 = vmax.bf16 %v1677, 0
      %s1690 = scalar_lea.vmem %s1, 448
      %v1691 = vld [vmem:[%s1690] sm:$0xf]
      %v1692 = vld [vmem:[%s1690 + $0x4] sm:$0xf]
      %v1693 = vld [vmem:[%s1690 + $0x8] sm:$0xf]
      %v1694 = vld [vmem:[%s1690 + $0xc] sm:$0xf]
      %v1695 = vld [vmem:[%s1690 + $0x10] sm:$0xf]
      %v1696 = vld [vmem:[%s1690 + $0x14] sm:$0xf]
      %v1697 = vld [vmem:[%s1690 + $0x18] sm:$0xf]
      %v1698 = vld [vmem:[%s1690 + $0x1c] sm:$0xf]
      %v1699 = vld [vmem:[%s1690 + $0x20] sm:$0xf]
      %v1700 = vld [vmem:[%s1690 + $0x24] sm:$0xf]
      %v1701 = vld [vmem:[%s1690 + $0x28] sm:$0xf]
      %v1702 = vld [vmem:[%s1690 + $0x2c] sm:$0xf]
      %v1703 = vld [vmem:[%s1690 + $0x30] sm:$0xf]
      %v1704 = vld [vmem:[%s1690 + $0x34] sm:$0xf]
      %v1705 = vld [vmem:[%s1690 + $0x38] sm:$0xf]
      %v1706 = vld [vmem:[%s1690 + $0x3c] sm:$0xf]
      %v1719 = vunpack.c.l.b16 %v1678
      %v1720 = vunpack.c.l.b16 %v1679
      %v1721 = vunpack.c.l.b16 %v1680
      %v1722 = vunpack.c.l.b16 %v1681
      %v1723 = vunpack.c.l.b16 %v1682
      %v1724 = vunpack.c.l.b16 %v1683
      %v1725 = vunpack.c.l.b16 %v1684
      %v1726 = vunpack.c.l.b16 %v1685
      %v1727 = vunpack.c.l.b16 %v1686
      %v1728 = vunpack.c.l.b16 %v1687
      %v1729 = vunpack.c.l.b16 %v1688
      %v1730 = vunpack.c.l.b16 %v1689
      %v1731 = vpack.c.b16 %v1720, %v1719
      %v1732 = vpack.c.b16 %v1722, %v1721
      %v1733 = vpack.c.b16 %v1724, %v1723
      %v1734 = vpack.c.b16 %v1726, %v1725
      %v1735 = vpack.c.b16 %v1728, %v1727
      %v1736 = vpack.c.b16 %v1730, %v1729
      %v1738 = vshrl.u32 %v1731, 16
      %v1740 = vshll.u32 %v1731, 16
      %v1742 = vrot.slane %v1740, 1
      %v1743 = vor.u32 %v1738, %v1742
      %v1745 = vshll.u32 %v1732, 16
      %v1747 = vrot.slane %v1745, 1
      %v1748 = vsel %vm1301, %v1743, %v1747
      %v1749 = vshrl.u32 %v1732, 16
      %v1751 = vor.u32 %v1749, %v1747
      %v1753 = vshll.u32 %v1733, 16
      %v1755 = vrot.slane %v1753, 1
      %v1756 = vsel %vm1301, %v1751, %v1755
      %v1757 = vshrl.u32 %v1733, 16
      %v1759 = vor.u32 %v1757, %v1755
      %v1761 = vshll.u32 %v1734, 16
      %v1763 = vrot.slane %v1761, 1
      %v1764 = vsel %vm1301, %v1759, %v1763
      %v1765 = vshrl.u32 %v1734, 16
      %v1767 = vor.u32 %v1765, %v1763
      %v1769 = vshll.u32 %v1735, 16
      %v1771 = vrot.slane %v1769, 1
      %v1772 = vsel %vm1301, %v1767, %v1771
      %v1773 = vshrl.u32 %v1735, 16
      %v1775 = vor.u32 %v1773, %v1771
      %v1777 = vshll.u32 %v1736, 16
      %v1779 = vrot.slane %v1777, 1
      %v1780 = vsel %vm1301, %v1775, %v1779
      %v1781 = vshrl.u32 %v1736, 16
      %v1783 = vor.u32 %v1781, %v1779
      %v1806 = vunpack.c.l.b16 %v1691
      %v1807 = vunpack.c.l.b16 %v1692
      %v1808 = vunpack.c.l.b16 %v1693
      %v1809 = vunpack.c.l.b16 %v1694
      %v1810 = vunpack.c.l.b16 %v1695
      %v1811 = vunpack.c.l.b16 %v1696
      %v1812 = vunpack.c.l.b16 %v1697
      %v1813 = vunpack.c.l.b16 %v1698
      %v1814 = vunpack.c.l.b16 %v1699
      %v1815 = vunpack.c.l.b16 %v1700
      %v1816 = vunpack.c.l.b16 %v1701
      %v1817 = vunpack.c.l.b16 %v1702
      %v1818 = vunpack.c.l.b16 %v1703
      %v1819 = vunpack.c.l.b16 %v1704
      %v1820 = vunpack.c.l.b16 %v1705
      %v1821 = vunpack.c.l.b16 %v1706
      %v1822 = vpack.c.b16 %v1807, %v1806
      %v1823 = vpack.c.b16 %v1809, %v1808
      %v1824 = vpack.c.b16 %v1811, %v1810
      %v1825 = vpack.c.b16 %v1813, %v1812
      %v1826 = vpack.c.b16 %v1815, %v1814
      %v1827 = vpack.c.b16 %v1817, %v1816
      %v1828 = vpack.c.b16 %v1819, %v1818
      %v1829 = vpack.c.b16 %v1821, %v1820
      %1838 = vmatprep.subr.bf16.mxu0 0
      %1839 = vmatpush1.bf16.msra.mxu0 %v1822
      %1840 = vmatprep.subr.bf16.mxu0 0
      %1841 = vmatpush1.bf16.msra.mxu0 %v1823
      %1842 = vmatprep.subr.bf16.mxu0 0
      %1843 = vmatpush1.bf16.msra.mxu0 %v1824
      %1844 = vmatprep.subr.bf16.mxu0 0
      %1845 = vmatpush1.bf16.msra.mxu0 %v1825
      %1846 = vmatprep.subr.bf16.mxu0 0
      %1847 = vmatpush1.bf16.msra.mxu0 %v1826
      %1848 = vmatprep.subr.bf16.mxu0 0
      %1849 = vmatpush1.bf16.msra.mxu0 %v1827
      %1850 = vmatprep.subr.bf16.mxu0 0
      %1851 = vmatpush1.bf16.msra.mxu0 %v1828
      %1852 = vmatprep.subr.bf16.mxu0 0
      %1853 = vmatpush1.bf16.msra.mxu0 %v1829
      %1854 = vmatprep.subr.bf16.mxu0 0
      %1855 = vmatpush1.bf16.msra.mxu0 0
      %1856 = vmatprep.subr.bf16.mxu0 0
      %1857 = vmatpush1.bf16.msra.mxu0 0
      %1858 = vmatprep.subr.bf16.mxu0 0
      %1859 = vmatpush1.bf16.msra.mxu0 0
      %1860 = vmatprep.subr.bf16.mxu0 0
      %1861 = vmatpush1.bf16.msra.mxu0 0
      %1862 = vmatprep.subr.bf16.mxu0 0
      %1863 = vmatpush1.bf16.msra.mxu0 0
      %1864 = vmatprep.subr.bf16.mxu0 0
      %1865 = vmatpush1.bf16.msra.mxu0 0
      %1866 = vmatprep.subr.bf16.mxu0 0
      %1867 = vmatpush1.bf16.msra.mxu0 0
      %1868 = vmatprep.subr.bf16.mxu0 0
      %1869 = vmatpush1.bf16.msra.mxu0 0
      %1870 = vmatprep.mubr.bf16.mxu0 0
      %1871 = vmatmul.mubr.bf16.gmra.mrb[0].mxu0 %v1748
      %v1872 = vpop.f32.mrb[0].mxu0
      %v1873 = vadd.f32 0.0, %v1872
      %v1874 = vpop.f32.mrb[0].mxu0
      %v1875 = vpop.f32.mrb[0].mxu0
      %v1876 = vadd.f32 0.0, %v1875
      %v1877 = vpop.f32.mrb[0].mxu0
      %1878 = vmatprep.mubr.bf16.mxu0 0
      %1879 = vmatmul.mubr.bf16.gmra.mrb[0].mxu0 %v1756
      %v1880 = vpop.f32.mrb[0].mxu0
      %v1881 = vadd.f32 0.0, %v1880
      %v1882 = vpop.f32.mrb[0].mxu0
      %v1883 = vpop.f32.mrb[0].mxu0
      %v1884 = vadd.f32 0.0, %v1883
      %v1885 = vpop.f32.mrb[0].mxu0
      %1886 = vmatprep.mubr.bf16.mxu0 0
      %1887 = vmatmul.mubr.bf16.gmra.mrb[0].mxu0 %v1764
      %v1888 = vpop.f32.mrb[0].mxu0
      %v1889 = vadd.f32 0.0, %v1888
      %v1890 = vpop.f32.mrb[0].mxu0
      %v1891 = vpop.f32.mrb[0].mxu0
      %v1892 = vadd.f32 0.0, %v1891
      %v1893 = vpop.f32.mrb[0].mxu0
      %1894 = vmatprep.mubr.bf16.mxu0 0
      %1895 = vmatmul.mubr.bf16.gmra.mrb[0].mxu0 %v1772
      %v1896 = vpop.f32.mrb[0].mxu0
      %v1897 = vadd.f32 0.0, %v1896
      %v1898 = vpop.f32.mrb[0].mxu0
      %v1899 = vpop.f32.mrb[0].mxu0
      %v1900 = vadd.f32 0.0, %v1899
      %v1901 = vpop.f32.mrb[0].mxu0
      %1902 = vmatprep.mubr.bf16.mxu0 0
      %1903 = vmatmul.mubr.bf16.gmra.mrb[0].mxu0 %v1780
      %v1904 = vpop.f32.mrb[0].mxu0
      %v1905 = vadd.f32 0.0, %v1904
      %v1906 = vpop.f32.mrb[0].mxu0
      %v1907 = vpop.f32.mrb[0].mxu0
      %v1908 = vadd.f32 0.0, %v1907
      %v1909 = vpop.f32.mrb[0].mxu0
      %1910 = vmatprep.mubr.bf16.mxu0 0
      %1911 = vmatmul.mubr.bf16.gmra.mrb[0].mxu0 %v1783
      %v1912 = vpop.f32.mrb[0].mxu0
      %v1913 = vadd.f32 0.0, %v1912
      %v1914 = vpop.f32.mrb[0].mxu0
      %v1915 = vpop.f32.mrb[0].mxu0
      %v1916 = vpop.f32.mrb[0].mxu0
      %1917 = vdwg.mxu0
      %v1918 = vadd.f32 %v1655, %v1873
      %v1919 = vadd.f32 %v1656, %v1876
      %v1920 = vadd.f32 %v1657, %v1881
      %v1921 = vadd.f32 %v1658, %v1884
      %v1922 = vadd.f32 %v1659, %v1889
      %v1923 = vadd.f32 %v1660, %v1892
      %v1924 = vadd.f32 %v1661, %v1897
      %v1925 = vadd.f32 %v1662, %v1900
      %v1926 = vadd.f32 %v1663, %v1905
      %v1927 = vadd.f32 %v1664, %v1908
      %v1928 = vadd.f32 %v1665, %v1913
      %v1929 = vld [vmem:[%s192 + $0xc] sm:$0xe]
      %v1930 = vmax.bf16 %v1929, 0
      %s1931 = scalar_lea.vmem %s1, 512
      %v1932 = vld [vmem:[%s1931] sm:$0xf]
      %v1933 = vld [vmem:[%s1931 + $0x4] sm:$0xf]
      %v1934 = vld [vmem:[%s1931 + $0x8] sm:$0xf]
      %v1935 = vld [vmem:[%s1931 + $0xc] sm:$0xf]
      %v1936 = vld [vmem:[%s1931 + $0x10] sm:$0xf]
      %v1937 = vld [vmem:[%s1931 + $0x14] sm:$0xf]
      %v1938 = vld [vmem:[%s1931 + $0x18] sm:$0xf]
      %v1939 = vld [vmem:[%s1931 + $0x1c] sm:$0xf]
      %v1940 = vld [vmem:[%s1931 + $0x20] sm:$0xf]
      %v1941 = vld [vmem:[%s1931 + $0x24] sm:$0xf]
      %v1942 = vld [vmem:[%s1931 + $0x28] sm:$0xf]
      %v1943 = vld [vmem:[%s1931 + $0x2c] sm:$0xf]
      %v1944 = vld [vmem:[%s1931 + $0x30] sm:$0xf]
      %v1945 = vld [vmem:[%s1931 + $0x34] sm:$0xf]
      %v1946 = vld [vmem:[%s1931 + $0x38] sm:$0xf]
      %v1947 = vld [vmem:[%s1931 + $0x3c] sm:$0xf]
      %v1949 = vunpack.c.l.b16 %v1930
      %v1950 = vpack.c.b16 %v1720, %v1949
      %vm1951 = vcmask 1046528
      %v1952 = vrot.slane %v1950, 1
      %v1953 = vrot.slane %v1732, 1
      %v1954 = vsel %vm1951, %v1952, %v1953
      %v1955 = vrot.slane %v1733, 1
      %v1956 = vsel %vm1951, %v1953, %v1955
      %v1957 = vrot.slane %v1734, 1
      %v1958 = vsel %vm1951, %v1955, %v1957
      %v1959 = vrot.slane %v1735, 1
      %v1960 = vsel %vm1951, %v1957, %v1959
      %v1961 = vrot.slane %v1736, 1
      %v1962 = vsel %vm1951, %v1959, %v1961
      %v1985 = vunpack.c.l.b16 %v1932
      %v1986 = vunpack.c.l.b16 %v1933
      %v1987 = vunpack.c.l.b16 %v1934
      %v1988 = vunpack.c.l.b16 %v1935
      %v1989 = vunpack.c.l.b16 %v1936
      %v1990 = vunpack.c.l.b16 %v1937
      %v1991 = vunpack.c.l.b16 %v1938
      %v1992 = vunpack.c.l.b16 %v1939
      %v1993 = vunpack.c.l.b16 %v1940
      %v1994 = vunpack.c.l.b16 %v1941
      %v1995 = vunpack.c.l.b16 %v1942
      %v1996 = vunpack.c.l.b16 %v1943
      %v1997 = vunpack.c.l.b16 %v1944
      %v1998 = vunpack.c.l.b16 %v1945
      %v1999 = vunpack.c.l.b16 %v1946
      %v2000 = vunpack.c.l.b16 %v1947
      %v2001 = vpack.c.b16 %v1986, %v1985
      %v2002 = vpack.c.b16 %v1988, %v1987
      %v2003 = vpack.c.b16 %v1990, %v1989
      %v2004 = vpack.c.b16 %v1992, %v1991
      %v2005 = vpack.c.b16 %v1994, %v1993
      %v2006 = vpack.c.b16 %v1996, %v1995
      %v2007 = vpack.c.b16 %v1998, %v1997
      %v2008 = vpack.c.b16 %v2000, %v1999
      %2017 = vmatprep.subr.bf16.mxu0 0
      %2018 = vmatpush1.bf16.msra.mxu0 %v2001
      %2019 = vmatprep.subr.bf16.mxu0 0
      %2020 = vmatpush1.bf16.msra.mxu0 %v2002
      %2021 = vmatprep.subr.bf16.mxu0 0
      %2022 = vmatpush1.bf16.msra.mxu0 %v2003
      %2023 = vmatprep.subr.bf16.mxu0 0
      %2024 = vmatpush1.bf16.msra.mxu0 %v2004
      %2025 = vmatprep.subr.bf16.mxu0 0
      %2026 = vmatpush1.bf16.msra.mxu0 %v2005
      %2027 = vmatprep.subr.bf16.mxu0 0
      %2028 = vmatpush1.bf16.msra.mxu0 %v2006
      %2029 = vmatprep.subr.bf16.mxu0 0
      %2030 = vmatpush1.bf16.msra.mxu0 %v2007
      %2031 = vmatprep.subr.bf16.mxu0 0
      %2032 = vmatpush1.bf16.msra.mxu0 %v2008
      %2033 = vmatprep.subr.bf16.mxu0 0
      %2034 = vmatpush1.bf16.msra.mxu0 0
      %2035 = vmatprep.subr.bf16.mxu0 0
      %2036 = vmatpush1.bf16.msra.mxu0 0
      %2037 = vmatprep.subr.bf16.mxu0 0
      %2038 = vmatpush1.bf16.msra.mxu0 0
      %2039 = vmatprep.subr.bf16.mxu0 0
      %2040 = vmatpush1.bf16.msra.mxu0 0
      %2041 = vmatprep.subr.bf16.mxu0 0
      %2042 = vmatpush1.bf16.msra.mxu0 0
      %2043 = vmatprep.subr.bf16.mxu0 0
      %2044 = vmatpush1.bf16.msra.mxu0 0
      %2045 = vmatprep.subr.bf16.mxu0 0
      %2046 = vmatpush1.bf16.msra.mxu0 0
      %2047 = vmatprep.subr.bf16.mxu0 0
      %2048 = vmatpush1.bf16.msra.mxu0 0
      %2049 = vmatprep.mubr.bf16.mxu0 0
      %2050 = vmatmul.mubr.bf16.gmra.mrb[0].mxu0 %v1954
      %v2051 = vpop.f32.mrb[0].mxu0
      %v2052 = vadd.f32 0.0, %v2051
      %v2053 = vpop.f32.mrb[0].mxu0
      %v2054 = vpop.f32.mrb[0].mxu0
      %v2055 = vadd.f32 0.0, %v2054
      %v2056 = vpop.f32.mrb[0].mxu0
      %2057 = vmatprep.mubr.bf16.mxu0 0
      %2058 = vmatmul.mubr.bf16.gmra.mrb[0].mxu0 %v1956
      %v2059 = vpop.f32.mrb[0].mxu0
      %v2060 = vadd.f32 0.0, %v2059
      %v2061 = vpop.f32.mrb[0].mxu0
      %v2062 = vpop.f32.mrb[0].mxu0
      %v2063 = vadd.f32 0.0, %v2062
      %v2064 = vpop.f32.mrb[0].mxu0
      %2065 = vmatprep.mubr.bf16.mxu0 0
      %2066 = vmatmul.mubr.bf16.gmra.mrb[0].mxu0 %v1958
      %v2067 = vpop.f32.mrb[0].mxu0
      %v2068 = vadd.f32 0.0, %v2067
      %v2069 = vpop.f32.mrb[0].mxu0
      %v2070 = vpop.f32.mrb[0].mxu0
      %v2071 = vadd.f32 0.0, %v2070
      %v2072 = vpop.f32.mrb[0].mxu0
      %2073 = vmatprep.mubr.bf16.mxu0 0
      %2074 = vmatmul.mubr.bf16.gmra.mrb[0].mxu0 %v1960
      %v2075 = vpop.f32.mrb[0].mxu0
      %v2076 = vadd.f32 0.0, %v2075
      %v2077 = vpop.f32.mrb[0].mxu0
      %v2078 = vpop.f32.mrb[0].mxu0
      %v2079 = vadd.f32 0.0, %v2078
      %v2080 = vpop.f32.mrb[0].mxu0
      %2081 = vmatprep.mubr.bf16.mxu0 0
      %2082 = vmatmul.mubr.bf16.gmra.mrb[0].mxu0 %v1962
      %v2083 = vpop.f32.mrb[0].mxu0
      %v2084 = vadd.f32 0.0, %v2083
      %v2085 = vpop.f32.mrb[0].mxu0
      %v2086 = vpop.f32.mrb[0].mxu0
      %v2087 = vadd.f32 0.0, %v2086
      %v2088 = vpop.f32.mrb[0].mxu0
      %2089 = vmatprep.mubr.bf16.mxu0 0
      %2090 = vmatmul.mubr.bf16.gmra.mrb[0].mxu0 %v1961
      %v2091 = vpop.f32.mrb[0].mxu0
      %v2092 = vadd.f32 0.0, %v2091
      %v2093 = vpop.f32.mrb[0].mxu0
      %v2094 = vpop.f32.mrb[0].mxu0
      %v2095 = vpop.f32.mrb[0].mxu0
      %2096 = vdwg.mxu0
      %v2097 = vadd.f32 %v1918, %v2052
      %v2098 = vadd.f32 %v1919, %v2055
      %v2099 = vadd.f32 %v1920, %v2060
      %v2100 = vadd.f32 %v1921, %v2063
      %v2101 = vadd.f32 %v1922, %v2068
      %v2102 = vadd.f32 %v1923, %v2071
      %v2103 = vadd.f32 %v1924, %v2076
      %v2104 = vadd.f32 %v1925, %v2079
      %v2105 = vadd.f32 %v1926, %v2084
      %v2106 = vadd.f32 %v1927, %v2087
      %v2107 = vadd.f32 %v1928, %v2092
      %v2108 = vmax.f32 %v2097, 0.0
      %v2109 = vmax.f32 %v2098, 0.0
      %v2110 = vmax.f32 %v2099, 0.0
      %v2111 = vmax.f32 %v2100, 0.0
      %v2112 = vmax.f32 %v2101, 0.0
      %v2113 = vmax.f32 %v2102, 0.0
      %v2114 = vmax.f32 %v2103, 0.0
      %v2115 = vmax.f32 %v2104, 0.0
      %v2116 = vmax.f32 %v2105, 0.0
      %v2117 = vmax.f32 %v2106, 0.0
      %v2118 = vmax.f32 %v2107, 0.0
      %v2119 = vpack.c.bf16 %v2109, %v2108
      %v2120 = vpack.c.bf16 %v2111, %v2110
      %v2121 = vpack.c.bf16 %v2113, %v2112
      %v2122 = vpack.c.bf16 %v2115, %v2114
      %v2123 = vpack.c.bf16 %v2117, %v2116
      %v2124 = vpack.c.bf16 %v2118, %v2118
      %v2125 = vunpack.c.l.bf16 %v794
      %v2126 = vunpack.c.l.bf16 %v795
      %v2127 = vunpack.c.l.bf16 %v796
      %v2128 = vunpack.c.l.bf16 %v797
      %v2129 = vunpack.c.l.bf16 %v798
      %v2130 = vunpack.c.l.bf16 %v799
      %v2131 = vunpack.c.l.bf16 %v800
      %v2132 = vunpack.c.l.bf16 %v801
      %v2133 = vunpack.c.l.bf16 %v802
      %v2134 = vunpack.c.l.bf16 %v803
      %v2135 = vunpack.c.l.bf16 %v804
      %v2136 = vld [vmem:[%s2] sm:$0xf]
      %v2137 = vld [vmem:[%s2 + $0x4] sm:$0xf]
      %v2138 = vld [vmem:[%s2 + $0x8] sm:$0xf]
      %v2139 = vld [vmem:[%s2 + $0xc] sm:$0xf]
      %v2144 = vunpack.c.l.b16 %v2136
      %v2145 = vunpack.c.l.b16 %v2137
      %v2146 = vunpack.c.l.b16 %v2138
      %v2147 = vunpack.c.l.b16 %v2139
      %v2148 = vpack.c.b16 %v2145, %v2144
      %v2149 = vpack.c.b16 %v2147, %v2146
      %vm2152 = vcmask 261120
      %v2154 = vsel %vm2152, %v2119, 0
      %v2157 = vsel %vm2152, %v2120, 0
      %v2160 = vsel %vm2152, %v2121, 0
      %v2163 = vsel %vm2152, %v2122, 0
      %v2166 = vsel %vm2152, %v2123, 0
      %v2169 = vsel %vm2152, %v2124, 0
      %2171 = vmatprep.subr.bf16.mxu0 0
      %2172 = vmatpush1.bf16.msra.mxu0 %v2148
      %2173 = vmatprep.subr.bf16.mxu0 0
      %2174 = vmatpush1.bf16.msra.mxu0 %v2149
      %2175 = vmatprep.subr.bf16.mxu0 0
      %2176 = vmatpush1.bf16.msra.mxu0 0
      %2177 = vmatprep.subr.bf16.mxu0 0
      %2178 = vmatpush1.bf16.msra.mxu0 0
      %2179 = vmatprep.subr.bf16.mxu0 0
      %2180 = vmatpush1.bf16.msra.mxu0 0
      %2181 = vmatprep.subr.bf16.mxu0 0
      %2182 = vmatpush1.bf16.msra.mxu0 0
      %2183 = vmatprep.subr.bf16.mxu0 0
      %2184 = vmatpush1.bf16.msra.mxu0 0
      %2185 = vmatprep.subr.bf16.mxu0 0
      %2186 = vmatpush1.bf16.msra.mxu0 0
      %2187 = vmatprep.subr.bf16.mxu0 0
      %2188 = vmatpush1.bf16.msra.mxu0 0
      %2189 = vmatprep.subr.bf16.mxu0 0
      %2190 = vmatpush1.bf16.msra.mxu0 0
      %2191 = vmatprep.subr.bf16.mxu0 0
      %2192 = vmatpush1.bf16.msra.mxu0 0
      %2193 = vmatprep.subr.bf16.mxu0 0
      %2194 = vmatpush1.bf16.msra.mxu0 0
      %2195 = vmatprep.subr.bf16.mxu0 0
      %2196 = vmatpush1.bf16.msra.mxu0 0
      %2197 = vmatprep.subr.bf16.mxu0 0
      %2198 = vmatpush1.bf16.msra.mxu0 0
      %2199 = vmatprep.subr.bf16.mxu0 0
      %2200 = vmatpush1.bf16.msra.mxu0 0
      %2201 = vmatprep.subr.bf16.mxu0 0
      %2202 = vmatpush1.bf16.msra.mxu0 0
      %2203 = vmatprep.mubr.bf16.mxu0 0
      %2204 = vmatmul.mubr.bf16.gmra.mrb[0].mxu0 %v2154
      %v2205 = vpop.f32.mrb[0].mxu0
      %v2206 = vadd.f32 0.0, %v2205
      %v2207 = vpop.f32.mrb[0].mxu0
      %v2208 = vpop.f32.mrb[0].mxu0
      %v2209 = vadd.f32 0.0, %v2208
      %v2210 = vpop.f32.mrb[0].mxu0
      %2211 = vmatprep.mubr.bf16.mxu0 0
      %2212 = vmatmul.mubr.bf16.gmra.mrb[0].mxu0 %v2157
      %v2213 = vpop.f32.mrb[0].mxu0
      %v2214 = vadd.f32 0.0, %v2213
      %v2215 = vpop.f32.mrb[0].mxu0
      %v2216 = vpop.f32.mrb[0].mxu0
      %v2217 = vadd.f32 0.0, %v2216
      %v2218 = vpop.f32.mrb[0].mxu0
      %2219 = vmatprep.mubr.bf16.mxu0 0
      %2220 = vmatmul.mubr.bf16.gmra.mrb[0].mxu0 %v2160
      %v2221 = vpop.f32.mrb[0].mxu0
      %v2222 = vadd.f32 0.0, %v2221
      %v2223 = vpop.f32.mrb[0].mxu0
      %v2224 = vpop.f32.mrb[0].mxu0
      %v2225 = vadd.f32 0.0, %v2224
      %v2226 = vpop.f32.mrb[0].mxu0
      %2227 = vmatprep.mubr.bf16.mxu0 0
      %2228 = vmatmul.mubr.bf16.gmra.mrb[0].mxu0 %v2163
      %v2229 = vpop.f32.mrb[0].mxu0
      %v2230 = vadd.f32 0.0, %v2229
      %v2231 = vpop.f32.mrb[0].mxu0
      %v2232 = vpop.f32.mrb[0].mxu0
      %v2233 = vadd.f32 0.0, %v2232
      %v2234 = vpop.f32.mrb[0].mxu0
      %2235 = vmatprep.mubr.bf16.mxu0 0
      %2236 = vmatmul.mubr.bf16.gmra.mrb[0].mxu0 %v2166
      %v2237 = vpop.f32.mrb[0].mxu0
      %v2238 = vadd.f32 0.0, %v2237
      %v2239 = vpop.f32.mrb[0].mxu0
      %v2240 = vpop.f32.mrb[0].mxu0
      %v2241 = vadd.f32 0.0, %v2240
      %v2242 = vpop.f32.mrb[0].mxu0
      %2243 = vmatprep.mubr.bf16.mxu0 0
      %2244 = vmatmul.mubr.bf16.gmra.mrb[0].mxu0 %v2169
      %v2245 = vpop.f32.mrb[0].mxu0
      %v2246 = vadd.f32 0.0, %v2245
      %v2247 = vpop.f32.mrb[0].mxu0
      %v2248 = vpop.f32.mrb[0].mxu0
      %v2249 = vpop.f32.mrb[0].mxu0
      %2250 = vdwg.mxu0
      %v2251 = vadd.f32 %v2125, %v2206
      %v2252 = vadd.f32 %v2126, %v2209
      %v2253 = vadd.f32 %v2127, %v2214
      %v2254 = vadd.f32 %v2128, %v2217
      %v2255 = vadd.f32 %v2129, %v2222
      %v2256 = vadd.f32 %v2130, %v2225
      %v2257 = vadd.f32 %v2131, %v2230
      %v2258 = vadd.f32 %v2132, %v2233
      %v2259 = vadd.f32 %v2133, %v2238
      %v2260 = vadd.f32 %v2134, %v2241
      %v2261 = vadd.f32 %v2135, %v2246
      %v2262 = vmax.f32 %v2251, 0.0
      %v2263 = vmax.f32 %v2252, 0.0
      %v2264 = vmax.f32 %v2253, 0.0
      %v2265 = vmax.f32 %v2254, 0.0
      %v2266 = vmax.f32 %v2255, 0.0
      %v2267 = vmax.f32 %v2256, 0.0
      %v2268 = vmax.f32 %v2257, 0.0
      %v2269 = vmax.f32 %v2258, 0.0
      %v2270 = vmax.f32 %v2259, 0.0
      %v2271 = vmax.f32 %v2260, 0.0
      %v2272 = vmax.f32 %v2261, 0.0
      %v2273 = vld [vmem:[%s3] sm:$0xff]
      %v2274 = vld [vmem:[%s3 + $0x8] sm:$0xff]
      %v2275 = vld [vmem:[%s3 + $0x10] sm:$0xff]
      %v2276 = vld [vmem:[%s3 + $0x18] sm:$0xff]
      %v2277 = vld [vmem:[%s3 + $0x20] sm:$0xff]
      %v2278 = vld [vmem:[%s3 + $0x28] sm:$0xff]
      %v2279 = vld [vmem:[%s3 + $0x30] sm:$0xff]
      %v2280 = vld [vmem:[%s3 + $0x38] sm:$0xff]
      %v2281 = vld [vmem:[%s3 + $0x40] sm:$0xff]
      %v2282 = vld [vmem:[%s3 + $0x48] sm:$0xff]
      %v2283 = vld [vmem:[%s3 + $0x50] sm:$0xff]
      %2285 = vset.pattern.permute.xlu0 0
      %2286 = vperm.xlu0 %2285, %v2273
      %v2287 = vpop.permute.xlu0 %2286
      %2290 = vset.pattern.permute.xlu0 0
      %2291 = vperm.xlu0 %2290, %v2274
      %v2292 = vpop.permute.xlu0 %2291
      %2295 = vset.pattern.permute.xlu0 0
      %2296 = vperm.xlu0 %2295, %v2275
      %v2297 = vpop.permute.xlu0 %2296
      %2300 = vset.pattern.permute.xlu0 0
      %2301 = vperm.xlu0 %2300, %v2276
      %v2302 = vpop.permute.xlu0 %2301
      %2305 = vset.pattern.permute.xlu0 0
      %2306 = vperm.xlu0 %2305, %v2277
      %v2307 = vpop.permute.xlu0 %2306
      %2310 = vset.pattern.permute.xlu0 0
      %2311 = vperm.xlu0 %2310, %v2278
      %v2312 = vpop.permute.xlu0 %2311
      %2315 = vset.pattern.permute.xlu0 0
      %2316 = vperm.xlu0 %2315, %v2279
      %v2317 = vpop.permute.xlu0 %2316
      %2320 = vset.pattern.permute.xlu0 0
      %2321 = vperm.xlu0 %2320, %v2280
      %v2322 = vpop.permute.xlu0 %2321
      %2325 = vset.pattern.permute.xlu0 0
      %2326 = vperm.xlu0 %2325, %v2281
      %v2327 = vpop.permute.xlu0 %2326
      %2330 = vset.pattern.permute.xlu0 0
      %2331 = vperm.xlu0 %2330, %v2282
      %v2332 = vpop.permute.xlu0 %2331
      %2335 = vset.pattern.permute.xlu0 0
      %2336 = vperm.xlu0 %2335, %v2283
      %v2337 = vpop.permute.xlu0 %2336
      %v2339 = vmul.f32 %v2262, %v2287
      %v2340 = vmul.f32 %v2263, %v2292
      %v2341 = vmul.f32 %v2264, %v2297
      %v2342 = vmul.f32 %v2265, %v2302
      %v2343 = vmul.f32 %v2266, %v2307
      %v2344 = vmul.f32 %v2267, %v2312
      %v2345 = vmul.f32 %v2268, %v2317
      %v2346 = vmul.f32 %v2269, %v2322
      %v2347 = vmul.f32 %v2270, %v2327
      %v2348 = vmul.f32 %v2271, %v2332
      %v2349 = vmul.f32 %v2272, %v2337
      %2350 = vst [vmem:[%s197] sm:$0xf] 0
      %2351 = vst [vmem:[%s197 + $0x4] sm:$0xf] 0
      %v2352 = vpack.c.bf16 %v2340, %v2339
      %v2353 = vpack.c.bf16 %v2342, %v2341
      %v2354 = vpack.c.bf16 %v2344, %v2343
      %v2355 = vpack.c.bf16 %v2346, %v2345
      %v2356 = vpack.c.bf16 %v2348, %v2347
      %v2357 = vpack.c.bf16 %v2349, %v2349
      %v2364 = vunpack.c.l.b16 %v2352
      %v2365 = vunpack.c.h.b16 %v2352
      %v2366 = vunpack.c.l.b16 %v2353
      %v2367 = vunpack.c.h.b16 %v2353
      %v2368 = vunpack.c.l.b16 %v2354
      %v2369 = vunpack.c.h.b16 %v2354
      %v2370 = vunpack.c.l.b16 %v2355
      %v2371 = vunpack.c.h.b16 %v2355
      %v2372 = vunpack.c.l.b16 %v2356
      %v2373 = vunpack.c.h.b16 %v2356
      %v2374 = vunpack.c.l.b16 %v2357
      %v2375 = vpack.c.b16 %v2364, %v2364
      %v2376 = vpack.c.b16 %v2365, %v2365
      %v2377 = vpack.c.b16 %v2366, %v2366
      %v2378 = vpack.c.b16 %v2367, %v2367
      %v2379 = vpack.c.b16 %v2368, %v2368
      %v2380 = vpack.c.b16 %v2369, %v2369
      %v2381 = vpack.c.b16 %v2370, %v2370
      %v2382 = vpack.c.b16 %v2371, %v2371
      %v2383 = vpack.c.b16 %v2372, %v2372
      %v2384 = vpack.c.b16 %v2373, %v2373
      %v2385 = vpack.c.b16 %v2374, %v2374
      %2397 = vst [vmem:[%s197 + $0x8] sm:$0xf] %v2375
      %2398 = vst [vmem:[%s197 + $0xc] sm:$0xf] %v2376
      %2399 = vst [vmem:[%s197 + $0x10] sm:$0xf] %v2377
      %2400 = vst [vmem:[%s197 + $0x14] sm:$0xf] %v2378
      %2401 = vst [vmem:[%s197 + $0x18] sm:$0xf] %v2379
      %2402 = vst [vmem:[%s197 + $0x1c] sm:$0xf] %v2380
      %2403 = vst [vmem:[%s197 + $0x20] sm:$0xf] %v2381
      %2404 = vst [vmem:[%s197 + $0x24] sm:$0xf] %v2382
      %2405 = vst [vmem:[%s197 + $0x28] sm:$0xf] %v2383
      %2406 = vst [vmem:[%s197 + $0x2c] sm:$0xf] %v2384
      %2407 = vst [vmem:[%s197 + $0x30] sm:$0xf] %v2385
      %2408 = vst [vmem:[%s197 + $0x34] sm:$0xf] 0
      %2409 = vst [vmem:[%s197 + $0x38] sm:$0xf] 0
      %p2410 = scmp.lt.s32.totalorder %s15, 3
      %s2411 = scalar_select %p2410, %s15, 3
      %s2412 = smul.addr %s2411, 15
      %s2413 = smul.addr %s2412, 4
      %s2414 = scalar_lea.vmem %s4, %s2413
      // Predicated region
      $region37: #{encoder_forward.9} parent=35 // pred_check
        %p2415 = pneg %p122
      $region38: #{encoder_forward.9} parent=35 // pred_check_branch
        %2417 = sbr.rel (%p2415) target = $region40
      $region39: #{encoder_forward.9} parent=35 // pred_region
        _
      $region40: #{encoder_forward.9} parent=35 // pred_fallthru
        _
    $region36: #{encoder_forward.9} parent=5 // pred_fallthru
      _
    %p2418 = scmp.le.s32.totalorder 2, %s10
    // Predicated region
    $region41: #{encoder_forward.9} parent=5 // pred_check
      %p2419 = pneg %p2418
    $region42: #{encoder_forward.9} parent=5 // pred_check_branch
      %2421 = sbr.rel (%p2419) target = $region44
    $region43: #{encoder_forward.9} parent=5 // pred_region
      %s2422 = ssub.s32 %s10, 2
      // Predicated region
      $region45: #{encoder_forward.9} parent=43 // pred_check
        %p2423 = pneg %p128
      $region46: #{encoder_forward.9} parent=43 // pred_check_branch
        %2425 = sbr.rel (%p2423) target = $region48
      $region47: #{encoder_forward.9} parent=43 // pred_region
        %p2426 = scmp.lt.s32.totalorder %s16, 3
        %s2427 = scalar_select %p2426, %s16, 3
        %s2428 = smul.addr %s2427, 15
        %s2429 = smul.addr %s2428, 4
        %s2430 = scalar_lea.vmem %s4, %s2429
      $region48: #{encoder_forward.9} parent=43 // pred_fallthru
        _
    $region44: #{encoder_forward.9} parent=5 // pred_fallthru
      _
  $region6: #{encoder_forward.9} parent=0 // loop_footer
    %s14 = sadd.s32 1, %s10
  $region7: #{encoder_forward.9} parent=0 // loop_footer_branch
    %9 = sbr.rel target = $region3
  $region8: #{encoder_forward.9} parent=0 // loop_exit
    _

</llo_original>
